<compile_context>
chip_gen: v6e
topology: v6e:2x2x1
jax: 0.10.0
libtpu: 0.0.40
codegen_flags: <defaults>
</compile_context>

<pallas_src>
import jax
import jax.numpy as jnp
from jax.experimental import pallas as pl
from jax.experimental.pallas import tpu as pltpu

# --- hyper-parameters from the PyTorch source ---
N_EMBD = 64
N_HEAD = 8
HEAD_SIZE = N_EMBD // N_HEAD          # 8
N_LAYER = 8
BLOCK_SIZE = 500
FF_HIDDEN = 4 * N_EMBD                # 256
VOCAB_SIZE = 102                      # TODO(synk): vocab_size undefined in excerpt; HeartGPT uses 101/102
V_PAD = 128                           # vocab padded to a lane-dense 128
LN_EPS = 1e-5
MASK_VALUE = -1e30                    # large finite negative (safer than -inf)
Q_TILE = 128                          # flash-style query tile


def _round_up(n, m):
    return ((n + m - 1) // m) * m


def _layer_norm(x, w, b):
    mu = jnp.mean(x, axis=-1, keepdims=True)
    xc = x - mu
    var = jnp.mean(xc * xc, axis=-1, keepdims=True)
    return xc * jax.lax.rsqrt(var + LN_EPS) * w + b


def _heartgpt_kernel(x_ref, mask_ref,
                     ln1w_ref, ln1b_ref, wqkvo_ref, bproj_ref,
                     ln2w_ref, ln2b_ref, wff1_ref, bff1_ref, wff2_ref, bff2_ref,
                     lnfw_ref, lnfb_ref, wlm_ref, blm_ref,
                     o_ref, x_scr):
    """Grid step (b, l): apply transformer block l to batch row b (activation in x_scr)."""
    l = pl.program_id(1)
    n_layers = pl.num_programs(1)
    T, C = x_scr.shape
    H, hs = N_HEAD, HEAD_SIZE
    tq = min(Q_TILE, T)
    n_qt = T // tq

    @pl.when(l == 0)
    def _():
        x_scr[...] = x_ref[0]                     # load this batch row's embeddings

    # ---------- attention sublayer: x <- x + Proj(MHA(LN1(x))) ----------
    x = x_scr[...]
    h1 = _layer_norm(x, ln1w_ref[l], ln1b_ref[l])                      # (T, C) f32

    # one fused projection per layer: columns = [Q_all(C) | K_all(C) | VO_0(C)..VO_{H-1}(C)]
    # (score scale n_embd**-0.5 already folded into the Q columns at pack time)
    proj = jnp.dot(h1.astype(jnp.bfloat16), wqkvo_ref[l],
                   preferred_element_type=jnp.float32)                 # (T, 2C + H*C)
    proj_bf = proj.astype(jnp.bfloat16)                                # single cast pass
    q_all = proj_bf[:, :C]                                             # (T, C) bf16
    kT_all = proj[:, C:2 * C].T.astype(jnp.bfloat16)                   # (C, T) bf16 — 1 transpose/layer
    vo_all = proj_bf[:, 2 * C:]                                        # (T, H*C) bf16
    bproj = bproj_ref[l]                                               # (1, C)

    for qi in range(n_qt):                         # static q-tiles, causal block skip
        q0 = qi * tq
        k_end = q0 + tq                            # keys > q-tile end are fully masked
        bias = mask_ref[q0:q0 + tq, :k_end]        # (tq, k_end) additive causal bias
        att = jnp.zeros((tq, C), jnp.float32)      # local accumulator (not scratch RMW)
        for h in range(H):                         # static unroll, static slices
            q_h = q_all[q0:q0 + tq, h * hs:(h + 1) * hs]               # (tq, hs) bf16
            s = jnp.dot(q_h, kT_all[h * hs:(h + 1) * hs, :k_end],
                        preferred_element_type=jnp.float32) + bias     # (tq, k_end)
            m = jnp.max(s, axis=-1, keepdims=True)
            p = jnp.exp(s - m)                                         # unnormalized, in [0, 1]
            denom = jnp.sum(p, axis=-1, keepdims=True)
            # TODO(synk): attention-weight dropout (eval mode => identity).
            pv = jnp.dot(p.astype(jnp.bfloat16), vo_all[:k_end, h * C:(h + 1) * C],
                         preferred_element_type=jnp.float32)           # (tq, C)
            att = att + pv * pl.reciprocal(denom, approx=True)         # deferred softmax norm
        x_scr[q0:q0 + tq, :] = x[q0:q0 + tq, :] + bproj + att          # one store per tile

    # ---------- feed-forward sublayer: x <- x + FFN(LN2(x)) ----------
    x = x_scr[...]
    h2 = _layer_norm(x, ln2w_ref[l], ln2b_ref[l])
    f = jnp.dot(h2.astype(jnp.bfloat16), wff1_ref[l],
                preferred_element_type=jnp.float32) + bff1_ref[l]      # (T, 4C)
    f = jnp.maximum(f, 0.0)
    x_scr[...] = x + jnp.dot(f.astype(jnp.bfloat16), wff2_ref[l],
                             preferred_element_type=jnp.float32) + bff2_ref[l]

    # ---------- after the last layer: final LayerNorm + lm_head ----------
    @pl.when(l == n_layers - 1)
    def _():
        xf = _layer_norm(x_scr[...], lnfw_ref[...], lnfb_ref[...])
        logits = jnp.dot(xf.astype(jnp.bfloat16), wlm_ref[...],
                         preferred_element_type=jnp.float32) + blm_ref[...]
        o_ref[0] = logits.astype(o_ref.dtype)


def _pack_params(p):
    """Stack per-layer weights, fuse Q/K/VO, fold the score scale, pre-transpose, cast bf16."""
    L, C, H, hs = N_LAYER, N_EMBD, N_HEAD, HEAD_SIZE
    scale = C ** -0.5                                                  # 1/8 — exact in bf16
    wq_all_T = jnp.swapaxes(p['wq'].reshape(L, C, C), 1, 2) * scale
    wk_all_T = jnp.swapaxes(p['wk'].reshape(L, C, C), 1, 2)
    # Wvo[l,h] = Wp[l][:, h*hs:(h+1)*hs] @ Wv[l,h]   (C_out, C_in)
    wvo = jnp.einsum('lcht,lhtd->lhcd', p['wp'].reshape(L, C, H, hs), p['wv'])
    wvo_T = jnp.transpose(wvo, (0, 3, 1, 2)).reshape(L, C, H * C)      # (L, C_in, H*C_out)
    w_qkvo_T = jnp.concatenate([wq_all_T, wk_all_T, wvo_T], axis=2).astype(jnp.bfloat16)
    w_lm_T = jnp.zeros((C, V_PAD), jnp.float32).at[:, :VOCAB_SIZE].set(p['w_lm'].T)
    b_lm = jnp.zeros((1, V_PAD), jnp.float32).at[:, :VOCAB_SIZE].set(p['b_lm'])
    return dict(
        ln1_w=p['ln1_w'].reshape(L, 1, C), ln1_b=p['ln1_b'].reshape(L, 1, C),
        w_qkvo_T=w_qkvo_T,
        b_proj=p['bp'].reshape(L, 1, C),
        ln2_w=p['ln2_w'].reshape(L, 1, C), ln2_b=p['ln2_b'].reshape(L, 1, C),
        w_ff1_T=jnp.swapaxes(p['w_ff1'], 1, 2).astype(jnp.bfloat16),   # (L, C, 4C)
        b_ff1=p['b_ff1'].reshape(L, 1, FF_HIDDEN),
        w_ff2_T=jnp.swapaxes(p['w_ff2'], 1, 2).astype(jnp.bfloat16),   # (L, 4C, C)
        b_ff2=p['b_ff2'].reshape(L, 1, C),
        lnf_w=p['lnf_w'].reshape(1, C), lnf_b=p['lnf_b'].reshape(1, C),
        w_lm_T=w_lm_T.astype(jnp.bfloat16),                            # (C, 128)
        b_lm=b_lm,
    )


def heart_gpt_forward(idx, params):
    """idx: (B, T) int32 token ids.  Returns logits (B, T, VOCAB_SIZE) (targets path omitted)."""
    B, T = idx.shape
    assert T <= BLOCK_SIZE
    C, L = N_EMBD, N_LAYER
    Tp = _round_up(T, Q_TILE)                                          # lane/tile-aligned seq length

    # token / position embedding gathers stay in plain JAX (irregular gather;
    # a Pallas version would need a manual DMA-gather).
    x = params['tok_emb'][idx] + params['pos_emb'][:T]                 # (B, T, C) f32
    x = jnp.pad(x, ((0, 0), (0, Tp - T), (0, 0)))                      # (B, Tp, C)

    # precomputed additive causal mask (padded keys sit at the end -> causal already masks them)
    row = jnp.arange(Tp, dtype=jnp.int32)[:, None]
    col = jnp.arange(Tp, dtype=jnp.int32)[None, :]
    mask = jnp.where(col <= row, jnp.float32(0.0), jnp.float32(MASK_VALUE))  # (Tp, Tp)

    pk = _pack_params(params)
    qkvo_cols = 2 * C + N_HEAD * C

    full3 = lambda b, l: (0, 0, 0)
    full2 = lambda b, l: (0, 0)

    out = pl.pallas_call(
        _heartgpt_kernel,
        out_shape=jax.ShapeDtypeStruct((B, Tp, V_PAD), jnp.float32),
        grid_spec=pltpu.PrefetchScalarGridSpec(
            num_scalar_prefetch=0,
            grid=(B, L),
            in_specs=[
                pl.BlockSpec((1, Tp, C), lambda b, l: (b, 0, 0)),      # embeddings
                pl.BlockSpec((Tp, Tp), full2),                         # causal additive mask (resident)
                pl.BlockSpec((L, 1, C), full3),                        # ln1 weight (all layers)
                pl.BlockSpec((L, 1, C), full3),                        # ln1 bias
                pl.BlockSpec((L, C, qkvo_cols), full3),                # fused Q|K|VO weights (bf16)
                pl.BlockSpec((L, 1, C), full3),                        # attn out-proj bias
                pl.BlockSpec((L, 1, C), full3),                        # ln2 weight
                pl.BlockSpec((L, 1, C), full3),                        # ln2 bias
                pl.BlockSpec((L, C, FF_HIDDEN), full3),                # ffn W1^T (bf16)
                pl.BlockSpec((L, 1, FF_HIDDEN), full3),                # ffn b1
                pl.BlockSpec((L, FF_HIDDEN, C), full3),                # ffn W2^T (bf16)
                pl.BlockSpec((L, 1, C), full3),                        # ffn b2
                pl.BlockSpec((1, C), full2),                           # ln_f weight
                pl.BlockSpec((1, C), full2),                           # ln_f bias
                pl.BlockSpec((C, V_PAD), full2),                       # lm_head W^T (bf16, padded)
                pl.BlockSpec((1, V_PAD), full2),                       # lm_head bias (padded)
            ],
            out_specs=pl.BlockSpec((1, Tp, V_PAD), lambda b, l: (b, 0, 0)),
            scratch_shapes=[pltpu.VMEM((Tp, C), jnp.float32)],         # resident activation
        ),
        compiler_params=pltpu.CompilerParams(
            dimension_semantics=("parallel", "arbitrary"),
            vmem_limit_bytes=32 * 1024 * 1024,
        ),
    )(x, mask, pk['ln1_w'], pk['ln1_b'], pk['w_qkvo_T'], pk['b_proj'],
      pk['ln2_w'], pk['ln2_b'], pk['w_ff1_T'], pk['b_ff1'],
      pk['w_ff2_T'], pk['b_ff2'], pk['lnf_w'], pk['lnf_b'],
      pk['w_lm_T'], pk['b_lm'])
    return out[:, :T, :VOCAB_SIZE]


def _reference(idx, params):
    """Pure-JAX f32 reference mirroring the PyTorch forward (eval mode)."""
    B, T = idx.shape
    C = N_EMBD
    x = params['tok_emb'][idx] + params['pos_emb'][:T]

    def ln(x, w, b):
        mu = x.mean(-1, keepdims=True)
        var = ((x - mu) ** 2).mean(-1, keepdims=True)
        return (x - mu) / jnp.sqrt(var + LN_EPS) * w + b

    causal = jnp.tril(jnp.ones((T, T), dtype=bool))
    for l in range(N_LAYER):
        h1 = ln(x, params['ln1_w'][l], params['ln1_b'][l])
        heads = []
        for h in range(N_HEAD):
            q = h1 @ params['wq'][l, h].T
            k = h1 @ params['wk'][l, h].T
            v = h1 @ params['wv'][l, h].T
            wei = (q @ jnp.swapaxes(k, -2, -1)) * (C ** -0.5)
            wei = jnp.where(causal, wei, -jnp.inf)
            wei = jax.nn.softmax(wei, axis=-1)
            heads.append(wei @ v)
        cat = jnp.concatenate(heads, axis=-1)
        x = x + cat @ params['wp'][l].T + params['bp'][l]
        h2 = ln(x, params['ln2_w'][l], params['ln2_b'][l])
        f = jax.nn.relu(h2 @ params['w_ff1'][l].T + params['b_ff1'][l])
        x = x + f @ params['w_ff2'][l].T + params['b_ff2'][l]
    xf = ln(x, params['lnf_w'], params['lnf_b'])
    return xf @ params['w_lm'].T + params['b_lm']


if __name__ == "__main__":
    key = jax.random.PRNGKey(0)
    L, C, H, hs, V, FH = N_LAYER, N_EMBD, N_HEAD, HEAD_SIZE, VOCAB_SIZE, FF_HIDDEN
    B, T = 2, 8                                   # T <= block_size = 500

    keys = jax.random.split(key, 20)

    def uni(k, shape, fan_in):                    # nn.Linear-style init
        bound = 1.0 / (fan_in ** 0.5)
        return jax.random.uniform(k, shape, jnp.float32, -bound, bound)

    params = dict(
        tok_emb=jax.random.normal(keys[0], (V, C), jnp.float32),
        pos_emb=jax.random.normal(keys[1], (BLOCK_SIZE, C), jnp.float32),
        wq=uni(keys[2], (L, H, hs, C), C),
        wk=uni(keys[3], (L, H, hs, C), C),
        wv=uni(keys[4], (L, H, hs, C), C),
        wp=uni(keys[5], (L, C, C), C),
        bp=uni(keys[6], (L, C), C),
        ln1_w=1.0 + 0.1 * jax.random.normal(keys[7], (L, C), jnp.float32),
        ln1_b=0.1 * jax.random.normal(keys[8], (L, C), jnp.float32),
        ln2_w=1.0 + 0.1 * jax.random.normal(keys[9], (L, C), jnp.float32),
        ln2_b=0.1 * jax.random.normal(keys[10], (L, C), jnp.float32),
        w_ff1=uni(keys[11], (L, FH, C), C),
        b_ff1=uni(keys[12], (L, FH), C),
        w_ff2=uni(keys[13], (L, C, FH), FH),
        b_ff2=uni(keys[14], (L, C), FH),
        lnf_w=1.0 + 0.1 * jax.random.normal(keys[15], (C,), jnp.float32),
        lnf_b=0.1 * jax.random.normal(keys[16], (C,), jnp.float32),
        w_lm=uni(keys[17], (V, C), C),
        b_lm=uni(keys[18], (V,), C),
    )
    idx = jax.random.randint(keys[19], (B, T), 0, V, dtype=jnp.int32)

    logits = heart_gpt_forward(idx, params)
    logits = jax.block_until_ready(logits)

    ref = _reference(idx, params)
    assert logits.shape == (B, T, V)
    max_err = float(jnp.max(jnp.abs(logits - ref)))
    mean_err = float(jnp.mean(jnp.abs(logits - ref)))
    # bf16 MXU operands across 8 residual layers -> relaxed (but still tight) tolerance.
    assert max_err < 1e-1 and mean_err < 2e-2, (max_err, mean_err)

    print("KERNEL_OK")
</pallas_src>

<mosaic_0001>
module attributes {stable_mosaic.version = 11 : i64} {
  func.func @_heartgpt_kernel(%arg0: i32, %arg1: i32, %arg2: memref<1x128x64xf32, #tpu.memory_space<vmem>>, %arg3: memref<128x128xf32, #tpu.memory_space<vmem>>, %arg4: memref<8x1x64xf32, #tpu.memory_space<vmem>>, %arg5: memref<8x1x64xf32, #tpu.memory_space<vmem>>, %arg6: memref<8x64x640xbf16, #tpu.memory_space<vmem>>, %arg7: memref<8x1x64xf32, #tpu.memory_space<vmem>>, %arg8: memref<8x1x64xf32, #tpu.memory_space<vmem>>, %arg9: memref<8x1x64xf32, #tpu.memory_space<vmem>>, %arg10: memref<8x64x256xbf16, #tpu.memory_space<vmem>>, %arg11: memref<8x1x256xf32, #tpu.memory_space<vmem>>, %arg12: memref<8x256x64xbf16, #tpu.memory_space<vmem>>, %arg13: memref<8x1x64xf32, #tpu.memory_space<vmem>>, %arg14: memref<1x64xf32, #tpu.memory_space<vmem>>, %arg15: memref<1x64xf32, #tpu.memory_space<vmem>>, %arg16: memref<64x128xbf16, #tpu.memory_space<vmem>>, %arg17: memref<1x128xf32, #tpu.memory_space<vmem>>, %arg18: memref<1x128x128xf32, #tpu.memory_space<vmem>>, %arg19: memref<128x64xf32, #tpu.memory_space<vmem>>) attributes {dimension_semantics = [#tpu.dimension_semantics<parallel>, #tpu.dimension_semantics<arbitrary>], iteration_bounds = array<i64: 2, 8>, scalar_prefetch = 0 : i64, scratch_operands = 1 : i64, tpu.core_type = #tpu.core_type<tc>, window_params = [{transform_indices = @transform_0, window_bounds = array<i64: 1, 128, 64>}, {pipeline_mode = #tpu.pipeline_mode<synchronous>, transform_indices = @transform_1, window_bounds = array<i64: 128, 128>}, {pipeline_mode = #tpu.pipeline_mode<synchronous>, transform_indices = @transform_2, window_bounds = array<i64: 8, 1, 64>}, {pipeline_mode = #tpu.pipeline_mode<synchronous>, transform_indices = @transform_3, window_bounds = array<i64: 8, 1, 64>}, {pipeline_mode = #tpu.pipeline_mode<synchronous>, transform_indices = @transform_4, window_bounds = array<i64: 8, 64, 640>}, {pipeline_mode = #tpu.pipeline_mode<synchronous>, transform_indices = @transform_5, window_bounds = array<i64: 8, 1, 64>}, {pipeline_mode = #tpu.pipeline_mode<synchronous>, transform_indices = @transform_6, window_bounds = array<i64: 8, 1, 64>}, {pipeline_mode = #tpu.pipeline_mode<synchronous>, transform_indices = @transform_7, window_bounds = array<i64: 8, 1, 64>}, {pipeline_mode = #tpu.pipeline_mode<synchronous>, transform_indices = @transform_8, window_bounds = array<i64: 8, 64, 256>}, {pipeline_mode = #tpu.pipeline_mode<synchronous>, transform_indices = @transform_9, window_bounds = array<i64: 8, 1, 256>}, {pipeline_mode = #tpu.pipeline_mode<synchronous>, transform_indices = @transform_10, window_bounds = array<i64: 8, 256, 64>}, {pipeline_mode = #tpu.pipeline_mode<synchronous>, transform_indices = @transform_11, window_bounds = array<i64: 8, 1, 64>}, {pipeline_mode = #tpu.pipeline_mode<synchronous>, transform_indices = @transform_12, window_bounds = array<i64: 1, 64>}, {pipeline_mode = #tpu.pipeline_mode<synchronous>, transform_indices = @transform_13, window_bounds = array<i64: 1, 64>}, {pipeline_mode = #tpu.pipeline_mode<synchronous>, transform_indices = @transform_14, window_bounds = array<i64: 64, 128>}, {pipeline_mode = #tpu.pipeline_mode<synchronous>, transform_indices = @transform_15, window_bounds = array<i64: 1, 128>}, {transform_indices = @transform_16, window_bounds = array<i64: 1, 128, 128>}]} {
    %c0_i32 = arith.constant 0 : i32
    %0 = arith.cmpi eq, %arg1, %c0_i32 : i32
    %1 = arith.extui %0 : i1 to i32
    %c0_i32_0 = arith.constant 0 : i32
    %2 = arith.cmpi ne, %1, %c0_i32_0 : i32
    scf.if %2 {
      %c0_77 = arith.constant 0 : index
      %c0_78 = arith.constant 0 : index
      %c0_79 = arith.constant 0 : index
      %248 = vector.load %arg2[%c0_77, %c0_78, %c0_79] : memref<1x128x64xf32, #tpu.memory_space<vmem>>, vector<1x128x64xf32>
      %249 = vector.shape_cast %248 : vector<1x128x64xf32> to vector<128x64xf32>
      %c0_80 = arith.constant 0 : index
      %c0_81 = arith.constant 0 : index
      %250 = vector.load %arg19[%c0_80, %c0_81] : memref<128x64xf32, #tpu.memory_space<vmem>>, vector<128x64xf32>
      tpu.vector_store %arg19[%c0_80, %c0_81], %249 {strides = array<i32>} : memref<128x64xf32, #tpu.memory_space<vmem>>, vector<128x64xf32>,
    } else {
    }
    %c0 = arith.constant 0 : index
    %c0_1 = arith.constant 0 : index
    %3 = vector.load %arg19[%c0, %c0_1] : memref<128x64xf32, #tpu.memory_space<vmem>>, vector<128x64xf32>
    %4 = arith.index_cast %arg1 : i32 to index
    %c0_2 = arith.constant 0 : index
    %c0_3 = arith.constant 0 : index
    %5 = vector.load %arg4[%4, %c0_2, %c0_3] : memref<8x1x64xf32, #tpu.memory_space<vmem>>, vector<1x1x64xf32>
    %6 = vector.shape_cast %5 : vector<1x1x64xf32> to vector<1x64xf32>
    %7 = arith.index_cast %arg1 : i32 to index
    %c0_4 = arith.constant 0 : index
    %c0_5 = arith.constant 0 : index
    %8 = vector.load %arg5[%7, %c0_4, %c0_5] : memref<8x1x64xf32, #tpu.memory_space<vmem>>, vector<1x1x64xf32>
    %9 = vector.shape_cast %8 : vector<1x1x64xf32> to vector<1x64xf32>
    %cst = arith.constant dense<0.000000e+00> : vector<128xf32>
    %10 = vector.multi_reduction <add>, %3, %cst [1] : vector<128x64xf32> to vector<128xf32>
    %11 = vector.shape_cast %10 : vector<128xf32> to vector<128x1xf32>
    %cst_6 = arith.constant 6.400000e+01 : f32
    %12 = vector.broadcast %cst_6 : f32 to vector<128x1xf32>
    %13 = arith.divf %11, %12 : vector<128x1xf32>
    %14 = vector.broadcast %13 : vector<128x1xf32> to vector<128x64xf32>
    %15 = arith.subf %3, %14 : vector<128x64xf32>
    %16 = arith.mulf %15, %15 : vector<128x64xf32>
    %cst_7 = arith.constant dense<0.000000e+00> : vector<128xf32>
    %17 = vector.multi_reduction <add>, %16, %cst_7 [1] : vector<128x64xf32> to vector<128xf32>
    %18 = vector.shape_cast %17 : vector<128xf32> to vector<128x1xf32>
    %cst_8 = arith.constant 6.400000e+01 : f32
    %19 = vector.broadcast %cst_8 : f32 to vector<128x1xf32>
    %20 = arith.divf %18, %19 : vector<128x1xf32>
    %cst_9 = arith.constant 9.99999974E-6 : f32
    %21 = vector.broadcast %cst_9 : f32 to vector<128x1xf32>
    %22 = arith.addf %20, %21 : vector<128x1xf32>
    %23 = math.rsqrt %22 : vector<128x1xf32>
    %24 = vector.broadcast %23 : vector<128x1xf32> to vector<128x64xf32>
    %25 = arith.mulf %15, %24 : vector<128x64xf32>
    %26 = vector.broadcast %6 : vector<1x64xf32> to vector<128x64xf32>
    %27 = arith.mulf %25, %26 : vector<128x64xf32>
    %28 = vector.broadcast %9 : vector<1x64xf32> to vector<128x64xf32>
    %29 = arith.addf %27, %28 : vector<128x64xf32>
    %30 = arith.truncf %29 : vector<128x64xf32> to vector<128x64xbf16>
    %31 = arith.index_cast %arg1 : i32 to index
    %c0_10 = arith.constant 0 : index
    %c0_11 = arith.constant 0 : index
    %32 = vector.load %arg6[%31, %c0_10, %c0_11] : memref<8x64x640xbf16, #tpu.memory_space<vmem>>, vector<1x64x640xbf16>
    %33 = vector.shape_cast %32 : vector<1x64x640xbf16> to vector<64x640xbf16>
    %cst_12 = arith.constant dense<0.000000e+00> : vector<128x640xf32>
    %34 = tpu.matmul %30, %33, %cst_12 {dimension_numbers = #tpu.dot_dimension_numbers<[1], [0], [0], [1], [0, 0, 1, 1], [], []>} : vector<128x64xbf16>, vector<64x640xbf16>, vector<128x640xf32> -> vector<128x640xf32>
    %35 = arith.truncf %34 : vector<128x640xf32> to vector<128x640xbf16>
    %36 = vector.extract_strided_slice %35 {offsets = [0, 0], sizes = [128, 64], strides = [1, 1]} : vector<128x640xbf16> to vector<128x64xbf16>
    %37 = vector.extract_strided_slice %34 {offsets = [0, 64], sizes = [128, 64], strides = [1, 1]} : vector<128x640xf32> to vector<128x64xf32>
    %38 = tpu.transpose %37, [1, 0] : vector<128x64xf32> -> vector<64x128xf32>
    %39 = arith.truncf %38 : vector<64x128xf32> to vector<64x128xbf16>
    %40 = vector.extract_strided_slice %35 {offsets = [0, 128], sizes = [128, 512], strides = [1, 1]} : vector<128x640xbf16> to vector<128x512xbf16>
    %41 = arith.index_cast %arg1 : i32 to index
    %c0_13 = arith.constant 0 : index
    %c0_14 = arith.constant 0 : index
    %42 = vector.load %arg7[%41, %c0_13, %c0_14] : memref<8x1x64xf32, #tpu.memory_space<vmem>>, vector<1x1x64xf32>
    %43 = vector.shape_cast %42 : vector<1x1x64xf32> to vector<1x64xf32>
    %c0_15 = arith.constant 0 : index
    %c0_16 = arith.constant 0 : index
    %44 = vector.load %arg3[%c0_15, %c0_16] : memref<128x128xf32, #tpu.memory_space<vmem>>, vector<128x128xf32>
    %cst_17 = arith.constant 0.000000e+00 : f32
    %45 = vector.broadcast %cst_17 : f32 to vector<128x64xf32>
    %46 = vector.extract_strided_slice %36 {offsets = [0, 0], sizes = [128, 8], strides = [1, 1]} : vector<128x64xbf16> to vector<128x8xbf16>
    %47 = vector.extract_strided_slice %39 {offsets = [0, 0], sizes = [8, 128], strides = [1, 1]} : vector<64x128xbf16> to vector<8x128xbf16>
    %cst_18 = arith.constant dense<0.000000e+00> : vector<128x128xf32>
    %48 = tpu.matmul %46, %47, %cst_18 {dimension_numbers = #tpu.dot_dimension_numbers<[1], [0], [0], [1], [0, 0, 1, 1], [], []>} : vector<128x8xbf16>, vector<8x128xbf16>, vector<128x128xf32> -> vector<128x128xf32>
    %49 = arith.addf %48, %44 : vector<128x128xf32>
    %cst_19 = arith.constant dense<0xFF800000> : vector<128xf32>
    %50 = vector.multi_reduction <maximumf>, %49, %cst_19 [1] : vector<128x128xf32> to vector<128xf32>
    %51 = vector.shape_cast %50 : vector<128xf32> to vector<128x1xf32>
    %52 = vector.broadcast %51 : vector<128x1xf32> to vector<128x128xf32>
    %53 = arith.subf %49, %52 : vector<128x128xf32>
    %54 = math.exp %53 : vector<128x128xf32>
    %cst_20 = arith.constant dense<0.000000e+00> : vector<128xf32>
    %55 = vector.multi_reduction <add>, %54, %cst_20 [1] : vector<128x128xf32> to vector<128xf32>
    %56 = vector.shape_cast %55 : vector<128xf32> to vector<128x1xf32>
    %57 = arith.truncf %54 : vector<128x128xf32> to vector<128x128xbf16>
    %58 = vector.extract_strided_slice %40 {offsets = [0, 0], sizes = [128, 64], strides = [1, 1]} : vector<128x512xbf16> to vector<128x64xbf16>
    %cst_21 = arith.constant dense<0.000000e+00> : vector<128x64xf32>
    %59 = tpu.matmul %57, %58, %cst_21 {dimension_numbers = #tpu.dot_dimension_numbers<[1], [0], [0], [1], [0, 0, 1, 1], [], []>} : vector<128x128xbf16>, vector<128x64xbf16>, vector<128x64xf32> -> vector<128x64xf32>
    %60 = tpu.reciprocal %56 {approx = true} : vector<128x1xf32> -> vector<128x1xf32>
    %61 = vector.broadcast %60 : vector<128x1xf32> to vector<128x64xf32>
    %62 = arith.mulf %59, %61 : vector<128x64xf32>
    %63 = arith.addf %45, %62 : vector<128x64xf32>
    %64 = vector.extract_strided_slice %36 {offsets = [0, 8], sizes = [128, 8], strides = [1, 1]} : vector<128x64xbf16> to vector<128x8xbf16>
    %65 = vector.extract_strided_slice %39 {offsets = [8, 0], sizes = [8, 128], strides = [1, 1]} : vector<64x128xbf16> to vector<8x128xbf16>
    %cst_22 = arith.constant dense<0.000000e+00> : vector<128x128xf32>
    %66 = tpu.matmul %64, %65, %cst_22 {dimension_numbers = #tpu.dot_dimension_numbers<[1], [0], [0], [1], [0, 0, 1, 1], [], []>} : vector<128x8xbf16>, vector<8x128xbf16>, vector<128x128xf32> -> vector<128x128xf32>
    %67 = arith.addf %66, %44 : vector<128x128xf32>
    %cst_23 = arith.constant dense<0xFF800000> : vector<128xf32>
    %68 = vector.multi_reduction <maximumf>, %67, %cst_23 [1] : vector<128x128xf32> to vector<128xf32>
    %69 = vector.shape_cast %68 : vector<128xf32> to vector<128x1xf32>
    %70 = vector.broadcast %69 : vector<128x1xf32> to vector<128x128xf32>
    %71 = arith.subf %67, %70 : vector<128x128xf32>
    %72 = math.exp %71 : vector<128x128xf32>
    %cst_24 = arith.constant dense<0.000000e+00> : vector<128xf32>
    %73 = vector.multi_reduction <add>, %72, %cst_24 [1] : vector<128x128xf32> to vector<128xf32>
    %74 = vector.shape_cast %73 : vector<128xf32> to vector<128x1xf32>
    %75 = arith.truncf %72 : vector<128x128xf32> to vector<128x128xbf16>
    %76 = vector.extract_strided_slice %40 {offsets = [0, 64], sizes = [128, 64], strides = [1, 1]} : vector<128x512xbf16> to vector<128x64xbf16>
    %cst_25 = arith.constant dense<0.000000e+00> : vector<128x64xf32>
    %77 = tpu.matmul %75, %76, %cst_25 {dimension_numbers = #tpu.dot_dimension_numbers<[1], [0], [0], [1], [0, 0, 1, 1], [], []>} : vector<128x128xbf16>, vector<128x64xbf16>, vector<128x64xf32> -> vector<128x64xf32>
    %78 = tpu.reciprocal %74 {approx = true} : vector<128x1xf32> -> vector<128x1xf32>
    %79 = vector.broadcast %78 : vector<128x1xf32> to vector<128x64xf32>
    %80 = arith.mulf %77, %79 : vector<128x64xf32>
    %81 = arith.addf %63, %80 : vector<128x64xf32>
    %82 = vector.extract_strided_slice %36 {offsets = [0, 16], sizes = [128, 8], strides = [1, 1]} : vector<128x64xbf16> to vector<128x8xbf16>
    %83 = vector.extract_strided_slice %39 {offsets = [16, 0], sizes = [8, 128], strides = [1, 1]} : vector<64x128xbf16> to vector<8x128xbf16>
    %cst_26 = arith.constant dense<0.000000e+00> : vector<128x128xf32>
    %84 = tpu.matmul %82, %83, %cst_26 {dimension_numbers = #tpu.dot_dimension_numbers<[1], [0], [0], [1], [0, 0, 1, 1], [], []>} : vector<128x8xbf16>, vector<8x128xbf16>, vector<128x128xf32> -> vector<128x128xf32>
    %85 = arith.addf %84, %44 : vector<128x128xf32>
    %cst_27 = arith.constant dense<0xFF800000> : vector<128xf32>
    %86 = vector.multi_reduction <maximumf>, %85, %cst_27 [1] : vector<128x128xf32> to vector<128xf32>
    %87 = vector.shape_cast %86 : vector<128xf32> to vector<128x1xf32>
    %88 = vector.broadcast %87 : vector<128x1xf32> to vector<128x128xf32>
    %89 = arith.subf %85, %88 : vector<128x128xf32>
    %90 = math.exp %89 : vector<128x128xf32>
    %cst_28 = arith.constant dense<0.000000e+00> : vector<128xf32>
    %91 = vector.multi_reduction <add>, %90, %cst_28 [1] : vector<128x128xf32> to vector<128xf32>
    %92 = vector.shape_cast %91 : vector<128xf32> to vector<128x1xf32>
    %93 = arith.truncf %90 : vector<128x128xf32> to vector<128x128xbf16>
    %94 = vector.extract_strided_slice %40 {offsets = [0, 128], sizes = [128, 64], strides = [1, 1]} : vector<128x512xbf16> to vector<128x64xbf16>
    %cst_29 = arith.constant dense<0.000000e+00> : vector<128x64xf32>
    %95 = tpu.matmul %93, %94, %cst_29 {dimension_numbers = #tpu.dot_dimension_numbers<[1], [0], [0], [1], [0, 0, 1, 1], [], []>} : vector<128x128xbf16>, vector<128x64xbf16>, vector<128x64xf32> -> vector<128x64xf32>
    %96 = tpu.reciprocal %92 {approx = true} : vector<128x1xf32> -> vector<128x1xf32>
    %97 = vector.broadcast %96 : vector<128x1xf32> to vector<128x64xf32>
    %98 = arith.mulf %95, %97 : vector<128x64xf32>
    %99 = arith.addf %81, %98 : vector<128x64xf32>
    %100 = vector.extract_strided_slice %36 {offsets = [0, 24], sizes = [128, 8], strides = [1, 1]} : vector<128x64xbf16> to vector<128x8xbf16>
    %101 = vector.extract_strided_slice %39 {offsets = [24, 0], sizes = [8, 128], strides = [1, 1]} : vector<64x128xbf16> to vector<8x128xbf16>
    %cst_30 = arith.constant dense<0.000000e+00> : vector<128x128xf32>
    %102 = tpu.matmul %100, %101, %cst_30 {dimension_numbers = #tpu.dot_dimension_numbers<[1], [0], [0], [1], [0, 0, 1, 1], [], []>} : vector<128x8xbf16>, vector<8x128xbf16>, vector<128x128xf32> -> vector<128x128xf32>
    %103 = arith.addf %102, %44 : vector<128x128xf32>
    %cst_31 = arith.constant dense<0xFF800000> : vector<128xf32>
    %104 = vector.multi_reduction <maximumf>, %103, %cst_31 [1] : vector<128x128xf32> to vector<128xf32>
    %105 = vector.shape_cast %104 : vector<128xf32> to vector<128x1xf32>
    %106 = vector.broadcast %105 : vector<128x1xf32> to vector<128x128xf32>
    %107 = arith.subf %103, %106 : vector<128x128xf32>
    %108 = math.exp %107 : vector<128x128xf32>
    %cst_32 = arith.constant dense<0.000000e+00> : vector<128xf32>
    %109 = vector.multi_reduction <add>, %108, %cst_32 [1] : vector<128x128xf32> to vector<128xf32>
    %110 = vector.shape_cast %109 : vector<128xf32> to vector<128x1xf32>
    %111 = arith.truncf %108 : vector<128x128xf32> to vector<128x128xbf16>
    %112 = vector.extract_strided_slice %40 {offsets = [0, 192], sizes = [128, 64], strides = [1, 1]} : vector<128x512xbf16> to vector<128x64xbf16>
    %cst_33 = arith.constant dense<0.000000e+00> : vector<128x64xf32>
    %113 = tpu.matmul %111, %112, %cst_33 {dimension_numbers = #tpu.dot_dimension_numbers<[1], [0], [0], [1], [0, 0, 1, 1], [], []>} : vector<128x128xbf16>, vector<128x64xbf16>, vector<128x64xf32> -> vector<128x64xf32>
    %114 = tpu.reciprocal %110 {approx = true} : vector<128x1xf32> -> vector<128x1xf32>
    %115 = vector.broadcast %114 : vector<128x1xf32> to vector<128x64xf32>
    %116 = arith.mulf %113, %115 : vector<128x64xf32>
    %117 = arith.addf %99, %116 : vector<128x64xf32>
    %118 = vector.extract_strided_slice %36 {offsets = [0, 32], sizes = [128, 8], strides = [1, 1]} : vector<128x64xbf16> to vector<128x8xbf16>
    %119 = vector.extract_strided_slice %39 {offsets = [32, 0], sizes = [8, 128], strides = [1, 1]} : vector<64x128xbf16> to vector<8x128xbf16>
    %cst_34 = arith.constant dense<0.000000e+00> : vector<128x128xf32>
    %120 = tpu.matmul %118, %119, %cst_34 {dimension_numbers = #tpu.dot_dimension_numbers<[1], [0], [0], [1], [0, 0, 1, 1], [], []>} : vector<128x8xbf16>, vector<8x128xbf16>, vector<128x128xf32> -> vector<128x128xf32>
    %121 = arith.addf %120, %44 : vector<128x128xf32>
    %cst_35 = arith.constant dense<0xFF800000> : vector<128xf32>
    %122 = vector.multi_reduction <maximumf>, %121, %cst_35 [1] : vector<128x128xf32> to vector<128xf32>
    %123 = vector.shape_cast %122 : vector<128xf32> to vector<128x1xf32>
    %124 = vector.broadcast %123 : vector<128x1xf32> to vector<128x128xf32>
    %125 = arith.subf %121, %124 : vector<128x128xf32>
    %126 = math.exp %125 : vector<128x128xf32>
    %cst_36 = arith.constant dense<0.000000e+00> : vector<128xf32>
    %127 = vector.multi_reduction <add>, %126, %cst_36 [1] : vector<128x128xf32> to vector<128xf32>
    %128 = vector.shape_cast %127 : vector<128xf32> to vector<128x1xf32>
    %129 = arith.truncf %126 : vector<128x128xf32> to vector<128x128xbf16>
    %130 = vector.extract_strided_slice %40 {offsets = [0, 256], sizes = [128, 64], strides = [1, 1]} : vector<128x512xbf16> to vector<128x64xbf16>
    %cst_37 = arith.constant dense<0.000000e+00> : vector<128x64xf32>
    %131 = tpu.matmul %129, %130, %cst_37 {dimension_numbers = #tpu.dot_dimension_numbers<[1], [0], [0], [1], [0, 0, 1, 1], [], []>} : vector<128x128xbf16>, vector<128x64xbf16>, vector<128x64xf32> -> vector<128x64xf32>
    %132 = tpu.reciprocal %128 {approx = true} : vector<128x1xf32> -> vector<128x1xf32>
    %133 = vector.broadcast %132 : vector<128x1xf32> to vector<128x64xf32>
    %134 = arith.mulf %131, %133 : vector<128x64xf32>
    %135 = arith.addf %117, %134 : vector<128x64xf32>
    %136 = vector.extract_strided_slice %36 {offsets = [0, 40], sizes = [128, 8], strides = [1, 1]} : vector<128x64xbf16> to vector<128x8xbf16>
    %137 = vector.extract_strided_slice %39 {offsets = [40, 0], sizes = [8, 128], strides = [1, 1]} : vector<64x128xbf16> to vector<8x128xbf16>
    %cst_38 = arith.constant dense<0.000000e+00> : vector<128x128xf32>
    %138 = tpu.matmul %136, %137, %cst_38 {dimension_numbers = #tpu.dot_dimension_numbers<[1], [0], [0], [1], [0, 0, 1, 1], [], []>} : vector<128x8xbf16>, vector<8x128xbf16>, vector<128x128xf32> -> vector<128x128xf32>
    %139 = arith.addf %138, %44 : vector<128x128xf32>
    %cst_39 = arith.constant dense<0xFF800000> : vector<128xf32>
    %140 = vector.multi_reduction <maximumf>, %139, %cst_39 [1] : vector<128x128xf32> to vector<128xf32>
    %141 = vector.shape_cast %140 : vector<128xf32> to vector<128x1xf32>
    %142 = vector.broadcast %141 : vector<128x1xf32> to vector<128x128xf32>
    %143 = arith.subf %139, %142 : vector<128x128xf32>
    %144 = math.exp %143 : vector<128x128xf32>
    %cst_40 = arith.constant dense<0.000000e+00> : vector<128xf32>
    %145 = vector.multi_reduction <add>, %144, %cst_40 [1] : vector<128x128xf32> to vector<128xf32>
    %146 = vector.shape_cast %145 : vector<128xf32> to vector<128x1xf32>
    %147 = arith.truncf %144 : vector<128x128xf32> to vector<128x128xbf16>
    %148 = vector.extract_strided_slice %40 {offsets = [0, 320], sizes = [128, 64], strides = [1, 1]} : vector<128x512xbf16> to vector<128x64xbf16>
    %cst_41 = arith.constant dense<0.000000e+00> : vector<128x64xf32>
    %149 = tpu.matmul %147, %148, %cst_41 {dimension_numbers = #tpu.dot_dimension_numbers<[1], [0], [0], [1], [0, 0, 1, 1], [], []>} : vector<128x128xbf16>, vector<128x64xbf16>, vector<128x64xf32> -> vector<128x64xf32>
    %150 = tpu.reciprocal %146 {approx = true} : vector<128x1xf32> -> vector<128x1xf32>
    %151 = vector.broadcast %150 : vector<128x1xf32> to vector<128x64xf32>
    %152 = arith.mulf %149, %151 : vector<128x64xf32>
    %153 = arith.addf %135, %152 : vector<128x64xf32>
    %154 = vector.extract_strided_slice %36 {offsets = [0, 48], sizes = [128, 8], strides = [1, 1]} : vector<128x64xbf16> to vector<128x8xbf16>
    %155 = vector.extract_strided_slice %39 {offsets = [48, 0], sizes = [8, 128], strides = [1, 1]} : vector<64x128xbf16> to vector<8x128xbf16>
    %cst_42 = arith.constant dense<0.000000e+00> : vector<128x128xf32>
    %156 = tpu.matmul %154, %155, %cst_42 {dimension_numbers = #tpu.dot_dimension_numbers<[1], [0], [0], [1], [0, 0, 1, 1], [], []>} : vector<128x8xbf16>, vector<8x128xbf16>, vector<128x128xf32> -> vector<128x128xf32>
    %157 = arith.addf %156, %44 : vector<128x128xf32>
    %cst_43 = arith.constant dense<0xFF800000> : vector<128xf32>
    %158 = vector.multi_reduction <maximumf>, %157, %cst_43 [1] : vector<128x128xf32> to vector<128xf32>
    %159 = vector.shape_cast %158 : vector<128xf32> to vector<128x1xf32>
    %160 = vector.broadcast %159 : vector<128x1xf32> to vector<128x128xf32>
    %161 = arith.subf %157, %160 : vector<128x128xf32>
    %162 = math.exp %161 : vector<128x128xf32>
    %cst_44 = arith.constant dense<0.000000e+00> : vector<128xf32>
    %163 = vector.multi_reduction <add>, %162, %cst_44 [1] : vector<128x128xf32> to vector<128xf32>
    %164 = vector.shape_cast %163 : vector<128xf32> to vector<128x1xf32>
    %165 = arith.truncf %162 : vector<128x128xf32> to vector<128x128xbf16>
    %166 = vector.extract_strided_slice %40 {offsets = [0, 384], sizes = [128, 64], strides = [1, 1]} : vector<128x512xbf16> to vector<128x64xbf16>
    %cst_45 = arith.constant dense<0.000000e+00> : vector<128x64xf32>
    %167 = tpu.matmul %165, %166, %cst_45 {dimension_numbers = #tpu.dot_dimension_numbers<[1], [0], [0], [1], [0, 0, 1, 1], [], []>} : vector<128x128xbf16>, vector<128x64xbf16>, vector<128x64xf32> -> vector<128x64xf32>
    %168 = tpu.reciprocal %164 {approx = true} : vector<128x1xf32> -> vector<128x1xf32>
    %169 = vector.broadcast %168 : vector<128x1xf32> to vector<128x64xf32>
    %170 = arith.mulf %167, %169 : vector<128x64xf32>
    %171 = arith.addf %153, %170 : vector<128x64xf32>
    %172 = vector.extract_strided_slice %36 {offsets = [0, 56], sizes = [128, 8], strides = [1, 1]} : vector<128x64xbf16> to vector<128x8xbf16>
    %173 = vector.extract_strided_slice %39 {offsets = [56, 0], sizes = [8, 128], strides = [1, 1]} : vector<64x128xbf16> to vector<8x128xbf16>
    %cst_46 = arith.constant dense<0.000000e+00> : vector<128x128xf32>
    %174 = tpu.matmul %172, %173, %cst_46 {dimension_numbers = #tpu.dot_dimension_numbers<[1], [0], [0], [1], [0, 0, 1, 1], [], []>} : vector<128x8xbf16>, vector<8x128xbf16>, vector<128x128xf32> -> vector<128x128xf32>
    %175 = arith.addf %174, %44 : vector<128x128xf32>
    %cst_47 = arith.constant dense<0xFF800000> : vector<128xf32>
    %176 = vector.multi_reduction <maximumf>, %175, %cst_47 [1] : vector<128x128xf32> to vector<128xf32>
    %177 = vector.shape_cast %176 : vector<128xf32> to vector<128x1xf32>
    %178 = vector.broadcast %177 : vector<128x1xf32> to vector<128x128xf32>
    %179 = arith.subf %175, %178 : vector<128x128xf32>
    %180 = math.exp %179 : vector<128x128xf32>
    %cst_48 = arith.constant dense<0.000000e+00> : vector<128xf32>
    %181 = vector.multi_reduction <add>, %180, %cst_48 [1] : vector<128x128xf32> to vector<128xf32>
    %182 = vector.shape_cast %181 : vector<128xf32> to vector<128x1xf32>
    %183 = arith.truncf %180 : vector<128x128xf32> to vector<128x128xbf16>
    %184 = vector.extract_strided_slice %40 {offsets = [0, 448], sizes = [128, 64], strides = [1, 1]} : vector<128x512xbf16> to vector<128x64xbf16>
    %cst_49 = arith.constant dense<0.000000e+00> : vector<128x64xf32>
    %185 = tpu.matmul %183, %184, %cst_49 {dimension_numbers = #tpu.dot_dimension_numbers<[1], [0], [0], [1], [0, 0, 1, 1], [], []>} : vector<128x128xbf16>, vector<128x64xbf16>, vector<128x64xf32> -> vector<128x64xf32>
    %186 = tpu.reciprocal %182 {approx = true} : vector<128x1xf32> -> vector<128x1xf32>
    %187 = vector.broadcast %186 : vector<128x1xf32> to vector<128x64xf32>
    %188 = arith.mulf %185, %187 : vector<128x64xf32>
    %189 = arith.addf %171, %188 : vector<128x64xf32>
    %190 = vector.broadcast %43 : vector<1x64xf32> to vector<128x64xf32>
    %191 = arith.addf %3, %190 : vector<128x64xf32>
    %192 = arith.addf %191, %189 : vector<128x64xf32>
    %c0_50 = arith.constant 0 : index
    %c0_51 = arith.constant 0 : index
    %193 = vector.load %arg19[%c0_50, %c0_51] : memref<128x64xf32, #tpu.memory_space<vmem>>, vector<128x64xf32>
    tpu.vector_store %arg19[%c0_50, %c0_51], %192 {strides = array<i32>} : memref<128x64xf32, #tpu.memory_space<vmem>>, vector<128x64xf32>,
    %c0_52 = arith.constant 0 : index
    %c0_53 = arith.constant 0 : index
    %194 = vector.load %arg19[%c0_52, %c0_53] : memref<128x64xf32, #tpu.memory_space<vmem>>, vector<128x64xf32>
    %195 = arith.index_cast %arg1 : i32 to index
    %c0_54 = arith.constant 0 : index
    %c0_55 = arith.constant 0 : index
    %196 = vector.load %arg8[%195, %c0_54, %c0_55] : memref<8x1x64xf32, #tpu.memory_space<vmem>>, vector<1x1x64xf32>
    %197 = vector.shape_cast %196 : vector<1x1x64xf32> to vector<1x64xf32>
    %198 = arith.index_cast %arg1 : i32 to index
    %c0_56 = arith.constant 0 : index
    %c0_57 = arith.constant 0 : index
    %199 = vector.load %arg9[%198, %c0_56, %c0_57] : memref<8x1x64xf32, #tpu.memory_space<vmem>>, vector<1x1x64xf32>
    %200 = vector.shape_cast %199 : vector<1x1x64xf32> to vector<1x64xf32>
    %cst_58 = arith.constant dense<0.000000e+00> : vector<128xf32>
    %201 = vector.multi_reduction <add>, %194, %cst_58 [1] : vector<128x64xf32> to vector<128xf32>
    %202 = vector.shape_cast %201 : vector<128xf32> to vector<128x1xf32>
    %cst_59 = arith.constant 6.400000e+01 : f32
    %203 = vector.broadcast %cst_59 : f32 to vector<128x1xf32>
    %204 = arith.divf %202, %203 : vector<128x1xf32>
    %205 = vector.broadcast %204 : vector<128x1xf32> to vector<128x64xf32>
    %206 = arith.subf %194, %205 : vector<128x64xf32>
    %207 = arith.mulf %206, %206 : vector<128x64xf32>
    %cst_60 = arith.constant dense<0.000000e+00> : vector<128xf32>
    %208 = vector.multi_reduction <add>, %207, %cst_60 [1] : vector<128x64xf32> to vector<128xf32>
    %209 = vector.shape_cast %208 : vector<128xf32> to vector<128x1xf32>
    %cst_61 = arith.constant 6.400000e+01 : f32
    %210 = vector.broadcast %cst_61 : f32 to vector<128x1xf32>
    %211 = arith.divf %209, %210 : vector<128x1xf32>
    %cst_62 = arith.constant 9.99999974E-6 : f32
    %212 = vector.broadcast %cst_62 : f32 to vector<128x1xf32>
    %213 = arith.addf %211, %212 : vector<128x1xf32>
    %214 = math.rsqrt %213 : vector<128x1xf32>
    %215 = vector.broadcast %214 : vector<128x1xf32> to vector<128x64xf32>
    %216 = arith.mulf %206, %215 : vector<128x64xf32>
    %217 = vector.broadcast %197 : vector<1x64xf32> to vector<128x64xf32>
    %218 = arith.mulf %216, %217 : vector<128x64xf32>
    %219 = vector.broadcast %200 : vector<1x64xf32> to vector<128x64xf32>
    %220 = arith.addf %218, %219 : vector<128x64xf32>
    %221 = arith.truncf %220 : vector<128x64xf32> to vector<128x64xbf16>
    %222 = arith.index_cast %arg1 : i32 to index
    %c0_63 = arith.constant 0 : index
    %c0_64 = arith.constant 0 : index
    %223 = vector.load %arg10[%222, %c0_63, %c0_64] : memref<8x64x256xbf16, #tpu.memory_space<vmem>>, vector<1x64x256xbf16>
    %224 = vector.shape_cast %223 : vector<1x64x256xbf16> to vector<64x256xbf16>
    %cst_65 = arith.constant dense<0.000000e+00> : vector<128x256xf32>
    %225 = tpu.matmul %221, %224, %cst_65 {dimension_numbers = #tpu.dot_dimension_numbers<[1], [0], [0], [1], [0, 0, 1, 1], [], []>} : vector<128x64xbf16>, vector<64x256xbf16>, vector<128x256xf32> -> vector<128x256xf32>
    %226 = arith.index_cast %arg1 : i32 to index
    %c0_66 = arith.constant 0 : index
    %c0_67 = arith.constant 0 : index
    %227 = vector.load %arg11[%226, %c0_66, %c0_67] : memref<8x1x256xf32, #tpu.memory_space<vmem>>, vector<1x1x256xf32>
    %228 = vector.shape_cast %227 : vector<1x1x256xf32> to vector<1x256xf32>
    %229 = vector.broadcast %228 : vector<1x256xf32> to vector<128x256xf32>
    %230 = arith.addf %225, %229 : vector<128x256xf32>
    %cst_68 = arith.constant 0.000000e+00 : f32
    %231 = vector.broadcast %cst_68 : f32 to vector<128x256xf32>
    %232 = arith.maximumf %230, %231 : vector<128x256xf32>
    %233 = arith.truncf %232 : vector<128x256xf32> to vector<128x256xbf16>
    %234 = arith.index_cast %arg1 : i32 to index
    %c0_69 = arith.constant 0 : index
    %c0_70 = arith.constant 0 : index
    %235 = vector.load %arg12[%234, %c0_69, %c0_70] : memref<8x256x64xbf16, #tpu.memory_space<vmem>>, vector<1x256x64xbf16>
    %236 = vector.shape_cast %235 : vector<1x256x64xbf16> to vector<256x64xbf16>
    %cst_71 = arith.constant dense<0.000000e+00> : vector<128x64xf32>
    %237 = tpu.matmul %233, %236, %cst_71 {dimension_numbers = #tpu.dot_dimension_numbers<[1], [0], [0], [1], [0, 0, 1, 1], [], []>} : vector<128x256xbf16>, vector<256x64xbf16>, vector<128x64xf32> -> vector<128x64xf32>
    %238 = arith.addf %194, %237 : vector<128x64xf32>
    %239 = arith.index_cast %arg1 : i32 to index
    %c0_72 = arith.constant 0 : index
    %c0_73 = arith.constant 0 : index
    %240 = vector.load %arg13[%239, %c0_72, %c0_73] : memref<8x1x64xf32, #tpu.memory_space<vmem>>, vector<1x1x64xf32>
    %241 = vector.shape_cast %240 : vector<1x1x64xf32> to vector<1x64xf32>
    %242 = vector.broadcast %241 : vector<1x64xf32> to vector<128x64xf32>
    %243 = arith.addf %238, %242 : vector<128x64xf32>
    %c0_74 = arith.constant 0 : index
    %c0_75 = arith.constant 0 : index
    %244 = vector.load %arg19[%c0_74, %c0_75] : memref<128x64xf32, #tpu.memory_space<vmem>>, vector<128x64xf32>
    tpu.vector_store %arg19[%c0_74, %c0_75], %243 {strides = array<i32>} : memref<128x64xf32, #tpu.memory_space<vmem>>, vector<128x64xf32>,
    %c7_i32 = arith.constant 7 : i32
    %245 = arith.cmpi eq, %arg1, %c7_i32 : i32
    %246 = arith.extui %245 : i1 to i32
    %c0_i32_76 = arith.constant 0 : i32
    %247 = arith.cmpi ne, %246, %c0_i32_76 : i32
    scf.if %247 {
      %c0_77 = arith.constant 0 : index
      %c0_78 = arith.constant 0 : index
      %248 = vector.load %arg19[%c0_77, %c0_78] : memref<128x64xf32, #tpu.memory_space<vmem>>, vector<128x64xf32>
      %c0_79 = arith.constant 0 : index
      %c0_80 = arith.constant 0 : index
      %249 = vector.load %arg14[%c0_79, %c0_80] : memref<1x64xf32, #tpu.memory_space<vmem>>, vector<1x64xf32>
      %c0_81 = arith.constant 0 : index
      %c0_82 = arith.constant 0 : index
      %250 = vector.load %arg15[%c0_81, %c0_82] : memref<1x64xf32, #tpu.memory_space<vmem>>, vector<1x64xf32>
      %cst_83 = arith.constant dense<0.000000e+00> : vector<128xf32>
      %251 = vector.multi_reduction <add>, %248, %cst_83 [1] : vector<128x64xf32> to vector<128xf32>
      %252 = vector.shape_cast %251 : vector<128xf32> to vector<128x1xf32>
      %cst_84 = arith.constant 6.400000e+01 : f32
      %253 = vector.broadcast %cst_84 : f32 to vector<128x1xf32>
      %254 = arith.divf %252, %253 : vector<128x1xf32>
      %255 = vector.broadcast %254 : vector<128x1xf32> to vector<128x64xf32>
      %256 = arith.subf %248, %255 : vector<128x64xf32>
      %257 = arith.mulf %256, %256 : vector<128x64xf32>
      %cst_85 = arith.constant dense<0.000000e+00> : vector<128xf32>
      %258 = vector.multi_reduction <add>, %257, %cst_85 [1] : vector<128x64xf32> to vector<128xf32>
      %259 = vector.shape_cast %258 : vector<128xf32> to vector<128x1xf32>
      %cst_86 = arith.constant 6.400000e+01 : f32
      %260 = vector.broadcast %cst_86 : f32 to vector<128x1xf32>
      %261 = arith.divf %259, %260 : vector<128x1xf32>
      %cst_87 = arith.constant 9.99999974E-6 : f32
      %262 = vector.broadcast %cst_87 : f32 to vector<128x1xf32>
      %263 = arith.addf %261, %262 : vector<128x1xf32>
      %264 = math.rsqrt %263 : vector<128x1xf32>
      %265 = vector.broadcast %264 : vector<128x1xf32> to vector<128x64xf32>
      %266 = arith.mulf %256, %265 : vector<128x64xf32>
      %267 = vector.broadcast %249 : vector<1x64xf32> to vector<128x64xf32>
      %268 = arith.mulf %266, %267 : vector<128x64xf32>
      %269 = vector.broadcast %250 : vector<1x64xf32> to vector<128x64xf32>
      %270 = arith.addf %268, %269 : vector<128x64xf32>
      %271 = arith.truncf %270 : vector<128x64xf32> to vector<128x64xbf16>
      %c0_88 = arith.constant 0 : index
      %c0_89 = arith.constant 0 : index
      %272 = vector.load %arg16[%c0_88, %c0_89] : memref<64x128xbf16, #tpu.memory_space<vmem>>, vector<64x128xbf16>
      %cst_90 = arith.constant dense<0.000000e+00> : vector<128x128xf32>
      %273 = tpu.matmul %271, %272, %cst_90 {dimension_numbers = #tpu.dot_dimension_numbers<[1], [0], [0], [1], [0, 0, 1, 1], [], []>} : vector<128x64xbf16>, vector<64x128xbf16>, vector<128x128xf32> -> vector<128x128xf32>
      %c0_91 = arith.constant 0 : index
      %c0_92 = arith.constant 0 : index
      %274 = vector.load %arg17[%c0_91, %c0_92] : memref<1x128xf32, #tpu.memory_space<vmem>>, vector<1x128xf32>
      %275 = vector.broadcast %274 : vector<1x128xf32> to vector<128x128xf32>
      %276 = arith.addf %273, %275 : vector<128x128xf32>
      %c0_93 = arith.constant 0 : index
      %c0_94 = arith.constant 0 : index
      %c0_95 = arith.constant 0 : index
      %277 = vector.load %arg18[%c0_93, %c0_94, %c0_95] : memref<1x128x128xf32, #tpu.memory_space<vmem>>, vector<1x128x128xf32>
      %278 = vector.shape_cast %277 : vector<1x128x128xf32> to vector<128x128xf32>
      %279 = vector.shape_cast %276 : vector<128x128xf32> to vector<1x128x128xf32>
      tpu.vector_store %arg18[%c0_93, %c0_94, %c0_95], %279 {strides = array<i32>} : memref<1x128x128xf32, #tpu.memory_space<vmem>>, vector<1x128x128xf32>,
    } else {
    }
    return
  }
  func.func @transform_0(%arg0: i32, %arg1: i32) -> (i32, i32, i32) {
    %c0_i32 = arith.constant 0 : i32
    %c0_i32_0 = arith.constant 0 : i32
    %c0_i32_1 = arith.constant 0 : i32
    return %arg0, %c0_i32, %c0_i32_0 : i32, i32, i32
  }
  func.func @transform_1(%arg0: i32, %arg1: i32) -> (i32, i32) {
    %c0_i32 = arith.constant 0 : i32
    %c0_i32_0 = arith.constant 0 : i32
    %c0_i32_1 = arith.constant 0 : i32
    return %c0_i32, %c0_i32_0 : i32, i32
  }
  func.func @transform_2(%arg0: i32, %arg1: i32) -> (i32, i32, i32) {
    %c0_i32 = arith.constant 0 : i32
    %c0_i32_0 = arith.constant 0 : i32
    %c0_i32_1 = arith.constant 0 : i32
    %c0_i32_2 = arith.constant 0 : i32
    return %c0_i32, %c0_i32_0, %c0_i32_1 : i32, i32, i32
  }
  func.func @transform_3(%arg0: i32, %arg1: i32) -> (i32, i32, i32) {
    %c0_i32 = arith.constant 0 : i32
    %c0_i32_0 = arith.constant 0 : i32
    %c0_i32_1 = arith.constant 0 : i32
    %c0_i32_2 = arith.constant 0 : i32
    return %c0_i32, %c0_i32_0, %c0_i32_1 : i32, i32, i32
  }
  func.func @transform_4(%arg0: i32, %arg1: i32) -> (i32, i32, i32) {
    %c0_i32 = arith.constant 0 : i32
    %c0_i32_0 = arith.constant 0 : i32
    %c0_i32_1 = arith.constant 0 : i32
    %c0_i32_2 = arith.constant 0 : i32
    return %c0_i32, %c0_i32_0, %c0_i32_1 : i32, i32, i32
  }
  func.func @transform_5(%arg0: i32, %arg1: i32) -> (i32, i32, i32) {
    %c0_i32 = arith.constant 0 : i32
    %c0_i32_0 = arith.constant 0 : i32
    %c0_i32_1 = arith.constant 0 : i32
    %c0_i32_2 = arith.constant 0 : i32
    return %c0_i32, %c0_i32_0, %c0_i32_1 : i32, i32, i32
  }
  func.func @transform_6(%arg0: i32, %arg1: i32) -> (i32, i32, i32) {
    %c0_i32 = arith.constant 0 : i32
    %c0_i32_0 = arith.constant 0 : i32
    %c0_i32_1 = arith.constant 0 : i32
    %c0_i32_2 = arith.constant 0 : i32
    return %c0_i32, %c0_i32_0, %c0_i32_1 : i32, i32, i32
  }
  func.func @transform_7(%arg0: i32, %arg1: i32) -> (i32, i32, i32) {
    %c0_i32 = arith.constant 0 : i32
    %c0_i32_0 = arith.constant 0 : i32
    %c0_i32_1 = arith.constant 0 : i32
    %c0_i32_2 = arith.constant 0 : i32
    return %c0_i32, %c0_i32_0, %c0_i32_1 : i32, i32, i32
  }
  func.func @transform_8(%arg0: i32, %arg1: i32) -> (i32, i32, i32) {
    %c0_i32 = arith.constant 0 : i32
    %c0_i32_0 = arith.constant 0 : i32
    %c0_i32_1 = arith.constant 0 : i32
    %c0_i32_2 = arith.constant 0 : i32
    return %c0_i32, %c0_i32_0, %c0_i32_1 : i32, i32, i32
  }
  func.func @transform_9(%arg0: i32, %arg1: i32) -> (i32, i32, i32) {
    %c0_i32 = arith.constant 0 : i32
    %c0_i32_0 = arith.constant 0 : i32
    %c0_i32_1 = arith.constant 0 : i32
    %c0_i32_2 = arith.constant 0 : i32
    return %c0_i32, %c0_i32_0, %c0_i32_1 : i32, i32, i32
  }
  func.func @transform_10(%arg0: i32, %arg1: i32) -> (i32, i32, i32) {
    %c0_i32 = arith.constant 0 : i32
    %c0_i32_0 = arith.constant 0 : i32
    %c0_i32_1 = arith.constant 0 : i32
    %c0_i32_2 = arith.constant 0 : i32
    return %c0_i32, %c0_i32_0, %c0_i32_1 : i32, i32, i32
  }
  func.func @transform_11(%arg0: i32, %arg1: i32) -> (i32, i32, i32) {
    %c0_i32 = arith.constant 0 : i32
    %c0_i32_0 = arith.constant 0 : i32
    %c0_i32_1 = arith.constant 0 : i32
    %c0_i32_2 = arith.constant 0 : i32
    return %c0_i32, %c0_i32_0, %c0_i32_1 : i32, i32, i32
  }
  func.func @transform_12(%arg0: i32, %arg1: i32) -> (i32, i32) {
    %c0_i32 = arith.constant 0 : i32
    %c0_i32_0 = arith.constant 0 : i32
    %c0_i32_1 = arith.constant 0 : i32
    return %c0_i32, %c0_i32_0 : i32, i32
  }
  func.func @transform_13(%arg0: i32, %arg1: i32) -> (i32, i32) {
    %c0_i32 = arith.constant 0 : i32
    %c0_i32_0 = arith.constant 0 : i32
    %c0_i32_1 = arith.constant 0 : i32
    return %c0_i32, %c0_i32_0 : i32, i32
  }
  func.func @transform_14(%arg0: i32, %arg1: i32) -> (i32, i32) {
    %c0_i32 = arith.constant 0 : i32
    %c0_i32_0 = arith.constant 0 : i32
    %c0_i32_1 = arith.constant 0 : i32
    return %c0_i32, %c0_i32_0 : i32, i32
  }
  func.func @transform_15(%arg0: i32, %arg1: i32) -> (i32, i32) {
    %c0_i32 = arith.constant 0 : i32
    %c0_i32_0 = arith.constant 0 : i32
    %c0_i32_1 = arith.constant 0 : i32
    return %c0_i32, %c0_i32_0 : i32, i32
  }
  func.func @transform_16(%arg0: i32, %arg1: i32) -> (i32, i32, i32) {
    %c0_i32 = arith.constant 0 : i32
    %c0_i32_0 = arith.constant 0 : i32
    %c0_i32_1 = arith.constant 0 : i32
    return %arg0, %c0_i32, %c0_i32_0 : i32, i32, i32
  }
}

</mosaic_0001>

<llo_original>
// kernel: tpu_custom_call.1
$region0: #{tpu_custom_call.1}
  #allocation0 [shape = 'u32[]', space=smem, size = 0x4, offset = 0x4, fixed_abs, tag = 'smem constant byte address 0x4 - core index']
  #allocation1 [shape = 'u32[144,128]{1,0:T(1,128)}', space=vmem, size = 0x12000, scoped, tag = 'internal scratch']
  #allocation2 [shape = 'f32[128,64]{1,0:T(8,128)}', space=vmem, size = 0x10000, scoped, tag = 'scratch operand']
  %s0 = inlined_call_operand.vmem [shape: f32[2,128,64], index: 0, kind: input, shape index: {}]
  %s1 = inlined_call_operand.vmem [shape: f32[128,128], index: 1, kind: input, shape index: {}]
  %s2 = inlined_call_operand.hbm [shape: f32[8,1,64], index: 2, kind: input, shape index: {}]
  %s3 = inlined_call_operand.hbm [shape: f32[8,1,64], index: 3, kind: input, shape index: {}]
  %s4 = inlined_call_operand.vmem [shape: bf16[8,64,640], index: 4, kind: input, shape index: {}]
  %s5 = inlined_call_operand.hbm [shape: f32[8,1,64], index: 5, kind: input, shape index: {}]
  %s6 = inlined_call_operand.hbm [shape: f32[8,1,64], index: 6, kind: input, shape index: {}]
  %s7 = inlined_call_operand.hbm [shape: f32[8,1,64], index: 7, kind: input, shape index: {}]
  %s8 = inlined_call_operand.vmem [shape: bf16[8,64,256], index: 8, kind: input, shape index: {}]
  %s9 = inlined_call_operand.hbm [shape: f32[8,1,256], index: 9, kind: input, shape index: {}]
  %s10 = inlined_call_operand.vmem [shape: bf16[8,256,64], index: 10, kind: input, shape index: {}]
  %s11 = inlined_call_operand.vmem [shape: f32[8,1,64], index: 11, kind: input, shape index: {}]
  %s12 = inlined_call_operand.vmem [shape: f32[1,64], index: 12, kind: input, shape index: {}]
  %s13 = inlined_call_operand.vmem [shape: f32[1,64], index: 13, kind: input, shape index: {}]
  %s14 = inlined_call_operand.hbm [shape: bf16[64,128], index: 14, kind: input, shape index: {}]
  %s15 = inlined_call_operand.vmem [shape: f32[1,128], index: 15, kind: input, shape index: {}]
  %s16 = inlined_call_operand.hbm [shape: f32[2,128,128], index: 16, kind: output, shape index: {}]
  %s17 = sld [smem:[#allocation0]]
  $region133: #{tpu_custom_call.1} parent=0
    _
  %s19 = ssub.s32 1, %s17
  %s20 = scalar_select 0, %s19, %s17
  $region1: #{tpu_custom_call.1} parent=0
    #allocation3 [shape = 'u8[4096]{0}', space=vmem, size = 0x1000, scoped, tag = 'input window, operand 2, single buffered']
    #allocation4 [shape = 's32[2]{0}', space=sflag, size = 0x8, scoped, tag = 'scoped memory for tpu_custom_call.1']
    #allocation5 [shape = 's32[2]{0}', space=sflag, size = 0x8, scoped, tag = 'scoped memory for tpu_custom_call.1']
    #allocation6 [shape = 'u8[4096]{0}', space=vmem, size = 0x1000, scoped, tag = 'input window, operand 3, single buffered']
    #allocation7 [shape = 's32[1]{0}', space=sflag, size = 0x4, scoped, tag = 'scoped memory for tpu_custom_call.1']
    #allocation8 [shape = 'u8[4096]{0}', space=vmem, size = 0x1000, scoped, tag = 'input window, operand 5, single buffered']
    #allocation9 [shape = 'u8[4096]{0}', space=vmem, size = 0x1000, scoped, tag = 'input window, operand 6, single buffered']
    #allocation10 [shape = 's32[1]{0}', space=sflag, size = 0x4, scoped, tag = 'scoped memory for tpu_custom_call.1']
    #allocation11 [shape = 'u8[4096]{0}', space=vmem, size = 0x1000, scoped, tag = 'input window, operand 7, single buffered']
    #allocation12 [shape = 'u8[8192]{0}', space=vmem, size = 0x2000, scoped, tag = 'input window, operand 9, single buffered']
    #allocation13 [shape = 's32[1]{0}', space=sflag, size = 0x4, scoped, tag = 'scoped memory for tpu_custom_call.1']
    #allocation14 [shape = 'u8[16384]{0}', space=vmem, size = 0x4000, scoped, tag = 'input window, operand 14, single buffered']
    #allocation15 [shape = 'u8[131072]{0}', space=vmem, size = 0x20000, scoped, tag = 'output window, operand 0']
    %21 = vsyncpa [#allocation4], 0
    %22 = vsyncpa [#allocation7], 0
    %23 = vsyncpa [#allocation10], 0
    %24 = vsyncpa [#allocation13], 0
    %25 = vsyncpa [#allocation5], 0
    %s26 = scalar_lea.sflag [#allocation5], 1
    %27 = vsyncpa %s26, 0
    loop: start=0, step=1, limit=18
    $region2: #{tpu_custom_call.1} parent=1 // loop_pre_header
      _
    $region3: #{tpu_custom_call.1} parent=1 // loop_header
      %s29 = sphi 0, %s33
      %p30 = scmp.ge.s32.totalorder %s29, 18
      %s36 = sphi 0, %s48
      %s37 = sphi 0, %s44
      %s38 = sphi 0, %s36
      %s39 = sphi 0, %s37
      %s40 = sphi 0, %s38
      %s41 = sphi 0, %s39
      %s51 = sphi 0, %s53
      %s54 = sphi 0, %s51
      %s55 = sphi 0, %s54
      %s71 = sphi 0, %s55
      %s75 = sphi 0, %s75
      %s77 = sphi 0, %s75
      %s78 = sphi 0, %s77
      %s92 = sphi 0, %s78
      %s96 = sphi 0, %s96
      %s98 = sphi 0, %s96
      %s99 = sphi 0, %s98
      %s113 = sphi 0, %s99
      %s117 = sphi 0, %s117
      %s119 = sphi 0, %s117
      %s120 = sphi 0, %s119
      %s134 = sphi 0, %s120
      %s138 = sphi 0, %s138
      %s140 = sphi 0, %s138
      %s141 = sphi 0, %s140
      %s155 = sphi 0, %s141
      %s159 = sphi 0, %s159
      %s161 = sphi 0, %s159
      %s162 = sphi 0, %s161
      %s176 = sphi 0, %s162
      %s180 = sphi 0, %s180
      %s182 = sphi 0, %s180
      %s183 = sphi 0, %s182
      %s197 = sphi 0, %s183
      %s201 = sphi 0, %s201
      %s203 = sphi 0, %s201
      %s204 = sphi 0, %s203
      %s218 = sphi 0, %s204
      %s222 = sphi 0, %s222
      %s224 = sphi 0, %s222
      %s225 = sphi 0, %s224
      %s239 = sphi 0, %s225
      %s243 = sphi 0, %s243
      %s245 = sphi 0, %s243
      %s246 = sphi 0, %s245
      %s260 = sphi 0, %s246
      %s264 = sphi 0, %s264
      %s266 = sphi 0, %s264
      %s267 = sphi 0, %s266
      %s281 = sphi 0, %s267
      %s285 = sphi 0, %s285
      %s287 = sphi 0, %s285
      %s288 = sphi 0, %s287
      %s302 = sphi 0, %s288
      %s306 = sphi 0, %s306
      %s308 = sphi 0, %s306
      %s309 = sphi 0, %s308
      %s323 = sphi 0, %s309
      %s327 = sphi 0, %s327
      %s329 = sphi 0, %s327
      %s330 = sphi 0, %s329
      %s344 = sphi 0, %s330
      %s348 = sphi 0, %s348
      %s350 = sphi 0, %s348
      %s351 = sphi 0, %s350
      %s365 = sphi 0, %s351
      %s369 = sphi 0, %s369
      %s371 = sphi 0, %s369
      %s372 = sphi 0, %s371
      %s386 = sphi 0, %s372
      %s392 = sphi 0, %s394
      %s395 = sphi 0, %s392
      %s396 = sphi 0, %s395
      %s412 = sphi 0, %s396
    $region4: #{tpu_custom_call.1} parent=1 // loop_header_branch
      %32 = sbr.rel (%p30) target = $region8
    $region5: #{tpu_custom_call.1} parent=1 // loop_body
      %s34 = ssub.s32 %s29, 1
      %s35 = ssub.s32 %s29, 2
      %s42 = sadd.s32 1, %s37
      %p43 = scmp.ge.s32.totalorder %s42, 8
      %s44 = scalar_select %p43, 0, %s42
      %s45 = sadd.s32 1, %s36
      %s46 = scalar_select %p43, %s45, %s36
      %p47 = scmp.ge.s32.totalorder %s46, 2
      %s48 = scalar_select %p47, 0, %s46
      %s49 = ssub.s32 %s36, %s48
      %p50 = scmp.eq.s32.totalorder %s49, 0
      %s52 = sadd.s32 %s51, 1
      %s53 = scalar_select %p50, %s51, %s52
      %p56 = pneg %p50
      %p57 = scmp.eq.s32.totalorder %s29, 15
      %p58 = por %p56, %p57
      %p59 = scmp.ne.s32.totalorder %s51, %s54
      %p60 = scmp.eq.s32.totalorder %s29, 0
      %p61 = por %p59, %p60
      %p62 = scmp.ne.s32.totalorder %s51, %s54
      %p63 = scmp.eq.s32.totalorder %s34, 15
      %p64 = por %p62, %p63
      %p65 = scmp.ne.s32.totalorder %s54, %s55
      %p66 = scmp.eq.s32.totalorder %s34, 0
      %p67 = por %p65, %p66
      %p68 = scmp.ne.s32.totalorder %s54, %s55
      %p69 = scmp.eq.s32.totalorder %s35, 15
      %p70 = por %p68, %p69
      %p72 = scmp.ne.s32.totalorder %s55, %s71
      %p73 = scmp.eq.s32.totalorder %s35, 0
      %p74 = por %p72, %p73
      %s76 = sadd.s32 %s75, 1
      %p79 = scmp.eq.s32.totalorder %s29, 15
      %p80 = scmp.ne.s32.totalorder %s75, %s77
      %p81 = scmp.eq.s32.totalorder %s29, 0
      %p82 = por %p80, %p81
      %p83 = scmp.ne.s32.totalorder %s75, %s77
      %p84 = scmp.eq.s32.totalorder %s34, 15
      %p85 = por %p83, %p84
      %p86 = scmp.ne.s32.totalorder %s77, %s78
      %p87 = scmp.eq.s32.totalorder %s34, 0
      %p88 = por %p86, %p87
      %p89 = scmp.ne.s32.totalorder %s77, %s78
      %p90 = scmp.eq.s32.totalorder %s35, 15
      %p91 = por %p89, %p90
      %p93 = scmp.ne.s32.totalorder %s78, %s92
      %p94 = scmp.eq.s32.totalorder %s35, 0
      %p95 = por %p93, %p94
      %s97 = sadd.s32 %s96, 1
      %p100 = scmp.eq.s32.totalorder %s29, 15
      %p101 = scmp.ne.s32.totalorder %s96, %s98
      %p102 = scmp.eq.s32.totalorder %s29, 0
      %p103 = por %p101, %p102
      %p104 = scmp.ne.s32.totalorder %s96, %s98
      %p105 = scmp.eq.s32.totalorder %s34, 15
      %p106 = por %p104, %p105
      %p107 = scmp.ne.s32.totalorder %s98, %s99
      %p108 = scmp.eq.s32.totalorder %s34, 0
      %p109 = por %p107, %p108
      %p110 = scmp.ne.s32.totalorder %s98, %s99
      %p111 = scmp.eq.s32.totalorder %s35, 15
      %p112 = por %p110, %p111
      %p114 = scmp.ne.s32.totalorder %s99, %s113
      %p115 = scmp.eq.s32.totalorder %s35, 0
      %p116 = por %p114, %p115
      %s118 = sadd.s32 %s117, 1
      %p121 = scmp.eq.s32.totalorder %s29, 15
      %p122 = scmp.ne.s32.totalorder %s117, %s119
      %p123 = scmp.eq.s32.totalorder %s29, 0
      %p124 = por %p122, %p123
      %p125 = scmp.ne.s32.totalorder %s117, %s119
      %p126 = scmp.eq.s32.totalorder %s34, 15
      %p127 = por %p125, %p126
      %p128 = scmp.ne.s32.totalorder %s119, %s120
      %p129 = scmp.eq.s32.totalorder %s34, 0
      %p130 = por %p128, %p129
      %p131 = scmp.ne.s32.totalorder %s119, %s120
      %p132 = scmp.eq.s32.totalorder %s35, 15
      %p133 = por %p131, %p132
      %p135 = scmp.ne.s32.totalorder %s120, %s134
      %p136 = scmp.eq.s32.totalorder %s35, 0
      %p137 = por %p135, %p136
      %s139 = sadd.s32 %s138, 1
      %p142 = scmp.eq.s32.totalorder %s29, 15
      %p143 = scmp.ne.s32.totalorder %s138, %s140
      %p144 = scmp.eq.s32.totalorder %s29, 0
      %p145 = por %p143, %p144
      %p146 = scmp.ne.s32.totalorder %s138, %s140
      %p147 = scmp.eq.s32.totalorder %s34, 15
      %p148 = por %p146, %p147
      %p149 = scmp.ne.s32.totalorder %s140, %s141
      %p150 = scmp.eq.s32.totalorder %s34, 0
      %p151 = por %p149, %p150
      %p152 = scmp.ne.s32.totalorder %s140, %s141
      %p153 = scmp.eq.s32.totalorder %s35, 15
      %p154 = por %p152, %p153
      %p156 = scmp.ne.s32.totalorder %s141, %s155
      %p157 = scmp.eq.s32.totalorder %s35, 0
      %p158 = por %p156, %p157
      %s160 = sadd.s32 %s159, 1
      %p163 = scmp.eq.s32.totalorder %s29, 15
      %p164 = scmp.ne.s32.totalorder %s159, %s161
      %p165 = scmp.eq.s32.totalorder %s29, 0
      %p166 = por %p164, %p165
      %p167 = scmp.ne.s32.totalorder %s159, %s161
      %p168 = scmp.eq.s32.totalorder %s34, 15
      %p169 = por %p167, %p168
      %p170 = scmp.ne.s32.totalorder %s161, %s162
      %p171 = scmp.eq.s32.totalorder %s34, 0
      %p172 = por %p170, %p171
      %p173 = scmp.ne.s32.totalorder %s161, %s162
      %p174 = scmp.eq.s32.totalorder %s35, 15
      %p175 = por %p173, %p174
      %p177 = scmp.ne.s32.totalorder %s162, %s176
      %p178 = scmp.eq.s32.totalorder %s35, 0
      %p179 = por %p177, %p178
      %s181 = sadd.s32 %s180, 1
      %p184 = scmp.eq.s32.totalorder %s29, 15
      %p185 = scmp.ne.s32.totalorder %s180, %s182
      %p186 = scmp.eq.s32.totalorder %s29, 0
      %p187 = por %p185, %p186
      %p188 = scmp.ne.s32.totalorder %s180, %s182
      %p189 = scmp.eq.s32.totalorder %s34, 15
      %p190 = por %p188, %p189
      %p191 = scmp.ne.s32.totalorder %s182, %s183
      %p192 = scmp.eq.s32.totalorder %s34, 0
      %p193 = por %p191, %p192
      %p194 = scmp.ne.s32.totalorder %s182, %s183
      %p195 = scmp.eq.s32.totalorder %s35, 15
      %p196 = por %p194, %p195
      %p198 = scmp.ne.s32.totalorder %s183, %s197
      %p199 = scmp.eq.s32.totalorder %s35, 0
      %p200 = por %p198, %p199
      %s202 = sadd.s32 %s201, 1
      %p205 = scmp.eq.s32.totalorder %s29, 15
      %p206 = scmp.ne.s32.totalorder %s201, %s203
      %p207 = scmp.eq.s32.totalorder %s29, 0
      %p208 = por %p206, %p207
      %p209 = scmp.ne.s32.totalorder %s201, %s203
      %p210 = scmp.eq.s32.totalorder %s34, 15
      %p211 = por %p209, %p210
      %p212 = scmp.ne.s32.totalorder %s203, %s204
      %p213 = scmp.eq.s32.totalorder %s34, 0
      %p214 = por %p212, %p213
      %p215 = scmp.ne.s32.totalorder %s203, %s204
      %p216 = scmp.eq.s32.totalorder %s35, 15
      %p217 = por %p215, %p216
      %p219 = scmp.ne.s32.totalorder %s204, %s218
      %p220 = scmp.eq.s32.totalorder %s35, 0
      %p221 = por %p219, %p220
      %s223 = sadd.s32 %s222, 1
      %p226 = scmp.eq.s32.totalorder %s29, 15
      %p227 = scmp.ne.s32.totalorder %s222, %s224
      %p228 = scmp.eq.s32.totalorder %s29, 0
      %p229 = por %p227, %p228
      %p230 = scmp.ne.s32.totalorder %s222, %s224
      %p231 = scmp.eq.s32.totalorder %s34, 15
      %p232 = por %p230, %p231
      %p233 = scmp.ne.s32.totalorder %s224, %s225
      %p234 = scmp.eq.s32.totalorder %s34, 0
      %p235 = por %p233, %p234
      %p236 = scmp.ne.s32.totalorder %s224, %s225
      %p237 = scmp.eq.s32.totalorder %s35, 15
      %p238 = por %p236, %p237
      %p240 = scmp.ne.s32.totalorder %s225, %s239
      %p241 = scmp.eq.s32.totalorder %s35, 0
      %p242 = por %p240, %p241
      %s244 = sadd.s32 %s243, 1
      %p247 = scmp.eq.s32.totalorder %s29, 15
      %p248 = scmp.ne.s32.totalorder %s243, %s245
      %p249 = scmp.eq.s32.totalorder %s29, 0
      %p250 = por %p248, %p249
      %p251 = scmp.ne.s32.totalorder %s243, %s245
      %p252 = scmp.eq.s32.totalorder %s34, 15
      %p253 = por %p251, %p252
      %p254 = scmp.ne.s32.totalorder %s245, %s246
      %p255 = scmp.eq.s32.totalorder %s34, 0
      %p256 = por %p254, %p255
      %p257 = scmp.ne.s32.totalorder %s245, %s246
      %p258 = scmp.eq.s32.totalorder %s35, 15
      %p259 = por %p257, %p258
      %p261 = scmp.ne.s32.totalorder %s246, %s260
      %p262 = scmp.eq.s32.totalorder %s35, 0
      %p263 = por %p261, %p262
      %s265 = sadd.s32 %s264, 1
      %p268 = scmp.eq.s32.totalorder %s29, 15
      %p269 = scmp.ne.s32.totalorder %s264, %s266
      %p270 = scmp.eq.s32.totalorder %s29, 0
      %p271 = por %p269, %p270
      %p272 = scmp.ne.s32.totalorder %s264, %s266
      %p273 = scmp.eq.s32.totalorder %s34, 15
      %p274 = por %p272, %p273
      %p275 = scmp.ne.s32.totalorder %s266, %s267
      %p276 = scmp.eq.s32.totalorder %s34, 0
      %p277 = por %p275, %p276
      %p278 = scmp.ne.s32.totalorder %s266, %s267
      %p279 = scmp.eq.s32.totalorder %s35, 15
      %p280 = por %p278, %p279
      %p282 = scmp.ne.s32.totalorder %s267, %s281
      %p283 = scmp.eq.s32.totalorder %s35, 0
      %p284 = por %p282, %p283
      %s286 = sadd.s32 %s285, 1
      %p289 = scmp.eq.s32.totalorder %s29, 15
      %p290 = scmp.ne.s32.totalorder %s285, %s287
      %p291 = scmp.eq.s32.totalorder %s29, 0
      %p292 = por %p290, %p291
      %p293 = scmp.ne.s32.totalorder %s285, %s287
      %p294 = scmp.eq.s32.totalorder %s34, 15
      %p295 = por %p293, %p294
      %p296 = scmp.ne.s32.totalorder %s287, %s288
      %p297 = scmp.eq.s32.totalorder %s34, 0
      %p298 = por %p296, %p297
      %p299 = scmp.ne.s32.totalorder %s287, %s288
      %p300 = scmp.eq.s32.totalorder %s35, 15
      %p301 = por %p299, %p300
      %p303 = scmp.ne.s32.totalorder %s288, %s302
      %p304 = scmp.eq.s32.totalorder %s35, 0
      %p305 = por %p303, %p304
      %s307 = sadd.s32 %s306, 1
      %p310 = scmp.eq.s32.totalorder %s29, 15
      %p311 = scmp.ne.s32.totalorder %s306, %s308
      %p312 = scmp.eq.s32.totalorder %s29, 0
      %p313 = por %p311, %p312
      %p314 = scmp.ne.s32.totalorder %s306, %s308
      %p315 = scmp.eq.s32.totalorder %s34, 15
      %p316 = por %p314, %p315
      %p317 = scmp.ne.s32.totalorder %s308, %s309
      %p318 = scmp.eq.s32.totalorder %s34, 0
      %p319 = por %p317, %p318
      %p320 = scmp.ne.s32.totalorder %s308, %s309
      %p321 = scmp.eq.s32.totalorder %s35, 15
      %p322 = por %p320, %p321
      %p324 = scmp.ne.s32.totalorder %s309, %s323
      %p325 = scmp.eq.s32.totalorder %s35, 0
      %p326 = por %p324, %p325
      %s328 = sadd.s32 %s327, 1
      %p331 = scmp.eq.s32.totalorder %s29, 15
      %p332 = scmp.ne.s32.totalorder %s327, %s329
      %p333 = scmp.eq.s32.totalorder %s29, 0
      %p334 = por %p332, %p333
      %p335 = scmp.ne.s32.totalorder %s327, %s329
      %p336 = scmp.eq.s32.totalorder %s34, 15
      %p337 = por %p335, %p336
      %p338 = scmp.ne.s32.totalorder %s329, %s330
      %p339 = scmp.eq.s32.totalorder %s34, 0
      %p340 = por %p338, %p339
      %p341 = scmp.ne.s32.totalorder %s329, %s330
      %p342 = scmp.eq.s32.totalorder %s35, 15
      %p343 = por %p341, %p342
      %p345 = scmp.ne.s32.totalorder %s330, %s344
      %p346 = scmp.eq.s32.totalorder %s35, 0
      %p347 = por %p345, %p346
      %s349 = sadd.s32 %s348, 1
      %p352 = scmp.eq.s32.totalorder %s29, 15
      %p353 = scmp.ne.s32.totalorder %s348, %s350
      %p354 = scmp.eq.s32.totalorder %s29, 0
      %p355 = por %p353, %p354
      %p356 = scmp.ne.s32.totalorder %s348, %s350
      %p357 = scmp.eq.s32.totalorder %s34, 15
      %p358 = por %p356, %p357
      %p359 = scmp.ne.s32.totalorder %s350, %s351
      %p360 = scmp.eq.s32.totalorder %s34, 0
      %p361 = por %p359, %p360
      %p362 = scmp.ne.s32.totalorder %s350, %s351
      %p363 = scmp.eq.s32.totalorder %s35, 15
      %p364 = por %p362, %p363
      %p366 = scmp.ne.s32.totalorder %s351, %s365
      %p367 = scmp.eq.s32.totalorder %s35, 0
      %p368 = por %p366, %p367
      %s370 = sadd.s32 %s369, 1
      %p373 = scmp.eq.s32.totalorder %s29, 15
      %p374 = scmp.ne.s32.totalorder %s369, %s371
      %p375 = scmp.eq.s32.totalorder %s29, 0
      %p376 = por %p374, %p375
      %p377 = scmp.ne.s32.totalorder %s369, %s371
      %p378 = scmp.eq.s32.totalorder %s34, 15
      %p379 = por %p377, %p378
      %p380 = scmp.ne.s32.totalorder %s371, %s372
      %p381 = scmp.eq.s32.totalorder %s34, 0
      %p382 = por %p380, %p381
      %p383 = scmp.ne.s32.totalorder %s371, %s372
      %p384 = scmp.eq.s32.totalorder %s35, 15
      %p385 = por %p383, %p384
      %p387 = scmp.ne.s32.totalorder %s372, %s386
      %p388 = scmp.eq.s32.totalorder %s35, 0
      %p389 = por %p387, %p388
      %s390 = ssub.s32 %s36, %s48
      %p391 = scmp.eq.s32.totalorder %s390, 0
      %s393 = sadd.s32 %s392, 1
      %s394 = scalar_select %p391, %s392, %s393
      %p397 = pneg %p391
      %p398 = scmp.eq.s32.totalorder %s29, 15
      %p399 = por %p397, %p398
      %p400 = scmp.ne.s32.totalorder %s392, %s395
      %p401 = scmp.eq.s32.totalorder %s29, 0
      %p402 = por %p400, %p401
      %p403 = scmp.ne.s32.totalorder %s392, %s395
      %p404 = scmp.eq.s32.totalorder %s34, 15
      %p405 = por %p403, %p404
      %p406 = scmp.ne.s32.totalorder %s395, %s396
      %p407 = scmp.eq.s32.totalorder %s34, 0
      %p408 = por %p406, %p407
      %p409 = scmp.ne.s32.totalorder %s395, %s396
      %p410 = scmp.eq.s32.totalorder %s35, 15
      %p411 = por %p409, %p410
      %p413 = scmp.ne.s32.totalorder %s396, %s412
      %p414 = scmp.eq.s32.totalorder %s35, 0
      %p415 = por %p413, %p414
      %p416 = scmp.le.s32.totalorder 1, %s29
      %p417 = scmp.lt.s32.totalorder %s29, 17
      %p418 = pnand %p416, %p417
      %p419 = pneg %p418
      // Predicated region
      $region9: #{tpu_custom_call.1} parent=5 // pred_check
        _
      $region10: #{tpu_custom_call.1} parent=5 // pred_check_branch
        %421 = sbr.rel (%p418) target = $region12
      $region11: #{tpu_custom_call.1} parent=5 // pred_region
        %s422 = ssub.s32 %s29, 1
        // Predicated region
        $region13: #{tpu_custom_call.1} parent=11 // pred_check
          %p423 = pneg %p88
        $region14: #{tpu_custom_call.1} parent=11 // pred_check_branch
          %425 = sbr.rel (%p423) target = $region16
        $region15: #{tpu_custom_call.1} parent=11 // pred_region
          _
        $region16: #{tpu_custom_call.1} parent=11 // pred_fallthru
          _
        // Predicated region
        $region17: #{tpu_custom_call.1} parent=11 // pred_check
          %p426 = pneg %p109
        $region18: #{tpu_custom_call.1} parent=11 // pred_check_branch
          %428 = sbr.rel (%p426) target = $region20
        $region19: #{tpu_custom_call.1} parent=11 // pred_region
          %s430 = ssub.s32 128, 128
          %431 = vsyncadd [#allocation4], %s430
          %s432 = sshll.u32 [#allocation3], 4
          %s433 = int_to_ptr.vmem [resolvable:$true] %s432
          %438 = dma.hbm_to_vmem [thread:$0]  %s2, 128, %s433, [#allocation4], 16, 16, 1
        $region20: #{tpu_custom_call.1} parent=11 // pred_fallthru
          _
        // Predicated region
        $region21: #{tpu_custom_call.1} parent=11 // pred_check
          %p439 = pneg %p130
        $region22: #{tpu_custom_call.1} parent=11 // pred_check_branch
          %441 = sbr.rel (%p439) target = $region24
        $region23: #{tpu_custom_call.1} parent=11 // pred_region
          %s443 = ssub.s32 128, 128
          %444 = vsyncadd [#allocation7], %s443
          %s445 = sshll.u32 [#allocation6], 4
          %s446 = int_to_ptr.vmem [resolvable:$true] %s445
          %451 = dma.hbm_to_vmem [thread:$0]  %s3, 128, %s446, [#allocation7], 16, 16, 1
        $region24: #{tpu_custom_call.1} parent=11 // pred_fallthru
          _
        // Predicated region
        $region25: #{tpu_custom_call.1} parent=11 // pred_check
          %p452 = pneg %p151
        $region26: #{tpu_custom_call.1} parent=11 // pred_check_branch
          %454 = sbr.rel (%p452) target = $region28
        $region27: #{tpu_custom_call.1} parent=11 // pred_region
          _
        $region28: #{tpu_custom_call.1} parent=11 // pred_fallthru
          _
        // Predicated region
        $region29: #{tpu_custom_call.1} parent=11 // pred_check
          %p455 = pneg %p172
        $region30: #{tpu_custom_call.1} parent=11 // pred_check_branch
          %457 = sbr.rel (%p455) target = $region32
        $region31: #{tpu_custom_call.1} parent=11 // pred_region
          %s459 = ssub.s32 128, 128
          %460 = vsyncadd [#allocation7], %s459
          %s461 = sshll.u32 [#allocation8], 4
          %s462 = int_to_ptr.vmem [resolvable:$true] %s461
          %467 = dma.hbm_to_vmem [thread:$0]  %s5, 128, %s462, [#allocation7], 16, 16, 1
        $region32: #{tpu_custom_call.1} parent=11 // pred_fallthru
          _
        // Predicated region
        $region33: #{tpu_custom_call.1} parent=11 // pred_check
          %p468 = pneg %p193
        $region34: #{tpu_custom_call.1} parent=11 // pred_check_branch
          %470 = sbr.rel (%p468) target = $region36
        $region35: #{tpu_custom_call.1} parent=11 // pred_region
          %s472 = ssub.s32 128, 128
          %473 = vsyncadd [#allocation10], %s472
          %s474 = sshll.u32 [#allocation9], 4
          %s475 = int_to_ptr.vmem [resolvable:$true] %s474
          %480 = dma.hbm_to_vmem [thread:$0]  %s6, 128, %s475, [#allocation10], 16, 16, 1
        $region36: #{tpu_custom_call.1} parent=11 // pred_fallthru
          _
        // Predicated region
        $region37: #{tpu_custom_call.1} parent=11 // pred_check
          %p481 = pneg %p214
        $region38: #{tpu_custom_call.1} parent=11 // pred_check_branch
          %483 = sbr.rel (%p481) target = $region40
        $region39: #{tpu_custom_call.1} parent=11 // pred_region
          %s485 = ssub.s32 128, 128
          %486 = vsyncadd [#allocation10], %s485
          %s487 = sshll.u32 [#allocation11], 4
          %s488 = int_to_ptr.vmem [resolvable:$true] %s487
          %493 = dma.hbm_to_vmem [thread:$0]  %s7, 128, %s488, [#allocation10], 16, 16, 1
        $region40: #{tpu_custom_call.1} parent=11 // pred_fallthru
          _
        // Predicated region
        $region41: #{tpu_custom_call.1} parent=11 // pred_check
          %p494 = pneg %p235
        $region42: #{tpu_custom_call.1} parent=11 // pred_check_branch
          %496 = sbr.rel (%p494) target = $region44
        $region43: #{tpu_custom_call.1} parent=11 // pred_region
          _
        $region44: #{tpu_custom_call.1} parent=11 // pred_fallthru
          _
        // Predicated region
        $region45: #{tpu_custom_call.1} parent=11 // pred_check
          %p497 = pneg %p256
        $region46: #{tpu_custom_call.1} parent=11 // pred_check_branch
          %499 = sbr.rel (%p497) target = $region48
        $region47: #{tpu_custom_call.1} parent=11 // pred_region
          %s501 = ssub.s32 256, 256
          %502 = vsyncadd [#allocation13], %s501
          %s503 = sshll.u32 [#allocation12], 4
          %s504 = int_to_ptr.vmem [resolvable:$true] %s503
          %509 = dma.hbm_to_vmem [thread:$0]  %s9, 256, %s504, [#allocation13], 32, 32, 2
        $region48: #{tpu_custom_call.1} parent=11 // pred_fallthru
          _
        // Predicated region
        $region49: #{tpu_custom_call.1} parent=11 // pred_check
          %p510 = pneg %p277
        $region50: #{tpu_custom_call.1} parent=11 // pred_check_branch
          %512 = sbr.rel (%p510) target = $region52
        $region51: #{tpu_custom_call.1} parent=11 // pred_region
          _
        $region52: #{tpu_custom_call.1} parent=11 // pred_fallthru
          _
        // Predicated region
        $region53: #{tpu_custom_call.1} parent=11 // pred_check
          %p513 = pneg %p298
        $region54: #{tpu_custom_call.1} parent=11 // pred_check_branch
          %515 = sbr.rel (%p513) target = $region56
        $region55: #{tpu_custom_call.1} parent=11 // pred_region
          _
        $region56: #{tpu_custom_call.1} parent=11 // pred_fallthru
          _
        // Predicated region
        $region57: #{tpu_custom_call.1} parent=11 // pred_check
          %p516 = pneg %p319
        $region58: #{tpu_custom_call.1} parent=11 // pred_check_branch
          %518 = sbr.rel (%p516) target = $region60
        $region59: #{tpu_custom_call.1} parent=11 // pred_region
          _
        $region60: #{tpu_custom_call.1} parent=11 // pred_fallthru
          _
        // Predicated region
        $region61: #{tpu_custom_call.1} parent=11 // pred_check
          %p519 = pneg %p340
        $region62: #{tpu_custom_call.1} parent=11 // pred_check_branch
          %521 = sbr.rel (%p519) target = $region64
        $region63: #{tpu_custom_call.1} parent=11 // pred_region
          _
        $region64: #{tpu_custom_call.1} parent=11 // pred_fallthru
          _
        // Predicated region
        $region65: #{tpu_custom_call.1} parent=11 // pred_check
          %p522 = pneg %p361
        $region66: #{tpu_custom_call.1} parent=11 // pred_check_branch
          %524 = sbr.rel (%p522) target = $region68
        $region67: #{tpu_custom_call.1} parent=11 // pred_region
          %s526 = ssub.s32 512, 512
          %527 = vsyncadd [#allocation13], %s526
          %s528 = sshll.u32 [#allocation14], 4
          %s529 = int_to_ptr.vmem [resolvable:$true] %s528
          %534 = dma.hbm_to_vmem [thread:$0]  %s14, 512, %s529, [#allocation13], 64, 64, 4
        $region68: #{tpu_custom_call.1} parent=11 // pred_fallthru
          _
        // Predicated region
        $region69: #{tpu_custom_call.1} parent=11 // pred_check
          %p535 = pneg %p382
        $region70: #{tpu_custom_call.1} parent=11 // pred_check_branch
          %537 = sbr.rel (%p535) target = $region72
        $region71: #{tpu_custom_call.1} parent=11 // pred_region
          _
        $region72: #{tpu_custom_call.1} parent=11 // pred_fallthru
          _
      $region12: #{tpu_custom_call.1} parent=5 // pred_fallthru
        _
      %p538 = scmp.lt.s32.totalorder %s29, 16
      // Predicated region
      $region73: #{tpu_custom_call.1} parent=5 // pred_check
        %p539 = pneg %p538
      $region74: #{tpu_custom_call.1} parent=5 // pred_check_branch
        %541 = sbr.rel (%p539) target = $region76
      $region75: #{tpu_custom_call.1} parent=5 // pred_region
        // Predicated region
        $region77: #{tpu_custom_call.1} parent=75 // pred_check
          %p542 = pneg %p61
        $region78: #{tpu_custom_call.1} parent=75 // pred_check_branch
          %544 = sbr.rel (%p542) target = $region80
        $region79: #{tpu_custom_call.1} parent=75 // pred_region
          %p545 = scmp.lt.s32.totalorder %s36, 1
          %s546 = scalar_select %p545, %s36, 1
          %s547 = smul.addr %s546, 16
          %s548 = smul.addr %s547, 8
          %s549 = scalar_lea.vmem %s0, %s548
        $region80: #{tpu_custom_call.1} parent=75 // pred_fallthru
          _
      $region76: #{tpu_custom_call.1} parent=5 // pred_fallthru
        _
      %p550 = scmp.le.s32.totalorder 1, %s29
      %p551 = scmp.lt.s32.totalorder %s29, 17
      %p552 = pnand %p550, %p551
      %p553 = pneg %p552
      // Predicated region
      $region81: #{tpu_custom_call.1} parent=5 // pred_check
        _
      $region82: #{tpu_custom_call.1} parent=5 // pred_check_branch
        %555 = sbr.rel (%p552) target = $region84
      $region83: #{tpu_custom_call.1} parent=5 // pred_region
        %s556 = ssub.s32 %s29, 1
        // Predicated region
        $region85: #{tpu_custom_call.1} parent=83 // pred_check
          %p557 = pneg %p109
        $region86: #{tpu_custom_call.1} parent=83 // pred_check_branch
          %559 = sbr.rel (%p557) target = $region88
        $region87: #{tpu_custom_call.1} parent=83 // pred_region
          %560 = dma.done [#allocation4], 128
        $region88: #{tpu_custom_call.1} parent=83 // pred_fallthru
          _
        // Predicated region
        $region89: #{tpu_custom_call.1} parent=83 // pred_check
          %p561 = pneg %p130
        $region90: #{tpu_custom_call.1} parent=83 // pred_check_branch
          %563 = sbr.rel (%p561) target = $region92
        $region91: #{tpu_custom_call.1} parent=83 // pred_region
          %564 = dma.done [#allocation7], 128
        $region92: #{tpu_custom_call.1} parent=83 // pred_fallthru
          _
        // Predicated region
        $region93: #{tpu_custom_call.1} parent=83 // pred_check
          %p565 = pneg %p172
        $region94: #{tpu_custom_call.1} parent=83 // pred_check_branch
          %567 = sbr.rel (%p565) target = $region96
        $region95: #{tpu_custom_call.1} parent=83 // pred_region
          %568 = dma.done [#allocation7], 128
        $region96: #{tpu_custom_call.1} parent=83 // pred_fallthru
          _
        // Predicated region
        $region97: #{tpu_custom_call.1} parent=83 // pred_check
          %p569 = pneg %p193
        $region98: #{tpu_custom_call.1} parent=83 // pred_check_branch
          %571 = sbr.rel (%p569) target = $region100
        $region99: #{tpu_custom_call.1} parent=83 // pred_region
          %572 = dma.done [#allocation10], 128
        $region100: #{tpu_custom_call.1} parent=83 // pred_fallthru
          _
        // Predicated region
        $region101: #{tpu_custom_call.1} parent=83 // pred_check
          %p573 = pneg %p214
        $region102: #{tpu_custom_call.1} parent=83 // pred_check_branch
          %575 = sbr.rel (%p573) target = $region104
        $region103: #{tpu_custom_call.1} parent=83 // pred_region
          %576 = dma.done [#allocation10], 128
        $region104: #{tpu_custom_call.1} parent=83 // pred_fallthru
          _
        // Predicated region
        $region105: #{tpu_custom_call.1} parent=83 // pred_check
          %p577 = pneg %p256
        $region106: #{tpu_custom_call.1} parent=83 // pred_check_branch
          %579 = sbr.rel (%p577) target = $region108
        $region107: #{tpu_custom_call.1} parent=83 // pred_region
          %580 = dma.done [#allocation13], 256
        $region108: #{tpu_custom_call.1} parent=83 // pred_fallthru
          _
        // Predicated region
        $region109: #{tpu_custom_call.1} parent=83 // pred_check
          %p581 = pneg %p361
        $region110: #{tpu_custom_call.1} parent=83 // pred_check_branch
          %583 = sbr.rel (%p581) target = $region112
        $region111: #{tpu_custom_call.1} parent=83 // pred_region
          %584 = dma.done [#allocation13], 512
        $region112: #{tpu_custom_call.1} parent=83 // pred_fallthru
          _
        %p585 = scmp.lt.s32.totalorder %s38, 1
        %s586 = scalar_select %p585, %s38, 1
        %s587 = smul.addr %s586, 16
        %s588 = smul.addr %s587, 8
        %s589 = scalar_lea.vmem %s0, %s588
        %p590 = pneg %p67
        %p591 = pneg %p64
        %p592 = pneg %p88
        %p593 = pneg %p85
        %p594 = pneg %p109
        %p595 = pneg %p106
        %p596 = pneg %p130
        %p597 = pneg %p127
        %p598 = pneg %p151
        %p599 = pneg %p148
        %p600 = pneg %p172
        %p601 = pneg %p169
        %p602 = pneg %p193
        %p603 = pneg %p190
        %p604 = pneg %p214
        %p605 = pneg %p211
        %p606 = pneg %p235
        %p607 = pneg %p232
        %p608 = pneg %p256
        %p609 = pneg %p253
        %p610 = pneg %p277
        %p611 = pneg %p274
        %p612 = pneg %p298
        %p613 = pneg %p295
        %p614 = pneg %p319
        %p615 = pneg %p316
        %p616 = pneg %p340
        %p617 = pneg %p337
        %p618 = pneg %p361
        %p619 = pneg %p358
        %p620 = pneg %p382
        %p621 = pneg %p379
        %p622 = pneg %p408
        %p623 = pneg %p405
        %s624 = sand.u32 %s395, 1
        %s625 = scalar_lea.sflag [#allocation5], %s624
        %s626 = sand.u32 %s395, 1
        %s627 = smul.addr %s626, 128
        %s628 = scalar_lea.vmem [#allocation15], %s627
        %p629 = scmp.lt.s32.totalorder %s38, 1
        %s630 = scalar_select %p629, %s38, 1
        %s631 = smul.addr %s630, 16
        %s632 = smul.addr %s631, 8
        %s633 = scalar_lea.vmem %s0, %s632
        %p635 = scmp.eq.s32.totalorder %s39, 0
        // Predicated region
        $region113: #{tpu_custom_call.1} parent=83 // pred_check
          %p636 = pneg %p635
        $region114: #{tpu_custom_call.1} parent=83 // pred_check_branch
          %638 = sbr.rel (%p636) target = $region116
        $region115: #{tpu_custom_call.1} parent=83 // pred_region
          %v639 = vld [vmem:[%s633] sm:$0xff]
          %v640 = vld [vmem:[%s633 + $0x8] sm:$0xff]
          %v641 = vld [vmem:[%s633 + $0x10] sm:$0xff]
          %v642 = vld [vmem:[%s633 + $0x18] sm:$0xff]
          %v643 = vld [vmem:[%s633 + $0x20] sm:$0xff]
          %v644 = vld [vmem:[%s633 + $0x28] sm:$0xff]
          %v645 = vld [vmem:[%s633 + $0x30] sm:$0xff]
          %v646 = vld [vmem:[%s633 + $0x38] sm:$0xff]
          %v647 = vld [vmem:[%s633 + $0x40] sm:$0xff]
          %v648 = vld [vmem:[%s633 + $0x48] sm:$0xff]
          %v649 = vld [vmem:[%s633 + $0x50] sm:$0xff]
          %v650 = vld [vmem:[%s633 + $0x58] sm:$0xff]
          %v651 = vld [vmem:[%s633 + $0x60] sm:$0xff]
          %v652 = vld [vmem:[%s633 + $0x68] sm:$0xff]
          %v653 = vld [vmem:[%s633 + $0x70] sm:$0xff]
          %v654 = vld [vmem:[%s633 + $0x78] sm:$0xff]
          %vm655 = vcmask 523264
          %656 = vst.msk [vmem:[#allocation2] sm:$0xff] %vm655, %v639
          %657 = vst.msk [vmem:[#allocation2 + $0x8] sm:$0xff] %vm655, %v640
          %658 = vst.msk [vmem:[#allocation2 + $0x10] sm:$0xff] %vm655, %v641
          %659 = vst.msk [vmem:[#allocation2 + $0x18] sm:$0xff] %vm655, %v642
          %660 = vst.msk [vmem:[#allocation2 + $0x20] sm:$0xff] %vm655, %v643
          %661 = vst.msk [vmem:[#allocation2 + $0x28] sm:$0xff] %vm655, %v644
          %662 = vst.msk [vmem:[#allocation2 + $0x30] sm:$0xff] %vm655, %v645
          %663 = vst.msk [vmem:[#allocation2 + $0x38] sm:$0xff] %vm655, %v646
          %664 = vst.msk [vmem:[#allocation2 + $0x40] sm:$0xff] %vm655, %v647
          %665 = vst.msk [vmem:[#allocation2 + $0x48] sm:$0xff] %vm655, %v648
          %666 = vst.msk [vmem:[#allocation2 + $0x50] sm:$0xff] %vm655, %v649
          %667 = vst.msk [vmem:[#allocation2 + $0x58] sm:$0xff] %vm655, %v650
          %668 = vst.msk [vmem:[#allocation2 + $0x60] sm:$0xff] %vm655, %v651
          %669 = vst.msk [vmem:[#allocation2 + $0x68] sm:$0xff] %vm655, %v652
          %670 = vst.msk [vmem:[#allocation2 + $0x70] sm:$0xff] %vm655, %v653
          %671 = vst.msk [vmem:[#allocation2 + $0x78] sm:$0xff] %vm655, %v654
        $region116: #{tpu_custom_call.1} parent=83 // pred_fallthru
          _
        %v672 = vld [vmem:[#allocation2] sm:$0xff]
        %v673 = vld [vmem:[#allocation2 + $0x8] sm:$0xff]
        %v674 = vld [vmem:[#allocation2 + $0x10] sm:$0xff]
        %v675 = vld [vmem:[#allocation2 + $0x18] sm:$0xff]
        %v676 = vld [vmem:[#allocation2 + $0x20] sm:$0xff]
        %v677 = vld [vmem:[#allocation2 + $0x28] sm:$0xff]
        %v678 = vld [vmem:[#allocation2 + $0x30] sm:$0xff]
        %v679 = vld [vmem:[#allocation2 + $0x38] sm:$0xff]
        %v680 = vld [vmem:[#allocation2 + $0x40] sm:$0xff]
        %v681 = vld [vmem:[#allocation2 + $0x48] sm:$0xff]
        %v682 = vld [vmem:[#allocation2 + $0x50] sm:$0xff]
        %v683 = vld [vmem:[#allocation2 + $0x58] sm:$0xff]
        %v684 = vld [vmem:[#allocation2 + $0x60] sm:$0xff]
        %v685 = vld [vmem:[#allocation2 + $0x68] sm:$0xff]
        %v686 = vld [vmem:[#allocation2 + $0x70] sm:$0xff]
        %v687 = vld [vmem:[#allocation2 + $0x78] sm:$0xff]
        %s688 = scalar_lea.vmem [#allocation3], %s39
        %v689 = vld [vmem:[%s688] sm:$0x1]
        %s690 = scalar_lea.vmem [#allocation6], %s39
        %v691 = vld [vmem:[%s690] sm:$0x1]
        %vm692 = vcmask 523264
        %v693 = vsel %vm692, %v672, 0.0
        %694 = vadd.xlane.f32.xlu0 %v693
        %v695 = vpop.xlane.xlu0 %694
        %v696 = vsel %vm692, %v673, 0.0
        %697 = vadd.xlane.f32.xlu0 %v696
        %v698 = vpop.xlane.xlu0 %697
        %v699 = vsel %vm692, %v674, 0.0
        %700 = vadd.xlane.f32.xlu0 %v699
        %v701 = vpop.xlane.xlu0 %700
        %v702 = vsel %vm692, %v675, 0.0
        %703 = vadd.xlane.f32.xlu0 %v702
        %v704 = vpop.xlane.xlu0 %703
        %v705 = vsel %vm692, %v676, 0.0
        %706 = vadd.xlane.f32.xlu0 %v705
        %v707 = vpop.xlane.xlu0 %706
        %v708 = vsel %vm692, %v677, 0.0
        %709 = vadd.xlane.f32.xlu0 %v708
        %v710 = vpop.xlane.xlu0 %709
        %v711 = vsel %vm692, %v678, 0.0
        %712 = vadd.xlane.f32.xlu0 %v711
        %v713 = vpop.xlane.xlu0 %712
        %v714 = vsel %vm692, %v679, 0.0
        %715 = vadd.xlane.f32.xlu0 %v714
        %v716 = vpop.xlane.xlu0 %715
        %v717 = vsel %vm692, %v680, 0.0
        %718 = vadd.xlane.f32.xlu0 %v717
        %v719 = vpop.xlane.xlu0 %718
        %v720 = vsel %vm692, %v681, 0.0
        %721 = vadd.xlane.f32.xlu0 %v720
        %v722 = vpop.xlane.xlu0 %721
        %v723 = vsel %vm692, %v682, 0.0
        %724 = vadd.xlane.f32.xlu0 %v723
        %v725 = vpop.xlane.xlu0 %724
        %v726 = vsel %vm692, %v683, 0.0
        %727 = vadd.xlane.f32.xlu0 %v726
        %v728 = vpop.xlane.xlu0 %727
        %v729 = vsel %vm692, %v684, 0.0
        %730 = vadd.xlane.f32.xlu0 %v729
        %v731 = vpop.xlane.xlu0 %730
        %v732 = vsel %vm692, %v685, 0.0
        %733 = vadd.xlane.f32.xlu0 %v732
        %v734 = vpop.xlane.xlu0 %733
        %v735 = vsel %vm692, %v686, 0.0
        %736 = vadd.xlane.f32.xlu0 %v735
        %v737 = vpop.xlane.xlu0 %736
        %v738 = vsel %vm692, %v687, 0.0
        %739 = vadd.xlane.f32.xlu0 %v738
        %v740 = vpop.xlane.xlu0 %739
        %v741 = vrcp.pop 64.0
        %v742 = vmul.f32 %v695, %v741
        %v743 = vmul.f32 %v698, %v741
        %v744 = vmul.f32 %v701, %v741
        %v745 = vmul.f32 %v704, %v741
        %v746 = vmul.f32 %v707, %v741
        %v747 = vmul.f32 %v710, %v741
        %v748 = vmul.f32 %v713, %v741
        %v749 = vmul.f32 %v716, %v741
        %v750 = vmul.f32 %v719, %v741
        %v751 = vmul.f32 %v722, %v741
        %v752 = vmul.f32 %v725, %v741
        %v753 = vmul.f32 %v728, %v741
        %v754 = vmul.f32 %v731, %v741
        %v755 = vmul.f32 %v734, %v741
        %v756 = vmul.f32 %v737, %v741
        %v757 = vmul.f32 %v740, %v741
        %v758 = vsub.f32 %v672, %v742
        %v759 = vsub.f32 %v673, %v743
        %v760 = vsub.f32 %v674, %v744
        %v761 = vsub.f32 %v675, %v745
        %v762 = vsub.f32 %v676, %v746
        %v763 = vsub.f32 %v677, %v747
        %v764 = vsub.f32 %v678, %v748
        %v765 = vsub.f32 %v679, %v749
        %v766 = vsub.f32 %v680, %v750
        %v767 = vsub.f32 %v681, %v751
        %v768 = vsub.f32 %v682, %v752
        %v769 = vsub.f32 %v683, %v753
        %v770 = vsub.f32 %v684, %v754
        %v771 = vsub.f32 %v685, %v755
        %v772 = vsub.f32 %v686, %v756
        %v773 = vsub.f32 %v687, %v757
        %v774 = vmul.f32 %v758, %v758
        %v775 = vmul.f32 %v759, %v759
        %v776 = vmul.f32 %v760, %v760
        %v777 = vmul.f32 %v761, %v761
        %v778 = vmul.f32 %v762, %v762
        %v779 = vmul.f32 %v763, %v763
        %v780 = vmul.f32 %v764, %v764
        %v781 = vmul.f32 %v765, %v765
        %v782 = vmul.f32 %v766, %v766
        %v783 = vmul.f32 %v767, %v767
        %v784 = vmul.f32 %v768, %v768
        %v785 = vmul.f32 %v769, %v769
        %v786 = vmul.f32 %v770, %v770
        %v787 = vmul.f32 %v771, %v771
        %v788 = vmul.f32 %v772, %v772
        %v789 = vmul.f32 %v773, %v773
        %v790 = vsel %vm692, %v774, 0.0
        %791 = vadd.xlane.f32.xlu0 %v790
        %v792 = vpop.xlane.xlu0 %791
        %v793 = vsel %vm692, %v775, 0.0
        %794 = vadd.xlane.f32.xlu0 %v793
        %v795 = vpop.xlane.xlu0 %794
        %v796 = vsel %vm692, %v776, 0.0
        %797 = vadd.xlane.f32.xlu0 %v796
        %v798 = vpop.xlane.xlu0 %797
        %v799 = vsel %vm692, %v777, 0.0
        %800 = vadd.xlane.f32.xlu0 %v799
        %v801 = vpop.xlane.xlu0 %800
        %v802 = vsel %vm692, %v778, 0.0
        %803 = vadd.xlane.f32.xlu0 %v802
        %v804 = vpop.xlane.xlu0 %803
        %v805 = vsel %vm692, %v779, 0.0
        %806 = vadd.xlane.f32.xlu0 %v805
        %v807 = vpop.xlane.xlu0 %806
        %v808 = vsel %vm692, %v780, 0.0
        %809 = vadd.xlane.f32.xlu0 %v808
        %v810 = vpop.xlane.xlu0 %809
        %v811 = vsel %vm692, %v781, 0.0
        %812 = vadd.xlane.f32.xlu0 %v811
        %v813 = vpop.xlane.xlu0 %812
        %v814 = vsel %vm692, %v782, 0.0
        %815 = vadd.xlane.f32.xlu0 %v814
        %v816 = vpop.xlane.xlu0 %815
        %v817 = vsel %vm692, %v783, 0.0
        %818 = vadd.xlane.f32.xlu0 %v817
        %v819 = vpop.xlane.xlu0 %818
        %v820 = vsel %vm692, %v784, 0.0
        %821 = vadd.xlane.f32.xlu0 %v820
        %v822 = vpop.xlane.xlu0 %821
        %v823 = vsel %vm692, %v785, 0.0
        %824 = vadd.xlane.f32.xlu0 %v823
        %v825 = vpop.xlane.xlu0 %824
        %v826 = vsel %vm692, %v786, 0.0
        %827 = vadd.xlane.f32.xlu0 %v826
        %v828 = vpop.xlane.xlu0 %827
        %v829 = vsel %vm692, %v787, 0.0
        %830 = vadd.xlane.f32.xlu0 %v829
        %v831 = vpop.xlane.xlu0 %830
        %v832 = vsel %vm692, %v788, 0.0
        %833 = vadd.xlane.f32.xlu0 %v832
        %v834 = vpop.xlane.xlu0 %833
        %v835 = vsel %vm692, %v789, 0.0
        %836 = vadd.xlane.f32.xlu0 %v835
        %v837 = vpop.xlane.xlu0 %836
        %v838 = vmul.f32 %v792, %v741
        %v839 = vmul.f32 %v795, %v741
        %v840 = vmul.f32 %v798, %v741
        %v841 = vmul.f32 %v801, %v741
        %v842 = vmul.f32 %v804, %v741
        %v843 = vmul.f32 %v807, %v741
        %v844 = vmul.f32 %v810, %v741
        %v845 = vmul.f32 %v813, %v741
        %v846 = vmul.f32 %v816, %v741
        %v847 = vmul.f32 %v819, %v741
        %v848 = vmul.f32 %v822, %v741
        %v849 = vmul.f32 %v825, %v741
        %v850 = vmul.f32 %v828, %v741
        %v851 = vmul.f32 %v831, %v741
        %v852 = vmul.f32 %v834, %v741
        %v853 = vmul.f32 %v837, %v741
        %v854 = vadd.f32 %v838, 1e-05
        %v855 = vadd.f32 %v839, 1e-05
        %v856 = vadd.f32 %v840, 1e-05
        %v857 = vadd.f32 %v841, 1e-05
        %v858 = vadd.f32 %v842, 1e-05
        %v859 = vadd.f32 %v843, 1e-05
        %v860 = vadd.f32 %v844, 1e-05
        %v861 = vadd.f32 %v845, 1e-05
        %v862 = vadd.f32 %v846, 1e-05
        %v863 = vadd.f32 %v847, 1e-05
        %v864 = vadd.f32 %v848, 1e-05
        %v865 = vadd.f32 %v849, 1e-05
        %v866 = vadd.f32 %v850, 1e-05
        %v867 = vadd.f32 %v851, 1e-05
        %v868 = vadd.f32 %v852, 1e-05
        %v869 = vadd.f32 %v853, 1e-05
        %v870 = vrsqrt.pop %v854
        %v871 = vrsqrt.pop %v855
        %v872 = vrsqrt.pop %v856
        %v873 = vrsqrt.pop %v857
        %v874 = vrsqrt.pop %v858
        %v875 = vrsqrt.pop %v859
        %v876 = vrsqrt.pop %v860
        %v877 = vrsqrt.pop %v861
        %v878 = vrsqrt.pop %v862
        %v879 = vrsqrt.pop %v863
        %v880 = vrsqrt.pop %v864
        %v881 = vrsqrt.pop %v865
        %v882 = vrsqrt.pop %v866
        %v883 = vrsqrt.pop %v867
        %v884 = vrsqrt.pop %v868
        %v885 = vrsqrt.pop %v869
        %v886 = vmul.f32 %v758, %v870
        %v887 = vmul.f32 %v759, %v871
        %v888 = vmul.f32 %v760, %v872
        %v889 = vmul.f32 %v761, %v873
        %v890 = vmul.f32 %v762, %v874
        %v891 = vmul.f32 %v763, %v875
        %v892 = vmul.f32 %v764, %v876
        %v893 = vmul.f32 %v765, %v877
        %v894 = vmul.f32 %v766, %v878
        %v895 = vmul.f32 %v767, %v879
        %v896 = vmul.f32 %v768, %v880
        %v897 = vmul.f32 %v769, %v881
        %v898 = vmul.f32 %v770, %v882
        %v899 = vmul.f32 %v771, %v883
        %v900 = vmul.f32 %v772, %v884
        %v901 = vmul.f32 %v773, %v885
        %v903 = vlaneseq
        %v904 = vshrl.u32 %v903, 7
        %v905 = vsub.s32 0, %v904
        %v906 = vrot.slane %v689, %v905
        %v908 = vmul.f32 %v886, %v906
        %v909 = vmul.f32 %v887, %v906
        %v910 = vmul.f32 %v888, %v906
        %v911 = vmul.f32 %v889, %v906
        %v912 = vmul.f32 %v890, %v906
        %v913 = vmul.f32 %v891, %v906
        %v914 = vmul.f32 %v892, %v906
        %v915 = vmul.f32 %v893, %v906
        %v916 = vmul.f32 %v894, %v906
        %v917 = vmul.f32 %v895, %v906
        %v918 = vmul.f32 %v896, %v906
        %v919 = vmul.f32 %v897, %v906
        %v920 = vmul.f32 %v898, %v906
        %v921 = vmul.f32 %v899, %v906
        %v922 = vmul.f32 %v900, %v906
        %v923 = vmul.f32 %v901, %v906
        %v925 = vlaneseq
        %v926 = vshrl.u32 %v925, 7
        %v927 = vsub.s32 0, %v926
        %v928 = vrot.slane %v691, %v927
        %v930 = vadd.f32 %v908, %v928
        %v931 = vadd.f32 %v909, %v928
        %v932 = vadd.f32 %v910, %v928
        %v933 = vadd.f32 %v911, %v928
        %v934 = vadd.f32 %v912, %v928
        %v935 = vadd.f32 %v913, %v928
        %v936 = vadd.f32 %v914, %v928
        %v937 = vadd.f32 %v915, %v928
        %v938 = vadd.f32 %v916, %v928
        %v939 = vadd.f32 %v917, %v928
        %v940 = vadd.f32 %v918, %v928
        %v941 = vadd.f32 %v919, %v928
        %v942 = vadd.f32 %v920, %v928
        %v943 = vadd.f32 %v921, %v928
        %v944 = vadd.f32 %v922, %v928
        %v945 = vadd.f32 %v923, %v928
        %v946 = vpack.c.bf16 %v931, %v930
        %v947 = vpack.c.bf16 %v933, %v932
        %v948 = vpack.c.bf16 %v935, %v934
        %v949 = vpack.c.bf16 %v937, %v936
        %v950 = vpack.c.bf16 %v939, %v938
        %v951 = vpack.c.bf16 %v941, %v940
        %v952 = vpack.c.bf16 %v943, %v942
        %v953 = vpack.c.bf16 %v945, %v944
        %s954 = smul.u32 %s39, 40
        %s955 = smul.addr %s954, 4
        %s956 = scalar_lea.vmem %s4, %s955
        %v957 = vld [vmem:[%s956] sm:$0xff]
        %v958 = vld [vmem:[%s956 + $0x8] sm:$0xff]
        %v959 = vld [vmem:[%s956 + $0x10] sm:$0xf]
        %v960 = vld [vmem:[%s956 + $0x14] sm:$0xff]
        %v961 = vld [vmem:[%s956 + $0x1c] sm:$0xff]
        %v962 = vld [vmem:[%s956 + $0x24] sm:$0xf]
        %v963 = vld [vmem:[%s956 + $0x28] sm:$0xff]
        %v964 = vld [vmem:[%s956 + $0x30] sm:$0xff]
        %v965 = vld [vmem:[%s956 + $0x38] sm:$0xf]
        %v966 = vld [vmem:[%s956 + $0x3c] sm:$0xff]
        %v967 = vld [vmem:[%s956 + $0x44] sm:$0xff]
        %v968 = vld [vmem:[%s956 + $0x4c] sm:$0xf]
        %v969 = vld [vmem:[%s956 + $0x50] sm:$0xff]
        %v970 = vld [vmem:[%s956 + $0x58] sm:$0xff]
        %v971 = vld [vmem:[%s956 + $0x60] sm:$0xf]
        %v972 = vld [vmem:[%s956 + $0x64] sm:$0xff]
        %v973 = vld [vmem:[%s956 + $0x6c] sm:$0xff]
        %v974 = vld [vmem:[%s956 + $0x74] sm:$0xf]
        %v975 = vld [vmem:[%s956 + $0x78] sm:$0xff]
        %v976 = vld [vmem:[%s956 + $0x80] sm:$0xff]
        %v977 = vld [vmem:[%s956 + $0x88] sm:$0xf]
        %v978 = vld [vmem:[%s956 + $0x8c] sm:$0xff]
        %v979 = vld [vmem:[%s956 + $0x94] sm:$0xff]
        %v980 = vld [vmem:[%s956 + $0x9c] sm:$0xf]
        %v1005 = vunpack.c.l.b16 %v957
        %v1006 = vunpack.c.h.b16 %v957
        %v1007 = vunpack.c.l.b16 %v958
        %v1008 = vunpack.c.h.b16 %v958
        %v1009 = vunpack.c.l.b16 %v959
        %v1010 = vunpack.c.l.b16 %v960
        %v1011 = vunpack.c.h.b16 %v960
        %v1012 = vunpack.c.l.b16 %v961
        %v1013 = vunpack.c.h.b16 %v961
        %v1014 = vunpack.c.l.b16 %v962
        %v1015 = vunpack.c.l.b16 %v963
        %v1016 = vunpack.c.h.b16 %v963
        %v1017 = vunpack.c.l.b16 %v964
        %v1018 = vunpack.c.h.b16 %v964
        %v1019 = vunpack.c.l.b16 %v965
        %v1020 = vunpack.c.l.b16 %v966
        %v1021 = vunpack.c.h.b16 %v966
        %v1022 = vunpack.c.l.b16 %v967
        %v1023 = vunpack.c.h.b16 %v967
        %v1024 = vunpack.c.l.b16 %v968
        %v1025 = vunpack.c.l.b16 %v969
        %v1026 = vunpack.c.h.b16 %v969
        %v1027 = vunpack.c.l.b16 %v970
        %v1028 = vunpack.c.h.b16 %v970
        %v1029 = vunpack.c.l.b16 %v971
        %v1030 = vunpack.c.l.b16 %v972
        %v1031 = vunpack.c.h.b16 %v972
        %v1032 = vunpack.c.l.b16 %v973
        %v1033 = vunpack.c.h.b16 %v973
        %v1034 = vunpack.c.l.b16 %v974
        %v1035 = vunpack.c.l.b16 %v975
        %v1036 = vunpack.c.h.b16 %v975
        %v1037 = vunpack.c.l.b16 %v976
        %v1038 = vunpack.c.h.b16 %v976
        %v1039 = vunpack.c.l.b16 %v977
        %v1040 = vunpack.c.l.b16 %v978
        %v1041 = vunpack.c.h.b16 %v978
        %v1042 = vunpack.c.l.b16 %v979
        %v1043 = vunpack.c.h.b16 %v979
        %v1044 = vunpack.c.l.b16 %v980
        %v1045 = vpack.c.b16 %v1010, %v1005
        %v1046 = vpack.c.b16 %v1011, %v1006
        %v1047 = vpack.c.b16 %v1012, %v1007
        %v1048 = vpack.c.b16 %v1013, %v1008
        %v1049 = vpack.c.b16 %v1014, %v1009
        %v1050 = vpack.c.b16 %v1020, %v1015
        %v1051 = vpack.c.b16 %v1021, %v1016
        %v1052 = vpack.c.b16 %v1022, %v1017
        %v1053 = vpack.c.b16 %v1023, %v1018
        %v1054 = vpack.c.b16 %v1024, %v1019
        %v1055 = vpack.c.b16 %v1030, %v1025
        %v1056 = vpack.c.b16 %v1031, %v1026
        %v1057 = vpack.c.b16 %v1032, %v1027
        %v1058 = vpack.c.b16 %v1033, %v1028
        %v1059 = vpack.c.b16 %v1034, %v1029
        %v1060 = vpack.c.b16 %v1040, %v1035
        %v1061 = vpack.c.b16 %v1041, %v1036
        %v1062 = vpack.c.b16 %v1042, %v1037
        %v1063 = vpack.c.b16 %v1043, %v1038
        %v1064 = vpack.c.b16 %v1044, %v1039
        %v1086 = vsel %vm692, %v946, 0
        %v1089 = vsel %vm692, %v947, 0
        %v1092 = vsel %vm692, %v948, 0
        %v1095 = vsel %vm692, %v949, 0
        %v1098 = vsel %vm692, %v950, 0
        %v1101 = vsel %vm692, %v951, 0
        %v1104 = vsel %vm692, %v952, 0
        %v1107 = vsel %vm692, %v953, 0
        %1109 = vmatprep.subr.bf16.mxu0 0
        %1110 = vmatpush1.bf16.msra.mxu0 0
        %1111 = vmatprep.subr.bf16.mxu0 0
        %1112 = vmatpush1.bf16.msra.mxu0 0
        %1113 = vmatprep.subr.bf16.mxu0 0
        %1114 = vmatpush1.bf16.msra.mxu0 0
        %1115 = vmatprep.subr.bf16.mxu0 0
        %1116 = vmatpush1.bf16.msra.mxu0 0
        %1117 = vmatprep.subr.bf16.mxu0 %v1061
        %1118 = vmatpush1.bf16.msra.mxu0 %v1060
        %1119 = vmatprep.subr.bf16.mxu0 %v1056
        %1120 = vmatpush1.bf16.msra.mxu0 %v1055
        %1121 = vmatprep.subr.bf16.mxu0 %v1051
        %1122 = vmatpush1.bf16.msra.mxu0 %v1050
        %1123 = vmatprep.subr.bf16.mxu0 %v1046
        %1124 = vmatpush1.bf16.msra.mxu0 %v1045
        %1125 = vmatprep.subr.bf16.mxu0 0
        %1126 = vmatpush2.bf16.msra.mxu0 0
        %1127 = vmatprep.subr.bf16.mxu0 0
        %1128 = vmatpush2.bf16.msra.mxu0 0
        %1129 = vmatprep.subr.bf16.mxu0 0
        %1130 = vmatpush2.bf16.msra.mxu0 0
        %1131 = vmatprep.subr.bf16.mxu0 0
        %1132 = vmatpush2.bf16.msra.mxu0 0
        %1133 = vmatprep.subr.bf16.mxu0 0
        %1134 = vmatpush2.bf16.msra.mxu0 0
        %1135 = vmatprep.subr.bf16.mxu0 0
        %1136 = vmatpush2.bf16.msra.mxu0 0
        %1137 = vmatprep.subr.bf16.mxu0 0
        %1138 = vmatpush2.bf16.msra.mxu0 0
        %1139 = vmatprep.subr.bf16.mxu0 0
        %1140 = vmatpush2.bf16.msra.mxu0 0
        %1141 = vmatprep.mubr.bf16.mxu0 0
        %1142 = vmatmul.mubr.bf16.gmra.mxu0 %v1086
        %v1143 = vpop.f32.mrf.mxu0
        %v1144 = vadd.f32 0.0, %v1143
        %v1145 = vpop.f32.mrf.mxu0
        %v1146 = vadd.f32 0.0, %v1145
        %v1147 = vpop.f32.mrf.mxu0
        %v1148 = vadd.f32 0.0, %v1147
        %v1149 = vpop.f32.mrf.mxu0
        %v1150 = vadd.f32 0.0, %v1149
        %1151 = vmatprep.mubr.bf16.mxu0 0
        %1152 = vmatmul.mubr.bf16.gmra.mxu0 %v1089
        %v1153 = vpop.f32.mrf.mxu0
        %v1154 = vadd.f32 0.0, %v1153
        %v1155 = vpop.f32.mrf.mxu0
        %v1156 = vadd.f32 0.0, %v1155
        %v1157 = vpop.f32.mrf.mxu0
        %v1158 = vadd.f32 0.0, %v1157
        %v1159 = vpop.f32.mrf.mxu0
        %v1160 = vadd.f32 0.0, %v1159
        %1161 = vmatprep.mubr.bf16.mxu0 0
        %1162 = vmatmul.mubr.bf16.gmra.mxu0 %v1092
        %v1163 = vpop.f32.mrf.mxu0
        %v1164 = vadd.f32 0.0, %v1163
        %v1165 = vpop.f32.mrf.mxu0
        %v1166 = vadd.f32 0.0, %v1165
        %v1167 = vpop.f32.mrf.mxu0
        %v1168 = vadd.f32 0.0, %v1167
        %v1169 = vpop.f32.mrf.mxu0
        %v1170 = vadd.f32 0.0, %v1169
        %1171 = vmatprep.mubr.bf16.mxu0 0
        %1172 = vmatmul.mubr.bf16.gmra.mxu0 %v1095
        %v1173 = vpop.f32.mrf.mxu0
        %v1174 = vadd.f32 0.0, %v1173
        %v1175 = vpop.f32.mrf.mxu0
        %v1176 = vadd.f32 0.0, %v1175
        %v1177 = vpop.f32.mrf.mxu0
        %v1178 = vadd.f32 0.0, %v1177
        %v1179 = vpop.f32.mrf.mxu0
        %v1180 = vadd.f32 0.0, %v1179
        %1181 = vmatprep.mubr.bf16.mxu0 0
        %1182 = vmatmul.mubr.bf16.gmra.mxu0 %v1098
        %v1183 = vpop.f32.mrf.mxu0
        %v1184 = vadd.f32 0.0, %v1183
        %v1185 = vpop.f32.mrf.mxu0
        %v1186 = vadd.f32 0.0, %v1185
        %v1187 = vpop.f32.mrf.mxu0
        %v1188 = vadd.f32 0.0, %v1187
        %v1189 = vpop.f32.mrf.mxu0
        %v1190 = vadd.f32 0.0, %v1189
        %1191 = vmatprep.mubr.bf16.mxu0 0
        %1192 = vmatmul.mubr.bf16.gmra.mxu0 %v1101
        %v1193 = vpop.f32.mrf.mxu0
        %v1194 = vadd.f32 0.0, %v1193
        %v1195 = vpop.f32.mrf.mxu0
        %v1196 = vadd.f32 0.0, %v1195
        %v1197 = vpop.f32.mrf.mxu0
        %v1198 = vadd.f32 0.0, %v1197
        %v1199 = vpop.f32.mrf.mxu0
        %v1200 = vadd.f32 0.0, %v1199
        %1201 = vmatprep.mubr.bf16.mxu0 0
        %1202 = vmatmul.mubr.bf16.gmra.mxu0 %v1104
        %v1203 = vpop.f32.mrf.mxu0
        %v1204 = vadd.f32 0.0, %v1203
        %v1205 = vpop.f32.mrf.mxu0
        %v1206 = vadd.f32 0.0, %v1205
        %v1207 = vpop.f32.mrf.mxu0
        %v1208 = vadd.f32 0.0, %v1207
        %v1209 = vpop.f32.mrf.mxu0
        %v1210 = vadd.f32 0.0, %v1209
        %1211 = vmatprep.mubr.bf16.mxu0 0
        %1212 = vmatmul.mubr.bf16.gmra.mxu0 %v1107
        %v1213 = vpop.f32.mrf.mxu0
        %v1214 = vadd.f32 0.0, %v1213
        %v1215 = vpop.f32.mrf.mxu0
        %v1216 = vadd.f32 0.0, %v1215
        %v1217 = vpop.f32.mrf.mxu0
        %v1218 = vadd.f32 0.0, %v1217
        %v1219 = vpop.f32.mrf.mxu0
        %v1220 = vadd.f32 0.0, %v1219
        %1221 = vdwg.mxu0
        %1222 = vmatprep.subr.bf16.mxu0 0
        %1223 = vmatpush1.bf16.msra.mxu0 0
        %1224 = vmatprep.subr.bf16.mxu0 0
        %1225 = vmatpush1.bf16.msra.mxu0 0
        %1226 = vmatprep.subr.bf16.mxu0 0
        %1227 = vmatpush1.bf16.msra.mxu0 0
        %1228 = vmatprep.subr.bf16.mxu0 0
        %1229 = vmatpush1.bf16.msra.mxu0 0
        %1230 = vmatprep.subr.bf16.mxu0 %v1063
        %1231 = vmatpush1.bf16.msra.mxu0 %v1062
        %1232 = vmatprep.subr.bf16.mxu0 %v1058
        %1233 = vmatpush1.bf16.msra.mxu0 %v1057
        %1234 = vmatprep.subr.bf16.mxu0 %v1053
        %1235 = vmatpush1.bf16.msra.mxu0 %v1052
        %1236 = vmatprep.subr.bf16.mxu0 %v1048
        %1237 = vmatpush1.bf16.msra.mxu0 %v1047
        %1238 = vmatprep.subr.bf16.mxu0 0
        %1239 = vmatpush2.bf16.msra.mxu0 0
        %1240 = vmatprep.subr.bf16.mxu0 0
        %1241 = vmatpush2.bf16.msra.mxu0 0
        %1242 = vmatprep.subr.bf16.mxu0 0
        %1243 = vmatpush2.bf16.msra.mxu0 0
        %1244 = vmatprep.subr.bf16.mxu0 0
        %1245 = vmatpush2.bf16.msra.mxu0 0
        %1246 = vmatprep.subr.bf16.mxu0 0
        %1247 = vmatpush2.bf16.msra.mxu0 0
        %1248 = vmatprep.subr.bf16.mxu0 0
        %1249 = vmatpush2.bf16.msra.mxu0 0
        %1250 = vmatprep.subr.bf16.mxu0 0
        %1251 = vmatpush2.bf16.msra.mxu0 0
        %1252 = vmatprep.subr.bf16.mxu0 0
        %1253 = vmatpush2.bf16.msra.mxu0 0
        %1254 = vmatprep.mubr.bf16.mxu0 0
        %1255 = vmatmul.mubr.bf16.gmra.mxu0 %v1086
        %v1256 = vpop.f32.mrf.mxu0
        %v1257 = vadd.f32 0.0, %v1256
        %v1258 = vpop.f32.mrf.mxu0
        %v1259 = vadd.f32 0.0, %v1258
        %v1260 = vpop.f32.mrf.mxu0
        %v1261 = vadd.f32 0.0, %v1260
        %v1262 = vpop.f32.mrf.mxu0
        %v1263 = vadd.f32 0.0, %v1262
        %1264 = vmatprep.mubr.bf16.mxu0 0
        %1265 = vmatmul.mubr.bf16.gmra.mxu0 %v1089
        %v1266 = vpop.f32.mrf.mxu0
        %v1267 = vadd.f32 0.0, %v1266
        %v1268 = vpop.f32.mrf.mxu0
        %v1269 = vadd.f32 0.0, %v1268
        %v1270 = vpop.f32.mrf.mxu0
        %v1271 = vadd.f32 0.0, %v1270
        %v1272 = vpop.f32.mrf.mxu0
        %v1273 = vadd.f32 0.0, %v1272
        %1274 = vmatprep.mubr.bf16.mxu0 0
        %1275 = vmatmul.mubr.bf16.gmra.mxu0 %v1092
        %v1276 = vpop.f32.mrf.mxu0
        %v1277 = vadd.f32 0.0, %v1276
        %v1278 = vpop.f32.mrf.mxu0
        %v1279 = vadd.f32 0.0, %v1278
        %v1280 = vpop.f32.mrf.mxu0
        %v1281 = vadd.f32 0.0, %v1280
        %v1282 = vpop.f32.mrf.mxu0
        %v1283 = vadd.f32 0.0, %v1282
        %1284 = vmatprep.mubr.bf16.mxu0 0
        %1285 = vmatmul.mubr.bf16.gmra.mxu0 %v1095
        %v1286 = vpop.f32.mrf.mxu0
        %v1287 = vadd.f32 0.0, %v1286
        %v1288 = vpop.f32.mrf.mxu0
        %v1289 = vadd.f32 0.0, %v1288
        %v1290 = vpop.f32.mrf.mxu0
        %v1291 = vadd.f32 0.0, %v1290
        %v1292 = vpop.f32.mrf.mxu0
        %v1293 = vadd.f32 0.0, %v1292
        %1294 = vmatprep.mubr.bf16.mxu0 0
        %1295 = vmatmul.mubr.bf16.gmra.mxu0 %v1098
        %v1296 = vpop.f32.mrf.mxu0
        %v1297 = vadd.f32 0.0, %v1296
        %v1298 = vpop.f32.mrf.mxu0
        %v1299 = vadd.f32 0.0, %v1298
        %v1300 = vpop.f32.mrf.mxu0
        %v1301 = vadd.f32 0.0, %v1300
        %v1302 = vpop.f32.mrf.mxu0
        %v1303 = vadd.f32 0.0, %v1302
        %1304 = vmatprep.mubr.bf16.mxu0 0
        %1305 = vmatmul.mubr.bf16.gmra.mxu0 %v1101
        %v1306 = vpop.f32.mrf.mxu0
        %v1307 = vadd.f32 0.0, %v1306
        %v1308 = vpop.f32.mrf.mxu0
        %v1309 = vadd.f32 0.0, %v1308
        %v1310 = vpop.f32.mrf.mxu0
        %v1311 = vadd.f32 0.0, %v1310
        %v1312 = vpop.f32.mrf.mxu0
        %v1313 = vadd.f32 0.0, %v1312
        %1314 = vmatprep.mubr.bf16.mxu0 0
        %1315 = vmatmul.mubr.bf16.gmra.mxu0 %v1104
        %v1316 = vpop.f32.mrf.mxu0
        %v1317 = vadd.f32 0.0, %v1316
        %v1318 = vpop.f32.mrf.mxu0
        %v1319 = vadd.f32 0.0, %v1318
        %v1320 = vpop.f32.mrf.mxu0
        %v1321 = vadd.f32 0.0, %v1320
        %v1322 = vpop.f32.mrf.mxu0
        %v1323 = vadd.f32 0.0, %v1322
        %1324 = vmatprep.mubr.bf16.mxu0 0
        %1325 = vmatmul.mubr.bf16.gmra.mxu0 %v1107
        %v1326 = vpop.f32.mrf.mxu0
        %v1327 = vadd.f32 0.0, %v1326
        %v1328 = vpop.f32.mrf.mxu0
        %v1329 = vadd.f32 0.0, %v1328
        %v1330 = vpop.f32.mrf.mxu0
        %v1331 = vadd.f32 0.0, %v1330
        %v1332 = vpop.f32.mrf.mxu0
        %v1333 = vadd.f32 0.0, %v1332
        %1334 = vdwg.mxu0
        %1335 = vmatprep.subr.bf16.mxu0 0
        %1336 = vmatpush1.bf16.msra.mxu0 0
        %1337 = vmatprep.subr.bf16.mxu0 0
        %1338 = vmatpush1.bf16.msra.mxu0 0
        %1339 = vmatprep.subr.bf16.mxu0 0
        %1340 = vmatpush1.bf16.msra.mxu0 0
        %1341 = vmatprep.subr.bf16.mxu0 0
        %1342 = vmatpush1.bf16.msra.mxu0 0
        %1343 = vmatprep.subr.bf16.mxu0 0
        %1344 = vmatpush1.bf16.msra.mxu0 %v1064
        %1345 = vmatprep.subr.bf16.mxu0 0
        %1346 = vmatpush1.bf16.msra.mxu0 %v1059
        %1347 = vmatprep.subr.bf16.mxu0 0
        %1348 = vmatpush1.bf16.msra.mxu0 %v1054
        %1349 = vmatprep.subr.bf16.mxu0 0
        %1350 = vmatpush1.bf16.msra.mxu0 %v1049
        %1351 = vmatprep.subr.bf16.mxu0 0
        %1352 = vmatpush2.bf16.msra.mxu0 0
        %1353 = vmatprep.subr.bf16.mxu0 0
        %1354 = vmatpush2.bf16.msra.mxu0 0
        %1355 = vmatprep.subr.bf16.mxu0 0
        %1356 = vmatpush2.bf16.msra.mxu0 0
        %1357 = vmatprep.subr.bf16.mxu0 0
        %1358 = vmatpush2.bf16.msra.mxu0 0
        %1359 = vmatprep.subr.bf16.mxu0 0
        %1360 = vmatpush2.bf16.msra.mxu0 0
        %1361 = vmatprep.subr.bf16.mxu0 0
        %1362 = vmatpush2.bf16.msra.mxu0 0
        %1363 = vmatprep.subr.bf16.mxu0 0
        %1364 = vmatpush2.bf16.msra.mxu0 0
        %1365 = vmatprep.subr.bf16.mxu0 0
        %1366 = vmatpush2.bf16.msra.mxu0 0
        %1367 = vmatprep.mubr.bf16.mxu0 0
        %1368 = vmatmul.mubr.bf16.gmra.mxu0 %v1086
        %v1369 = vpop.f32.mrf.mxu0
        %v1370 = vadd.f32 0.0, %v1369
        %v1371 = vpop.f32.mrf.mxu0
        %v1372 = vpop.f32.mrf.mxu0
        %v1373 = vadd.f32 0.0, %v1372
        %v1374 = vpop.f32.mrf.mxu0
        %1375 = vmatprep.mubr.bf16.mxu0 0
        %1376 = vmatmul.mubr.bf16.gmra.mxu0 %v1089
        %v1377 = vpop.f32.mrf.mxu0
        %v1378 = vadd.f32 0.0, %v1377
        %v1379 = vpop.f32.mrf.mxu0
        %v1380 = vpop.f32.mrf.mxu0
        %v1381 = vadd.f32 0.0, %v1380
        %v1382 = vpop.f32.mrf.mxu0
        %1383 = vmatprep.mubr.bf16.mxu0 0
        %1384 = vmatmul.mubr.bf16.gmra.mxu0 %v1092
        %v1385 = vpop.f32.mrf.mxu0
        %v1386 = vadd.f32 0.0, %v1385
        %v1387 = vpop.f32.mrf.mxu0
        %v1388 = vpop.f32.mrf.mxu0
        %v1389 = vadd.f32 0.0, %v1388
        %v1390 = vpop.f32.mrf.mxu0
        %1391 = vmatprep.mubr.bf16.mxu0 0
        %1392 = vmatmul.mubr.bf16.gmra.mxu0 %v1095
        %v1393 = vpop.f32.mrf.mxu0
        %v1394 = vadd.f32 0.0, %v1393
        %v1395 = vpop.f32.mrf.mxu0
        %v1396 = vpop.f32.mrf.mxu0
        %v1397 = vadd.f32 0.0, %v1396
        %v1398 = vpop.f32.mrf.mxu0
        %1399 = vmatprep.mubr.bf16.mxu0 0
        %1400 = vmatmul.mubr.bf16.gmra.mxu0 %v1098
        %v1401 = vpop.f32.mrf.mxu0
        %v1402 = vadd.f32 0.0, %v1401
        %v1403 = vpop.f32.mrf.mxu0
        %v1404 = vpop.f32.mrf.mxu0
        %v1405 = vadd.f32 0.0, %v1404
        %v1406 = vpop.f32.mrf.mxu0
        %1407 = vmatprep.mubr.bf16.mxu0 0
        %1408 = vmatmul.mubr.bf16.gmra.mxu0 %v1101
        %v1409 = vpop.f32.mrf.mxu0
        %v1410 = vadd.f32 0.0, %v1409
        %v1411 = vpop.f32.mrf.mxu0
        %v1412 = vpop.f32.mrf.mxu0
        %v1413 = vadd.f32 0.0, %v1412
        %v1414 = vpop.f32.mrf.mxu0
        %1415 = vmatprep.mubr.bf16.mxu0 0
        %1416 = vmatmul.mubr.bf16.gmra.mxu0 %v1104
        %v1417 = vpop.f32.mrf.mxu0
        %v1418 = vadd.f32 0.0, %v1417
        %v1419 = vpop.f32.mrf.mxu0
        %v1420 = vpop.f32.mrf.mxu0
        %v1421 = vadd.f32 0.0, %v1420
        %v1422 = vpop.f32.mrf.mxu0
        %1423 = vmatprep.mubr.bf16.mxu0 0
        %1424 = vmatmul.mubr.bf16.gmra.mxu0 %v1107
        %v1425 = vpop.f32.mrf.mxu0
        %v1426 = vadd.f32 0.0, %v1425
        %v1427 = vpop.f32.mrf.mxu0
        %v1428 = vpop.f32.mrf.mxu0
        %v1429 = vadd.f32 0.0, %v1428
        %v1430 = vpop.f32.mrf.mxu0
        %1431 = vdwg.mxu0
        %v1432 = vpack.c.bf16 %v1148, %v1144
        %v1433 = vpack.c.bf16 %v1150, %v1146
        %v1434 = vpack.c.bf16 %v1261, %v1257
        %v1435 = vpack.c.bf16 %v1263, %v1259
        %v1436 = vpack.c.bf16 %v1373, %v1370
        %v1437 = vpack.c.bf16 %v1158, %v1154
        %v1438 = vpack.c.bf16 %v1160, %v1156
        %v1439 = vpack.c.bf16 %v1271, %v1267
        %v1440 = vpack.c.bf16 %v1273, %v1269
        %v1441 = vpack.c.bf16 %v1381, %v1378
        %v1442 = vpack.c.bf16 %v1168, %v1164
        %v1443 = vpack.c.bf16 %v1170, %v1166
        %v1444 = vpack.c.bf16 %v1281, %v1277
        %v1445 = vpack.c.bf16 %v1283, %v1279
        %v1446 = vpack.c.bf16 %v1389, %v1386
        %v1447 = vpack.c.bf16 %v1178, %v1174
        %v1448 = vpack.c.bf16 %v1180, %v1176
        %v1449 = vpack.c.bf16 %v1291, %v1287
        %v1450 = vpack.c.bf16 %v1293, %v1289
        %v1451 = vpack.c.bf16 %v1397, %v1394
        %v1452 = vpack.c.bf16 %v1188, %v1184
        %v1453 = vpack.c.bf16 %v1190, %v1186
        %v1454 = vpack.c.bf16 %v1301, %v1297
        %v1455 = vpack.c.bf16 %v1303, %v1299
        %v1456 = vpack.c.bf16 %v1405, %v1402
        %v1457 = vpack.c.bf16 %v1198, %v1194
        %v1458 = vpack.c.bf16 %v1200, %v1196
        %v1459 = vpack.c.bf16 %v1311, %v1307
        %v1460 = vpack.c.bf16 %v1313, %v1309
        %v1461 = vpack.c.bf16 %v1413, %v1410
        %v1462 = vpack.c.bf16 %v1208, %v1204
        %v1463 = vpack.c.bf16 %v1210, %v1206
        %v1464 = vpack.c.bf16 %v1321, %v1317
        %v1465 = vpack.c.bf16 %v1323, %v1319
        %v1466 = vpack.c.bf16 %v1421, %v1418
        %v1467 = vpack.c.bf16 %v1218, %v1214
        %v1468 = vpack.c.bf16 %v1220, %v1216
        %v1469 = vpack.c.bf16 %v1331, %v1327
        %v1470 = vpack.c.bf16 %v1333, %v1329
        %v1471 = vpack.c.bf16 %v1429, %v1426
        %1488 = vrot.lane.b32.xlu0 %v1144, 64
        %v1489 = vpop.permute.xlu0 %1488
        %1490 = vrot.lane.b32.xlu0 %v1148, 64
        %v1491 = vpop.permute.xlu0 %1490
        %1492 = vrot.lane.b32.xlu0 %v1154, 64
        %v1493 = vpop.permute.xlu0 %1492
        %1494 = vrot.lane.b32.xlu0 %v1158, 64
        %v1495 = vpop.permute.xlu0 %1494
        %1496 = vrot.lane.b32.xlu0 %v1164, 64
        %v1497 = vpop.permute.xlu0 %1496
        %1498 = vrot.lane.b32.xlu0 %v1168, 64
        %v1499 = vpop.permute.xlu0 %1498
        %1500 = vrot.lane.b32.xlu0 %v1174, 64
        %v1501 = vpop.permute.xlu0 %1500
        %1502 = vrot.lane.b32.xlu0 %v1178, 64
        %v1503 = vpop.permute.xlu0 %1502
        %1504 = vrot.lane.b32.xlu0 %v1184, 64
        %v1505 = vpop.permute.xlu0 %1504
        %1506 = vrot.lane.b32.xlu0 %v1188, 64
        %v1507 = vpop.permute.xlu0 %1506
        %1508 = vrot.lane.b32.xlu0 %v1194, 64
        %v1509 = vpop.permute.xlu0 %1508
        %1510 = vrot.lane.b32.xlu0 %v1198, 64
        %v1511 = vpop.permute.xlu0 %1510
        %1512 = vrot.lane.b32.xlu0 %v1204, 64
        %v1513 = vpop.permute.xlu0 %1512
        %1514 = vrot.lane.b32.xlu0 %v1208, 64
        %v1515 = vpop.permute.xlu0 %1514
        %1516 = vrot.lane.b32.xlu0 %v1214, 64
        %v1517 = vpop.permute.xlu0 %1516
        %1518 = vrot.lane.b32.xlu0 %v1218, 64
        %v1519 = vpop.permute.xlu0 %1518
        %1536 = vxpose.xlu0.b32.start [1/16] %v1489, 128
        %1537 = vxpose.xlu0.b32.cont [2/16] %v1491, 128
        %1538 = vxpose.xlu0.b32.cont [3/16] %v1493, 128
        %1539 = vxpose.xlu0.b32.cont [4/16] %v1495, 128
        %1540 = vxpose.xlu0.b32.cont [5/16] %v1497, 128
        %1541 = vxpose.xlu0.b32.cont [6/16] %v1499, 128
        %1542 = vxpose.xlu0.b32.cont [7/16] %v1501, 128
        %1543 = vxpose.xlu0.b32.cont [8/16] %v1503, 128
        %1544 = vxpose.xlu0.b32.cont [9/16] %v1505, 128
        %1545 = vxpose.xlu0.b32.cont [10/16] %v1507, 128
        %1546 = vxpose.xlu0.b32.cont [11/16] %v1509, 128
        %1547 = vxpose.xlu0.b32.cont [12/16] %v1511, 128
        %1548 = vxpose.xlu0.b32.cont [13/16] %v1513, 128
        %1549 = vxpose.xlu0.b32.cont [14/16] %v1515, 128
        %1550 = vxpose.xlu0.b32.cont [15/16] %v1517, 128
        %1551 = vxpose.xlu0.b32.end [16/16] %v1519, 128
        %v1552 = vpop.trf.xlu0
        %v1553 = vpop.trf.xlu0
        %v1554 = vpop.trf.xlu0
        %v1555 = vpop.trf.xlu0
        %v1556 = vpop.trf.xlu0
        %v1557 = vpop.trf.xlu0
        %v1558 = vpop.trf.xlu0
        %v1559 = vpop.trf.xlu0
        %v1560 = vpop.trf.xlu0
        %v1561 = vpop.trf.xlu0
        %v1562 = vpop.trf.xlu0
        %v1563 = vpop.trf.xlu0
        %v1564 = vpop.trf.xlu0
        %v1565 = vpop.trf.xlu0
        %v1566 = vpop.trf.xlu0
        %v1567 = vpop.trf.xlu0
        %v1568 = vpack.c.bf16 %v1553, %v1552
        %v1569 = vpack.c.bf16 %v1555, %v1554
        %v1570 = vpack.c.bf16 %v1557, %v1556
        %v1571 = vpack.c.bf16 %v1559, %v1558
        %s1572 = scalar_lea.vmem [#allocation8], %s39
        %v1573 = vld [vmem:[%s1572] sm:$0x1]
        %v1574 = vld [vmem:[%s1] sm:$0xff]
        %v1575 = vld [vmem:[%s1 + $0x8] sm:$0xff]
        %v1576 = vld [vmem:[%s1 + $0x10] sm:$0xff]
        %v1577 = vld [vmem:[%s1 + $0x18] sm:$0xff]
        %v1578 = vld [vmem:[%s1 + $0x20] sm:$0xff]
        %v1579 = vld [vmem:[%s1 + $0x28] sm:$0xff]
        %v1580 = vld [vmem:[%s1 + $0x30] sm:$0xff]
        %v1581 = vld [vmem:[%s1 + $0x38] sm:$0xff]
        %v1582 = vld [vmem:[%s1 + $0x40] sm:$0xff]
        %v1583 = vld [vmem:[%s1 + $0x48] sm:$0xff]
        %v1584 = vld [vmem:[%s1 + $0x50] sm:$0xff]
        %v1585 = vld [vmem:[%s1 + $0x58] sm:$0xff]
        %v1586 = vld [vmem:[%s1 + $0x60] sm:$0xff]
        %v1587 = vld [vmem:[%s1 + $0x68] sm:$0xff]
        %v1588 = vld [vmem:[%s1 + $0x70] sm:$0xff]
        %v1589 = vld [vmem:[%s1 + $0x78] sm:$0xff]
        %vm1590 = vcmask 64512
        %v1592 = vsel %vm1590, %v1432, 0
        %v1595 = vsel %vm1590, %v1437, 0
        %v1598 = vsel %vm1590, %v1442, 0
        %v1601 = vsel %vm1590, %v1447, 0
        %v1604 = vsel %vm1590, %v1452, 0
        %v1607 = vsel %vm1590, %v1457, 0
        %v1610 = vsel %vm1590, %v1462, 0
        %v1613 = vsel %vm1590, %v1467, 0
        %vm1615 = vcmask 1043456
        %v1617 = vsel %vm1615, %v1568, 0
        %1619 = vmatprep.subr.bf16.mxu0 0
        %1620 = vmatpush1.bf16.msra.mxu0 0
        %1621 = vmatprep.subr.bf16.mxu0 0
        %1622 = vmatpush1.bf16.msra.mxu0 0
        %1623 = vmatprep.subr.bf16.mxu0 0
        %1624 = vmatpush1.bf16.msra.mxu0 0
        %1625 = vmatprep.subr.bf16.mxu0 0
        %1626 = vmatpush1.bf16.msra.mxu0 0
        %1627 = vmatprep.subr.bf16.mxu0 0
        %1628 = vmatpush1.bf16.msra.mxu0 0
        %1629 = vmatprep.subr.bf16.mxu0 0
        %1630 = vmatpush1.bf16.msra.mxu0 0
        %1631 = vmatprep.subr.bf16.mxu0 0
        %1632 = vmatpush1.bf16.msra.mxu0 0
        %1633 = vmatprep.subr.bf16.mxu0 0
        %1634 = vmatpush1.bf16.msra.mxu0 %v1617
        %1635 = vmatprep.subr.bf16.mxu0 0
        %1636 = vmatpush2.bf16.msra.mxu0 0
        %1637 = vmatprep.subr.bf16.mxu0 0
        %1638 = vmatpush2.bf16.msra.mxu0 0
        %1639 = vmatprep.subr.bf16.mxu0 0
        %1640 = vmatpush2.bf16.msra.mxu0 0
        %1641 = vmatprep.subr.bf16.mxu0 0
        %1642 = vmatpush2.bf16.msra.mxu0 0
        %1643 = vmatprep.subr.bf16.mxu0 0
        %1644 = vmatpush2.bf16.msra.mxu0 0
        %1645 = vmatprep.subr.bf16.mxu0 0
        %1646 = vmatpush2.bf16.msra.mxu0 0
        %1647 = vmatprep.subr.bf16.mxu0 0
        %1648 = vmatpush2.bf16.msra.mxu0 0
        %1649 = vmatprep.subr.bf16.mxu0 0
        %1650 = vmatpush2.bf16.msra.mxu0 0
        %1651 = vmatprep.mubr.bf16.mxu0 0
        %1652 = vmatmul.mubr.bf16.gmra.mxu0 %v1592
        %v1653 = vpop.f32.mrf.mxu0
        %v1654 = vadd.f32 %v1574, %v1653
        %v1655 = vpop.f32.mrf.mxu0
        %v1656 = vpop.f32.mrf.mxu0
        %v1657 = vadd.f32 %v1575, %v1656
        %v1658 = vpop.f32.mrf.mxu0
        %1659 = vmatprep.mubr.bf16.mxu0 0
        %1660 = vmatmul.mubr.bf16.gmra.mxu0 %v1595
        %v1661 = vpop.f32.mrf.mxu0
        %v1662 = vadd.f32 %v1576, %v1661
        %v1663 = vpop.f32.mrf.mxu0
        %v1664 = vpop.f32.mrf.mxu0
        %v1665 = vadd.f32 %v1577, %v1664
        %v1666 = vpop.f32.mrf.mxu0
        %1667 = vmatprep.mubr.bf16.mxu0 0
        %1668 = vmatmul.mubr.bf16.gmra.mxu0 %v1598
        %v1669 = vpop.f32.mrf.mxu0
        %v1670 = vadd.f32 %v1578, %v1669
        %v1671 = vpop.f32.mrf.mxu0
        %v1672 = vpop.f32.mrf.mxu0
        %v1673 = vadd.f32 %v1579, %v1672
        %v1674 = vpop.f32.mrf.mxu0
        %1675 = vmatprep.mubr.bf16.mxu0 0
        %1676 = vmatmul.mubr.bf16.gmra.mxu0 %v1601
        %v1677 = vpop.f32.mrf.mxu0
        %v1678 = vadd.f32 %v1580, %v1677
        %v1679 = vpop.f32.mrf.mxu0
        %v1680 = vpop.f32.mrf.mxu0
        %v1681 = vadd.f32 %v1581, %v1680
        %v1682 = vpop.f32.mrf.mxu0
        %1683 = vmatprep.mubr.bf16.mxu0 0
        %1684 = vmatmul.mubr.bf16.gmra.mxu0 %v1604
        %v1685 = vpop.f32.mrf.mxu0
        %v1686 = vadd.f32 %v1582, %v1685
        %v1687 = vpop.f32.mrf.mxu0
        %v1688 = vpop.f32.mrf.mxu0
        %v1689 = vadd.f32 %v1583, %v1688
        %v1690 = vpop.f32.mrf.mxu0
        %1691 = vmatprep.mubr.bf16.mxu0 0
        %1692 = vmatmul.mubr.bf16.gmra.mxu0 %v1607
        %v1693 = vpop.f32.mrf.mxu0
        %v1694 = vadd.f32 %v1584, %v1693
        %v1695 = vpop.f32.mrf.mxu0
        %v1696 = vpop.f32.mrf.mxu0
        %v1697 = vadd.f32 %v1585, %v1696
        %v1698 = vpop.f32.mrf.mxu0
        %1699 = vmatprep.mubr.bf16.mxu0 0
        %1700 = vmatmul.mubr.bf16.gmra.mxu0 %v1610
        %v1701 = vpop.f32.mrf.mxu0
        %v1702 = vadd.f32 %v1586, %v1701
        %v1703 = vpop.f32.mrf.mxu0
        %v1704 = vpop.f32.mrf.mxu0
        %v1705 = vadd.f32 %v1587, %v1704
        %v1706 = vpop.f32.mrf.mxu0
        %1707 = vmatprep.mubr.bf16.mxu0 0
        %1708 = vmatmul.mubr.bf16.gmra.mxu0 %v1613
        %v1709 = vpop.f32.mrf.mxu0
        %v1710 = vadd.f32 %v1588, %v1709
        %v1711 = vpop.f32.mrf.mxu0
        %v1712 = vpop.f32.mrf.mxu0
        %v1713 = vadd.f32 %v1589, %v1712
        %v1714 = vpop.f32.mrf.mxu0
        %1715 = vdwg.mxu0
        %1716 = vmax.xlane.f32.xlu0 %v1654
        %v1717 = vpop.xlane.xlu0 %1716
        %1718 = vmax.xlane.f32.xlu0 %v1657
        %v1719 = vpop.xlane.xlu0 %1718
        %1720 = vmax.xlane.f32.xlu0 %v1662
        %v1721 = vpop.xlane.xlu0 %1720
        %1722 = vmax.xlane.f32.xlu0 %v1665
        %v1723 = vpop.xlane.xlu0 %1722
        %1724 = vmax.xlane.f32.xlu0 %v1670
        %v1725 = vpop.xlane.xlu0 %1724
        %1726 = vmax.xlane.f32.xlu0 %v1673
        %v1727 = vpop.xlane.xlu0 %1726
        %1728 = vmax.xlane.f32.xlu0 %v1678
        %v1729 = vpop.xlane.xlu0 %1728
        %1730 = vmax.xlane.f32.xlu0 %v1681
        %v1731 = vpop.xlane.xlu0 %1730
        %1732 = vmax.xlane.f32.xlu0 %v1686
        %v1733 = vpop.xlane.xlu0 %1732
        %1734 = vmax.xlane.f32.xlu0 %v1689
        %v1735 = vpop.xlane.xlu0 %1734
        %1736 = vmax.xlane.f32.xlu0 %v1694
        %v1737 = vpop.xlane.xlu0 %1736
        %1738 = vmax.xlane.f32.xlu0 %v1697
        %v1739 = vpop.xlane.xlu0 %1738
        %1740 = vmax.xlane.f32.xlu0 %v1702
        %v1741 = vpop.xlane.xlu0 %1740
        %1742 = vmax.xlane.f32.xlu0 %v1705
        %v1743 = vpop.xlane.xlu0 %1742
        %1744 = vmax.xlane.f32.xlu0 %v1710
        %v1745 = vpop.xlane.xlu0 %1744
        %1746 = vmax.xlane.f32.xlu0 %v1713
        %v1747 = vpop.xlane.xlu0 %1746
        %v1748 = vsub.f32 %v1654, %v1717
        %v1749 = vsub.f32 %v1657, %v1719
        %v1750 = vsub.f32 %v1662, %v1721
        %v1751 = vsub.f32 %v1665, %v1723
        %v1752 = vsub.f32 %v1670, %v1725
        %v1753 = vsub.f32 %v1673, %v1727
        %v1754 = vsub.f32 %v1678, %v1729
        %v1755 = vsub.f32 %v1681, %v1731
        %v1756 = vsub.f32 %v1686, %v1733
        %v1757 = vsub.f32 %v1689, %v1735
        %v1758 = vsub.f32 %v1694, %v1737
        %v1759 = vsub.f32 %v1697, %v1739
        %v1760 = vsub.f32 %v1702, %v1741
        %v1761 = vsub.f32 %v1705, %v1743
        %v1762 = vsub.f32 %v1710, %v1745
        %v1763 = vsub.f32 %v1713, %v1747
        %v1764 = vmul.f32 %v1748, 1.442695
        %v1765 = vpow.pop %v1764
        %v1766 = vmul.f32 %v1749, 1.442695
        %v1767 = vpow.pop %v1766
        %v1768 = vmul.f32 %v1750, 1.442695
        %v1769 = vpow.pop %v1768
        %v1770 = vmul.f32 %v1751, 1.442695
        %v1771 = vpow.pop %v1770
        %v1772 = vmul.f32 %v1752, 1.442695
        %v1773 = vpow.pop %v1772
        %v1774 = vmul.f32 %v1753, 1.442695
        %v1775 = vpow.pop %v1774
        %v1776 = vmul.f32 %v1754, 1.442695
        %v1777 = vpow.pop %v1776
        %v1778 = vmul.f32 %v1755, 1.442695
        %v1779 = vpow.pop %v1778
        %v1780 = vmul.f32 %v1756, 1.442695
        %v1781 = vpow.pop %v1780
        %v1782 = vmul.f32 %v1757, 1.442695
        %v1783 = vpow.pop %v1782
        %v1784 = vmul.f32 %v1758, 1.442695
        %v1785 = vpow.pop %v1784
        %v1786 = vmul.f32 %v1759, 1.442695
        %v1787 = vpow.pop %v1786
        %v1788 = vmul.f32 %v1760, 1.442695
        %v1789 = vpow.pop %v1788
        %v1790 = vmul.f32 %v1761, 1.442695
        %v1791 = vpow.pop %v1790
        %v1792 = vmul.f32 %v1762, 1.442695
        %v1793 = vpow.pop %v1792
        %v1794 = vmul.f32 %v1763, 1.442695
        %v1795 = vpow.pop %v1794
        %1796 = vadd.xlane.f32.xlu0 %v1765
        %v1797 = vpop.xlane.xlu0 %1796
        %1798 = vadd.xlane.f32.xlu0 %v1767
        %v1799 = vpop.xlane.xlu0 %1798
        %1800 = vadd.xlane.f32.xlu0 %v1769
        %v1801 = vpop.xlane.xlu0 %1800
        %1802 = vadd.xlane.f32.xlu0 %v1771
        %v1803 = vpop.xlane.xlu0 %1802
        %1804 = vadd.xlane.f32.xlu0 %v1773
        %v1805 = vpop.xlane.xlu0 %1804
        %1806 = vadd.xlane.f32.xlu0 %v1775
        %v1807 = vpop.xlane.xlu0 %1806
        %1808 = vadd.xlane.f32.xlu0 %v1777
        %v1809 = vpop.xlane.xlu0 %1808
        %1810 = vadd.xlane.f32.xlu0 %v1779
        %v1811 = vpop.xlane.xlu0 %1810
        %1812 = vadd.xlane.f32.xlu0 %v1781
        %v1813 = vpop.xlane.xlu0 %1812
        %1814 = vadd.xlane.f32.xlu0 %v1783
        %v1815 = vpop.xlane.xlu0 %1814
        %1816 = vadd.xlane.f32.xlu0 %v1785
        %v1817 = vpop.xlane.xlu0 %1816
        %1818 = vadd.xlane.f32.xlu0 %v1787
        %v1819 = vpop.xlane.xlu0 %1818
        %1820 = vadd.xlane.f32.xlu0 %v1789
        %v1821 = vpop.xlane.xlu0 %1820
        %1822 = vadd.xlane.f32.xlu0 %v1791
        %v1823 = vpop.xlane.xlu0 %1822
        %1824 = vadd.xlane.f32.xlu0 %v1793
        %v1825 = vpop.xlane.xlu0 %1824
        %1826 = vadd.xlane.f32.xlu0 %v1795
        %v1827 = vpop.xlane.xlu0 %1826
        %v1828 = vpack.c.bf16 %v1767, %v1765
        %v1829 = vpack.c.bf16 %v1771, %v1769
        %v1830 = vpack.c.bf16 %v1775, %v1773
        %v1831 = vpack.c.bf16 %v1779, %v1777
        %v1832 = vpack.c.bf16 %v1783, %v1781
        %v1833 = vpack.c.bf16 %v1787, %v1785
        %v1834 = vpack.c.bf16 %v1791, %v1789
        %v1835 = vpack.c.bf16 %v1795, %v1793
        %1836 = vmatprep.subr.bf16.mxu0 0
        %1837 = vmatpush1.bf16.msra.mxu0 %v1468
        %1838 = vmatprep.subr.bf16.mxu0 0
        %1839 = vmatpush1.bf16.msra.mxu0 %v1463
        %1840 = vmatprep.subr.bf16.mxu0 0
        %1841 = vmatpush1.bf16.msra.mxu0 %v1458
        %1842 = vmatprep.subr.bf16.mxu0 0
        %1843 = vmatpush1.bf16.msra.mxu0 %v1453
        %1844 = vmatprep.subr.bf16.mxu0 0
        %1845 = vmatpush1.bf16.msra.mxu0 %v1448
        %1846 = vmatprep.subr.bf16.mxu0 0
        %1847 = vmatpush1.bf16.msra.mxu0 %v1443
        %1848 = vmatprep.subr.bf16.mxu0 0
        %1849 = vmatpush1.bf16.msra.mxu0 %v1438
        %1850 = vmatprep.subr.bf16.mxu0 0
        %1851 = vmatpush1.bf16.msra.mxu0 %v1433
        %1852 = vmatprep.subr.bf16.mxu0 0
        %1853 = vmatpush2.bf16.msra.mxu0 0
        %1854 = vmatprep.subr.bf16.mxu0 0
        %1855 = vmatpush2.bf16.msra.mxu0 0
        %1856 = vmatprep.subr.bf16.mxu0 0
        %1857 = vmatpush2.bf16.msra.mxu0 0
        %1858 = vmatprep.subr.bf16.mxu0 0
        %1859 = vmatpush2.bf16.msra.mxu0 0
        %1860 = vmatprep.subr.bf16.mxu0 0
        %1861 = vmatpush2.bf16.msra.mxu0 0
        %1862 = vmatprep.subr.bf16.mxu0 0
        %1863 = vmatpush2.bf16.msra.mxu0 0
        %1864 = vmatprep.subr.bf16.mxu0 0
        %1865 = vmatpush2.bf16.msra.mxu0 0
        %1866 = vmatprep.subr.bf16.mxu0 0
        %1867 = vmatpush2.bf16.msra.mxu0 0
        %1868 = vmatprep.mubr.bf16.mxu0 0
        %1869 = vmatmul.mubr.bf16.gmra.mxu0 %v1828
        %v1870 = vpop.f32.mrf.mxu0
        %v1871 = vadd.f32 0.0, %v1870
        %v1872 = vpop.f32.mrf.mxu0
        %v1873 = vpop.f32.mrf.mxu0
        %v1874 = vadd.f32 0.0, %v1873
        %v1875 = vpop.f32.mrf.mxu0
        %1876 = vmatprep.mubr.bf16.mxu0 0
        %1877 = vmatmul.mubr.bf16.gmra.mxu0 %v1829
        %v1878 = vpop.f32.mrf.mxu0
        %v1879 = vadd.f32 0.0, %v1878
        %v1880 = vpop.f32.mrf.mxu0
        %v1881 = vpop.f32.mrf.mxu0
        %v1882 = vadd.f32 0.0, %v1881
        %v1883 = vpop.f32.mrf.mxu0
        %1884 = vmatprep.mubr.bf16.mxu0 0
        %1885 = vmatmul.mubr.bf16.gmra.mxu0 %v1830
        %v1886 = vpop.f32.mrf.mxu0
        %v1887 = vadd.f32 0.0, %v1886
        %v1888 = vpop.f32.mrf.mxu0
        %v1889 = vpop.f32.mrf.mxu0
        %v1890 = vadd.f32 0.0, %v1889
        %v1891 = vpop.f32.mrf.mxu0
        %1892 = vmatprep.mubr.bf16.mxu0 0
        %1893 = vmatmul.mubr.bf16.gmra.mxu0 %v1831
        %v1894 = vpop.f32.mrf.mxu0
        %v1895 = vadd.f32 0.0, %v1894
        %v1896 = vpop.f32.mrf.mxu0
        %v1897 = vpop.f32.mrf.mxu0
        %v1898 = vadd.f32 0.0, %v1897
        %v1899 = vpop.f32.mrf.mxu0
        %1900 = vmatprep.mubr.bf16.mxu0 0
        %1901 = vmatmul.mubr.bf16.gmra.mxu0 %v1832
        %v1902 = vpop.f32.mrf.mxu0
        %v1903 = vadd.f32 0.0, %v1902
        %v1904 = vpop.f32.mrf.mxu0
        %v1905 = vpop.f32.mrf.mxu0
        %v1906 = vadd.f32 0.0, %v1905
        %v1907 = vpop.f32.mrf.mxu0
        %1908 = vmatprep.mubr.bf16.mxu0 0
        %1909 = vmatmul.mubr.bf16.gmra.mxu0 %v1833
        %v1910 = vpop.f32.mrf.mxu0
        %v1911 = vadd.f32 0.0, %v1910
        %v1912 = vpop.f32.mrf.mxu0
        %v1913 = vpop.f32.mrf.mxu0
        %v1914 = vadd.f32 0.0, %v1913
        %v1915 = vpop.f32.mrf.mxu0
        %1916 = vmatprep.mubr.bf16.mxu0 0
        %1917 = vmatmul.mubr.bf16.gmra.mxu0 %v1834
        %v1918 = vpop.f32.mrf.mxu0
        %v1919 = vadd.f32 0.0, %v1918
        %v1920 = vpop.f32.mrf.mxu0
        %v1921 = vpop.f32.mrf.mxu0
        %v1922 = vadd.f32 0.0, %v1921
        %v1923 = vpop.f32.mrf.mxu0
        %1924 = vmatprep.mubr.bf16.mxu0 0
        %1925 = vmatmul.mubr.bf16.gmra.mxu0 %v1835
        %v1926 = vpop.f32.mrf.mxu0
        %v1927 = vadd.f32 0.0, %v1926
        %v1928 = vpop.f32.mrf.mxu0
        %v1929 = vpop.f32.mrf.mxu0
        %v1930 = vadd.f32 0.0, %v1929
        %v1931 = vpop.f32.mrf.mxu0
        %1932 = vdwg.mxu0
        %v1933 = vrcp.pop %v1797
        %v1934 = vrcp.pop %v1799
        %v1935 = vrcp.pop %v1801
        %v1936 = vrcp.pop %v1803
        %v1937 = vrcp.pop %v1805
        %v1938 = vrcp.pop %v1807
        %v1939 = vrcp.pop %v1809
        %v1940 = vrcp.pop %v1811
        %v1941 = vrcp.pop %v1813
        %v1942 = vrcp.pop %v1815
        %v1943 = vrcp.pop %v1817
        %v1944 = vrcp.pop %v1819
        %v1945 = vrcp.pop %v1821
        %v1946 = vrcp.pop %v1823
        %v1947 = vrcp.pop %v1825
        %v1948 = vrcp.pop %v1827
        %v1949 = vmul.f32 %v1871, %v1933
        %v1950 = vmul.f32 %v1874, %v1934
        %v1951 = vmul.f32 %v1879, %v1935
        %v1952 = vmul.f32 %v1882, %v1936
        %v1953 = vmul.f32 %v1887, %v1937
        %v1954 = vmul.f32 %v1890, %v1938
        %v1955 = vmul.f32 %v1895, %v1939
        %v1956 = vmul.f32 %v1898, %v1940
        %v1957 = vmul.f32 %v1903, %v1941
        %v1958 = vmul.f32 %v1906, %v1942
        %v1959 = vmul.f32 %v1911, %v1943
        %v1960 = vmul.f32 %v1914, %v1944
        %v1961 = vmul.f32 %v1919, %v1945
        %v1962 = vmul.f32 %v1922, %v1946
        %v1963 = vmul.f32 %v1927, %v1947
        %v1964 = vmul.f32 %v1930, %v1948
        %v1965 = vadd.f32 %v1949, 0.0
        %v1966 = vadd.f32 %v1950, 0.0
        %v1967 = vadd.f32 %v1951, 0.0
        %v1968 = vadd.f32 %v1952, 0.0
        %v1969 = vadd.f32 %v1953, 0.0
        %v1970 = vadd.f32 %v1954, 0.0
        %v1971 = vadd.f32 %v1955, 0.0
        %v1972 = vadd.f32 %v1956, 0.0
        %v1973 = vadd.f32 %v1957, 0.0
        %v1974 = vadd.f32 %v1958, 0.0
        %v1975 = vadd.f32 %v1959, 0.0
        %v1976 = vadd.f32 %v1960, 0.0
        %v1977 = vadd.f32 %v1961, 0.0
        %v1978 = vadd.f32 %v1962, 0.0
        %v1979 = vadd.f32 %v1963, 0.0
        %v1980 = vadd.f32 %v1964, 0.0
        %1989 = vrot.lane.b32.xlu0 %v1432, 120
        %v1990 = vpop.permute.xlu0 %1989
        %1991 = vrot.lane.b32.xlu0 %v1437, 120
        %v1992 = vpop.permute.xlu0 %1991
        %1993 = vrot.lane.b32.xlu0 %v1442, 120
        %v1994 = vpop.permute.xlu0 %1993
        %1995 = vrot.lane.b32.xlu0 %v1447, 120
        %v1996 = vpop.permute.xlu0 %1995
        %1997 = vrot.lane.b32.xlu0 %v1452, 120
        %v1998 = vpop.permute.xlu0 %1997
        %1999 = vrot.lane.b32.xlu0 %v1457, 120
        %v2000 = vpop.permute.xlu0 %1999
        %2001 = vrot.lane.b32.xlu0 %v1462, 120
        %v2002 = vpop.permute.xlu0 %2001
        %2003 = vrot.lane.b32.xlu0 %v1467, 120
        %v2004 = vpop.permute.xlu0 %2003
        %v2006 = vrot.slane %v1568, 4
        %v2008 = vsel %vm1590, %v1990, 0
        %v2011 = vsel %vm1590, %v1992, 0
        %v2014 = vsel %vm1590, %v1994, 0
        %v2017 = vsel %vm1590, %v1996, 0
        %v2020 = vsel %vm1590, %v1998, 0
        %v2023 = vsel %vm1590, %v2000, 0
        %v2026 = vsel %vm1590, %v2002, 0
        %v2029 = vsel %vm1590, %v2004, 0
        %v2032 = vsel %vm1615, %v2006, 0
        %2034 = vmatprep.subr.bf16.mxu0 0
        %2035 = vmatpush1.bf16.msra.mxu0 0
        %2036 = vmatprep.subr.bf16.mxu0 0
        %2037 = vmatpush1.bf16.msra.mxu0 0
        %2038 = vmatprep.subr.bf16.mxu0 0
        %2039 = vmatpush1.bf16.msra.mxu0 0
        %2040 = vmatprep.subr.bf16.mxu0 0
        %2041 = vmatpush1.bf16.msra.mxu0 0
        %2042 = vmatprep.subr.bf16.mxu0 0
        %2043 = vmatpush1.bf16.msra.mxu0 0
        %2044 = vmatprep.subr.bf16.mxu0 0
        %2045 = vmatpush1.bf16.msra.mxu0 0
        %2046 = vmatprep.subr.bf16.mxu0 0
        %2047 = vmatpush1.bf16.msra.mxu0 0
        %2048 = vmatprep.subr.bf16.mxu0 0
        %2049 = vmatpush1.bf16.msra.mxu0 %v2032
        %2050 = vmatprep.subr.bf16.mxu0 0
        %2051 = vmatpush2.bf16.msra.mxu0 0
        %2052 = vmatprep.subr.bf16.mxu0 0
        %2053 = vmatpush2.bf16.msra.mxu0 0
        %2054 = vmatprep.subr.bf16.mxu0 0
        %2055 = vmatpush2.bf16.msra.mxu0 0
        %2056 = vmatprep.subr.bf16.mxu0 0
        %2057 = vmatpush2.bf16.msra.mxu0 0
        %2058 = vmatprep.subr.bf16.mxu0 0
        %2059 = vmatpush2.bf16.msra.mxu0 0
        %2060 = vmatprep.subr.bf16.mxu0 0
        %2061 = vmatpush2.bf16.msra.mxu0 0
        %2062 = vmatprep.subr.bf16.mxu0 0
        %2063 = vmatpush2.bf16.msra.mxu0 0
        %2064 = vmatprep.subr.bf16.mxu0 0
        %2065 = vmatpush2.bf16.msra.mxu0 0
        %2066 = vmatprep.mubr.bf16.mxu0 0
        %2067 = vmatmul.mubr.bf16.gmra.mxu0 %v2008
        %v2068 = vpop.f32.mrf.mxu0
        %v2069 = vadd.f32 %v1574, %v2068
        %v2070 = vpop.f32.mrf.mxu0
        %v2071 = vpop.f32.mrf.mxu0
        %v2072 = vadd.f32 %v1575, %v2071
        %v2073 = vpop.f32.mrf.mxu0
        %2074 = vmatprep.mubr.bf16.mxu0 0
        %2075 = vmatmul.mubr.bf16.gmra.mxu0 %v2011
        %v2076 = vpop.f32.mrf.mxu0
        %v2077 = vadd.f32 %v1576, %v2076
        %v2078 = vpop.f32.mrf.mxu0
        %v2079 = vpop.f32.mrf.mxu0
        %v2080 = vadd.f32 %v1577, %v2079
        %v2081 = vpop.f32.mrf.mxu0
        %2082 = vmatprep.mubr.bf16.mxu0 0
        %2083 = vmatmul.mubr.bf16.gmra.mxu0 %v2014
        %v2084 = vpop.f32.mrf.mxu0
        %v2085 = vadd.f32 %v1578, %v2084
        %v2086 = vpop.f32.mrf.mxu0
        %v2087 = vpop.f32.mrf.mxu0
        %v2088 = vadd.f32 %v1579, %v2087
        %v2089 = vpop.f32.mrf.mxu0
        %2090 = vmatprep.mubr.bf16.mxu0 0
        %2091 = vmatmul.mubr.bf16.gmra.mxu0 %v2017
        %v2092 = vpop.f32.mrf.mxu0
        %v2093 = vadd.f32 %v1580, %v2092
        %v2094 = vpop.f32.mrf.mxu0
        %v2095 = vpop.f32.mrf.mxu0
        %v2096 = vadd.f32 %v1581, %v2095
        %v2097 = vpop.f32.mrf.mxu0
        %2098 = vmatprep.mubr.bf16.mxu0 0
        %2099 = vmatmul.mubr.bf16.gmra.mxu0 %v2020
        %v2100 = vpop.f32.mrf.mxu0
        %v2101 = vadd.f32 %v1582, %v2100
        %v2102 = vpop.f32.mrf.mxu0
        %v2103 = vpop.f32.mrf.mxu0
        %v2104 = vadd.f32 %v1583, %v2103
        %v2105 = vpop.f32.mrf.mxu0
        %2106 = vmatprep.mubr.bf16.mxu0 0
        %2107 = vmatmul.mubr.bf16.gmra.mxu0 %v2023
        %v2108 = vpop.f32.mrf.mxu0
        %v2109 = vadd.f32 %v1584, %v2108
        %v2110 = vpop.f32.mrf.mxu0
        %v2111 = vpop.f32.mrf.mxu0
        %v2112 = vadd.f32 %v1585, %v2111
        %v2113 = vpop.f32.mrf.mxu0
        %2114 = vmatprep.mubr.bf16.mxu0 0
        %2115 = vmatmul.mubr.bf16.gmra.mxu0 %v2026
        %v2116 = vpop.f32.mrf.mxu0
        %v2117 = vadd.f32 %v1586, %v2116
        %v2118 = vpop.f32.mrf.mxu0
        %v2119 = vpop.f32.mrf.mxu0
        %v2120 = vadd.f32 %v1587, %v2119
        %v2121 = vpop.f32.mrf.mxu0
        %2122 = vmatprep.mubr.bf16.mxu0 0
        %2123 = vmatmul.mubr.bf16.gmra.mxu0 %v2029
        %v2124 = vpop.f32.mrf.mxu0
        %v2125 = vadd.f32 %v1588, %v2124
        %v2126 = vpop.f32.mrf.mxu0
        %v2127 = vpop.f32.mrf.mxu0
        %v2128 = vadd.f32 %v1589, %v2127
        %v2129 = vpop.f32.mrf.mxu0
        %2130 = vdwg.mxu0
        %2131 = vmax.xlane.f32.xlu0 %v2069
        %v2132 = vpop.xlane.xlu0 %2131
        %2133 = vmax.xlane.f32.xlu0 %v2072
        %v2134 = vpop.xlane.xlu0 %2133
        %2135 = vmax.xlane.f32.xlu0 %v2077
        %v2136 = vpop.xlane.xlu0 %2135
        %2137 = vmax.xlane.f32.xlu0 %v2080
        %v2138 = vpop.xlane.xlu0 %2137
        %2139 = vmax.xlane.f32.xlu0 %v2085
        %v2140 = vpop.xlane.xlu0 %2139
        %2141 = vmax.xlane.f32.xlu0 %v2088
        %v2142 = vpop.xlane.xlu0 %2141
        %2143 = vmax.xlane.f32.xlu0 %v2093
        %v2144 = vpop.xlane.xlu0 %2143
        %2145 = vmax.xlane.f32.xlu0 %v2096
        %v2146 = vpop.xlane.xlu0 %2145
        %2147 = vmax.xlane.f32.xlu0 %v2101
        %v2148 = vpop.xlane.xlu0 %2147
        %2149 = vmax.xlane.f32.xlu0 %v2104
        %v2150 = vpop.xlane.xlu0 %2149
        %2151 = vmax.xlane.f32.xlu0 %v2109
        %v2152 = vpop.xlane.xlu0 %2151
        %2153 = vmax.xlane.f32.xlu0 %v2112
        %v2154 = vpop.xlane.xlu0 %2153
        %2155 = vmax.xlane.f32.xlu0 %v2117
        %v2156 = vpop.xlane.xlu0 %2155
        %2157 = vmax.xlane.f32.xlu0 %v2120
        %v2158 = vpop.xlane.xlu0 %2157
        %2159 = vmax.xlane.f32.xlu0 %v2125
        %v2160 = vpop.xlane.xlu0 %2159
        %2161 = vmax.xlane.f32.xlu0 %v2128
        %v2162 = vpop.xlane.xlu0 %2161
        %v2163 = vsub.f32 %v2069, %v2132
        %v2164 = vsub.f32 %v2072, %v2134
        %v2165 = vsub.f32 %v2077, %v2136
        %v2166 = vsub.f32 %v2080, %v2138
        %v2167 = vsub.f32 %v2085, %v2140
        %v2168 = vsub.f32 %v2088, %v2142
        %v2169 = vsub.f32 %v2093, %v2144
        %v2170 = vsub.f32 %v2096, %v2146
        %v2171 = vsub.f32 %v2101, %v2148
        %v2172 = vsub.f32 %v2104, %v2150
        %v2173 = vsub.f32 %v2109, %v2152
        %v2174 = vsub.f32 %v2112, %v2154
        %v2175 = vsub.f32 %v2117, %v2156
        %v2176 = vsub.f32 %v2120, %v2158
        %v2177 = vsub.f32 %v2125, %v2160
        %v2178 = vsub.f32 %v2128, %v2162
        %v2179 = vmul.f32 %v2163, 1.442695
        %v2180 = vpow.pop %v2179
        %v2181 = vmul.f32 %v2164, 1.442695
        %v2182 = vpow.pop %v2181
        %v2183 = vmul.f32 %v2165, 1.442695
        %v2184 = vpow.pop %v2183
        %v2185 = vmul.f32 %v2166, 1.442695
        %v2186 = vpow.pop %v2185
        %v2187 = vmul.f32 %v2167, 1.442695
        %v2188 = vpow.pop %v2187
        %v2189 = vmul.f32 %v2168, 1.442695
        %v2190 = vpow.pop %v2189
        %v2191 = vmul.f32 %v2169, 1.442695
        %v2192 = vpow.pop %v2191
        %v2193 = vmul.f32 %v2170, 1.442695
        %v2194 = vpow.pop %v2193
        %v2195 = vmul.f32 %v2171, 1.442695
        %v2196 = vpow.pop %v2195
        %v2197 = vmul.f32 %v2172, 1.442695
        %v2198 = vpow.pop %v2197
        %v2199 = vmul.f32 %v2173, 1.442695
        %v2200 = vpow.pop %v2199
        %v2201 = vmul.f32 %v2174, 1.442695
        %v2202 = vpow.pop %v2201
        %v2203 = vmul.f32 %v2175, 1.442695
        %v2204 = vpow.pop %v2203
        %v2205 = vmul.f32 %v2176, 1.442695
        %v2206 = vpow.pop %v2205
        %v2207 = vmul.f32 %v2177, 1.442695
        %v2208 = vpow.pop %v2207
        %v2209 = vmul.f32 %v2178, 1.442695
        %v2210 = vpow.pop %v2209
        %2211 = vadd.xlane.f32.xlu0 %v2180
        %v2212 = vpop.xlane.xlu0 %2211
        %2213 = vadd.xlane.f32.xlu0 %v2182
        %v2214 = vpop.xlane.xlu0 %2213
        %2215 = vadd.xlane.f32.xlu0 %v2184
        %v2216 = vpop.xlane.xlu0 %2215
        %2217 = vadd.xlane.f32.xlu0 %v2186
        %v2218 = vpop.xlane.xlu0 %2217
        %2219 = vadd.xlane.f32.xlu0 %v2188
        %v2220 = vpop.xlane.xlu0 %2219
        %2221 = vadd.xlane.f32.xlu0 %v2190
        %v2222 = vpop.xlane.xlu0 %2221
        %2223 = vadd.xlane.f32.xlu0 %v2192
        %v2224 = vpop.xlane.xlu0 %2223
        %2225 = vadd.xlane.f32.xlu0 %v2194
        %v2226 = vpop.xlane.xlu0 %2225
        %2227 = vadd.xlane.f32.xlu0 %v2196
        %v2228 = vpop.xlane.xlu0 %2227
        %2229 = vadd.xlane.f32.xlu0 %v2198
        %v2230 = vpop.xlane.xlu0 %2229
        %2231 = vadd.xlane.f32.xlu0 %v2200
        %v2232 = vpop.xlane.xlu0 %2231
        %2233 = vadd.xlane.f32.xlu0 %v2202
        %v2234 = vpop.xlane.xlu0 %2233
        %2235 = vadd.xlane.f32.xlu0 %v2204
        %v2236 = vpop.xlane.xlu0 %2235
        %2237 = vadd.xlane.f32.xlu0 %v2206
        %v2238 = vpop.xlane.xlu0 %2237
        %2239 = vadd.xlane.f32.xlu0 %v2208
        %v2240 = vpop.xlane.xlu0 %2239
        %2241 = vadd.xlane.f32.xlu0 %v2210
        %v2242 = vpop.xlane.xlu0 %2241
        %v2243 = vpack.c.bf16 %v2182, %v2180
        %v2244 = vpack.c.bf16 %v2186, %v2184
        %v2245 = vpack.c.bf16 %v2190, %v2188
        %v2246 = vpack.c.bf16 %v2194, %v2192
        %v2247 = vpack.c.bf16 %v2198, %v2196
        %v2248 = vpack.c.bf16 %v2202, %v2200
        %v2249 = vpack.c.bf16 %v2206, %v2204
        %v2250 = vpack.c.bf16 %v2210, %v2208
        %2259 = vrot.lane.b32.xlu0 %v1433, 64
        %v2260 = vpop.permute.xlu0 %2259
        %2261 = vrot.lane.b32.xlu0 %v1438, 64
        %v2262 = vpop.permute.xlu0 %2261
        %2263 = vrot.lane.b32.xlu0 %v1443, 64
        %v2264 = vpop.permute.xlu0 %2263
        %2265 = vrot.lane.b32.xlu0 %v1448, 64
        %v2266 = vpop.permute.xlu0 %2265
        %2267 = vrot.lane.b32.xlu0 %v1453, 64
        %v2268 = vpop.permute.xlu0 %2267
        %2269 = vrot.lane.b32.xlu0 %v1458, 64
        %v2270 = vpop.permute.xlu0 %2269
        %2271 = vrot.lane.b32.xlu0 %v1463, 64
        %v2272 = vpop.permute.xlu0 %2271
        %2273 = vrot.lane.b32.xlu0 %v1468, 64
        %v2274 = vpop.permute.xlu0 %2273
        %2283 = vmatprep.subr.bf16.mxu0 0
        %2284 = vmatpush1.bf16.msra.mxu0 %v2274
        %2285 = vmatprep.subr.bf16.mxu0 0
        %2286 = vmatpush1.bf16.msra.mxu0 %v2272
        %2287 = vmatprep.subr.bf16.mxu0 0
        %2288 = vmatpush1.bf16.msra.mxu0 %v2270
        %2289 = vmatprep.subr.bf16.mxu0 0
        %2290 = vmatpush1.bf16.msra.mxu0 %v2268
        %2291 = vmatprep.subr.bf16.mxu0 0
        %2292 = vmatpush1.bf16.msra.mxu0 %v2266
        %2293 = vmatprep.subr.bf16.mxu0 0
        %2294 = vmatpush1.bf16.msra.mxu0 %v2264
        %2295 = vmatprep.subr.bf16.mxu0 0
        %2296 = vmatpush1.bf16.msra.mxu0 %v2262
        %2297 = vmatprep.subr.bf16.mxu0 0
        %2298 = vmatpush1.bf16.msra.mxu0 %v2260
        %2299 = vmatprep.subr.bf16.mxu0 0
        %2300 = vmatpush2.bf16.msra.mxu0 0
        %2301 = vmatprep.subr.bf16.mxu0 0
        %2302 = vmatpush2.bf16.msra.mxu0 0
        %2303 = vmatprep.subr.bf16.mxu0 0
        %2304 = vmatpush2.bf16.msra.mxu0 0
        %2305 = vmatprep.subr.bf16.mxu0 0
        %2306 = vmatpush2.bf16.msra.mxu0 0
        %2307 = vmatprep.subr.bf16.mxu0 0
        %2308 = vmatpush2.bf16.msra.mxu0 0
        %2309 = vmatprep.subr.bf16.mxu0 0
        %2310 = vmatpush2.bf16.msra.mxu0 0
        %2311 = vmatprep.subr.bf16.mxu0 0
        %2312 = vmatpush2.bf16.msra.mxu0 0
        %2313 = vmatprep.subr.bf16.mxu0 0
        %2314 = vmatpush2.bf16.msra.mxu0 0
        %2315 = vmatprep.mubr.bf16.mxu0 0
        %2316 = vmatmul.mubr.bf16.gmra.mxu0 %v2243
        %v2317 = vpop.f32.mrf.mxu0
        %v2318 = vadd.f32 0.0, %v2317
        %v2319 = vpop.f32.mrf.mxu0
        %v2320 = vpop.f32.mrf.mxu0
        %v2321 = vadd.f32 0.0, %v2320
        %v2322 = vpop.f32.mrf.mxu0
        %2323 = vmatprep.mubr.bf16.mxu0 0
        %2324 = vmatmul.mubr.bf16.gmra.mxu0 %v2244
        %v2325 = vpop.f32.mrf.mxu0
        %v2326 = vadd.f32 0.0, %v2325
        %v2327 = vpop.f32.mrf.mxu0
        %v2328 = vpop.f32.mrf.mxu0
        %v2329 = vadd.f32 0.0, %v2328
        %v2330 = vpop.f32.mrf.mxu0
        %2331 = vmatprep.mubr.bf16.mxu0 0
        %2332 = vmatmul.mubr.bf16.gmra.mxu0 %v2245
        %v2333 = vpop.f32.mrf.mxu0
        %v2334 = vadd.f32 0.0, %v2333
        %v2335 = vpop.f32.mrf.mxu0
        %v2336 = vpop.f32.mrf.mxu0
        %v2337 = vadd.f32 0.0, %v2336
        %v2338 = vpop.f32.mrf.mxu0
        %2339 = vmatprep.mubr.bf16.mxu0 0
        %2340 = vmatmul.mubr.bf16.gmra.mxu0 %v2246
        %v2341 = vpop.f32.mrf.mxu0
        %v2342 = vadd.f32 0.0, %v2341
        %v2343 = vpop.f32.mrf.mxu0
        %v2344 = vpop.f32.mrf.mxu0
        %v2345 = vadd.f32 0.0, %v2344
        %v2346 = vpop.f32.mrf.mxu0
        %2347 = vmatprep.mubr.bf16.mxu0 0
        %2348 = vmatmul.mubr.bf16.gmra.mxu0 %v2247
        %v2349 = vpop.f32.mrf.mxu0
        %v2350 = vadd.f32 0.0, %v2349
        %v2351 = vpop.f32.mrf.mxu0
        %v2352 = vpop.f32.mrf.mxu0
        %v2353 = vadd.f32 0.0, %v2352
        %v2354 = vpop.f32.mrf.mxu0
        %2355 = vmatprep.mubr.bf16.mxu0 0
        %2356 = vmatmul.mubr.bf16.gmra.mxu0 %v2248
        %v2357 = vpop.f32.mrf.mxu0
        %v2358 = vadd.f32 0.0, %v2357
        %v2359 = vpop.f32.mrf.mxu0
        %v2360 = vpop.f32.mrf.mxu0
        %v2361 = vadd.f32 0.0, %v2360
        %v2362 = vpop.f32.mrf.mxu0
        %2363 = vmatprep.mubr.bf16.mxu0 0
        %2364 = vmatmul.mubr.bf16.gmra.mxu0 %v2249
        %v2365 = vpop.f32.mrf.mxu0
        %v2366 = vadd.f32 0.0, %v2365
        %v2367 = vpop.f32.mrf.mxu0
        %v2368 = vpop.f32.mrf.mxu0
        %v2369 = vadd.f32 0.0, %v2368
        %v2370 = vpop.f32.mrf.mxu0
        %2371 = vmatprep.mubr.bf16.mxu0 0
        %2372 = vmatmul.mubr.bf16.gmra.mxu0 %v2250
        %v2373 = vpop.f32.mrf.mxu0
        %v2374 = vadd.f32 0.0, %v2373
        %v2375 = vpop.f32.mrf.mxu0
        %v2376 = vpop.f32.mrf.mxu0
        %v2377 = vadd.f32 0.0, %v2376
        %v2378 = vpop.f32.mrf.mxu0
        %2379 = vdwg.mxu0
        %v2380 = vrcp.pop %v2212
        %v2381 = vrcp.pop %v2214
        %v2382 = vrcp.pop %v2216
        %v2383 = vrcp.pop %v2218
        %v2384 = vrcp.pop %v2220
        %v2385 = vrcp.pop %v2222
        %v2386 = vrcp.pop %v2224
        %v2387 = vrcp.pop %v2226
        %v2388 = vrcp.pop %v2228
        %v2389 = vrcp.pop %v2230
        %v2390 = vrcp.pop %v2232
        %v2391 = vrcp.pop %v2234
        %v2392 = vrcp.pop %v2236
        %v2393 = vrcp.pop %v2238
        %v2394 = vrcp.pop %v2240
        %v2395 = vrcp.pop %v2242
        %v2396 = vmul.f32 %v2318, %v2380
        %v2397 = vmul.f32 %v2321, %v2381
        %v2398 = vmul.f32 %v2326, %v2382
        %v2399 = vmul.f32 %v2329, %v2383
        %v2400 = vmul.f32 %v2334, %v2384
        %v2401 = vmul.f32 %v2337, %v2385
        %v2402 = vmul.f32 %v2342, %v2386
        %v2403 = vmul.f32 %v2345, %v2387
        %v2404 = vmul.f32 %v2350, %v2388
        %v2405 = vmul.f32 %v2353, %v2389
        %v2406 = vmul.f32 %v2358, %v2390
        %v2407 = vmul.f32 %v2361, %v2391
        %v2408 = vmul.f32 %v2366, %v2392
        %v2409 = vmul.f32 %v2369, %v2393
        %v2410 = vmul.f32 %v2374, %v2394
        %v2411 = vmul.f32 %v2377, %v2395
        %v2412 = vadd.f32 %v1965, %v2396
        %v2413 = vadd.f32 %v1966, %v2397
        %v2414 = vadd.f32 %v1967, %v2398
        %v2415 = vadd.f32 %v1968, %v2399
        %v2416 = vadd.f32 %v1969, %v2400
        %v2417 = vadd.f32 %v1970, %v2401
        %v2418 = vadd.f32 %v1971, %v2402
        %v2419 = vadd.f32 %v1972, %v2403
        %v2420 = vadd.f32 %v1973, %v2404
        %v2421 = vadd.f32 %v1974, %v2405
        %v2422 = vadd.f32 %v1975, %v2406
        %v2423 = vadd.f32 %v1976, %v2407
        %v2424 = vadd.f32 %v1977, %v2408
        %v2425 = vadd.f32 %v1978, %v2409
        %v2426 = vadd.f32 %v1979, %v2410
        %v2427 = vadd.f32 %v1980, %v2411
        %2428 = vrot.lane.b32.xlu0 %v1432, 112
        %v2429 = vpop.permute.xlu0 %2428
        %2430 = vrot.lane.b32.xlu0 %v1437, 112
        %v2431 = vpop.permute.xlu0 %2430
        %2432 = vrot.lane.b32.xlu0 %v1442, 112
        %v2433 = vpop.permute.xlu0 %2432
        %2434 = vrot.lane.b32.xlu0 %v1447, 112
        %v2435 = vpop.permute.xlu0 %2434
        %2436 = vrot.lane.b32.xlu0 %v1452, 112
        %v2437 = vpop.permute.xlu0 %2436
        %2438 = vrot.lane.b32.xlu0 %v1457, 112
        %v2439 = vpop.permute.xlu0 %2438
        %2440 = vrot.lane.b32.xlu0 %v1462, 112
        %v2441 = vpop.permute.xlu0 %2440
        %2442 = vrot.lane.b32.xlu0 %v1467, 112
        %v2443 = vpop.permute.xlu0 %2442
        %v2445 = vsel %vm1590, %v2429, 0
        %v2448 = vsel %vm1590, %v2431, 0
        %v2451 = vsel %vm1590, %v2433, 0
        %v2454 = vsel %vm1590, %v2435, 0
        %v2457 = vsel %vm1590, %v2437, 0
        %v2460 = vsel %vm1590, %v2439, 0
        %v2463 = vsel %vm1590, %v2441, 0
        %v2466 = vsel %vm1590, %v2443, 0
        %v2469 = vsel %vm1615, %v1569, 0
        %2471 = vmatprep.subr.bf16.mxu0 0
        %2472 = vmatpush1.bf16.msra.mxu0 0
        %2473 = vmatprep.subr.bf16.mxu0 0
        %2474 = vmatpush1.bf16.msra.mxu0 0
        %2475 = vmatprep.subr.bf16.mxu0 0
        %2476 = vmatpush1.bf16.msra.mxu0 0
        %2477 = vmatprep.subr.bf16.mxu0 0
        %2478 = vmatpush1.bf16.msra.mxu0 0
        %2479 = vmatprep.subr.bf16.mxu0 0
        %2480 = vmatpush1.bf16.msra.mxu0 0
        %2481 = vmatprep.subr.bf16.mxu0 0
        %2482 = vmatpush1.bf16.msra.mxu0 0
        %2483 = vmatprep.subr.bf16.mxu0 0
        %2484 = vmatpush1.bf16.msra.mxu0 0
        %2485 = vmatprep.subr.bf16.mxu0 0
        %2486 = vmatpush1.bf16.msra.mxu0 %v2469
        %2487 = vmatprep.subr.bf16.mxu0 0
        %2488 = vmatpush2.bf16.msra.mxu0 0
        %2489 = vmatprep.subr.bf16.mxu0 0
        %2490 = vmatpush2.bf16.msra.mxu0 0
        %2491 = vmatprep.subr.bf16.mxu0 0
        %2492 = vmatpush2.bf16.msra.mxu0 0
        %2493 = vmatprep.subr.bf16.mxu0 0
        %2494 = vmatpush2.bf16.msra.mxu0 0
        %2495 = vmatprep.subr.bf16.mxu0 0
        %2496 = vmatpush2.bf16.msra.mxu0 0
        %2497 = vmatprep.subr.bf16.mxu0 0
        %2498 = vmatpush2.bf16.msra.mxu0 0
        %2499 = vmatprep.subr.bf16.mxu0 0
        %2500 = vmatpush2.bf16.msra.mxu0 0
        %2501 = vmatprep.subr.bf16.mxu0 0
        %2502 = vmatpush2.bf16.msra.mxu0 0
        %2503 = vmatprep.mubr.bf16.mxu0 0
        %2504 = vmatmul.mubr.bf16.gmra.mxu0 %v2445
        %v2505 = vpop.f32.mrf.mxu0
        %v2506 = vadd.f32 %v1574, %v2505
        %v2507 = vpop.f32.mrf.mxu0
        %v2508 = vpop.f32.mrf.mxu0
        %v2509 = vadd.f32 %v1575, %v2508
        %v2510 = vpop.f32.mrf.mxu0
        %2511 = vmatprep.mubr.bf16.mxu0 0
        %2512 = vmatmul.mubr.bf16.gmra.mxu0 %v2448
        %v2513 = vpop.f32.mrf.mxu0
        %v2514 = vadd.f32 %v1576, %v2513
        %v2515 = vpop.f32.mrf.mxu0
        %v2516 = vpop.f32.mrf.mxu0
        %v2517 = vadd.f32 %v1577, %v2516
        %v2518 = vpop.f32.mrf.mxu0
        %2519 = vmatprep.mubr.bf16.mxu0 0
        %2520 = vmatmul.mubr.bf16.gmra.mxu0 %v2451
        %v2521 = vpop.f32.mrf.mxu0
        %v2522 = vadd.f32 %v1578, %v2521
        %v2523 = vpop.f32.mrf.mxu0
        %v2524 = vpop.f32.mrf.mxu0
        %v2525 = vadd.f32 %v1579, %v2524
        %v2526 = vpop.f32.mrf.mxu0
        %2527 = vmatprep.mubr.bf16.mxu0 0
        %2528 = vmatmul.mubr.bf16.gmra.mxu0 %v2454
        %v2529 = vpop.f32.mrf.mxu0
        %v2530 = vadd.f32 %v1580, %v2529
        %v2531 = vpop.f32.mrf.mxu0
        %v2532 = vpop.f32.mrf.mxu0
        %v2533 = vadd.f32 %v1581, %v2532
        %v2534 = vpop.f32.mrf.mxu0
        %2535 = vmatprep.mubr.bf16.mxu0 0
        %2536 = vmatmul.mubr.bf16.gmra.mxu0 %v2457
        %v2537 = vpop.f32.mrf.mxu0
        %v2538 = vadd.f32 %v1582, %v2537
        %v2539 = vpop.f32.mrf.mxu0
        %v2540 = vpop.f32.mrf.mxu0
        %v2541 = vadd.f32 %v1583, %v2540
        %v2542 = vpop.f32.mrf.mxu0
        %2543 = vmatprep.mubr.bf16.mxu0 0
        %2544 = vmatmul.mubr.bf16.gmra.mxu0 %v2460
        %v2545 = vpop.f32.mrf.mxu0
        %v2546 = vadd.f32 %v1584, %v2545
        %v2547 = vpop.f32.mrf.mxu0
        %v2548 = vpop.f32.mrf.mxu0
        %v2549 = vadd.f32 %v1585, %v2548
        %v2550 = vpop.f32.mrf.mxu0
        %2551 = vmatprep.mubr.bf16.mxu0 0
        %2552 = vmatmul.mubr.bf16.gmra.mxu0 %v2463
        %v2553 = vpop.f32.mrf.mxu0
        %v2554 = vadd.f32 %v1586, %v2553
        %v2555 = vpop.f32.mrf.mxu0
        %v2556 = vpop.f32.mrf.mxu0
        %v2557 = vadd.f32 %v1587, %v2556
        %v2558 = vpop.f32.mrf.mxu0
        %2559 = vmatprep.mubr.bf16.mxu0 0
        %2560 = vmatmul.mubr.bf16.gmra.mxu0 %v2466
        %v2561 = vpop.f32.mrf.mxu0
        %v2562 = vadd.f32 %v1588, %v2561
        %v2563 = vpop.f32.mrf.mxu0
        %v2564 = vpop.f32.mrf.mxu0
        %v2565 = vadd.f32 %v1589, %v2564
        %v2566 = vpop.f32.mrf.mxu0
        %2567 = vdwg.mxu0
        %2568 = vmax.xlane.f32.xlu0 %v2506
        %v2569 = vpop.xlane.xlu0 %2568
        %2570 = vmax.xlane.f32.xlu0 %v2509
        %v2571 = vpop.xlane.xlu0 %2570
        %2572 = vmax.xlane.f32.xlu0 %v2514
        %v2573 = vpop.xlane.xlu0 %2572
        %2574 = vmax.xlane.f32.xlu0 %v2517
        %v2575 = vpop.xlane.xlu0 %2574
        %2576 = vmax.xlane.f32.xlu0 %v2522
        %v2577 = vpop.xlane.xlu0 %2576
        %2578 = vmax.xlane.f32.xlu0 %v2525
        %v2579 = vpop.xlane.xlu0 %2578
        %2580 = vmax.xlane.f32.xlu0 %v2530
        %v2581 = vpop.xlane.xlu0 %2580
        %2582 = vmax.xlane.f32.xlu0 %v2533
        %v2583 = vpop.xlane.xlu0 %2582
        %2584 = vmax.xlane.f32.xlu0 %v2538
        %v2585 = vpop.xlane.xlu0 %2584
        %2586 = vmax.xlane.f32.xlu0 %v2541
        %v2587 = vpop.xlane.xlu0 %2586
        %2588 = vmax.xlane.f32.xlu0 %v2546
        %v2589 = vpop.xlane.xlu0 %2588
        %2590 = vmax.xlane.f32.xlu0 %v2549
        %v2591 = vpop.xlane.xlu0 %2590
        %2592 = vmax.xlane.f32.xlu0 %v2554
        %v2593 = vpop.xlane.xlu0 %2592
        %2594 = vmax.xlane.f32.xlu0 %v2557
        %v2595 = vpop.xlane.xlu0 %2594
        %2596 = vmax.xlane.f32.xlu0 %v2562
        %v2597 = vpop.xlane.xlu0 %2596
        %2598 = vmax.xlane.f32.xlu0 %v2565
        %v2599 = vpop.xlane.xlu0 %2598
        %v2600 = vsub.f32 %v2506, %v2569
        %v2601 = vsub.f32 %v2509, %v2571
        %v2602 = vsub.f32 %v2514, %v2573
        %v2603 = vsub.f32 %v2517, %v2575
        %v2604 = vsub.f32 %v2522, %v2577
        %v2605 = vsub.f32 %v2525, %v2579
        %v2606 = vsub.f32 %v2530, %v2581
        %v2607 = vsub.f32 %v2533, %v2583
        %v2608 = vsub.f32 %v2538, %v2585
        %v2609 = vsub.f32 %v2541, %v2587
        %v2610 = vsub.f32 %v2546, %v2589
        %v2611 = vsub.f32 %v2549, %v2591
        %v2612 = vsub.f32 %v2554, %v2593
        %v2613 = vsub.f32 %v2557, %v2595
        %v2614 = vsub.f32 %v2562, %v2597
        %v2615 = vsub.f32 %v2565, %v2599
        %v2616 = vmul.f32 %v2600, 1.442695
        %v2617 = vpow.pop %v2616
        %v2618 = vmul.f32 %v2601, 1.442695
        %v2619 = vpow.pop %v2618
        %v2620 = vmul.f32 %v2602, 1.442695
        %v2621 = vpow.pop %v2620
        %v2622 = vmul.f32 %v2603, 1.442695
        %v2623 = vpow.pop %v2622
        %v2624 = vmul.f32 %v2604, 1.442695
        %v2625 = vpow.pop %v2624
        %v2626 = vmul.f32 %v2605, 1.442695
        %v2627 = vpow.pop %v2626
        %v2628 = vmul.f32 %v2606, 1.442695
        %v2629 = vpow.pop %v2628
        %v2630 = vmul.f32 %v2607, 1.442695
        %v2631 = vpow.pop %v2630
        %v2632 = vmul.f32 %v2608, 1.442695
        %v2633 = vpow.pop %v2632
        %v2634 = vmul.f32 %v2609, 1.442695
        %v2635 = vpow.pop %v2634
        %v2636 = vmul.f32 %v2610, 1.442695
        %v2637 = vpow.pop %v2636
        %v2638 = vmul.f32 %v2611, 1.442695
        %v2639 = vpow.pop %v2638
        %v2640 = vmul.f32 %v2612, 1.442695
        %v2641 = vpow.pop %v2640
        %v2642 = vmul.f32 %v2613, 1.442695
        %v2643 = vpow.pop %v2642
        %v2644 = vmul.f32 %v2614, 1.442695
        %v2645 = vpow.pop %v2644
        %v2646 = vmul.f32 %v2615, 1.442695
        %v2647 = vpow.pop %v2646
        %2648 = vadd.xlane.f32.xlu0 %v2617
        %v2649 = vpop.xlane.xlu0 %2648
        %2650 = vadd.xlane.f32.xlu0 %v2619
        %v2651 = vpop.xlane.xlu0 %2650
        %2652 = vadd.xlane.f32.xlu0 %v2621
        %v2653 = vpop.xlane.xlu0 %2652
        %2654 = vadd.xlane.f32.xlu0 %v2623
        %v2655 = vpop.xlane.xlu0 %2654
        %2656 = vadd.xlane.f32.xlu0 %v2625
        %v2657 = vpop.xlane.xlu0 %2656
        %2658 = vadd.xlane.f32.xlu0 %v2627
        %v2659 = vpop.xlane.xlu0 %2658
        %2660 = vadd.xlane.f32.xlu0 %v2629
        %v2661 = vpop.xlane.xlu0 %2660
        %2662 = vadd.xlane.f32.xlu0 %v2631
        %v2663 = vpop.xlane.xlu0 %2662
        %2664 = vadd.xlane.f32.xlu0 %v2633
        %v2665 = vpop.xlane.xlu0 %2664
        %2666 = vadd.xlane.f32.xlu0 %v2635
        %v2667 = vpop.xlane.xlu0 %2666
        %2668 = vadd.xlane.f32.xlu0 %v2637
        %v2669 = vpop.xlane.xlu0 %2668
        %2670 = vadd.xlane.f32.xlu0 %v2639
        %v2671 = vpop.xlane.xlu0 %2670
        %2672 = vadd.xlane.f32.xlu0 %v2641
        %v2673 = vpop.xlane.xlu0 %2672
        %2674 = vadd.xlane.f32.xlu0 %v2643
        %v2675 = vpop.xlane.xlu0 %2674
        %2676 = vadd.xlane.f32.xlu0 %v2645
        %v2677 = vpop.xlane.xlu0 %2676
        %2678 = vadd.xlane.f32.xlu0 %v2647
        %v2679 = vpop.xlane.xlu0 %2678
        %v2680 = vpack.c.bf16 %v2619, %v2617
        %v2681 = vpack.c.bf16 %v2623, %v2621
        %v2682 = vpack.c.bf16 %v2627, %v2625
        %v2683 = vpack.c.bf16 %v2631, %v2629
        %v2684 = vpack.c.bf16 %v2635, %v2633
        %v2685 = vpack.c.bf16 %v2639, %v2637
        %v2686 = vpack.c.bf16 %v2643, %v2641
        %v2687 = vpack.c.bf16 %v2647, %v2645
        %2688 = vmatprep.subr.bf16.mxu0 0
        %2689 = vmatpush1.bf16.msra.mxu0 %v1469
        %2690 = vmatprep.subr.bf16.mxu0 0
        %2691 = vmatpush1.bf16.msra.mxu0 %v1464
        %2692 = vmatprep.subr.bf16.mxu0 0
        %2693 = vmatpush1.bf16.msra.mxu0 %v1459
        %2694 = vmatprep.subr.bf16.mxu0 0
        %2695 = vmatpush1.bf16.msra.mxu0 %v1454
        %2696 = vmatprep.subr.bf16.mxu0 0
        %2697 = vmatpush1.bf16.msra.mxu0 %v1449
        %2698 = vmatprep.subr.bf16.mxu0 0
        %2699 = vmatpush1.bf16.msra.mxu0 %v1444
        %2700 = vmatprep.subr.bf16.mxu0 0
        %2701 = vmatpush1.bf16.msra.mxu0 %v1439
        %2702 = vmatprep.subr.bf16.mxu0 0
        %2703 = vmatpush1.bf16.msra.mxu0 %v1434
        %2704 = vmatprep.subr.bf16.mxu0 0
        %2705 = vmatpush2.bf16.msra.mxu0 0
        %2706 = vmatprep.subr.bf16.mxu0 0
        %2707 = vmatpush2.bf16.msra.mxu0 0
        %2708 = vmatprep.subr.bf16.mxu0 0
        %2709 = vmatpush2.bf16.msra.mxu0 0
        %2710 = vmatprep.subr.bf16.mxu0 0
        %2711 = vmatpush2.bf16.msra.mxu0 0
        %2712 = vmatprep.subr.bf16.mxu0 0
        %2713 = vmatpush2.bf16.msra.mxu0 0
        %2714 = vmatprep.subr.bf16.mxu0 0
        %2715 = vmatpush2.bf16.msra.mxu0 0
        %2716 = vmatprep.subr.bf16.mxu0 0
        %2717 = vmatpush2.bf16.msra.mxu0 0
        %2718 = vmatprep.subr.bf16.mxu0 0
        %2719 = vmatpush2.bf16.msra.mxu0 0
        %2720 = vmatprep.mubr.bf16.mxu0 0
        %2721 = vmatmul.mubr.bf16.gmra.mxu0 %v2680
        %v2722 = vpop.f32.mrf.mxu0
        %v2723 = vadd.f32 0.0, %v2722
        %v2724 = vpop.f32.mrf.mxu0
        %v2725 = vpop.f32.mrf.mxu0
        %v2726 = vadd.f32 0.0, %v2725
        %v2727 = vpop.f32.mrf.mxu0
        %2728 = vmatprep.mubr.bf16.mxu0 0
        %2729 = vmatmul.mubr.bf16.gmra.mxu0 %v2681
        %v2730 = vpop.f32.mrf.mxu0
        %v2731 = vadd.f32 0.0, %v2730
        %v2732 = vpop.f32.mrf.mxu0
        %v2733 = vpop.f32.mrf.mxu0
        %v2734 = vadd.f32 0.0, %v2733
        %v2735 = vpop.f32.mrf.mxu0
        %2736 = vmatprep.mubr.bf16.mxu0 0
        %2737 = vmatmul.mubr.bf16.gmra.mxu0 %v2682
        %v2738 = vpop.f32.mrf.mxu0
        %v2739 = vadd.f32 0.0, %v2738
        %v2740 = vpop.f32.mrf.mxu0
        %v2741 = vpop.f32.mrf.mxu0
        %v2742 = vadd.f32 0.0, %v2741
        %v2743 = vpop.f32.mrf.mxu0
        %2744 = vmatprep.mubr.bf16.mxu0 0
        %2745 = vmatmul.mubr.bf16.gmra.mxu0 %v2683
        %v2746 = vpop.f32.mrf.mxu0
        %v2747 = vadd.f32 0.0, %v2746
        %v2748 = vpop.f32.mrf.mxu0
        %v2749 = vpop.f32.mrf.mxu0
        %v2750 = vadd.f32 0.0, %v2749
        %v2751 = vpop.f32.mrf.mxu0
        %2752 = vmatprep.mubr.bf16.mxu0 0
        %2753 = vmatmul.mubr.bf16.gmra.mxu0 %v2684
        %v2754 = vpop.f32.mrf.mxu0
        %v2755 = vadd.f32 0.0, %v2754
        %v2756 = vpop.f32.mrf.mxu0
        %v2757 = vpop.f32.mrf.mxu0
        %v2758 = vadd.f32 0.0, %v2757
        %v2759 = vpop.f32.mrf.mxu0
        %2760 = vmatprep.mubr.bf16.mxu0 0
        %2761 = vmatmul.mubr.bf16.gmra.mxu0 %v2685
        %v2762 = vpop.f32.mrf.mxu0
        %v2763 = vadd.f32 0.0, %v2762
        %v2764 = vpop.f32.mrf.mxu0
        %v2765 = vpop.f32.mrf.mxu0
        %v2766 = vadd.f32 0.0, %v2765
        %v2767 = vpop.f32.mrf.mxu0
        %2768 = vmatprep.mubr.bf16.mxu0 0
        %2769 = vmatmul.mubr.bf16.gmra.mxu0 %v2686
        %v2770 = vpop.f32.mrf.mxu0
        %v2771 = vadd.f32 0.0, %v2770
        %v2772 = vpop.f32.mrf.mxu0
        %v2773 = vpop.f32.mrf.mxu0
        %v2774 = vadd.f32 0.0, %v2773
        %v2775 = vpop.f32.mrf.mxu0
        %2776 = vmatprep.mubr.bf16.mxu0 0
        %2777 = vmatmul.mubr.bf16.gmra.mxu0 %v2687
        %v2778 = vpop.f32.mrf.mxu0
        %v2779 = vadd.f32 0.0, %v2778
        %v2780 = vpop.f32.mrf.mxu0
        %v2781 = vpop.f32.mrf.mxu0
        %v2782 = vadd.f32 0.0, %v2781
        %v2783 = vpop.f32.mrf.mxu0
        %2784 = vdwg.mxu0
        %v2785 = vrcp.pop %v2649
        %v2786 = vrcp.pop %v2651
        %v2787 = vrcp.pop %v2653
        %v2788 = vrcp.pop %v2655
        %v2789 = vrcp.pop %v2657
        %v2790 = vrcp.pop %v2659
        %v2791 = vrcp.pop %v2661
        %v2792 = vrcp.pop %v2663
        %v2793 = vrcp.pop %v2665
        %v2794 = vrcp.pop %v2667
        %v2795 = vrcp.pop %v2669
        %v2796 = vrcp.pop %v2671
        %v2797 = vrcp.pop %v2673
        %v2798 = vrcp.pop %v2675
        %v2799 = vrcp.pop %v2677
        %v2800 = vrcp.pop %v2679
        %v2801 = vmul.f32 %v2723, %v2785
        %v2802 = vmul.f32 %v2726, %v2786
        %v2803 = vmul.f32 %v2731, %v2787
        %v2804 = vmul.f32 %v2734, %v2788
        %v2805 = vmul.f32 %v2739, %v2789
        %v2806 = vmul.f32 %v2742, %v2790
        %v2807 = vmul.f32 %v2747, %v2791
        %v2808 = vmul.f32 %v2750, %v2792
        %v2809 = vmul.f32 %v2755, %v2793
        %v2810 = vmul.f32 %v2758, %v2794
        %v2811 = vmul.f32 %v2763, %v2795
        %v2812 = vmul.f32 %v2766, %v2796
        %v2813 = vmul.f32 %v2771, %v2797
        %v2814 = vmul.f32 %v2774, %v2798
        %v2815 = vmul.f32 %v2779, %v2799
        %v2816 = vmul.f32 %v2782, %v2800
        %v2817 = vadd.f32 %v2412, %v2801
        %v2818 = vadd.f32 %v2413, %v2802
        %v2819 = vadd.f32 %v2414, %v2803
        %v2820 = vadd.f32 %v2415, %v2804
        %v2821 = vadd.f32 %v2416, %v2805
        %v2822 = vadd.f32 %v2417, %v2806
        %v2823 = vadd.f32 %v2418, %v2807
        %v2824 = vadd.f32 %v2419, %v2808
        %v2825 = vadd.f32 %v2420, %v2809
        %v2826 = vadd.f32 %v2421, %v2810
        %v2827 = vadd.f32 %v2422, %v2811
        %v2828 = vadd.f32 %v2423, %v2812
        %v2829 = vadd.f32 %v2424, %v2813
        %v2830 = vadd.f32 %v2425, %v2814
        %v2831 = vadd.f32 %v2426, %v2815
        %v2832 = vadd.f32 %v2427, %v2816
        %2833 = vrot.lane.b32.xlu0 %v1432, 104
        %v2834 = vpop.permute.xlu0 %2833
        %2835 = vrot.lane.b32.xlu0 %v1437, 104
        %v2836 = vpop.permute.xlu0 %2835
        %2837 = vrot.lane.b32.xlu0 %v1442, 104
        %v2838 = vpop.permute.xlu0 %2837
        %2839 = vrot.lane.b32.xlu0 %v1447, 104
        %v2840 = vpop.permute.xlu0 %2839
        %2841 = vrot.lane.b32.xlu0 %v1452, 104
        %v2842 = vpop.permute.xlu0 %2841
        %2843 = vrot.lane.b32.xlu0 %v1457, 104
        %v2844 = vpop.permute.xlu0 %2843
        %2845 = vrot.lane.b32.xlu0 %v1462, 104
        %v2846 = vpop.permute.xlu0 %2845
        %2847 = vrot.lane.b32.xlu0 %v1467, 104
        %v2848 = vpop.permute.xlu0 %2847
        %v2850 = vrot.slane %v1569, 4
        %v2852 = vsel %vm1590, %v2834, 0
        %v2855 = vsel %vm1590, %v2836, 0
        %v2858 = vsel %vm1590, %v2838, 0
        %v2861 = vsel %vm1590, %v2840, 0
        %v2864 = vsel %vm1590, %v2842, 0
        %v2867 = vsel %vm1590, %v2844, 0
        %v2870 = vsel %vm1590, %v2846, 0
        %v2873 = vsel %vm1590, %v2848, 0
        %v2876 = vsel %vm1615, %v2850, 0
        %2878 = vmatprep.subr.bf16.mxu0 0
        %2879 = vmatpush1.bf16.msra.mxu0 0
        %2880 = vmatprep.subr.bf16.mxu0 0
        %2881 = vmatpush1.bf16.msra.mxu0 0
        %2882 = vmatprep.subr.bf16.mxu0 0
        %2883 = vmatpush1.bf16.msra.mxu0 0
        %2884 = vmatprep.subr.bf16.mxu0 0
        %2885 = vmatpush1.bf16.msra.mxu0 0
        %2886 = vmatprep.subr.bf16.mxu0 0
        %2887 = vmatpush1.bf16.msra.mxu0 0
        %2888 = vmatprep.subr.bf16.mxu0 0
        %2889 = vmatpush1.bf16.msra.mxu0 0
        %2890 = vmatprep.subr.bf16.mxu0 0
        %2891 = vmatpush1.bf16.msra.mxu0 0
        %2892 = vmatprep.subr.bf16.mxu0 0
        %2893 = vmatpush1.bf16.msra.mxu0 %v2876
        %2894 = vmatprep.subr.bf16.mxu0 0
        %2895 = vmatpush2.bf16.msra.mxu0 0
        %2896 = vmatprep.subr.bf16.mxu0 0
        %2897 = vmatpush2.bf16.msra.mxu0 0
        %2898 = vmatprep.subr.bf16.mxu0 0
        %2899 = vmatpush2.bf16.msra.mxu0 0
        %2900 = vmatprep.subr.bf16.mxu0 0
        %2901 = vmatpush2.bf16.msra.mxu0 0
        %2902 = vmatprep.subr.bf16.mxu0 0
        %2903 = vmatpush2.bf16.msra.mxu0 0
        %2904 = vmatprep.subr.bf16.mxu0 0
        %2905 = vmatpush2.bf16.msra.mxu0 0
        %2906 = vmatprep.subr.bf16.mxu0 0
        %2907 = vmatpush2.bf16.msra.mxu0 0
        %2908 = vmatprep.subr.bf16.mxu0 0
        %2909 = vmatpush2.bf16.msra.mxu0 0
        %2910 = vmatprep.mubr.bf16.mxu0 0
        %2911 = vmatmul.mubr.bf16.gmra.mxu0 %v2852
        %v2912 = vpop.f32.mrf.mxu0
        %v2913 = vadd.f32 %v1574, %v2912
        %v2914 = vpop.f32.mrf.mxu0
        %v2915 = vpop.f32.mrf.mxu0
        %v2916 = vadd.f32 %v1575, %v2915
        %v2917 = vpop.f32.mrf.mxu0
        %2918 = vmatprep.mubr.bf16.mxu0 0
        %2919 = vmatmul.mubr.bf16.gmra.mxu0 %v2855
        %v2920 = vpop.f32.mrf.mxu0
        %v2921 = vadd.f32 %v1576, %v2920
        %v2922 = vpop.f32.mrf.mxu0
        %v2923 = vpop.f32.mrf.mxu0
        %v2924 = vadd.f32 %v1577, %v2923
        %v2925 = vpop.f32.mrf.mxu0
        %2926 = vmatprep.mubr.bf16.mxu0 0
        %2927 = vmatmul.mubr.bf16.gmra.mxu0 %v2858
        %v2928 = vpop.f32.mrf.mxu0
        %v2929 = vadd.f32 %v1578, %v2928
        %v2930 = vpop.f32.mrf.mxu0
        %v2931 = vpop.f32.mrf.mxu0
        %v2932 = vadd.f32 %v1579, %v2931
        %v2933 = vpop.f32.mrf.mxu0
        %2934 = vmatprep.mubr.bf16.mxu0 0
        %2935 = vmatmul.mubr.bf16.gmra.mxu0 %v2861
        %v2936 = vpop.f32.mrf.mxu0
        %v2937 = vadd.f32 %v1580, %v2936
        %v2938 = vpop.f32.mrf.mxu0
        %v2939 = vpop.f32.mrf.mxu0
        %v2940 = vadd.f32 %v1581, %v2939
        %v2941 = vpop.f32.mrf.mxu0
        %2942 = vmatprep.mubr.bf16.mxu0 0
        %2943 = vmatmul.mubr.bf16.gmra.mxu0 %v2864
        %v2944 = vpop.f32.mrf.mxu0
        %v2945 = vadd.f32 %v1582, %v2944
        %v2946 = vpop.f32.mrf.mxu0
        %v2947 = vpop.f32.mrf.mxu0
        %v2948 = vadd.f32 %v1583, %v2947
        %v2949 = vpop.f32.mrf.mxu0
        %2950 = vmatprep.mubr.bf16.mxu0 0
        %2951 = vmatmul.mubr.bf16.gmra.mxu0 %v2867
        %v2952 = vpop.f32.mrf.mxu0
        %v2953 = vadd.f32 %v1584, %v2952
        %v2954 = vpop.f32.mrf.mxu0
        %v2955 = vpop.f32.mrf.mxu0
        %v2956 = vadd.f32 %v1585, %v2955
        %v2957 = vpop.f32.mrf.mxu0
        %2958 = vmatprep.mubr.bf16.mxu0 0
        %2959 = vmatmul.mubr.bf16.gmra.mxu0 %v2870
        %v2960 = vpop.f32.mrf.mxu0
        %v2961 = vadd.f32 %v1586, %v2960
        %v2962 = vpop.f32.mrf.mxu0
        %v2963 = vpop.f32.mrf.mxu0
        %v2964 = vadd.f32 %v1587, %v2963
        %v2965 = vpop.f32.mrf.mxu0
        %2966 = vmatprep.mubr.bf16.mxu0 0
        %2967 = vmatmul.mubr.bf16.gmra.mxu0 %v2873
        %v2968 = vpop.f32.mrf.mxu0
        %v2969 = vadd.f32 %v1588, %v2968
        %v2970 = vpop.f32.mrf.mxu0
        %v2971 = vpop.f32.mrf.mxu0
        %v2972 = vadd.f32 %v1589, %v2971
        %v2973 = vpop.f32.mrf.mxu0
        %2974 = vdwg.mxu0
        %2975 = vmax.xlane.f32.xlu0 %v2913
        %v2976 = vpop.xlane.xlu0 %2975
        %2977 = vmax.xlane.f32.xlu0 %v2916
        %v2978 = vpop.xlane.xlu0 %2977
        %2979 = vmax.xlane.f32.xlu0 %v2921
        %v2980 = vpop.xlane.xlu0 %2979
        %2981 = vmax.xlane.f32.xlu0 %v2924
        %v2982 = vpop.xlane.xlu0 %2981
        %2983 = vmax.xlane.f32.xlu0 %v2929
        %v2984 = vpop.xlane.xlu0 %2983
        %2985 = vmax.xlane.f32.xlu0 %v2932
        %v2986 = vpop.xlane.xlu0 %2985
        %2987 = vmax.xlane.f32.xlu0 %v2937
        %v2988 = vpop.xlane.xlu0 %2987
        %2989 = vmax.xlane.f32.xlu0 %v2940
        %v2990 = vpop.xlane.xlu0 %2989
        %2991 = vmax.xlane.f32.xlu0 %v2945
        %v2992 = vpop.xlane.xlu0 %2991
        %2993 = vmax.xlane.f32.xlu0 %v2948
        %v2994 = vpop.xlane.xlu0 %2993
        %2995 = vmax.xlane.f32.xlu0 %v2953
        %v2996 = vpop.xlane.xlu0 %2995
        %2997 = vmax.xlane.f32.xlu0 %v2956
        %v2998 = vpop.xlane.xlu0 %2997
        %2999 = vmax.xlane.f32.xlu0 %v2961
        %v3000 = vpop.xlane.xlu0 %2999
        %3001 = vmax.xlane.f32.xlu0 %v2964
        %v3002 = vpop.xlane.xlu0 %3001
        %3003 = vmax.xlane.f32.xlu0 %v2969
        %v3004 = vpop.xlane.xlu0 %3003
        %3005 = vmax.xlane.f32.xlu0 %v2972
        %v3006 = vpop.xlane.xlu0 %3005
        %v3007 = vsub.f32 %v2913, %v2976
        %v3008 = vsub.f32 %v2916, %v2978
        %v3009 = vsub.f32 %v2921, %v2980
        %v3010 = vsub.f32 %v2924, %v2982
        %v3011 = vsub.f32 %v2929, %v2984
        %v3012 = vsub.f32 %v2932, %v2986
        %v3013 = vsub.f32 %v2937, %v2988
        %v3014 = vsub.f32 %v2940, %v2990
        %v3015 = vsub.f32 %v2945, %v2992
        %v3016 = vsub.f32 %v2948, %v2994
        %v3017 = vsub.f32 %v2953, %v2996
        %v3018 = vsub.f32 %v2956, %v2998
        %v3019 = vsub.f32 %v2961, %v3000
        %v3020 = vsub.f32 %v2964, %v3002
        %v3021 = vsub.f32 %v2969, %v3004
        %v3022 = vsub.f32 %v2972, %v3006
        %v3023 = vmul.f32 %v3007, 1.442695
        %v3024 = vpow.pop %v3023
        %v3025 = vmul.f32 %v3008, 1.442695
        %v3026 = vpow.pop %v3025
        %v3027 = vmul.f32 %v3009, 1.442695
        %v3028 = vpow.pop %v3027
        %v3029 = vmul.f32 %v3010, 1.442695
        %v3030 = vpow.pop %v3029
        %v3031 = vmul.f32 %v3011, 1.442695
        %v3032 = vpow.pop %v3031
        %v3033 = vmul.f32 %v3012, 1.442695
        %v3034 = vpow.pop %v3033
        %v3035 = vmul.f32 %v3013, 1.442695
        %v3036 = vpow.pop %v3035
        %v3037 = vmul.f32 %v3014, 1.442695
        %v3038 = vpow.pop %v3037
        %v3039 = vmul.f32 %v3015, 1.442695
        %v3040 = vpow.pop %v3039
        %v3041 = vmul.f32 %v3016, 1.442695
        %v3042 = vpow.pop %v3041
        %v3043 = vmul.f32 %v3017, 1.442695
        %v3044 = vpow.pop %v3043
        %v3045 = vmul.f32 %v3018, 1.442695
        %v3046 = vpow.pop %v3045
        %v3047 = vmul.f32 %v3019, 1.442695
        %v3048 = vpow.pop %v3047
        %v3049 = vmul.f32 %v3020, 1.442695
        %v3050 = vpow.pop %v3049
        %v3051 = vmul.f32 %v3021, 1.442695
        %v3052 = vpow.pop %v3051
        %v3053 = vmul.f32 %v3022, 1.442695
        %v3054 = vpow.pop %v3053
        %3055 = vadd.xlane.f32.xlu0 %v3024
        %v3056 = vpop.xlane.xlu0 %3055
        %3057 = vadd.xlane.f32.xlu0 %v3026
        %v3058 = vpop.xlane.xlu0 %3057
        %3059 = vadd.xlane.f32.xlu0 %v3028
        %v3060 = vpop.xlane.xlu0 %3059
        %3061 = vadd.xlane.f32.xlu0 %v3030
        %v3062 = vpop.xlane.xlu0 %3061
        %3063 = vadd.xlane.f32.xlu0 %v3032
        %v3064 = vpop.xlane.xlu0 %3063
        %3065 = vadd.xlane.f32.xlu0 %v3034
        %v3066 = vpop.xlane.xlu0 %3065
        %3067 = vadd.xlane.f32.xlu0 %v3036
        %v3068 = vpop.xlane.xlu0 %3067
        %3069 = vadd.xlane.f32.xlu0 %v3038
        %v3070 = vpop.xlane.xlu0 %3069
        %3071 = vadd.xlane.f32.xlu0 %v3040
        %v3072 = vpop.xlane.xlu0 %3071
        %3073 = vadd.xlane.f32.xlu0 %v3042
        %v3074 = vpop.xlane.xlu0 %3073
        %3075 = vadd.xlane.f32.xlu0 %v3044
        %v3076 = vpop.xlane.xlu0 %3075
        %3077 = vadd.xlane.f32.xlu0 %v3046
        %v3078 = vpop.xlane.xlu0 %3077
        %3079 = vadd.xlane.f32.xlu0 %v3048
        %v3080 = vpop.xlane.xlu0 %3079
        %3081 = vadd.xlane.f32.xlu0 %v3050
        %v3082 = vpop.xlane.xlu0 %3081
        %3083 = vadd.xlane.f32.xlu0 %v3052
        %v3084 = vpop.xlane.xlu0 %3083
        %3085 = vadd.xlane.f32.xlu0 %v3054
        %v3086 = vpop.xlane.xlu0 %3085
        %v3087 = vpack.c.bf16 %v3026, %v3024
        %v3088 = vpack.c.bf16 %v3030, %v3028
        %v3089 = vpack.c.bf16 %v3034, %v3032
        %v3090 = vpack.c.bf16 %v3038, %v3036
        %v3091 = vpack.c.bf16 %v3042, %v3040
        %v3092 = vpack.c.bf16 %v3046, %v3044
        %v3093 = vpack.c.bf16 %v3050, %v3048
        %v3094 = vpack.c.bf16 %v3054, %v3052
        %3103 = vrot.lane.b32.xlu0 %v1434, 64
        %v3104 = vpop.permute.xlu0 %3103
        %3105 = vrot.lane.b32.xlu0 %v1439, 64
        %v3106 = vpop.permute.xlu0 %3105
        %3107 = vrot.lane.b32.xlu0 %v1444, 64
        %v3108 = vpop.permute.xlu0 %3107
        %3109 = vrot.lane.b32.xlu0 %v1449, 64
        %v3110 = vpop.permute.xlu0 %3109
        %3111 = vrot.lane.b32.xlu0 %v1454, 64
        %v3112 = vpop.permute.xlu0 %3111
        %3113 = vrot.lane.b32.xlu0 %v1459, 64
        %v3114 = vpop.permute.xlu0 %3113
        %3115 = vrot.lane.b32.xlu0 %v1464, 64
        %v3116 = vpop.permute.xlu0 %3115
        %3117 = vrot.lane.b32.xlu0 %v1469, 64
        %v3118 = vpop.permute.xlu0 %3117
        %3127 = vmatprep.subr.bf16.mxu0 0
        %3128 = vmatpush1.bf16.msra.mxu0 %v3118
        %3129 = vmatprep.subr.bf16.mxu0 0
        %3130 = vmatpush1.bf16.msra.mxu0 %v3116
        %3131 = vmatprep.subr.bf16.mxu0 0
        %3132 = vmatpush1.bf16.msra.mxu0 %v3114
        %3133 = vmatprep.subr.bf16.mxu0 0
        %3134 = vmatpush1.bf16.msra.mxu0 %v3112
        %3135 = vmatprep.subr.bf16.mxu0 0
        %3136 = vmatpush1.bf16.msra.mxu0 %v3110
        %3137 = vmatprep.subr.bf16.mxu0 0
        %3138 = vmatpush1.bf16.msra.mxu0 %v3108
        %3139 = vmatprep.subr.bf16.mxu0 0
        %3140 = vmatpush1.bf16.msra.mxu0 %v3106
        %3141 = vmatprep.subr.bf16.mxu0 0
        %3142 = vmatpush1.bf16.msra.mxu0 %v3104
        %3143 = vmatprep.subr.bf16.mxu0 0
        %3144 = vmatpush2.bf16.msra.mxu0 0
        %3145 = vmatprep.subr.bf16.mxu0 0
        %3146 = vmatpush2.bf16.msra.mxu0 0
        %3147 = vmatprep.subr.bf16.mxu0 0
        %3148 = vmatpush2.bf16.msra.mxu0 0
        %3149 = vmatprep.subr.bf16.mxu0 0
        %3150 = vmatpush2.bf16.msra.mxu0 0
        %3151 = vmatprep.subr.bf16.mxu0 0
        %3152 = vmatpush2.bf16.msra.mxu0 0
        %3153 = vmatprep.subr.bf16.mxu0 0
        %3154 = vmatpush2.bf16.msra.mxu0 0
        %3155 = vmatprep.subr.bf16.mxu0 0
        %3156 = vmatpush2.bf16.msra.mxu0 0
        %3157 = vmatprep.subr.bf16.mxu0 0
        %3158 = vmatpush2.bf16.msra.mxu0 0
        %3159 = vmatprep.mubr.bf16.mxu0 0
        %3160 = vmatmul.mubr.bf16.gmra.mxu0 %v3087
        %v3161 = vpop.f32.mrf.mxu0
        %v3162 = vadd.f32 0.0, %v3161
        %v3163 = vpop.f32.mrf.mxu0
        %v3164 = vpop.f32.mrf.mxu0
        %v3165 = vadd.f32 0.0, %v3164
        %v3166 = vpop.f32.mrf.mxu0
        %3167 = vmatprep.mubr.bf16.mxu0 0
        %3168 = vmatmul.mubr.bf16.gmra.mxu0 %v3088
        %v3169 = vpop.f32.mrf.mxu0
        %v3170 = vadd.f32 0.0, %v3169
        %v3171 = vpop.f32.mrf.mxu0
        %v3172 = vpop.f32.mrf.mxu0
        %v3173 = vadd.f32 0.0, %v3172
        %v3174 = vpop.f32.mrf.mxu0
        %3175 = vmatprep.mubr.bf16.mxu0 0
        %3176 = vmatmul.mubr.bf16.gmra.mxu0 %v3089
        %v3177 = vpop.f32.mrf.mxu0
        %v3178 = vadd.f32 0.0, %v3177
        %v3179 = vpop.f32.mrf.mxu0
        %v3180 = vpop.f32.mrf.mxu0
        %v3181 = vadd.f32 0.0, %v3180
        %v3182 = vpop.f32.mrf.mxu0
        %3183 = vmatprep.mubr.bf16.mxu0 0
        %3184 = vmatmul.mubr.bf16.gmra.mxu0 %v3090
        %v3185 = vpop.f32.mrf.mxu0
        %v3186 = vadd.f32 0.0, %v3185
        %v3187 = vpop.f32.mrf.mxu0
        %v3188 = vpop.f32.mrf.mxu0
        %v3189 = vadd.f32 0.0, %v3188
        %v3190 = vpop.f32.mrf.mxu0
        %3191 = vmatprep.mubr.bf16.mxu0 0
        %3192 = vmatmul.mubr.bf16.gmra.mxu0 %v3091
        %v3193 = vpop.f32.mrf.mxu0
        %v3194 = vadd.f32 0.0, %v3193
        %v3195 = vpop.f32.mrf.mxu0
        %v3196 = vpop.f32.mrf.mxu0
        %v3197 = vadd.f32 0.0, %v3196
        %v3198 = vpop.f32.mrf.mxu0
        %3199 = vmatprep.mubr.bf16.mxu0 0
        %3200 = vmatmul.mubr.bf16.gmra.mxu0 %v3092
        %v3201 = vpop.f32.mrf.mxu0
        %v3202 = vadd.f32 0.0, %v3201
        %v3203 = vpop.f32.mrf.mxu0
        %v3204 = vpop.f32.mrf.mxu0
        %v3205 = vadd.f32 0.0, %v3204
        %v3206 = vpop.f32.mrf.mxu0
        %3207 = vmatprep.mubr.bf16.mxu0 0
        %3208 = vmatmul.mubr.bf16.gmra.mxu0 %v3093
        %v3209 = vpop.f32.mrf.mxu0
        %v3210 = vadd.f32 0.0, %v3209
        %v3211 = vpop.f32.mrf.mxu0
        %v3212 = vpop.f32.mrf.mxu0
        %v3213 = vadd.f32 0.0, %v3212
        %v3214 = vpop.f32.mrf.mxu0
        %3215 = vmatprep.mubr.bf16.mxu0 0
        %3216 = vmatmul.mubr.bf16.gmra.mxu0 %v3094
        %v3217 = vpop.f32.mrf.mxu0
        %v3218 = vadd.f32 0.0, %v3217
        %v3219 = vpop.f32.mrf.mxu0
        %v3220 = vpop.f32.mrf.mxu0
        %v3221 = vadd.f32 0.0, %v3220
        %v3222 = vpop.f32.mrf.mxu0
        %3223 = vdwg.mxu0
        %v3224 = vrcp.pop %v3056
        %v3225 = vrcp.pop %v3058
        %v3226 = vrcp.pop %v3060
        %v3227 = vrcp.pop %v3062
        %v3228 = vrcp.pop %v3064
        %v3229 = vrcp.pop %v3066
        %v3230 = vrcp.pop %v3068
        %v3231 = vrcp.pop %v3070
        %v3232 = vrcp.pop %v3072
        %v3233 = vrcp.pop %v3074
        %v3234 = vrcp.pop %v3076
        %v3235 = vrcp.pop %v3078
        %v3236 = vrcp.pop %v3080
        %v3237 = vrcp.pop %v3082
        %v3238 = vrcp.pop %v3084
        %v3239 = vrcp.pop %v3086
        %v3240 = vmul.f32 %v3162, %v3224
        %v3241 = vmul.f32 %v3165, %v3225
        %v3242 = vmul.f32 %v3170, %v3226
        %v3243 = vmul.f32 %v3173, %v3227
        %v3244 = vmul.f32 %v3178, %v3228
        %v3245 = vmul.f32 %v3181, %v3229
        %v3246 = vmul.f32 %v3186, %v3230
        %v3247 = vmul.f32 %v3189, %v3231
        %v3248 = vmul.f32 %v3194, %v3232
        %v3249 = vmul.f32 %v3197, %v3233
        %v3250 = vmul.f32 %v3202, %v3234
        %v3251 = vmul.f32 %v3205, %v3235
        %v3252 = vmul.f32 %v3210, %v3236
        %v3253 = vmul.f32 %v3213, %v3237
        %v3254 = vmul.f32 %v3218, %v3238
        %v3255 = vmul.f32 %v3221, %v3239
        %v3256 = vadd.f32 %v2817, %v3240
        %v3257 = vadd.f32 %v2818, %v3241
        %v3258 = vadd.f32 %v2819, %v3242
        %v3259 = vadd.f32 %v2820, %v3243
        %v3260 = vadd.f32 %v2821, %v3244
        %v3261 = vadd.f32 %v2822, %v3245
        %v3262 = vadd.f32 %v2823, %v3246
        %v3263 = vadd.f32 %v2824, %v3247
        %v3264 = vadd.f32 %v2825, %v3248
        %v3265 = vadd.f32 %v2826, %v3249
        %v3266 = vadd.f32 %v2827, %v3250
        %v3267 = vadd.f32 %v2828, %v3251
        %v3268 = vadd.f32 %v2829, %v3252
        %v3269 = vadd.f32 %v2830, %v3253
        %v3270 = vadd.f32 %v2831, %v3254
        %v3271 = vadd.f32 %v2832, %v3255
        %3272 = vrot.lane.b32.xlu0 %v1432, 96
        %v3273 = vpop.permute.xlu0 %3272
        %3274 = vrot.lane.b32.xlu0 %v1437, 96
        %v3275 = vpop.permute.xlu0 %3274
        %3276 = vrot.lane.b32.xlu0 %v1442, 96
        %v3277 = vpop.permute.xlu0 %3276
        %3278 = vrot.lane.b32.xlu0 %v1447, 96
        %v3279 = vpop.permute.xlu0 %3278
        %3280 = vrot.lane.b32.xlu0 %v1452, 96
        %v3281 = vpop.permute.xlu0 %3280
        %3282 = vrot.lane.b32.xlu0 %v1457, 96
        %v3283 = vpop.permute.xlu0 %3282
        %3284 = vrot.lane.b32.xlu0 %v1462, 96
        %v3285 = vpop.permute.xlu0 %3284
        %3286 = vrot.lane.b32.xlu0 %v1467, 96
        %v3287 = vpop.permute.xlu0 %3286
        %v3289 = vsel %vm1590, %v3273, 0
        %v3292 = vsel %vm1590, %v3275, 0
        %v3295 = vsel %vm1590, %v3277, 0
        %v3298 = vsel %vm1590, %v3279, 0
        %v3301 = vsel %vm1590, %v3281, 0
        %v3304 = vsel %vm1590, %v3283, 0
        %v3307 = vsel %vm1590, %v3285, 0
        %v3310 = vsel %vm1590, %v3287, 0
        %v3313 = vsel %vm1615, %v1570, 0
        %3315 = vmatprep.subr.bf16.mxu0 0
        %3316 = vmatpush1.bf16.msra.mxu0 0
        %3317 = vmatprep.subr.bf16.mxu0 0
        %3318 = vmatpush1.bf16.msra.mxu0 0
        %3319 = vmatprep.subr.bf16.mxu0 0
        %3320 = vmatpush1.bf16.msra.mxu0 0
        %3321 = vmatprep.subr.bf16.mxu0 0
        %3322 = vmatpush1.bf16.msra.mxu0 0
        %3323 = vmatprep.subr.bf16.mxu0 0
        %3324 = vmatpush1.bf16.msra.mxu0 0
        %3325 = vmatprep.subr.bf16.mxu0 0
        %3326 = vmatpush1.bf16.msra.mxu0 0
        %3327 = vmatprep.subr.bf16.mxu0 0
        %3328 = vmatpush1.bf16.msra.mxu0 0
        %3329 = vmatprep.subr.bf16.mxu0 0
        %3330 = vmatpush1.bf16.msra.mxu0 %v3313
        %3331 = vmatprep.subr.bf16.mxu0 0
        %3332 = vmatpush2.bf16.msra.mxu0 0
        %3333 = vmatprep.subr.bf16.mxu0 0
        %3334 = vmatpush2.bf16.msra.mxu0 0
        %3335 = vmatprep.subr.bf16.mxu0 0
        %3336 = vmatpush2.bf16.msra.mxu0 0
        %3337 = vmatprep.subr.bf16.mxu0 0
        %3338 = vmatpush2.bf16.msra.mxu0 0
        %3339 = vmatprep.subr.bf16.mxu0 0
        %3340 = vmatpush2.bf16.msra.mxu0 0
        %3341 = vmatprep.subr.bf16.mxu0 0
        %3342 = vmatpush2.bf16.msra.mxu0 0
        %3343 = vmatprep.subr.bf16.mxu0 0
        %3344 = vmatpush2.bf16.msra.mxu0 0
        %3345 = vmatprep.subr.bf16.mxu0 0
        %3346 = vmatpush2.bf16.msra.mxu0 0
        %3347 = vmatprep.mubr.bf16.mxu0 0
        %3348 = vmatmul.mubr.bf16.gmra.mxu0 %v3289
        %v3349 = vpop.f32.mrf.mxu0
        %v3350 = vadd.f32 %v1574, %v3349
        %v3351 = vpop.f32.mrf.mxu0
        %v3352 = vpop.f32.mrf.mxu0
        %v3353 = vadd.f32 %v1575, %v3352
        %v3354 = vpop.f32.mrf.mxu0
        %3355 = vmatprep.mubr.bf16.mxu0 0
        %3356 = vmatmul.mubr.bf16.gmra.mxu0 %v3292
        %v3357 = vpop.f32.mrf.mxu0
        %v3358 = vadd.f32 %v1576, %v3357
        %v3359 = vpop.f32.mrf.mxu0
        %v3360 = vpop.f32.mrf.mxu0
        %v3361 = vadd.f32 %v1577, %v3360
        %v3362 = vpop.f32.mrf.mxu0
        %3363 = vmatprep.mubr.bf16.mxu0 0
        %3364 = vmatmul.mubr.bf16.gmra.mxu0 %v3295
        %v3365 = vpop.f32.mrf.mxu0
        %v3366 = vadd.f32 %v1578, %v3365
        %v3367 = vpop.f32.mrf.mxu0
        %v3368 = vpop.f32.mrf.mxu0
        %v3369 = vadd.f32 %v1579, %v3368
        %v3370 = vpop.f32.mrf.mxu0
        %3371 = vmatprep.mubr.bf16.mxu0 0
        %3372 = vmatmul.mubr.bf16.gmra.mxu0 %v3298
        %v3373 = vpop.f32.mrf.mxu0
        %v3374 = vadd.f32 %v1580, %v3373
        %v3375 = vpop.f32.mrf.mxu0
        %v3376 = vpop.f32.mrf.mxu0
        %v3377 = vadd.f32 %v1581, %v3376
        %v3378 = vpop.f32.mrf.mxu0
        %3379 = vmatprep.mubr.bf16.mxu0 0
        %3380 = vmatmul.mubr.bf16.gmra.mxu0 %v3301
        %v3381 = vpop.f32.mrf.mxu0
        %v3382 = vadd.f32 %v1582, %v3381
        %v3383 = vpop.f32.mrf.mxu0
        %v3384 = vpop.f32.mrf.mxu0
        %v3385 = vadd.f32 %v1583, %v3384
        %v3386 = vpop.f32.mrf.mxu0
        %3387 = vmatprep.mubr.bf16.mxu0 0
        %3388 = vmatmul.mubr.bf16.gmra.mxu0 %v3304
        %v3389 = vpop.f32.mrf.mxu0
        %v3390 = vadd.f32 %v1584, %v3389
        %v3391 = vpop.f32.mrf.mxu0
        %v3392 = vpop.f32.mrf.mxu0
        %v3393 = vadd.f32 %v1585, %v3392
        %v3394 = vpop.f32.mrf.mxu0
        %3395 = vmatprep.mubr.bf16.mxu0 0
        %3396 = vmatmul.mubr.bf16.gmra.mxu0 %v3307
        %v3397 = vpop.f32.mrf.mxu0
        %v3398 = vadd.f32 %v1586, %v3397
        %v3399 = vpop.f32.mrf.mxu0
        %v3400 = vpop.f32.mrf.mxu0
        %v3401 = vadd.f32 %v1587, %v3400
        %v3402 = vpop.f32.mrf.mxu0
        %3403 = vmatprep.mubr.bf16.mxu0 0
        %3404 = vmatmul.mubr.bf16.gmra.mxu0 %v3310
        %v3405 = vpop.f32.mrf.mxu0
        %v3406 = vadd.f32 %v1588, %v3405
        %v3407 = vpop.f32.mrf.mxu0
        %v3408 = vpop.f32.mrf.mxu0
        %v3409 = vadd.f32 %v1589, %v3408
        %v3410 = vpop.f32.mrf.mxu0
        %3411 = vdwg.mxu0
        %3412 = vmax.xlane.f32.xlu0 %v3350
        %v3413 = vpop.xlane.xlu0 %3412
        %3414 = vmax.xlane.f32.xlu0 %v3353
        %v3415 = vpop.xlane.xlu0 %3414
        %3416 = vmax.xlane.f32.xlu0 %v3358
        %v3417 = vpop.xlane.xlu0 %3416
        %3418 = vmax.xlane.f32.xlu0 %v3361
        %v3419 = vpop.xlane.xlu0 %3418
        %3420 = vmax.xlane.f32.xlu0 %v3366
        %v3421 = vpop.xlane.xlu0 %3420
        %3422 = vmax.xlane.f32.xlu0 %v3369
        %v3423 = vpop.xlane.xlu0 %3422
        %3424 = vmax.xlane.f32.xlu0 %v3374
        %v3425 = vpop.xlane.xlu0 %3424
        %3426 = vmax.xlane.f32.xlu0 %v3377
        %v3427 = vpop.xlane.xlu0 %3426
        %3428 = vmax.xlane.f32.xlu0 %v3382
        %v3429 = vpop.xlane.xlu0 %3428
        %3430 = vmax.xlane.f32.xlu0 %v3385
        %v3431 = vpop.xlane.xlu0 %3430
        %3432 = vmax.xlane.f32.xlu0 %v3390
        %v3433 = vpop.xlane.xlu0 %3432
        %3434 = vmax.xlane.f32.xlu0 %v3393
        %v3435 = vpop.xlane.xlu0 %3434
        %3436 = vmax.xlane.f32.xlu0 %v3398
        %v3437 = vpop.xlane.xlu0 %3436
        %3438 = vmax.xlane.f32.xlu0 %v3401
        %v3439 = vpop.xlane.xlu0 %3438
        %3440 = vmax.xlane.f32.xlu0 %v3406
        %v3441 = vpop.xlane.xlu0 %3440
        %3442 = vmax.xlane.f32.xlu0 %v3409
        %v3443 = vpop.xlane.xlu0 %3442
        %v3444 = vsub.f32 %v3350, %v3413
        %v3445 = vsub.f32 %v3353, %v3415
        %v3446 = vsub.f32 %v3358, %v3417
        %v3447 = vsub.f32 %v3361, %v3419
        %v3448 = vsub.f32 %v3366, %v3421
        %v3449 = vsub.f32 %v3369, %v3423
        %v3450 = vsub.f32 %v3374, %v3425
        %v3451 = vsub.f32 %v3377, %v3427
        %v3452 = vsub.f32 %v3382, %v3429
        %v3453 = vsub.f32 %v3385, %v3431
        %v3454 = vsub.f32 %v3390, %v3433
        %v3455 = vsub.f32 %v3393, %v3435
        %v3456 = vsub.f32 %v3398, %v3437
        %v3457 = vsub.f32 %v3401, %v3439
        %v3458 = vsub.f32 %v3406, %v3441
        %v3459 = vsub.f32 %v3409, %v3443
        %v3460 = vmul.f32 %v3444, 1.442695
        %v3461 = vpow.pop %v3460
        %v3462 = vmul.f32 %v3445, 1.442695
        %v3463 = vpow.pop %v3462
        %v3464 = vmul.f32 %v3446, 1.442695
        %v3465 = vpow.pop %v3464
        %v3466 = vmul.f32 %v3447, 1.442695
        %v3467 = vpow.pop %v3466
        %v3468 = vmul.f32 %v3448, 1.442695
        %v3469 = vpow.pop %v3468
        %v3470 = vmul.f32 %v3449, 1.442695
        %v3471 = vpow.pop %v3470
        %v3472 = vmul.f32 %v3450, 1.442695
        %v3473 = vpow.pop %v3472
        %v3474 = vmul.f32 %v3451, 1.442695
        %v3475 = vpow.pop %v3474
        %v3476 = vmul.f32 %v3452, 1.442695
        %v3477 = vpow.pop %v3476
        %v3478 = vmul.f32 %v3453, 1.442695
        %v3479 = vpow.pop %v3478
        %v3480 = vmul.f32 %v3454, 1.442695
        %v3481 = vpow.pop %v3480
        %v3482 = vmul.f32 %v3455, 1.442695
        %v3483 = vpow.pop %v3482
        %v3484 = vmul.f32 %v3456, 1.442695
        %v3485 = vpow.pop %v3484
        %v3486 = vmul.f32 %v3457, 1.442695
        %v3487 = vpow.pop %v3486
        %v3488 = vmul.f32 %v3458, 1.442695
        %v3489 = vpow.pop %v3488
        %v3490 = vmul.f32 %v3459, 1.442695
        %v3491 = vpow.pop %v3490
        %3492 = vadd.xlane.f32.xlu0 %v3461
        %v3493 = vpop.xlane.xlu0 %3492
        %3494 = vadd.xlane.f32.xlu0 %v3463
        %v3495 = vpop.xlane.xlu0 %3494
        %3496 = vadd.xlane.f32.xlu0 %v3465
        %v3497 = vpop.xlane.xlu0 %3496
        %3498 = vadd.xlane.f32.xlu0 %v3467
        %v3499 = vpop.xlane.xlu0 %3498
        %3500 = vadd.xlane.f32.xlu0 %v3469
        %v3501 = vpop.xlane.xlu0 %3500
        %3502 = vadd.xlane.f32.xlu0 %v3471
        %v3503 = vpop.xlane.xlu0 %3502
        %3504 = vadd.xlane.f32.xlu0 %v3473
        %v3505 = vpop.xlane.xlu0 %3504
        %3506 = vadd.xlane.f32.xlu0 %v3475
        %v3507 = vpop.xlane.xlu0 %3506
        %3508 = vadd.xlane.f32.xlu0 %v3477
        %v3509 = vpop.xlane.xlu0 %3508
        %3510 = vadd.xlane.f32.xlu0 %v3479
        %v3511 = vpop.xlane.xlu0 %3510
        %3512 = vadd.xlane.f32.xlu0 %v3481
        %v3513 = vpop.xlane.xlu0 %3512
        %3514 = vadd.xlane.f32.xlu0 %v3483
        %v3515 = vpop.xlane.xlu0 %3514
        %3516 = vadd.xlane.f32.xlu0 %v3485
        %v3517 = vpop.xlane.xlu0 %3516
        %3518 = vadd.xlane.f32.xlu0 %v3487
        %v3519 = vpop.xlane.xlu0 %3518
        %3520 = vadd.xlane.f32.xlu0 %v3489
        %v3521 = vpop.xlane.xlu0 %3520
        %3522 = vadd.xlane.f32.xlu0 %v3491
        %v3523 = vpop.xlane.xlu0 %3522
        %v3524 = vpack.c.bf16 %v3463, %v3461
        %v3525 = vpack.c.bf16 %v3467, %v3465
        %v3526 = vpack.c.bf16 %v3471, %v3469
        %v3527 = vpack.c.bf16 %v3475, %v3473
        %v3528 = vpack.c.bf16 %v3479, %v3477
        %v3529 = vpack.c.bf16 %v3483, %v3481
        %v3530 = vpack.c.bf16 %v3487, %v3485
        %v3531 = vpack.c.bf16 %v3491, %v3489
        %3532 = vmatprep.subr.bf16.mxu0 0
        %3533 = vmatpush1.bf16.msra.mxu0 %v1470
        %3534 = vmatprep.subr.bf16.mxu0 0
        %3535 = vmatpush1.bf16.msra.mxu0 %v1465
        %3536 = vmatprep.subr.bf16.mxu0 0
        %3537 = vmatpush1.bf16.msra.mxu0 %v1460
        %3538 = vmatprep.subr.bf16.mxu0 0
        %3539 = vmatpush1.bf16.msra.mxu0 %v1455
        %3540 = vmatprep.subr.bf16.mxu0 0
        %3541 = vmatpush1.bf16.msra.mxu0 %v1450
        %3542 = vmatprep.subr.bf16.mxu0 0
        %3543 = vmatpush1.bf16.msra.mxu0 %v1445
        %3544 = vmatprep.subr.bf16.mxu0 0
        %3545 = vmatpush1.bf16.msra.mxu0 %v1440
        %3546 = vmatprep.subr.bf16.mxu0 0
        %3547 = vmatpush1.bf16.msra.mxu0 %v1435
        %3548 = vmatprep.subr.bf16.mxu0 0
        %3549 = vmatpush2.bf16.msra.mxu0 0
        %3550 = vmatprep.subr.bf16.mxu0 0
        %3551 = vmatpush2.bf16.msra.mxu0 0
        %3552 = vmatprep.subr.bf16.mxu0 0
        %3553 = vmatpush2.bf16.msra.mxu0 0
        %3554 = vmatprep.subr.bf16.mxu0 0
        %3555 = vmatpush2.bf16.msra.mxu0 0
        %3556 = vmatprep.subr.bf16.mxu0 0
        %3557 = vmatpush2.bf16.msra.mxu0 0
        %3558 = vmatprep.subr.bf16.mxu0 0
        %3559 = vmatpush2.bf16.msra.mxu0 0
        %3560 = vmatprep.subr.bf16.mxu0 0
        %3561 = vmatpush2.bf16.msra.mxu0 0
        %3562 = vmatprep.subr.bf16.mxu0 0
        %3563 = vmatpush2.bf16.msra.mxu0 0
        %3564 = vmatprep.mubr.bf16.mxu0 0
        %3565 = vmatmul.mubr.bf16.gmra.mxu0 %v3524
        %v3566 = vpop.f32.mrf.mxu0
        %v3567 = vadd.f32 0.0, %v3566
        %v3568 = vpop.f32.mrf.mxu0
        %v3569 = vpop.f32.mrf.mxu0
        %v3570 = vadd.f32 0.0, %v3569
        %v3571 = vpop.f32.mrf.mxu0
        %3572 = vmatprep.mubr.bf16.mxu0 0
        %3573 = vmatmul.mubr.bf16.gmra.mxu0 %v3525
        %v3574 = vpop.f32.mrf.mxu0
        %v3575 = vadd.f32 0.0, %v3574
        %v3576 = vpop.f32.mrf.mxu0
        %v3577 = vpop.f32.mrf.mxu0
        %v3578 = vadd.f32 0.0, %v3577
        %v3579 = vpop.f32.mrf.mxu0
        %3580 = vmatprep.mubr.bf16.mxu0 0
        %3581 = vmatmul.mubr.bf16.gmra.mxu0 %v3526
        %v3582 = vpop.f32.mrf.mxu0
        %v3583 = vadd.f32 0.0, %v3582
        %v3584 = vpop.f32.mrf.mxu0
        %v3585 = vpop.f32.mrf.mxu0
        %v3586 = vadd.f32 0.0, %v3585
        %v3587 = vpop.f32.mrf.mxu0
        %3588 = vmatprep.mubr.bf16.mxu0 0
        %3589 = vmatmul.mubr.bf16.gmra.mxu0 %v3527
        %v3590 = vpop.f32.mrf.mxu0
        %v3591 = vadd.f32 0.0, %v3590
        %v3592 = vpop.f32.mrf.mxu0
        %v3593 = vpop.f32.mrf.mxu0
        %v3594 = vadd.f32 0.0, %v3593
        %v3595 = vpop.f32.mrf.mxu0
        %3596 = vmatprep.mubr.bf16.mxu0 0
        %3597 = vmatmul.mubr.bf16.gmra.mxu0 %v3528
        %v3598 = vpop.f32.mrf.mxu0
        %v3599 = vadd.f32 0.0, %v3598
        %v3600 = vpop.f32.mrf.mxu0
        %v3601 = vpop.f32.mrf.mxu0
        %v3602 = vadd.f32 0.0, %v3601
        %v3603 = vpop.f32.mrf.mxu0
        %3604 = vmatprep.mubr.bf16.mxu0 0
        %3605 = vmatmul.mubr.bf16.gmra.mxu0 %v3529
        %v3606 = vpop.f32.mrf.mxu0
        %v3607 = vadd.f32 0.0, %v3606
        %v3608 = vpop.f32.mrf.mxu0
        %v3609 = vpop.f32.mrf.mxu0
        %v3610 = vadd.f32 0.0, %v3609
        %v3611 = vpop.f32.mrf.mxu0
        %3612 = vmatprep.mubr.bf16.mxu0 0
        %3613 = vmatmul.mubr.bf16.gmra.mxu0 %v3530
        %v3614 = vpop.f32.mrf.mxu0
        %v3615 = vadd.f32 0.0, %v3614
        %v3616 = vpop.f32.mrf.mxu0
        %v3617 = vpop.f32.mrf.mxu0
        %v3618 = vadd.f32 0.0, %v3617
        %v3619 = vpop.f32.mrf.mxu0
        %3620 = vmatprep.mubr.bf16.mxu0 0
        %3621 = vmatmul.mubr.bf16.gmra.mxu0 %v3531
        %v3622 = vpop.f32.mrf.mxu0
        %v3623 = vadd.f32 0.0, %v3622
        %v3624 = vpop.f32.mrf.mxu0
        %v3625 = vpop.f32.mrf.mxu0
        %v3626 = vadd.f32 0.0, %v3625
        %v3627 = vpop.f32.mrf.mxu0
        %3628 = vdwg.mxu0
        %v3629 = vrcp.pop %v3493
        %v3630 = vrcp.pop %v3495
        %v3631 = vrcp.pop %v3497
        %v3632 = vrcp.pop %v3499
        %v3633 = vrcp.pop %v3501
        %v3634 = vrcp.pop %v3503
        %v3635 = vrcp.pop %v3505
        %v3636 = vrcp.pop %v3507
        %v3637 = vrcp.pop %v3509
        %v3638 = vrcp.pop %v3511
        %v3639 = vrcp.pop %v3513
        %v3640 = vrcp.pop %v3515
        %v3641 = vrcp.pop %v3517
        %v3642 = vrcp.pop %v3519
        %v3643 = vrcp.pop %v3521
        %v3644 = vrcp.pop %v3523
        %v3645 = vmul.f32 %v3567, %v3629
        %v3646 = vmul.f32 %v3570, %v3630
        %v3647 = vmul.f32 %v3575, %v3631
        %v3648 = vmul.f32 %v3578, %v3632
        %v3649 = vmul.f32 %v3583, %v3633
        %v3650 = vmul.f32 %v3586, %v3634
        %v3651 = vmul.f32 %v3591, %v3635
        %v3652 = vmul.f32 %v3594, %v3636
        %v3653 = vmul.f32 %v3599, %v3637
        %v3654 = vmul.f32 %v3602, %v3638
        %v3655 = vmul.f32 %v3607, %v3639
        %v3656 = vmul.f32 %v3610, %v3640
        %v3657 = vmul.f32 %v3615, %v3641
        %v3658 = vmul.f32 %v3618, %v3642
        %v3659 = vmul.f32 %v3623, %v3643
        %v3660 = vmul.f32 %v3626, %v3644
        %v3661 = vadd.f32 %v3256, %v3645
        %v3662 = vadd.f32 %v3257, %v3646
        %v3663 = vadd.f32 %v3258, %v3647
        %v3664 = vadd.f32 %v3259, %v3648
        %v3665 = vadd.f32 %v3260, %v3649
        %v3666 = vadd.f32 %v3261, %v3650
        %v3667 = vadd.f32 %v3262, %v3651
        %v3668 = vadd.f32 %v3263, %v3652
        %v3669 = vadd.f32 %v3264, %v3653
        %v3670 = vadd.f32 %v3265, %v3654
        %v3671 = vadd.f32 %v3266, %v3655
        %v3672 = vadd.f32 %v3267, %v3656
        %v3673 = vadd.f32 %v3268, %v3657
        %v3674 = vadd.f32 %v3269, %v3658
        %v3675 = vadd.f32 %v3270, %v3659
        %v3676 = vadd.f32 %v3271, %v3660
        %3677 = vrot.lane.b32.xlu0 %v1432, 88
        %v3678 = vpop.permute.xlu0 %3677
        %3679 = vrot.lane.b32.xlu0 %v1437, 88
        %v3680 = vpop.permute.xlu0 %3679
        %3681 = vrot.lane.b32.xlu0 %v1442, 88
        %v3682 = vpop.permute.xlu0 %3681
        %3683 = vrot.lane.b32.xlu0 %v1447, 88
        %v3684 = vpop.permute.xlu0 %3683
        %3685 = vrot.lane.b32.xlu0 %v1452, 88
        %v3686 = vpop.permute.xlu0 %3685
        %3687 = vrot.lane.b32.xlu0 %v1457, 88
        %v3688 = vpop.permute.xlu0 %3687
        %3689 = vrot.lane.b32.xlu0 %v1462, 88
        %v3690 = vpop.permute.xlu0 %3689
        %3691 = vrot.lane.b32.xlu0 %v1467, 88
        %v3692 = vpop.permute.xlu0 %3691
        %v3694 = vrot.slane %v1570, 4
        %v3696 = vsel %vm1590, %v3678, 0
        %v3699 = vsel %vm1590, %v3680, 0
        %v3702 = vsel %vm1590, %v3682, 0
        %v3705 = vsel %vm1590, %v3684, 0
        %v3708 = vsel %vm1590, %v3686, 0
        %v3711 = vsel %vm1590, %v3688, 0
        %v3714 = vsel %vm1590, %v3690, 0
        %v3717 = vsel %vm1590, %v3692, 0
        %v3720 = vsel %vm1615, %v3694, 0
        %3722 = vmatprep.subr.bf16.mxu0 0
        %3723 = vmatpush1.bf16.msra.mxu0 0
        %3724 = vmatprep.subr.bf16.mxu0 0
        %3725 = vmatpush1.bf16.msra.mxu0 0
        %3726 = vmatprep.subr.bf16.mxu0 0
        %3727 = vmatpush1.bf16.msra.mxu0 0
        %3728 = vmatprep.subr.bf16.mxu0 0
        %3729 = vmatpush1.bf16.msra.mxu0 0
        %3730 = vmatprep.subr.bf16.mxu0 0
        %3731 = vmatpush1.bf16.msra.mxu0 0
        %3732 = vmatprep.subr.bf16.mxu0 0
        %3733 = vmatpush1.bf16.msra.mxu0 0
        %3734 = vmatprep.subr.bf16.mxu0 0
        %3735 = vmatpush1.bf16.msra.mxu0 0
        %3736 = vmatprep.subr.bf16.mxu0 0
        %3737 = vmatpush1.bf16.msra.mxu0 %v3720
        %3738 = vmatprep.subr.bf16.mxu0 0
        %3739 = vmatpush2.bf16.msra.mxu0 0
        %3740 = vmatprep.subr.bf16.mxu0 0
        %3741 = vmatpush2.bf16.msra.mxu0 0
        %3742 = vmatprep.subr.bf16.mxu0 0
        %3743 = vmatpush2.bf16.msra.mxu0 0
        %3744 = vmatprep.subr.bf16.mxu0 0
        %3745 = vmatpush2.bf16.msra.mxu0 0
        %3746 = vmatprep.subr.bf16.mxu0 0
        %3747 = vmatpush2.bf16.msra.mxu0 0
        %3748 = vmatprep.subr.bf16.mxu0 0
        %3749 = vmatpush2.bf16.msra.mxu0 0
        %3750 = vmatprep.subr.bf16.mxu0 0
        %3751 = vmatpush2.bf16.msra.mxu0 0
        %3752 = vmatprep.subr.bf16.mxu0 0
        %3753 = vmatpush2.bf16.msra.mxu0 0
        %3754 = vmatprep.mubr.bf16.mxu0 0
        %3755 = vmatmul.mubr.bf16.gmra.mxu0 %v3696
        %v3756 = vpop.f32.mrf.mxu0
        %v3757 = vadd.f32 %v1574, %v3756
        %v3758 = vpop.f32.mrf.mxu0
        %v3759 = vpop.f32.mrf.mxu0
        %v3760 = vadd.f32 %v1575, %v3759
        %v3761 = vpop.f32.mrf.mxu0
        %3762 = vmatprep.mubr.bf16.mxu0 0
        %3763 = vmatmul.mubr.bf16.gmra.mxu0 %v3699
        %v3764 = vpop.f32.mrf.mxu0
        %v3765 = vadd.f32 %v1576, %v3764
        %v3766 = vpop.f32.mrf.mxu0
        %v3767 = vpop.f32.mrf.mxu0
        %v3768 = vadd.f32 %v1577, %v3767
        %v3769 = vpop.f32.mrf.mxu0
        %3770 = vmatprep.mubr.bf16.mxu0 0
        %3771 = vmatmul.mubr.bf16.gmra.mxu0 %v3702
        %v3772 = vpop.f32.mrf.mxu0
        %v3773 = vadd.f32 %v1578, %v3772
        %v3774 = vpop.f32.mrf.mxu0
        %v3775 = vpop.f32.mrf.mxu0
        %v3776 = vadd.f32 %v1579, %v3775
        %v3777 = vpop.f32.mrf.mxu0
        %3778 = vmatprep.mubr.bf16.mxu0 0
        %3779 = vmatmul.mubr.bf16.gmra.mxu0 %v3705
        %v3780 = vpop.f32.mrf.mxu0
        %v3781 = vadd.f32 %v1580, %v3780
        %v3782 = vpop.f32.mrf.mxu0
        %v3783 = vpop.f32.mrf.mxu0
        %v3784 = vadd.f32 %v1581, %v3783
        %v3785 = vpop.f32.mrf.mxu0
        %3786 = vmatprep.mubr.bf16.mxu0 0
        %3787 = vmatmul.mubr.bf16.gmra.mxu0 %v3708
        %v3788 = vpop.f32.mrf.mxu0
        %v3789 = vadd.f32 %v1582, %v3788
        %v3790 = vpop.f32.mrf.mxu0
        %v3791 = vpop.f32.mrf.mxu0
        %v3792 = vadd.f32 %v1583, %v3791
        %v3793 = vpop.f32.mrf.mxu0
        %3794 = vmatprep.mubr.bf16.mxu0 0
        %3795 = vmatmul.mubr.bf16.gmra.mxu0 %v3711
        %v3796 = vpop.f32.mrf.mxu0
        %v3797 = vadd.f32 %v1584, %v3796
        %v3798 = vpop.f32.mrf.mxu0
        %v3799 = vpop.f32.mrf.mxu0
        %v3800 = vadd.f32 %v1585, %v3799
        %v3801 = vpop.f32.mrf.mxu0
        %3802 = vmatprep.mubr.bf16.mxu0 0
        %3803 = vmatmul.mubr.bf16.gmra.mxu0 %v3714
        %v3804 = vpop.f32.mrf.mxu0
        %v3805 = vadd.f32 %v1586, %v3804
        %v3806 = vpop.f32.mrf.mxu0
        %v3807 = vpop.f32.mrf.mxu0
        %v3808 = vadd.f32 %v1587, %v3807
        %v3809 = vpop.f32.mrf.mxu0
        %3810 = vmatprep.mubr.bf16.mxu0 0
        %3811 = vmatmul.mubr.bf16.gmra.mxu0 %v3717
        %v3812 = vpop.f32.mrf.mxu0
        %v3813 = vadd.f32 %v1588, %v3812
        %v3814 = vpop.f32.mrf.mxu0
        %v3815 = vpop.f32.mrf.mxu0
        %v3816 = vadd.f32 %v1589, %v3815
        %v3817 = vpop.f32.mrf.mxu0
        %3818 = vdwg.mxu0
        %3819 = vmax.xlane.f32.xlu0 %v3757
        %v3820 = vpop.xlane.xlu0 %3819
        %3821 = vmax.xlane.f32.xlu0 %v3760
        %v3822 = vpop.xlane.xlu0 %3821
        %3823 = vmax.xlane.f32.xlu0 %v3765
        %v3824 = vpop.xlane.xlu0 %3823
        %3825 = vmax.xlane.f32.xlu0 %v3768
        %v3826 = vpop.xlane.xlu0 %3825
        %3827 = vmax.xlane.f32.xlu0 %v3773
        %v3828 = vpop.xlane.xlu0 %3827
        %3829 = vmax.xlane.f32.xlu0 %v3776
        %v3830 = vpop.xlane.xlu0 %3829
        %3831 = vmax.xlane.f32.xlu0 %v3781
        %v3832 = vpop.xlane.xlu0 %3831
        %3833 = vmax.xlane.f32.xlu0 %v3784
        %v3834 = vpop.xlane.xlu0 %3833
        %3835 = vmax.xlane.f32.xlu0 %v3789
        %v3836 = vpop.xlane.xlu0 %3835
        %3837 = vmax.xlane.f32.xlu0 %v3792
        %v3838 = vpop.xlane.xlu0 %3837
        %3839 = vmax.xlane.f32.xlu0 %v3797
        %v3840 = vpop.xlane.xlu0 %3839
        %3841 = vmax.xlane.f32.xlu0 %v3800
        %v3842 = vpop.xlane.xlu0 %3841
        %3843 = vmax.xlane.f32.xlu0 %v3805
        %v3844 = vpop.xlane.xlu0 %3843
        %3845 = vmax.xlane.f32.xlu0 %v3808
        %v3846 = vpop.xlane.xlu0 %3845
        %3847 = vmax.xlane.f32.xlu0 %v3813
        %v3848 = vpop.xlane.xlu0 %3847
        %3849 = vmax.xlane.f32.xlu0 %v3816
        %v3850 = vpop.xlane.xlu0 %3849
        %v3851 = vsub.f32 %v3757, %v3820
        %v3852 = vsub.f32 %v3760, %v3822
        %v3853 = vsub.f32 %v3765, %v3824
        %v3854 = vsub.f32 %v3768, %v3826
        %v3855 = vsub.f32 %v3773, %v3828
        %v3856 = vsub.f32 %v3776, %v3830
        %v3857 = vsub.f32 %v3781, %v3832
        %v3858 = vsub.f32 %v3784, %v3834
        %v3859 = vsub.f32 %v3789, %v3836
        %v3860 = vsub.f32 %v3792, %v3838
        %v3861 = vsub.f32 %v3797, %v3840
        %v3862 = vsub.f32 %v3800, %v3842
        %v3863 = vsub.f32 %v3805, %v3844
        %v3864 = vsub.f32 %v3808, %v3846
        %v3865 = vsub.f32 %v3813, %v3848
        %v3866 = vsub.f32 %v3816, %v3850
        %v3867 = vmul.f32 %v3851, 1.442695
        %v3868 = vpow.pop %v3867
        %v3869 = vmul.f32 %v3852, 1.442695
        %v3870 = vpow.pop %v3869
        %v3871 = vmul.f32 %v3853, 1.442695
        %v3872 = vpow.pop %v3871
        %v3873 = vmul.f32 %v3854, 1.442695
        %v3874 = vpow.pop %v3873
        %v3875 = vmul.f32 %v3855, 1.442695
        %v3876 = vpow.pop %v3875
        %v3877 = vmul.f32 %v3856, 1.442695
        %v3878 = vpow.pop %v3877
        %v3879 = vmul.f32 %v3857, 1.442695
        %v3880 = vpow.pop %v3879
        %v3881 = vmul.f32 %v3858, 1.442695
        %v3882 = vpow.pop %v3881
        %v3883 = vmul.f32 %v3859, 1.442695
        %v3884 = vpow.pop %v3883
        %v3885 = vmul.f32 %v3860, 1.442695
        %v3886 = vpow.pop %v3885
        %v3887 = vmul.f32 %v3861, 1.442695
        %v3888 = vpow.pop %v3887
        %v3889 = vmul.f32 %v3862, 1.442695
        %v3890 = vpow.pop %v3889
        %v3891 = vmul.f32 %v3863, 1.442695
        %v3892 = vpow.pop %v3891
        %v3893 = vmul.f32 %v3864, 1.442695
        %v3894 = vpow.pop %v3893
        %v3895 = vmul.f32 %v3865, 1.442695
        %v3896 = vpow.pop %v3895
        %v3897 = vmul.f32 %v3866, 1.442695
        %v3898 = vpow.pop %v3897
        %3899 = vadd.xlane.f32.xlu0 %v3868
        %v3900 = vpop.xlane.xlu0 %3899
        %3901 = vadd.xlane.f32.xlu0 %v3870
        %v3902 = vpop.xlane.xlu0 %3901
        %3903 = vadd.xlane.f32.xlu0 %v3872
        %v3904 = vpop.xlane.xlu0 %3903
        %3905 = vadd.xlane.f32.xlu0 %v3874
        %v3906 = vpop.xlane.xlu0 %3905
        %3907 = vadd.xlane.f32.xlu0 %v3876
        %v3908 = vpop.xlane.xlu0 %3907
        %3909 = vadd.xlane.f32.xlu0 %v3878
        %v3910 = vpop.xlane.xlu0 %3909
        %3911 = vadd.xlane.f32.xlu0 %v3880
        %v3912 = vpop.xlane.xlu0 %3911
        %3913 = vadd.xlane.f32.xlu0 %v3882
        %v3914 = vpop.xlane.xlu0 %3913
        %3915 = vadd.xlane.f32.xlu0 %v3884
        %v3916 = vpop.xlane.xlu0 %3915
        %3917 = vadd.xlane.f32.xlu0 %v3886
        %v3918 = vpop.xlane.xlu0 %3917
        %3919 = vadd.xlane.f32.xlu0 %v3888
        %v3920 = vpop.xlane.xlu0 %3919
        %3921 = vadd.xlane.f32.xlu0 %v3890
        %v3922 = vpop.xlane.xlu0 %3921
        %3923 = vadd.xlane.f32.xlu0 %v3892
        %v3924 = vpop.xlane.xlu0 %3923
        %3925 = vadd.xlane.f32.xlu0 %v3894
        %v3926 = vpop.xlane.xlu0 %3925
        %3927 = vadd.xlane.f32.xlu0 %v3896
        %v3928 = vpop.xlane.xlu0 %3927
        %3929 = vadd.xlane.f32.xlu0 %v3898
        %v3930 = vpop.xlane.xlu0 %3929
        %v3931 = vpack.c.bf16 %v3870, %v3868
        %v3932 = vpack.c.bf16 %v3874, %v3872
        %v3933 = vpack.c.bf16 %v3878, %v3876
        %v3934 = vpack.c.bf16 %v3882, %v3880
        %v3935 = vpack.c.bf16 %v3886, %v3884
        %v3936 = vpack.c.bf16 %v3890, %v3888
        %v3937 = vpack.c.bf16 %v3894, %v3892
        %v3938 = vpack.c.bf16 %v3898, %v3896
        %3947 = vrot.lane.b32.xlu0 %v1435, 64
        %v3948 = vpop.permute.xlu0 %3947
        %3949 = vrot.lane.b32.xlu0 %v1440, 64
        %v3950 = vpop.permute.xlu0 %3949
        %3951 = vrot.lane.b32.xlu0 %v1445, 64
        %v3952 = vpop.permute.xlu0 %3951
        %3953 = vrot.lane.b32.xlu0 %v1450, 64
        %v3954 = vpop.permute.xlu0 %3953
        %3955 = vrot.lane.b32.xlu0 %v1455, 64
        %v3956 = vpop.permute.xlu0 %3955
        %3957 = vrot.lane.b32.xlu0 %v1460, 64
        %v3958 = vpop.permute.xlu0 %3957
        %3959 = vrot.lane.b32.xlu0 %v1465, 64
        %v3960 = vpop.permute.xlu0 %3959
        %3961 = vrot.lane.b32.xlu0 %v1470, 64
        %v3962 = vpop.permute.xlu0 %3961
        %3971 = vmatprep.subr.bf16.mxu0 0
        %3972 = vmatpush1.bf16.msra.mxu0 %v3962
        %3973 = vmatprep.subr.bf16.mxu0 0
        %3974 = vmatpush1.bf16.msra.mxu0 %v3960
        %3975 = vmatprep.subr.bf16.mxu0 0
        %3976 = vmatpush1.bf16.msra.mxu0 %v3958
        %3977 = vmatprep.subr.bf16.mxu0 0
        %3978 = vmatpush1.bf16.msra.mxu0 %v3956
        %3979 = vmatprep.subr.bf16.mxu0 0
        %3980 = vmatpush1.bf16.msra.mxu0 %v3954
        %3981 = vmatprep.subr.bf16.mxu0 0
        %3982 = vmatpush1.bf16.msra.mxu0 %v3952
        %3983 = vmatprep.subr.bf16.mxu0 0
        %3984 = vmatpush1.bf16.msra.mxu0 %v3950
        %3985 = vmatprep.subr.bf16.mxu0 0
        %3986 = vmatpush1.bf16.msra.mxu0 %v3948
        %3987 = vmatprep.subr.bf16.mxu0 0
        %3988 = vmatpush2.bf16.msra.mxu0 0
        %3989 = vmatprep.subr.bf16.mxu0 0
        %3990 = vmatpush2.bf16.msra.mxu0 0
        %3991 = vmatprep.subr.bf16.mxu0 0
        %3992 = vmatpush2.bf16.msra.mxu0 0
        %3993 = vmatprep.subr.bf16.mxu0 0
        %3994 = vmatpush2.bf16.msra.mxu0 0
        %3995 = vmatprep.subr.bf16.mxu0 0
        %3996 = vmatpush2.bf16.msra.mxu0 0
        %3997 = vmatprep.subr.bf16.mxu0 0
        %3998 = vmatpush2.bf16.msra.mxu0 0
        %3999 = vmatprep.subr.bf16.mxu0 0
        %4000 = vmatpush2.bf16.msra.mxu0 0
        %4001 = vmatprep.subr.bf16.mxu0 0
        %4002 = vmatpush2.bf16.msra.mxu0 0
        %4003 = vmatprep.mubr.bf16.mxu0 0
        %4004 = vmatmul.mubr.bf16.gmra.mxu0 %v3931
        %v4005 = vpop.f32.mrf.mxu0
        %v4006 = vadd.f32 0.0, %v4005
        %v4007 = vpop.f32.mrf.mxu0
        %v4008 = vpop.f32.mrf.mxu0
        %v4009 = vadd.f32 0.0, %v4008
        %v4010 = vpop.f32.mrf.mxu0
        %4011 = vmatprep.mubr.bf16.mxu0 0
        %4012 = vmatmul.mubr.bf16.gmra.mxu0 %v3932
        %v4013 = vpop.f32.mrf.mxu0
        %v4014 = vadd.f32 0.0, %v4013
        %v4015 = vpop.f32.mrf.mxu0
        %v4016 = vpop.f32.mrf.mxu0
        %v4017 = vadd.f32 0.0, %v4016
        %v4018 = vpop.f32.mrf.mxu0
        %4019 = vmatprep.mubr.bf16.mxu0 0
        %4020 = vmatmul.mubr.bf16.gmra.mxu0 %v3933
        %v4021 = vpop.f32.mrf.mxu0
        %v4022 = vadd.f32 0.0, %v4021
        %v4023 = vpop.f32.mrf.mxu0
        %v4024 = vpop.f32.mrf.mxu0
        %v4025 = vadd.f32 0.0, %v4024
        %v4026 = vpop.f32.mrf.mxu0
        %4027 = vmatprep.mubr.bf16.mxu0 0
        %4028 = vmatmul.mubr.bf16.gmra.mxu0 %v3934
        %v4029 = vpop.f32.mrf.mxu0
        %v4030 = vadd.f32 0.0, %v4029
        %v4031 = vpop.f32.mrf.mxu0
        %v4032 = vpop.f32.mrf.mxu0
        %v4033 = vadd.f32 0.0, %v4032
        %v4034 = vpop.f32.mrf.mxu0
        %4035 = vmatprep.mubr.bf16.mxu0 0
        %4036 = vmatmul.mubr.bf16.gmra.mxu0 %v3935
        %v4037 = vpop.f32.mrf.mxu0
        %v4038 = vadd.f32 0.0, %v4037
        %v4039 = vpop.f32.mrf.mxu0
        %v4040 = vpop.f32.mrf.mxu0
        %v4041 = vadd.f32 0.0, %v4040
        %v4042 = vpop.f32.mrf.mxu0
        %4043 = vmatprep.mubr.bf16.mxu0 0
        %4044 = vmatmul.mubr.bf16.gmra.mxu0 %v3936
        %v4045 = vpop.f32.mrf.mxu0
        %v4046 = vadd.f32 0.0, %v4045
        %v4047 = vpop.f32.mrf.mxu0
        %v4048 = vpop.f32.mrf.mxu0
        %v4049 = vadd.f32 0.0, %v4048
        %v4050 = vpop.f32.mrf.mxu0
        %4051 = vmatprep.mubr.bf16.mxu0 0
        %4052 = vmatmul.mubr.bf16.gmra.mxu0 %v3937
        %v4053 = vpop.f32.mrf.mxu0
        %v4054 = vadd.f32 0.0, %v4053
        %v4055 = vpop.f32.mrf.mxu0
        %v4056 = vpop.f32.mrf.mxu0
        %v4057 = vadd.f32 0.0, %v4056
        %v4058 = vpop.f32.mrf.mxu0
        %4059 = vmatprep.mubr.bf16.mxu0 0
        %4060 = vmatmul.mubr.bf16.gmra.mxu0 %v3938
        %v4061 = vpop.f32.mrf.mxu0
        %v4062 = vadd.f32 0.0, %v4061
        %v4063 = vpop.f32.mrf.mxu0
        %v4064 = vpop.f32.mrf.mxu0
        %v4065 = vadd.f32 0.0, %v4064
        %v4066 = vpop.f32.mrf.mxu0
        %4067 = vdwg.mxu0
        %v4068 = vrcp.pop %v3900
        %v4069 = vrcp.pop %v3902
        %v4070 = vrcp.pop %v3904
        %v4071 = vrcp.pop %v3906
        %v4072 = vrcp.pop %v3908
        %v4073 = vrcp.pop %v3910
        %v4074 = vrcp.pop %v3912
        %v4075 = vrcp.pop %v3914
        %v4076 = vrcp.pop %v3916
        %v4077 = vrcp.pop %v3918
        %v4078 = vrcp.pop %v3920
        %v4079 = vrcp.pop %v3922
        %v4080 = vrcp.pop %v3924
        %v4081 = vrcp.pop %v3926
        %v4082 = vrcp.pop %v3928
        %v4083 = vrcp.pop %v3930
        %v4084 = vmul.f32 %v4006, %v4068
        %v4085 = vmul.f32 %v4009, %v4069
        %v4086 = vmul.f32 %v4014, %v4070
        %v4087 = vmul.f32 %v4017, %v4071
        %v4088 = vmul.f32 %v4022, %v4072
        %v4089 = vmul.f32 %v4025, %v4073
        %v4090 = vmul.f32 %v4030, %v4074
        %v4091 = vmul.f32 %v4033, %v4075
        %v4092 = vmul.f32 %v4038, %v4076
        %v4093 = vmul.f32 %v4041, %v4077
        %v4094 = vmul.f32 %v4046, %v4078
        %v4095 = vmul.f32 %v4049, %v4079
        %v4096 = vmul.f32 %v4054, %v4080
        %v4097 = vmul.f32 %v4057, %v4081
        %v4098 = vmul.f32 %v4062, %v4082
        %v4099 = vmul.f32 %v4065, %v4083
        %v4100 = vadd.f32 %v3661, %v4084
        %v4101 = vadd.f32 %v3662, %v4085
        %v4102 = vadd.f32 %v3663, %v4086
        %v4103 = vadd.f32 %v3664, %v4087
        %v4104 = vadd.f32 %v3665, %v4088
        %v4105 = vadd.f32 %v3666, %v4089
        %v4106 = vadd.f32 %v3667, %v4090
        %v4107 = vadd.f32 %v3668, %v4091
        %v4108 = vadd.f32 %v3669, %v4092
        %v4109 = vadd.f32 %v3670, %v4093
        %v4110 = vadd.f32 %v3671, %v4094
        %v4111 = vadd.f32 %v3672, %v4095
        %v4112 = vadd.f32 %v3673, %v4096
        %v4113 = vadd.f32 %v3674, %v4097
        %v4114 = vadd.f32 %v3675, %v4098
        %v4115 = vadd.f32 %v3676, %v4099
        %4116 = vrot.lane.b32.xlu0 %v1432, 80
        %v4117 = vpop.permute.xlu0 %4116
        %4118 = vrot.lane.b32.xlu0 %v1437, 80
        %v4119 = vpop.permute.xlu0 %4118
        %4120 = vrot.lane.b32.xlu0 %v1442, 80
        %v4121 = vpop.permute.xlu0 %4120
        %4122 = vrot.lane.b32.xlu0 %v1447, 80
        %v4123 = vpop.permute.xlu0 %4122
        %4124 = vrot.lane.b32.xlu0 %v1452, 80
        %v4125 = vpop.permute.xlu0 %4124
        %4126 = vrot.lane.b32.xlu0 %v1457, 80
        %v4127 = vpop.permute.xlu0 %4126
        %4128 = vrot.lane.b32.xlu0 %v1462, 80
        %v4129 = vpop.permute.xlu0 %4128
        %4130 = vrot.lane.b32.xlu0 %v1467, 80
        %v4131 = vpop.permute.xlu0 %4130
        %v4133 = vsel %vm1590, %v4117, 0
        %v4136 = vsel %vm1590, %v4119, 0
        %v4139 = vsel %vm1590, %v4121, 0
        %v4142 = vsel %vm1590, %v4123, 0
        %v4145 = vsel %vm1590, %v4125, 0
        %v4148 = vsel %vm1590, %v4127, 0
        %v4151 = vsel %vm1590, %v4129, 0
        %v4154 = vsel %vm1590, %v4131, 0
        %v4157 = vsel %vm1615, %v1571, 0
        %4159 = vmatprep.subr.bf16.mxu0 0
        %4160 = vmatpush1.bf16.msra.mxu0 0
        %4161 = vmatprep.subr.bf16.mxu0 0
        %4162 = vmatpush1.bf16.msra.mxu0 0
        %4163 = vmatprep.subr.bf16.mxu0 0
        %4164 = vmatpush1.bf16.msra.mxu0 0
        %4165 = vmatprep.subr.bf16.mxu0 0
        %4166 = vmatpush1.bf16.msra.mxu0 0
        %4167 = vmatprep.subr.bf16.mxu0 0
        %4168 = vmatpush1.bf16.msra.mxu0 0
        %4169 = vmatprep.subr.bf16.mxu0 0
        %4170 = vmatpush1.bf16.msra.mxu0 0
        %4171 = vmatprep.subr.bf16.mxu0 0
        %4172 = vmatpush1.bf16.msra.mxu0 0
        %4173 = vmatprep.subr.bf16.mxu0 0
        %4174 = vmatpush1.bf16.msra.mxu0 %v4157
        %4175 = vmatprep.subr.bf16.mxu0 0
        %4176 = vmatpush2.bf16.msra.mxu0 0
        %4177 = vmatprep.subr.bf16.mxu0 0
        %4178 = vmatpush2.bf16.msra.mxu0 0
        %4179 = vmatprep.subr.bf16.mxu0 0
        %4180 = vmatpush2.bf16.msra.mxu0 0
        %4181 = vmatprep.subr.bf16.mxu0 0
        %4182 = vmatpush2.bf16.msra.mxu0 0
        %4183 = vmatprep.subr.bf16.mxu0 0
        %4184 = vmatpush2.bf16.msra.mxu0 0
        %4185 = vmatprep.subr.bf16.mxu0 0
        %4186 = vmatpush2.bf16.msra.mxu0 0
        %4187 = vmatprep.subr.bf16.mxu0 0
        %4188 = vmatpush2.bf16.msra.mxu0 0
        %4189 = vmatprep.subr.bf16.mxu0 0
        %4190 = vmatpush2.bf16.msra.mxu0 0
        %4191 = vmatprep.mubr.bf16.mxu0 0
        %4192 = vmatmul.mubr.bf16.gmra.mxu0 %v4133
        %v4193 = vpop.f32.mrf.mxu0
        %v4194 = vadd.f32 %v1574, %v4193
        %v4195 = vpop.f32.mrf.mxu0
        %v4196 = vpop.f32.mrf.mxu0
        %v4197 = vadd.f32 %v1575, %v4196
        %v4198 = vpop.f32.mrf.mxu0
        %4199 = vmatprep.mubr.bf16.mxu0 0
        %4200 = vmatmul.mubr.bf16.gmra.mxu0 %v4136
        %v4201 = vpop.f32.mrf.mxu0
        %v4202 = vadd.f32 %v1576, %v4201
        %v4203 = vpop.f32.mrf.mxu0
        %v4204 = vpop.f32.mrf.mxu0
        %v4205 = vadd.f32 %v1577, %v4204
        %v4206 = vpop.f32.mrf.mxu0
        %4207 = vmatprep.mubr.bf16.mxu0 0
        %4208 = vmatmul.mubr.bf16.gmra.mxu0 %v4139
        %v4209 = vpop.f32.mrf.mxu0
        %v4210 = vadd.f32 %v1578, %v4209
        %v4211 = vpop.f32.mrf.mxu0
        %v4212 = vpop.f32.mrf.mxu0
        %v4213 = vadd.f32 %v1579, %v4212
        %v4214 = vpop.f32.mrf.mxu0
        %4215 = vmatprep.mubr.bf16.mxu0 0
        %4216 = vmatmul.mubr.bf16.gmra.mxu0 %v4142
        %v4217 = vpop.f32.mrf.mxu0
        %v4218 = vadd.f32 %v1580, %v4217
        %v4219 = vpop.f32.mrf.mxu0
        %v4220 = vpop.f32.mrf.mxu0
        %v4221 = vadd.f32 %v1581, %v4220
        %v4222 = vpop.f32.mrf.mxu0
        %4223 = vmatprep.mubr.bf16.mxu0 0
        %4224 = vmatmul.mubr.bf16.gmra.mxu0 %v4145
        %v4225 = vpop.f32.mrf.mxu0
        %v4226 = vadd.f32 %v1582, %v4225
        %v4227 = vpop.f32.mrf.mxu0
        %v4228 = vpop.f32.mrf.mxu0
        %v4229 = vadd.f32 %v1583, %v4228
        %v4230 = vpop.f32.mrf.mxu0
        %4231 = vmatprep.mubr.bf16.mxu0 0
        %4232 = vmatmul.mubr.bf16.gmra.mxu0 %v4148
        %v4233 = vpop.f32.mrf.mxu0
        %v4234 = vadd.f32 %v1584, %v4233
        %v4235 = vpop.f32.mrf.mxu0
        %v4236 = vpop.f32.mrf.mxu0
        %v4237 = vadd.f32 %v1585, %v4236
        %v4238 = vpop.f32.mrf.mxu0
        %4239 = vmatprep.mubr.bf16.mxu0 0
        %4240 = vmatmul.mubr.bf16.gmra.mxu0 %v4151
        %v4241 = vpop.f32.mrf.mxu0
        %v4242 = vadd.f32 %v1586, %v4241
        %v4243 = vpop.f32.mrf.mxu0
        %v4244 = vpop.f32.mrf.mxu0
        %v4245 = vadd.f32 %v1587, %v4244
        %v4246 = vpop.f32.mrf.mxu0
        %4247 = vmatprep.mubr.bf16.mxu0 0
        %4248 = vmatmul.mubr.bf16.gmra.mxu0 %v4154
        %v4249 = vpop.f32.mrf.mxu0
        %v4250 = vadd.f32 %v1588, %v4249
        %v4251 = vpop.f32.mrf.mxu0
        %v4252 = vpop.f32.mrf.mxu0
        %v4253 = vadd.f32 %v1589, %v4252
        %v4254 = vpop.f32.mrf.mxu0
        %4255 = vdwg.mxu0
        %4256 = vmax.xlane.f32.xlu0 %v4194
        %v4257 = vpop.xlane.xlu0 %4256
        %4258 = vmax.xlane.f32.xlu0 %v4197
        %v4259 = vpop.xlane.xlu0 %4258
        %4260 = vmax.xlane.f32.xlu0 %v4202
        %v4261 = vpop.xlane.xlu0 %4260
        %4262 = vmax.xlane.f32.xlu0 %v4205
        %v4263 = vpop.xlane.xlu0 %4262
        %4264 = vmax.xlane.f32.xlu0 %v4210
        %v4265 = vpop.xlane.xlu0 %4264
        %4266 = vmax.xlane.f32.xlu0 %v4213
        %v4267 = vpop.xlane.xlu0 %4266
        %4268 = vmax.xlane.f32.xlu0 %v4218
        %v4269 = vpop.xlane.xlu0 %4268
        %4270 = vmax.xlane.f32.xlu0 %v4221
        %v4271 = vpop.xlane.xlu0 %4270
        %4272 = vmax.xlane.f32.xlu0 %v4226
        %v4273 = vpop.xlane.xlu0 %4272
        %4274 = vmax.xlane.f32.xlu0 %v4229
        %v4275 = vpop.xlane.xlu0 %4274
        %4276 = vmax.xlane.f32.xlu0 %v4234
        %v4277 = vpop.xlane.xlu0 %4276
        %4278 = vmax.xlane.f32.xlu0 %v4237
        %v4279 = vpop.xlane.xlu0 %4278
        %4280 = vmax.xlane.f32.xlu0 %v4242
        %v4281 = vpop.xlane.xlu0 %4280
        %4282 = vmax.xlane.f32.xlu0 %v4245
        %v4283 = vpop.xlane.xlu0 %4282
        %4284 = vmax.xlane.f32.xlu0 %v4250
        %v4285 = vpop.xlane.xlu0 %4284
        %4286 = vmax.xlane.f32.xlu0 %v4253
        %v4287 = vpop.xlane.xlu0 %4286
        %v4288 = vsub.f32 %v4194, %v4257
        %v4289 = vsub.f32 %v4197, %v4259
        %v4290 = vsub.f32 %v4202, %v4261
        %v4291 = vsub.f32 %v4205, %v4263
        %v4292 = vsub.f32 %v4210, %v4265
        %v4293 = vsub.f32 %v4213, %v4267
        %v4294 = vsub.f32 %v4218, %v4269
        %v4295 = vsub.f32 %v4221, %v4271
        %v4296 = vsub.f32 %v4226, %v4273
        %v4297 = vsub.f32 %v4229, %v4275
        %v4298 = vsub.f32 %v4234, %v4277
        %v4299 = vsub.f32 %v4237, %v4279
        %v4300 = vsub.f32 %v4242, %v4281
        %v4301 = vsub.f32 %v4245, %v4283
        %v4302 = vsub.f32 %v4250, %v4285
        %v4303 = vsub.f32 %v4253, %v4287
        %v4304 = vmul.f32 %v4288, 1.442695
        %v4305 = vpow.pop %v4304
        %v4306 = vmul.f32 %v4289, 1.442695
        %v4307 = vpow.pop %v4306
        %v4308 = vmul.f32 %v4290, 1.442695
        %v4309 = vpow.pop %v4308
        %v4310 = vmul.f32 %v4291, 1.442695
        %v4311 = vpow.pop %v4310
        %v4312 = vmul.f32 %v4292, 1.442695
        %v4313 = vpow.pop %v4312
        %v4314 = vmul.f32 %v4293, 1.442695
        %v4315 = vpow.pop %v4314
        %v4316 = vmul.f32 %v4294, 1.442695
        %v4317 = vpow.pop %v4316
        %v4318 = vmul.f32 %v4295, 1.442695
        %v4319 = vpow.pop %v4318
        %v4320 = vmul.f32 %v4296, 1.442695
        %v4321 = vpow.pop %v4320
        %v4322 = vmul.f32 %v4297, 1.442695
        %v4323 = vpow.pop %v4322
        %v4324 = vmul.f32 %v4298, 1.442695
        %v4325 = vpow.pop %v4324
        %v4326 = vmul.f32 %v4299, 1.442695
        %v4327 = vpow.pop %v4326
        %v4328 = vmul.f32 %v4300, 1.442695
        %v4329 = vpow.pop %v4328
        %v4330 = vmul.f32 %v4301, 1.442695
        %v4331 = vpow.pop %v4330
        %v4332 = vmul.f32 %v4302, 1.442695
        %v4333 = vpow.pop %v4332
        %v4334 = vmul.f32 %v4303, 1.442695
        %v4335 = vpow.pop %v4334
        %4336 = vadd.xlane.f32.xlu0 %v4305
        %v4337 = vpop.xlane.xlu0 %4336
        %4338 = vadd.xlane.f32.xlu0 %v4307
        %v4339 = vpop.xlane.xlu0 %4338
        %4340 = vadd.xlane.f32.xlu0 %v4309
        %v4341 = vpop.xlane.xlu0 %4340
        %4342 = vadd.xlane.f32.xlu0 %v4311
        %v4343 = vpop.xlane.xlu0 %4342
        %4344 = vadd.xlane.f32.xlu0 %v4313
        %v4345 = vpop.xlane.xlu0 %4344
        %4346 = vadd.xlane.f32.xlu0 %v4315
        %v4347 = vpop.xlane.xlu0 %4346
        %4348 = vadd.xlane.f32.xlu0 %v4317
        %v4349 = vpop.xlane.xlu0 %4348
        %4350 = vadd.xlane.f32.xlu0 %v4319
        %v4351 = vpop.xlane.xlu0 %4350
        %4352 = vadd.xlane.f32.xlu0 %v4321
        %v4353 = vpop.xlane.xlu0 %4352
        %4354 = vadd.xlane.f32.xlu0 %v4323
        %v4355 = vpop.xlane.xlu0 %4354
        %4356 = vadd.xlane.f32.xlu0 %v4325
        %v4357 = vpop.xlane.xlu0 %4356
        %4358 = vadd.xlane.f32.xlu0 %v4327
        %v4359 = vpop.xlane.xlu0 %4358
        %4360 = vadd.xlane.f32.xlu0 %v4329
        %v4361 = vpop.xlane.xlu0 %4360
        %4362 = vadd.xlane.f32.xlu0 %v4331
        %v4363 = vpop.xlane.xlu0 %4362
        %4364 = vadd.xlane.f32.xlu0 %v4333
        %v4365 = vpop.xlane.xlu0 %4364
        %4366 = vadd.xlane.f32.xlu0 %v4335
        %v4367 = vpop.xlane.xlu0 %4366
        %v4368 = vpack.c.bf16 %v4307, %v4305
        %v4369 = vpack.c.bf16 %v4311, %v4309
        %v4370 = vpack.c.bf16 %v4315, %v4313
        %v4371 = vpack.c.bf16 %v4319, %v4317
        %v4372 = vpack.c.bf16 %v4323, %v4321
        %v4373 = vpack.c.bf16 %v4327, %v4325
        %v4374 = vpack.c.bf16 %v4331, %v4329
        %v4375 = vpack.c.bf16 %v4335, %v4333
        %4376 = vmatprep.subr.bf16.mxu0 0
        %4377 = vmatpush1.bf16.msra.mxu0 %v1471
        %4378 = vmatprep.subr.bf16.mxu0 0
        %4379 = vmatpush1.bf16.msra.mxu0 %v1466
        %4380 = vmatprep.subr.bf16.mxu0 0
        %4381 = vmatpush1.bf16.msra.mxu0 %v1461
        %4382 = vmatprep.subr.bf16.mxu0 0
        %4383 = vmatpush1.bf16.msra.mxu0 %v1456
        %4384 = vmatprep.subr.bf16.mxu0 0
        %4385 = vmatpush1.bf16.msra.mxu0 %v1451
        %4386 = vmatprep.subr.bf16.mxu0 0
        %4387 = vmatpush1.bf16.msra.mxu0 %v1446
        %4388 = vmatprep.subr.bf16.mxu0 0
        %4389 = vmatpush1.bf16.msra.mxu0 %v1441
        %4390 = vmatprep.subr.bf16.mxu0 0
        %4391 = vmatpush1.bf16.msra.mxu0 %v1436
        %4392 = vmatprep.subr.bf16.mxu0 0
        %4393 = vmatpush2.bf16.msra.mxu0 0
        %4394 = vmatprep.subr.bf16.mxu0 0
        %4395 = vmatpush2.bf16.msra.mxu0 0
        %4396 = vmatprep.subr.bf16.mxu0 0
        %4397 = vmatpush2.bf16.msra.mxu0 0
        %4398 = vmatprep.subr.bf16.mxu0 0
        %4399 = vmatpush2.bf16.msra.mxu0 0
        %4400 = vmatprep.subr.bf16.mxu0 0
        %4401 = vmatpush2.bf16.msra.mxu0 0
        %4402 = vmatprep.subr.bf16.mxu0 0
        %4403 = vmatpush2.bf16.msra.mxu0 0
        %4404 = vmatprep.subr.bf16.mxu0 0
        %4405 = vmatpush2.bf16.msra.mxu0 0
        %4406 = vmatprep.subr.bf16.mxu0 0
        %4407 = vmatpush2.bf16.msra.mxu0 0
        %4408 = vmatprep.mubr.bf16.mxu0 0
        %4409 = vmatmul.mubr.bf16.gmra.mxu0 %v4368
        %v4410 = vpop.f32.mrf.mxu0
        %v4411 = vadd.f32 0.0, %v4410
        %v4412 = vpop.f32.mrf.mxu0
        %v4413 = vpop.f32.mrf.mxu0
        %v4414 = vadd.f32 0.0, %v4413
        %v4415 = vpop.f32.mrf.mxu0
        %4416 = vmatprep.mubr.bf16.mxu0 0
        %4417 = vmatmul.mubr.bf16.gmra.mxu0 %v4369
        %v4418 = vpop.f32.mrf.mxu0
        %v4419 = vadd.f32 0.0, %v4418
        %v4420 = vpop.f32.mrf.mxu0
        %v4421 = vpop.f32.mrf.mxu0
        %v4422 = vadd.f32 0.0, %v4421
        %v4423 = vpop.f32.mrf.mxu0
        %4424 = vmatprep.mubr.bf16.mxu0 0
        %4425 = vmatmul.mubr.bf16.gmra.mxu0 %v4370
        %v4426 = vpop.f32.mrf.mxu0
        %v4427 = vadd.f32 0.0, %v4426
        %v4428 = vpop.f32.mrf.mxu0
        %v4429 = vpop.f32.mrf.mxu0
        %v4430 = vadd.f32 0.0, %v4429
        %v4431 = vpop.f32.mrf.mxu0
        %4432 = vmatprep.mubr.bf16.mxu0 0
        %4433 = vmatmul.mubr.bf16.gmra.mxu0 %v4371
        %v4434 = vpop.f32.mrf.mxu0
        %v4435 = vadd.f32 0.0, %v4434
        %v4436 = vpop.f32.mrf.mxu0
        %v4437 = vpop.f32.mrf.mxu0
        %v4438 = vadd.f32 0.0, %v4437
        %v4439 = vpop.f32.mrf.mxu0
        %4440 = vmatprep.mubr.bf16.mxu0 0
        %4441 = vmatmul.mubr.bf16.gmra.mxu0 %v4372
        %v4442 = vpop.f32.mrf.mxu0
        %v4443 = vadd.f32 0.0, %v4442
        %v4444 = vpop.f32.mrf.mxu0
        %v4445 = vpop.f32.mrf.mxu0
        %v4446 = vadd.f32 0.0, %v4445
        %v4447 = vpop.f32.mrf.mxu0
        %4448 = vmatprep.mubr.bf16.mxu0 0
        %4449 = vmatmul.mubr.bf16.gmra.mxu0 %v4373
        %v4450 = vpop.f32.mrf.mxu0
        %v4451 = vadd.f32 0.0, %v4450
        %v4452 = vpop.f32.mrf.mxu0
        %v4453 = vpop.f32.mrf.mxu0
        %v4454 = vadd.f32 0.0, %v4453
        %v4455 = vpop.f32.mrf.mxu0
        %4456 = vmatprep.mubr.bf16.mxu0 0
        %4457 = vmatmul.mubr.bf16.gmra.mxu0 %v4374
        %v4458 = vpop.f32.mrf.mxu0
        %v4459 = vadd.f32 0.0, %v4458
        %v4460 = vpop.f32.mrf.mxu0
        %v4461 = vpop.f32.mrf.mxu0
        %v4462 = vadd.f32 0.0, %v4461
        %v4463 = vpop.f32.mrf.mxu0
        %4464 = vmatprep.mubr.bf16.mxu0 0
        %4465 = vmatmul.mubr.bf16.gmra.mxu0 %v4375
        %v4466 = vpop.f32.mrf.mxu0
        %v4467 = vadd.f32 0.0, %v4466
        %v4468 = vpop.f32.mrf.mxu0
        %v4469 = vpop.f32.mrf.mxu0
        %v4470 = vadd.f32 0.0, %v4469
        %v4471 = vpop.f32.mrf.mxu0
        %4472 = vdwg.mxu0
        %v4473 = vrcp.pop %v4337
        %v4474 = vrcp.pop %v4339
        %v4475 = vrcp.pop %v4341
        %v4476 = vrcp.pop %v4343
        %v4477 = vrcp.pop %v4345
        %v4478 = vrcp.pop %v4347
        %v4479 = vrcp.pop %v4349
        %v4480 = vrcp.pop %v4351
        %v4481 = vrcp.pop %v4353
        %v4482 = vrcp.pop %v4355
        %v4483 = vrcp.pop %v4357
        %v4484 = vrcp.pop %v4359
        %v4485 = vrcp.pop %v4361
        %v4486 = vrcp.pop %v4363
        %v4487 = vrcp.pop %v4365
        %v4488 = vrcp.pop %v4367
        %v4489 = vmul.f32 %v4411, %v4473
        %v4490 = vmul.f32 %v4414, %v4474
        %v4491 = vmul.f32 %v4419, %v4475
        %v4492 = vmul.f32 %v4422, %v4476
        %v4493 = vmul.f32 %v4427, %v4477
        %v4494 = vmul.f32 %v4430, %v4478
        %v4495 = vmul.f32 %v4435, %v4479
        %v4496 = vmul.f32 %v4438, %v4480
        %v4497 = vmul.f32 %v4443, %v4481
        %v4498 = vmul.f32 %v4446, %v4482
        %v4499 = vmul.f32 %v4451, %v4483
        %v4500 = vmul.f32 %v4454, %v4484
        %v4501 = vmul.f32 %v4459, %v4485
        %v4502 = vmul.f32 %v4462, %v4486
        %v4503 = vmul.f32 %v4467, %v4487
        %v4504 = vmul.f32 %v4470, %v4488
        %v4505 = vadd.f32 %v4100, %v4489
        %v4506 = vadd.f32 %v4101, %v4490
        %v4507 = vadd.f32 %v4102, %v4491
        %v4508 = vadd.f32 %v4103, %v4492
        %v4509 = vadd.f32 %v4104, %v4493
        %v4510 = vadd.f32 %v4105, %v4494
        %v4511 = vadd.f32 %v4106, %v4495
        %v4512 = vadd.f32 %v4107, %v4496
        %v4513 = vadd.f32 %v4108, %v4497
        %v4514 = vadd.f32 %v4109, %v4498
        %v4515 = vadd.f32 %v4110, %v4499
        %v4516 = vadd.f32 %v4111, %v4500
        %v4517 = vadd.f32 %v4112, %v4501
        %v4518 = vadd.f32 %v4113, %v4502
        %v4519 = vadd.f32 %v4114, %v4503
        %v4520 = vadd.f32 %v4115, %v4504
        %4521 = vrot.lane.b32.xlu0 %v1432, 72
        %v4522 = vpop.permute.xlu0 %4521
        %4523 = vrot.lane.b32.xlu0 %v1437, 72
        %v4524 = vpop.permute.xlu0 %4523
        %4525 = vrot.lane.b32.xlu0 %v1442, 72
        %v4526 = vpop.permute.xlu0 %4525
        %4527 = vrot.lane.b32.xlu0 %v1447, 72
        %v4528 = vpop.permute.xlu0 %4527
        %4529 = vrot.lane.b32.xlu0 %v1452, 72
        %v4530 = vpop.permute.xlu0 %4529
        %4531 = vrot.lane.b32.xlu0 %v1457, 72
        %v4532 = vpop.permute.xlu0 %4531
        %4533 = vrot.lane.b32.xlu0 %v1462, 72
        %v4534 = vpop.permute.xlu0 %4533
        %4535 = vrot.lane.b32.xlu0 %v1467, 72
        %v4536 = vpop.permute.xlu0 %4535
        %v4538 = vrot.slane %v1571, 4
        %v4540 = vsel %vm1590, %v4522, 0
        %v4543 = vsel %vm1590, %v4524, 0
        %v4546 = vsel %vm1590, %v4526, 0
        %v4549 = vsel %vm1590, %v4528, 0
        %v4552 = vsel %vm1590, %v4530, 0
        %v4555 = vsel %vm1590, %v4532, 0
        %v4558 = vsel %vm1590, %v4534, 0
        %v4561 = vsel %vm1590, %v4536, 0
        %v4564 = vsel %vm1615, %v4538, 0
        %4566 = vmatprep.subr.bf16.mxu0 0
        %4567 = vmatpush1.bf16.msra.mxu0 0
        %4568 = vmatprep.subr.bf16.mxu0 0
        %4569 = vmatpush1.bf16.msra.mxu0 0
        %4570 = vmatprep.subr.bf16.mxu0 0
        %4571 = vmatpush1.bf16.msra.mxu0 0
        %4572 = vmatprep.subr.bf16.mxu0 0
        %4573 = vmatpush1.bf16.msra.mxu0 0
        %4574 = vmatprep.subr.bf16.mxu0 0
        %4575 = vmatpush1.bf16.msra.mxu0 0
        %4576 = vmatprep.subr.bf16.mxu0 0
        %4577 = vmatpush1.bf16.msra.mxu0 0
        %4578 = vmatprep.subr.bf16.mxu0 0
        %4579 = vmatpush1.bf16.msra.mxu0 0
        %4580 = vmatprep.subr.bf16.mxu0 0
        %4581 = vmatpush1.bf16.msra.mxu0 %v4564
        %4582 = vmatprep.subr.bf16.mxu0 0
        %4583 = vmatpush2.bf16.msra.mxu0 0
        %4584 = vmatprep.subr.bf16.mxu0 0
        %4585 = vmatpush2.bf16.msra.mxu0 0
        %4586 = vmatprep.subr.bf16.mxu0 0
        %4587 = vmatpush2.bf16.msra.mxu0 0
        %4588 = vmatprep.subr.bf16.mxu0 0
        %4589 = vmatpush2.bf16.msra.mxu0 0
        %4590 = vmatprep.subr.bf16.mxu0 0
        %4591 = vmatpush2.bf16.msra.mxu0 0
        %4592 = vmatprep.subr.bf16.mxu0 0
        %4593 = vmatpush2.bf16.msra.mxu0 0
        %4594 = vmatprep.subr.bf16.mxu0 0
        %4595 = vmatpush2.bf16.msra.mxu0 0
        %4596 = vmatprep.subr.bf16.mxu0 0
        %4597 = vmatpush2.bf16.msra.mxu0 0
        %4598 = vmatprep.mubr.bf16.mxu0 0
        %4599 = vmatmul.mubr.bf16.gmra.mxu0 %v4540
        %v4600 = vpop.f32.mrf.mxu0
        %v4601 = vadd.f32 %v1574, %v4600
        %v4602 = vpop.f32.mrf.mxu0
        %v4603 = vpop.f32.mrf.mxu0
        %v4604 = vadd.f32 %v1575, %v4603
        %v4605 = vpop.f32.mrf.mxu0
        %4606 = vmatprep.mubr.bf16.mxu0 0
        %4607 = vmatmul.mubr.bf16.gmra.mxu0 %v4543
        %v4608 = vpop.f32.mrf.mxu0
        %v4609 = vadd.f32 %v1576, %v4608
        %v4610 = vpop.f32.mrf.mxu0
        %v4611 = vpop.f32.mrf.mxu0
        %v4612 = vadd.f32 %v1577, %v4611
        %v4613 = vpop.f32.mrf.mxu0
        %4614 = vmatprep.mubr.bf16.mxu0 0
        %4615 = vmatmul.mubr.bf16.gmra.mxu0 %v4546
        %v4616 = vpop.f32.mrf.mxu0
        %v4617 = vadd.f32 %v1578, %v4616
        %v4618 = vpop.f32.mrf.mxu0
        %v4619 = vpop.f32.mrf.mxu0
        %v4620 = vadd.f32 %v1579, %v4619
        %v4621 = vpop.f32.mrf.mxu0
        %4622 = vmatprep.mubr.bf16.mxu0 0
        %4623 = vmatmul.mubr.bf16.gmra.mxu0 %v4549
        %v4624 = vpop.f32.mrf.mxu0
        %v4625 = vadd.f32 %v1580, %v4624
        %v4626 = vpop.f32.mrf.mxu0
        %v4627 = vpop.f32.mrf.mxu0
        %v4628 = vadd.f32 %v1581, %v4627
        %v4629 = vpop.f32.mrf.mxu0
        %4630 = vmatprep.mubr.bf16.mxu0 0
        %4631 = vmatmul.mubr.bf16.gmra.mxu0 %v4552
        %v4632 = vpop.f32.mrf.mxu0
        %v4633 = vadd.f32 %v1582, %v4632
        %v4634 = vpop.f32.mrf.mxu0
        %v4635 = vpop.f32.mrf.mxu0
        %v4636 = vadd.f32 %v1583, %v4635
        %v4637 = vpop.f32.mrf.mxu0
        %4638 = vmatprep.mubr.bf16.mxu0 0
        %4639 = vmatmul.mubr.bf16.gmra.mxu0 %v4555
        %v4640 = vpop.f32.mrf.mxu0
        %v4641 = vadd.f32 %v1584, %v4640
        %v4642 = vpop.f32.mrf.mxu0
        %v4643 = vpop.f32.mrf.mxu0
        %v4644 = vadd.f32 %v1585, %v4643
        %v4645 = vpop.f32.mrf.mxu0
        %4646 = vmatprep.mubr.bf16.mxu0 0
        %4647 = vmatmul.mubr.bf16.gmra.mxu0 %v4558
        %v4648 = vpop.f32.mrf.mxu0
        %v4649 = vadd.f32 %v1586, %v4648
        %v4650 = vpop.f32.mrf.mxu0
        %v4651 = vpop.f32.mrf.mxu0
        %v4652 = vadd.f32 %v1587, %v4651
        %v4653 = vpop.f32.mrf.mxu0
        %4654 = vmatprep.mubr.bf16.mxu0 0
        %4655 = vmatmul.mubr.bf16.gmra.mxu0 %v4561
        %v4656 = vpop.f32.mrf.mxu0
        %v4657 = vadd.f32 %v1588, %v4656
        %v4658 = vpop.f32.mrf.mxu0
        %v4659 = vpop.f32.mrf.mxu0
        %v4660 = vadd.f32 %v1589, %v4659
        %v4661 = vpop.f32.mrf.mxu0
        %4662 = vdwg.mxu0
        %4663 = vmax.xlane.f32.xlu0 %v4601
        %v4664 = vpop.xlane.xlu0 %4663
        %4665 = vmax.xlane.f32.xlu0 %v4604
        %v4666 = vpop.xlane.xlu0 %4665
        %4667 = vmax.xlane.f32.xlu0 %v4609
        %v4668 = vpop.xlane.xlu0 %4667
        %4669 = vmax.xlane.f32.xlu0 %v4612
        %v4670 = vpop.xlane.xlu0 %4669
        %4671 = vmax.xlane.f32.xlu0 %v4617
        %v4672 = vpop.xlane.xlu0 %4671
        %4673 = vmax.xlane.f32.xlu0 %v4620
        %v4674 = vpop.xlane.xlu0 %4673
        %4675 = vmax.xlane.f32.xlu0 %v4625
        %v4676 = vpop.xlane.xlu0 %4675
        %4677 = vmax.xlane.f32.xlu0 %v4628
        %v4678 = vpop.xlane.xlu0 %4677
        %4679 = vmax.xlane.f32.xlu0 %v4633
        %v4680 = vpop.xlane.xlu0 %4679
        %4681 = vmax.xlane.f32.xlu0 %v4636
        %v4682 = vpop.xlane.xlu0 %4681
        %4683 = vmax.xlane.f32.xlu0 %v4641
        %v4684 = vpop.xlane.xlu0 %4683
        %4685 = vmax.xlane.f32.xlu0 %v4644
        %v4686 = vpop.xlane.xlu0 %4685
        %4687 = vmax.xlane.f32.xlu0 %v4649
        %v4688 = vpop.xlane.xlu0 %4687
        %4689 = vmax.xlane.f32.xlu0 %v4652
        %v4690 = vpop.xlane.xlu0 %4689
        %4691 = vmax.xlane.f32.xlu0 %v4657
        %v4692 = vpop.xlane.xlu0 %4691
        %4693 = vmax.xlane.f32.xlu0 %v4660
        %v4694 = vpop.xlane.xlu0 %4693
        %v4695 = vsub.f32 %v4601, %v4664
        %v4696 = vsub.f32 %v4604, %v4666
        %v4697 = vsub.f32 %v4609, %v4668
        %v4698 = vsub.f32 %v4612, %v4670
        %v4699 = vsub.f32 %v4617, %v4672
        %v4700 = vsub.f32 %v4620, %v4674
        %v4701 = vsub.f32 %v4625, %v4676
        %v4702 = vsub.f32 %v4628, %v4678
        %v4703 = vsub.f32 %v4633, %v4680
        %v4704 = vsub.f32 %v4636, %v4682
        %v4705 = vsub.f32 %v4641, %v4684
        %v4706 = vsub.f32 %v4644, %v4686
        %v4707 = vsub.f32 %v4649, %v4688
        %v4708 = vsub.f32 %v4652, %v4690
        %v4709 = vsub.f32 %v4657, %v4692
        %v4710 = vsub.f32 %v4660, %v4694
        %v4711 = vmul.f32 %v4695, 1.442695
        %v4712 = vpow.pop %v4711
        %v4713 = vmul.f32 %v4696, 1.442695
        %v4714 = vpow.pop %v4713
        %v4715 = vmul.f32 %v4697, 1.442695
        %v4716 = vpow.pop %v4715
        %v4717 = vmul.f32 %v4698, 1.442695
        %v4718 = vpow.pop %v4717
        %v4719 = vmul.f32 %v4699, 1.442695
        %v4720 = vpow.pop %v4719
        %v4721 = vmul.f32 %v4700, 1.442695
        %v4722 = vpow.pop %v4721
        %v4723 = vmul.f32 %v4701, 1.442695
        %v4724 = vpow.pop %v4723
        %v4725 = vmul.f32 %v4702, 1.442695
        %v4726 = vpow.pop %v4725
        %v4727 = vmul.f32 %v4703, 1.442695
        %v4728 = vpow.pop %v4727
        %v4729 = vmul.f32 %v4704, 1.442695
        %v4730 = vpow.pop %v4729
        %v4731 = vmul.f32 %v4705, 1.442695
        %v4732 = vpow.pop %v4731
        %v4733 = vmul.f32 %v4706, 1.442695
        %v4734 = vpow.pop %v4733
        %v4735 = vmul.f32 %v4707, 1.442695
        %v4736 = vpow.pop %v4735
        %v4737 = vmul.f32 %v4708, 1.442695
        %v4738 = vpow.pop %v4737
        %v4739 = vmul.f32 %v4709, 1.442695
        %v4740 = vpow.pop %v4739
        %v4741 = vmul.f32 %v4710, 1.442695
        %v4742 = vpow.pop %v4741
        %4743 = vadd.xlane.f32.xlu0 %v4712
        %v4744 = vpop.xlane.xlu0 %4743
        %4745 = vadd.xlane.f32.xlu0 %v4714
        %v4746 = vpop.xlane.xlu0 %4745
        %4747 = vadd.xlane.f32.xlu0 %v4716
        %v4748 = vpop.xlane.xlu0 %4747
        %4749 = vadd.xlane.f32.xlu0 %v4718
        %v4750 = vpop.xlane.xlu0 %4749
        %4751 = vadd.xlane.f32.xlu0 %v4720
        %v4752 = vpop.xlane.xlu0 %4751
        %4753 = vadd.xlane.f32.xlu0 %v4722
        %v4754 = vpop.xlane.xlu0 %4753
        %4755 = vadd.xlane.f32.xlu0 %v4724
        %v4756 = vpop.xlane.xlu0 %4755
        %4757 = vadd.xlane.f32.xlu0 %v4726
        %v4758 = vpop.xlane.xlu0 %4757
        %4759 = vadd.xlane.f32.xlu0 %v4728
        %v4760 = vpop.xlane.xlu0 %4759
        %4761 = vadd.xlane.f32.xlu0 %v4730
        %v4762 = vpop.xlane.xlu0 %4761
        %4763 = vadd.xlane.f32.xlu0 %v4732
        %v4764 = vpop.xlane.xlu0 %4763
        %4765 = vadd.xlane.f32.xlu0 %v4734
        %v4766 = vpop.xlane.xlu0 %4765
        %4767 = vadd.xlane.f32.xlu0 %v4736
        %v4768 = vpop.xlane.xlu0 %4767
        %4769 = vadd.xlane.f32.xlu0 %v4738
        %v4770 = vpop.xlane.xlu0 %4769
        %4771 = vadd.xlane.f32.xlu0 %v4740
        %v4772 = vpop.xlane.xlu0 %4771
        %4773 = vadd.xlane.f32.xlu0 %v4742
        %v4774 = vpop.xlane.xlu0 %4773
        %v4775 = vpack.c.bf16 %v4714, %v4712
        %v4776 = vpack.c.bf16 %v4718, %v4716
        %v4777 = vpack.c.bf16 %v4722, %v4720
        %v4778 = vpack.c.bf16 %v4726, %v4724
        %v4779 = vpack.c.bf16 %v4730, %v4728
        %v4780 = vpack.c.bf16 %v4734, %v4732
        %v4781 = vpack.c.bf16 %v4738, %v4736
        %v4782 = vpack.c.bf16 %v4742, %v4740
        %4791 = vrot.lane.b32.xlu0 %v1436, 64
        %v4792 = vpop.permute.xlu0 %4791
        %4793 = vrot.lane.b32.xlu0 %v1441, 64
        %v4794 = vpop.permute.xlu0 %4793
        %4795 = vrot.lane.b32.xlu0 %v1446, 64
        %v4796 = vpop.permute.xlu0 %4795
        %4797 = vrot.lane.b32.xlu0 %v1451, 64
        %v4798 = vpop.permute.xlu0 %4797
        %4799 = vrot.lane.b32.xlu0 %v1456, 64
        %v4800 = vpop.permute.xlu0 %4799
        %4801 = vrot.lane.b32.xlu0 %v1461, 64
        %v4802 = vpop.permute.xlu0 %4801
        %4803 = vrot.lane.b32.xlu0 %v1466, 64
        %v4804 = vpop.permute.xlu0 %4803
        %4805 = vrot.lane.b32.xlu0 %v1471, 64
        %v4806 = vpop.permute.xlu0 %4805
        %4815 = vmatprep.subr.bf16.mxu0 0
        %4816 = vmatpush1.bf16.msra.mxu0 %v4806
        %4817 = vmatprep.subr.bf16.mxu0 0
        %4818 = vmatpush1.bf16.msra.mxu0 %v4804
        %4819 = vmatprep.subr.bf16.mxu0 0
        %4820 = vmatpush1.bf16.msra.mxu0 %v4802
        %4821 = vmatprep.subr.bf16.mxu0 0
        %4822 = vmatpush1.bf16.msra.mxu0 %v4800
        %4823 = vmatprep.subr.bf16.mxu0 0
        %4824 = vmatpush1.bf16.msra.mxu0 %v4798
        %4825 = vmatprep.subr.bf16.mxu0 0
        %4826 = vmatpush1.bf16.msra.mxu0 %v4796
        %4827 = vmatprep.subr.bf16.mxu0 0
        %4828 = vmatpush1.bf16.msra.mxu0 %v4794
        %4829 = vmatprep.subr.bf16.mxu0 0
        %4830 = vmatpush1.bf16.msra.mxu0 %v4792
        %4831 = vmatprep.subr.bf16.mxu0 0
        %4832 = vmatpush2.bf16.msra.mxu0 0
        %4833 = vmatprep.subr.bf16.mxu0 0
        %4834 = vmatpush2.bf16.msra.mxu0 0
        %4835 = vmatprep.subr.bf16.mxu0 0
        %4836 = vmatpush2.bf16.msra.mxu0 0
        %4837 = vmatprep.subr.bf16.mxu0 0
        %4838 = vmatpush2.bf16.msra.mxu0 0
        %4839 = vmatprep.subr.bf16.mxu0 0
        %4840 = vmatpush2.bf16.msra.mxu0 0
        %4841 = vmatprep.subr.bf16.mxu0 0
        %4842 = vmatpush2.bf16.msra.mxu0 0
        %4843 = vmatprep.subr.bf16.mxu0 0
        %4844 = vmatpush2.bf16.msra.mxu0 0
        %4845 = vmatprep.subr.bf16.mxu0 0
        %4846 = vmatpush2.bf16.msra.mxu0 0
        %4847 = vmatprep.mubr.bf16.mxu0 0
        %4848 = vmatmul.mubr.bf16.gmra.mxu0 %v4775
        %v4849 = vpop.f32.mrf.mxu0
        %v4850 = vadd.f32 0.0, %v4849
        %v4851 = vpop.f32.mrf.mxu0
        %v4852 = vpop.f32.mrf.mxu0
        %v4853 = vadd.f32 0.0, %v4852
        %v4854 = vpop.f32.mrf.mxu0
        %4855 = vmatprep.mubr.bf16.mxu0 0
        %4856 = vmatmul.mubr.bf16.gmra.mxu0 %v4776
        %v4857 = vpop.f32.mrf.mxu0
        %v4858 = vadd.f32 0.0, %v4857
        %v4859 = vpop.f32.mrf.mxu0
        %v4860 = vpop.f32.mrf.mxu0
        %v4861 = vadd.f32 0.0, %v4860
        %v4862 = vpop.f32.mrf.mxu0
        %4863 = vmatprep.mubr.bf16.mxu0 0
        %4864 = vmatmul.mubr.bf16.gmra.mxu0 %v4777
        %v4865 = vpop.f32.mrf.mxu0
        %v4866 = vadd.f32 0.0, %v4865
        %v4867 = vpop.f32.mrf.mxu0
        %v4868 = vpop.f32.mrf.mxu0
        %v4869 = vadd.f32 0.0, %v4868
        %v4870 = vpop.f32.mrf.mxu0
        %4871 = vmatprep.mubr.bf16.mxu0 0
        %4872 = vmatmul.mubr.bf16.gmra.mxu0 %v4778
        %v4873 = vpop.f32.mrf.mxu0
        %v4874 = vadd.f32 0.0, %v4873
        %v4875 = vpop.f32.mrf.mxu0
        %v4876 = vpop.f32.mrf.mxu0
        %v4877 = vadd.f32 0.0, %v4876
        %v4878 = vpop.f32.mrf.mxu0
        %4879 = vmatprep.mubr.bf16.mxu0 0
        %4880 = vmatmul.mubr.bf16.gmra.mxu0 %v4779
        %v4881 = vpop.f32.mrf.mxu0
        %v4882 = vadd.f32 0.0, %v4881
        %v4883 = vpop.f32.mrf.mxu0
        %v4884 = vpop.f32.mrf.mxu0
        %v4885 = vadd.f32 0.0, %v4884
        %v4886 = vpop.f32.mrf.mxu0
        %4887 = vmatprep.mubr.bf16.mxu0 0
        %4888 = vmatmul.mubr.bf16.gmra.mxu0 %v4780
        %v4889 = vpop.f32.mrf.mxu0
        %v4890 = vadd.f32 0.0, %v4889
        %v4891 = vpop.f32.mrf.mxu0
        %v4892 = vpop.f32.mrf.mxu0
        %v4893 = vadd.f32 0.0, %v4892
        %v4894 = vpop.f32.mrf.mxu0
        %4895 = vmatprep.mubr.bf16.mxu0 0
        %4896 = vmatmul.mubr.bf16.gmra.mxu0 %v4781
        %v4897 = vpop.f32.mrf.mxu0
        %v4898 = vadd.f32 0.0, %v4897
        %v4899 = vpop.f32.mrf.mxu0
        %v4900 = vpop.f32.mrf.mxu0
        %v4901 = vadd.f32 0.0, %v4900
        %v4902 = vpop.f32.mrf.mxu0
        %4903 = vmatprep.mubr.bf16.mxu0 0
        %4904 = vmatmul.mubr.bf16.gmra.mxu0 %v4782
        %v4905 = vpop.f32.mrf.mxu0
        %v4906 = vadd.f32 0.0, %v4905
        %v4907 = vpop.f32.mrf.mxu0
        %v4908 = vpop.f32.mrf.mxu0
        %v4909 = vadd.f32 0.0, %v4908
        %v4910 = vpop.f32.mrf.mxu0
        %4911 = vdwg.mxu0
        %v4912 = vrcp.pop %v4744
        %v4913 = vrcp.pop %v4746
        %v4914 = vrcp.pop %v4748
        %v4915 = vrcp.pop %v4750
        %v4916 = vrcp.pop %v4752
        %v4917 = vrcp.pop %v4754
        %v4918 = vrcp.pop %v4756
        %v4919 = vrcp.pop %v4758
        %v4920 = vrcp.pop %v4760
        %v4921 = vrcp.pop %v4762
        %v4922 = vrcp.pop %v4764
        %v4923 = vrcp.pop %v4766
        %v4924 = vrcp.pop %v4768
        %v4925 = vrcp.pop %v4770
        %v4926 = vrcp.pop %v4772
        %v4927 = vrcp.pop %v4774
        %v4928 = vmul.f32 %v4850, %v4912
        %v4929 = vmul.f32 %v4853, %v4913
        %v4930 = vmul.f32 %v4858, %v4914
        %v4931 = vmul.f32 %v4861, %v4915
        %v4932 = vmul.f32 %v4866, %v4916
        %v4933 = vmul.f32 %v4869, %v4917
        %v4934 = vmul.f32 %v4874, %v4918
        %v4935 = vmul.f32 %v4877, %v4919
        %v4936 = vmul.f32 %v4882, %v4920
        %v4937 = vmul.f32 %v4885, %v4921
        %v4938 = vmul.f32 %v4890, %v4922
        %v4939 = vmul.f32 %v4893, %v4923
        %v4940 = vmul.f32 %v4898, %v4924
        %v4941 = vmul.f32 %v4901, %v4925
        %v4942 = vmul.f32 %v4906, %v4926
        %v4943 = vmul.f32 %v4909, %v4927
        %v4944 = vadd.f32 %v4505, %v4928
        %v4945 = vadd.f32 %v4506, %v4929
        %v4946 = vadd.f32 %v4507, %v4930
        %v4947 = vadd.f32 %v4508, %v4931
        %v4948 = vadd.f32 %v4509, %v4932
        %v4949 = vadd.f32 %v4510, %v4933
        %v4950 = vadd.f32 %v4511, %v4934
        %v4951 = vadd.f32 %v4512, %v4935
        %v4952 = vadd.f32 %v4513, %v4936
        %v4953 = vadd.f32 %v4514, %v4937
        %v4954 = vadd.f32 %v4515, %v4938
        %v4955 = vadd.f32 %v4516, %v4939
        %v4956 = vadd.f32 %v4517, %v4940
        %v4957 = vadd.f32 %v4518, %v4941
        %v4958 = vadd.f32 %v4519, %v4942
        %v4959 = vadd.f32 %v4520, %v4943
        %v4961 = vlaneseq
        %v4962 = vshrl.u32 %v4961, 7
        %v4963 = vsub.s32 0, %v4962
        %v4964 = vrot.slane %v1573, %v4963
        %v4966 = vadd.f32 %v672, %v4964
        %v4967 = vadd.f32 %v673, %v4964
        %v4968 = vadd.f32 %v674, %v4964
        %v4969 = vadd.f32 %v675, %v4964
        %v4970 = vadd.f32 %v676, %v4964
        %v4971 = vadd.f32 %v677, %v4964
        %v4972 = vadd.f32 %v678, %v4964
        %v4973 = vadd.f32 %v679, %v4964
        %v4974 = vadd.f32 %v680, %v4964
        %v4975 = vadd.f32 %v681, %v4964
        %v4976 = vadd.f32 %v682, %v4964
        %v4977 = vadd.f32 %v683, %v4964
        %v4978 = vadd.f32 %v684, %v4964
        %v4979 = vadd.f32 %v685, %v4964
        %v4980 = vadd.f32 %v686, %v4964
        %v4981 = vadd.f32 %v687, %v4964
        %v4982 = vadd.f32 %v4966, %v4944
        %v4983 = vadd.f32 %v4967, %v4945
        %v4984 = vadd.f32 %v4968, %v4946
        %v4985 = vadd.f32 %v4969, %v4947
        %v4986 = vadd.f32 %v4970, %v4948
        %v4987 = vadd.f32 %v4971, %v4949
        %v4988 = vadd.f32 %v4972, %v4950
        %v4989 = vadd.f32 %v4973, %v4951
        %v4990 = vadd.f32 %v4974, %v4952
        %v4991 = vadd.f32 %v4975, %v4953
        %v4992 = vadd.f32 %v4976, %v4954
        %v4993 = vadd.f32 %v4977, %v4955
        %v4994 = vadd.f32 %v4978, %v4956
        %v4995 = vadd.f32 %v4979, %v4957
        %v4996 = vadd.f32 %v4980, %v4958
        %v4997 = vadd.f32 %v4981, %v4959
        %4998 = vst.msk [vmem:[#allocation2] sm:$0xff] %vm692, %v4982
        %4999 = vst.msk [vmem:[#allocation2 + $0x8] sm:$0xff] %vm692, %v4983
        %5000 = vst.msk [vmem:[#allocation2 + $0x10] sm:$0xff] %vm692, %v4984
        %5001 = vst.msk [vmem:[#allocation2 + $0x18] sm:$0xff] %vm692, %v4985
        %5002 = vst.msk [vmem:[#allocation2 + $0x20] sm:$0xff] %vm692, %v4986
        %5003 = vst.msk [vmem:[#allocation2 + $0x28] sm:$0xff] %vm692, %v4987
        %5004 = vst.msk [vmem:[#allocation2 + $0x30] sm:$0xff] %vm692, %v4988
        %5005 = vst.msk [vmem:[#allocation2 + $0x38] sm:$0xff] %vm692, %v4989
        %5006 = vst.msk [vmem:[#allocation2 + $0x40] sm:$0xff] %vm692, %v4990
        %5007 = vst.msk [vmem:[#allocation2 + $0x48] sm:$0xff] %vm692, %v4991
        %5008 = vst.msk [vmem:[#allocation2 + $0x50] sm:$0xff] %vm692, %v4992
        %5009 = vst.msk [vmem:[#allocation2 + $0x58] sm:$0xff] %vm692, %v4993
        %5010 = vst.msk [vmem:[#allocation2 + $0x60] sm:$0xff] %vm692, %v4994
        %5011 = vst.msk [vmem:[#allocation2 + $0x68] sm:$0xff] %vm692, %v4995
        %5012 = vst.msk [vmem:[#allocation2 + $0x70] sm:$0xff] %vm692, %v4996
        %5013 = vst.msk [vmem:[#allocation2 + $0x78] sm:$0xff] %vm692, %v4997
        %v5014 = vld [vmem:[#allocation2] sm:$0xff]
        %v5015 = vld [vmem:[#allocation2 + $0x8] sm:$0xff]
        %v5016 = vld [vmem:[#allocation2 + $0x10] sm:$0xff]
        %v5017 = vld [vmem:[#allocation2 + $0x18] sm:$0xff]
        %v5018 = vld [vmem:[#allocation2 + $0x20] sm:$0xff]
        %v5019 = vld [vmem:[#allocation2 + $0x28] sm:$0xff]
        %v5020 = vld [vmem:[#allocation2 + $0x30] sm:$0xff]
        %v5021 = vld [vmem:[#allocation2 + $0x38] sm:$0xff]
        %v5022 = vld [vmem:[#allocation2 + $0x40] sm:$0xff]
        %v5023 = vld [vmem:[#allocation2 + $0x48] sm:$0xff]
        %v5024 = vld [vmem:[#allocation2 + $0x50] sm:$0xff]
        %v5025 = vld [vmem:[#allocation2 + $0x58] sm:$0xff]
        %v5026 = vld [vmem:[#allocation2 + $0x60] sm:$0xff]
        %v5027 = vld [vmem:[#allocation2 + $0x68] sm:$0xff]
        %v5028 = vld [vmem:[#allocation2 + $0x70] sm:$0xff]
        %v5029 = vld [vmem:[#allocation2 + $0x78] sm:$0xff]
        %s5030 = scalar_lea.vmem [#allocation9], %s39
        %v5031 = vld [vmem:[%s5030] sm:$0x1]
        %s5032 = scalar_lea.vmem [#allocation11], %s39
        %v5033 = vld [vmem:[%s5032] sm:$0x1]
        %v5034 = vsel %vm692, %v5014, 0.0
        %5035 = vadd.xlane.f32.xlu0 %v5034
        %v5036 = vpop.xlane.xlu0 %5035
        %v5037 = vsel %vm692, %v5015, 0.0
        %5038 = vadd.xlane.f32.xlu0 %v5037
        %v5039 = vpop.xlane.xlu0 %5038
        %v5040 = vsel %vm692, %v5016, 0.0
        %5041 = vadd.xlane.f32.xlu0 %v5040
        %v5042 = vpop.xlane.xlu0 %5041
        %v5043 = vsel %vm692, %v5017, 0.0
        %5044 = vadd.xlane.f32.xlu0 %v5043
        %v5045 = vpop.xlane.xlu0 %5044
        %v5046 = vsel %vm692, %v5018, 0.0
        %5047 = vadd.xlane.f32.xlu0 %v5046
        %v5048 = vpop.xlane.xlu0 %5047
        %v5049 = vsel %vm692, %v5019, 0.0
        %5050 = vadd.xlane.f32.xlu0 %v5049
        %v5051 = vpop.xlane.xlu0 %5050
        %v5052 = vsel %vm692, %v5020, 0.0
        %5053 = vadd.xlane.f32.xlu0 %v5052
        %v5054 = vpop.xlane.xlu0 %5053
        %v5055 = vsel %vm692, %v5021, 0.0
        %5056 = vadd.xlane.f32.xlu0 %v5055
        %v5057 = vpop.xlane.xlu0 %5056
        %v5058 = vsel %vm692, %v5022, 0.0
        %5059 = vadd.xlane.f32.xlu0 %v5058
        %v5060 = vpop.xlane.xlu0 %5059
        %v5061 = vsel %vm692, %v5023, 0.0
        %5062 = vadd.xlane.f32.xlu0 %v5061
        %v5063 = vpop.xlane.xlu0 %5062
        %v5064 = vsel %vm692, %v5024, 0.0
        %5065 = vadd.xlane.f32.xlu0 %v5064
        %v5066 = vpop.xlane.xlu0 %5065
        %v5067 = vsel %vm692, %v5025, 0.0
        %5068 = vadd.xlane.f32.xlu0 %v5067
        %v5069 = vpop.xlane.xlu0 %5068
        %v5070 = vsel %vm692, %v5026, 0.0
        %5071 = vadd.xlane.f32.xlu0 %v5070
        %v5072 = vpop.xlane.xlu0 %5071
        %v5073 = vsel %vm692, %v5027, 0.0
        %5074 = vadd.xlane.f32.xlu0 %v5073
        %v5075 = vpop.xlane.xlu0 %5074
        %v5076 = vsel %vm692, %v5028, 0.0
        %5077 = vadd.xlane.f32.xlu0 %v5076
        %v5078 = vpop.xlane.xlu0 %5077
        %v5079 = vsel %vm692, %v5029, 0.0
        %5080 = vadd.xlane.f32.xlu0 %v5079
        %v5081 = vpop.xlane.xlu0 %5080
        %v5082 = vmul.f32 %v5036, %v741
        %v5083 = vmul.f32 %v5039, %v741
        %v5084 = vmul.f32 %v5042, %v741
        %v5085 = vmul.f32 %v5045, %v741
        %v5086 = vmul.f32 %v5048, %v741
        %v5087 = vmul.f32 %v5051, %v741
        %v5088 = vmul.f32 %v5054, %v741
        %v5089 = vmul.f32 %v5057, %v741
        %v5090 = vmul.f32 %v5060, %v741
        %v5091 = vmul.f32 %v5063, %v741
        %v5092 = vmul.f32 %v5066, %v741
        %v5093 = vmul.f32 %v5069, %v741
        %v5094 = vmul.f32 %v5072, %v741
        %v5095 = vmul.f32 %v5075, %v741
        %v5096 = vmul.f32 %v5078, %v741
        %v5097 = vmul.f32 %v5081, %v741
        %v5098 = vsub.f32 %v5014, %v5082
        %v5099 = vsub.f32 %v5015, %v5083
        %v5100 = vsub.f32 %v5016, %v5084
        %v5101 = vsub.f32 %v5017, %v5085
        %v5102 = vsub.f32 %v5018, %v5086
        %v5103 = vsub.f32 %v5019, %v5087
        %v5104 = vsub.f32 %v5020, %v5088
        %v5105 = vsub.f32 %v5021, %v5089
        %v5106 = vsub.f32 %v5022, %v5090
        %v5107 = vsub.f32 %v5023, %v5091
        %v5108 = vsub.f32 %v5024, %v5092
        %v5109 = vsub.f32 %v5025, %v5093
        %v5110 = vsub.f32 %v5026, %v5094
        %v5111 = vsub.f32 %v5027, %v5095
        %v5112 = vsub.f32 %v5028, %v5096
        %v5113 = vsub.f32 %v5029, %v5097
        %v5114 = vmul.f32 %v5098, %v5098
        %v5115 = vmul.f32 %v5099, %v5099
        %v5116 = vmul.f32 %v5100, %v5100
        %v5117 = vmul.f32 %v5101, %v5101
        %v5118 = vmul.f32 %v5102, %v5102
        %v5119 = vmul.f32 %v5103, %v5103
        %v5120 = vmul.f32 %v5104, %v5104
        %v5121 = vmul.f32 %v5105, %v5105
        %v5122 = vmul.f32 %v5106, %v5106
        %v5123 = vmul.f32 %v5107, %v5107
        %v5124 = vmul.f32 %v5108, %v5108
        %v5125 = vmul.f32 %v5109, %v5109
        %v5126 = vmul.f32 %v5110, %v5110
        %v5127 = vmul.f32 %v5111, %v5111
        %v5128 = vmul.f32 %v5112, %v5112
        %v5129 = vmul.f32 %v5113, %v5113
        %v5130 = vsel %vm692, %v5114, 0.0
        %5131 = vadd.xlane.f32.xlu0 %v5130
        %v5132 = vpop.xlane.xlu0 %5131
        %v5133 = vsel %vm692, %v5115, 0.0
        %5134 = vadd.xlane.f32.xlu0 %v5133
        %v5135 = vpop.xlane.xlu0 %5134
        %v5136 = vsel %vm692, %v5116, 0.0
        %5137 = vadd.xlane.f32.xlu0 %v5136
        %v5138 = vpop.xlane.xlu0 %5137
        %v5139 = vsel %vm692, %v5117, 0.0
        %5140 = vadd.xlane.f32.xlu0 %v5139
        %v5141 = vpop.xlane.xlu0 %5140
        %v5142 = vsel %vm692, %v5118, 0.0
        %5143 = vadd.xlane.f32.xlu0 %v5142
        %v5144 = vpop.xlane.xlu0 %5143
        %v5145 = vsel %vm692, %v5119, 0.0
        %5146 = vadd.xlane.f32.xlu0 %v5145
        %v5147 = vpop.xlane.xlu0 %5146
        %v5148 = vsel %vm692, %v5120, 0.0
        %5149 = vadd.xlane.f32.xlu0 %v5148
        %v5150 = vpop.xlane.xlu0 %5149
        %v5151 = vsel %vm692, %v5121, 0.0
        %5152 = vadd.xlane.f32.xlu0 %v5151
        %v5153 = vpop.xlane.xlu0 %5152
        %v5154 = vsel %vm692, %v5122, 0.0
        %5155 = vadd.xlane.f32.xlu0 %v5154
        %v5156 = vpop.xlane.xlu0 %5155
        %v5157 = vsel %vm692, %v5123, 0.0
        %5158 = vadd.xlane.f32.xlu0 %v5157
        %v5159 = vpop.xlane.xlu0 %5158
        %v5160 = vsel %vm692, %v5124, 0.0
        %5161 = vadd.xlane.f32.xlu0 %v5160
        %v5162 = vpop.xlane.xlu0 %5161
        %v5163 = vsel %vm692, %v5125, 0.0
        %5164 = vadd.xlane.f32.xlu0 %v5163
        %v5165 = vpop.xlane.xlu0 %5164
        %v5166 = vsel %vm692, %v5126, 0.0
        %5167 = vadd.xlane.f32.xlu0 %v5166
        %v5168 = vpop.xlane.xlu0 %5167
        %v5169 = vsel %vm692, %v5127, 0.0
        %5170 = vadd.xlane.f32.xlu0 %v5169
        %v5171 = vpop.xlane.xlu0 %5170
        %v5172 = vsel %vm692, %v5128, 0.0
        %5173 = vadd.xlane.f32.xlu0 %v5172
        %v5174 = vpop.xlane.xlu0 %5173
        %v5175 = vsel %vm692, %v5129, 0.0
        %5176 = vadd.xlane.f32.xlu0 %v5175
        %v5177 = vpop.xlane.xlu0 %5176
        %v5178 = vmul.f32 %v5132, %v741
        %v5179 = vmul.f32 %v5135, %v741
        %v5180 = vmul.f32 %v5138, %v741
        %v5181 = vmul.f32 %v5141, %v741
        %v5182 = vmul.f32 %v5144, %v741
        %v5183 = vmul.f32 %v5147, %v741
        %v5184 = vmul.f32 %v5150, %v741
        %v5185 = vmul.f32 %v5153, %v741
        %v5186 = vmul.f32 %v5156, %v741
        %v5187 = vmul.f32 %v5159, %v741
        %v5188 = vmul.f32 %v5162, %v741
        %v5189 = vmul.f32 %v5165, %v741
        %v5190 = vmul.f32 %v5168, %v741
        %v5191 = vmul.f32 %v5171, %v741
        %v5192 = vmul.f32 %v5174, %v741
        %v5193 = vmul.f32 %v5177, %v741
        %v5194 = vadd.f32 %v5178, 1e-05
        %v5195 = vadd.f32 %v5179, 1e-05
        %v5196 = vadd.f32 %v5180, 1e-05
        %v5197 = vadd.f32 %v5181, 1e-05
        %v5198 = vadd.f32 %v5182, 1e-05
        %v5199 = vadd.f32 %v5183, 1e-05
        %v5200 = vadd.f32 %v5184, 1e-05
        %v5201 = vadd.f32 %v5185, 1e-05
        %v5202 = vadd.f32 %v5186, 1e-05
        %v5203 = vadd.f32 %v5187, 1e-05
        %v5204 = vadd.f32 %v5188, 1e-05
        %v5205 = vadd.f32 %v5189, 1e-05
        %v5206 = vadd.f32 %v5190, 1e-05
        %v5207 = vadd.f32 %v5191, 1e-05
        %v5208 = vadd.f32 %v5192, 1e-05
        %v5209 = vadd.f32 %v5193, 1e-05
        %v5210 = vrsqrt.pop %v5194
        %v5211 = vrsqrt.pop %v5195
        %v5212 = vrsqrt.pop %v5196
        %v5213 = vrsqrt.pop %v5197
        %v5214 = vrsqrt.pop %v5198
        %v5215 = vrsqrt.pop %v5199
        %v5216 = vrsqrt.pop %v5200
        %v5217 = vrsqrt.pop %v5201
        %v5218 = vrsqrt.pop %v5202
        %v5219 = vrsqrt.pop %v5203
        %v5220 = vrsqrt.pop %v5204
        %v5221 = vrsqrt.pop %v5205
        %v5222 = vrsqrt.pop %v5206
        %v5223 = vrsqrt.pop %v5207
        %v5224 = vrsqrt.pop %v5208
        %v5225 = vrsqrt.pop %v5209
        %v5226 = vmul.f32 %v5098, %v5210
        %v5227 = vmul.f32 %v5099, %v5211
        %v5228 = vmul.f32 %v5100, %v5212
        %v5229 = vmul.f32 %v5101, %v5213
        %v5230 = vmul.f32 %v5102, %v5214
        %v5231 = vmul.f32 %v5103, %v5215
        %v5232 = vmul.f32 %v5104, %v5216
        %v5233 = vmul.f32 %v5105, %v5217
        %v5234 = vmul.f32 %v5106, %v5218
        %v5235 = vmul.f32 %v5107, %v5219
        %v5236 = vmul.f32 %v5108, %v5220
        %v5237 = vmul.f32 %v5109, %v5221
        %v5238 = vmul.f32 %v5110, %v5222
        %v5239 = vmul.f32 %v5111, %v5223
        %v5240 = vmul.f32 %v5112, %v5224
        %v5241 = vmul.f32 %v5113, %v5225
        %v5243 = vlaneseq
        %v5244 = vshrl.u32 %v5243, 7
        %v5245 = vsub.s32 0, %v5244
        %v5246 = vrot.slane %v5031, %v5245
        %v5248 = vmul.f32 %v5226, %v5246
        %v5249 = vmul.f32 %v5227, %v5246
        %v5250 = vmul.f32 %v5228, %v5246
        %v5251 = vmul.f32 %v5229, %v5246
        %v5252 = vmul.f32 %v5230, %v5246
        %v5253 = vmul.f32 %v5231, %v5246
        %v5254 = vmul.f32 %v5232, %v5246
        %v5255 = vmul.f32 %v5233, %v5246
        %v5256 = vmul.f32 %v5234, %v5246
        %v5257 = vmul.f32 %v5235, %v5246
        %v5258 = vmul.f32 %v5236, %v5246
        %v5259 = vmul.f32 %v5237, %v5246
        %v5260 = vmul.f32 %v5238, %v5246
        %v5261 = vmul.f32 %v5239, %v5246
        %v5262 = vmul.f32 %v5240, %v5246
        %v5263 = vmul.f32 %v5241, %v5246
        %v5265 = vlaneseq
        %v5266 = vshrl.u32 %v5265, 7
        %v5267 = vsub.s32 0, %v5266
        %v5268 = vrot.slane %v5033, %v5267
        %v5270 = vadd.f32 %v5248, %v5268
        %v5271 = vadd.f32 %v5249, %v5268
        %v5272 = vadd.f32 %v5250, %v5268
        %v5273 = vadd.f32 %v5251, %v5268
        %v5274 = vadd.f32 %v5252, %v5268
        %v5275 = vadd.f32 %v5253, %v5268
        %v5276 = vadd.f32 %v5254, %v5268
        %v5277 = vadd.f32 %v5255, %v5268
        %v5278 = vadd.f32 %v5256, %v5268
        %v5279 = vadd.f32 %v5257, %v5268
        %v5280 = vadd.f32 %v5258, %v5268
        %v5281 = vadd.f32 %v5259, %v5268
        %v5282 = vadd.f32 %v5260, %v5268
        %v5283 = vadd.f32 %v5261, %v5268
        %v5284 = vadd.f32 %v5262, %v5268
        %v5285 = vadd.f32 %v5263, %v5268
        %v5286 = vpack.c.bf16 %v5271, %v5270
        %v5287 = vpack.c.bf16 %v5273, %v5272
        %v5288 = vpack.c.bf16 %v5275, %v5274
        %v5289 = vpack.c.bf16 %v5277, %v5276
        %v5290 = vpack.c.bf16 %v5279, %v5278
        %v5291 = vpack.c.bf16 %v5281, %v5280
        %v5292 = vpack.c.bf16 %v5283, %v5282
        %v5293 = vpack.c.bf16 %v5285, %v5284
        %s5294 = smul.u32 %s39, 16
        %s5295 = smul.addr %s5294, 4
        %s5296 = scalar_lea.vmem %s8, %s5295
        %v5297 = vld [vmem:[%s5296] sm:$0xff]
        %v5298 = vld [vmem:[%s5296 + $0x8] sm:$0xff]
        %v5299 = vld [vmem:[%s5296 + $0x10] sm:$0xff]
        %v5300 = vld [vmem:[%s5296 + $0x18] sm:$0xff]
        %v5301 = vld [vmem:[%s5296 + $0x20] sm:$0xff]
        %v5302 = vld [vmem:[%s5296 + $0x28] sm:$0xff]
        %v5303 = vld [vmem:[%s5296 + $0x30] sm:$0xff]
        %v5304 = vld [vmem:[%s5296 + $0x38] sm:$0xff]
        %s5305 = smul.u32 %s39, 2
        %s5306 = scalar_lea.vmem [#allocation12], %s5305
        %v5307 = vld [vmem:[%s5306] sm:$0x3]
        %v5309 = vlaneseq
        %v5310 = vshrl.u32 %v5309, 7
        %v5311 = vsub.s32 0, %v5310
        %v5312 = vrot.slane %v5307, %v5311
        %v5313 = vlaneseq
        %v5314 = vshrl.u32 %v5313, 7
        %v5315 = vsub.s32 1, %v5314
        %v5316 = vrot.slane %v5307, %v5315
        %v5327 = vunpack.c.l.b16 %v5297
        %v5328 = vunpack.c.h.b16 %v5297
        %v5329 = vunpack.c.l.b16 %v5298
        %v5330 = vunpack.c.h.b16 %v5298
        %v5331 = vunpack.c.l.b16 %v5299
        %v5332 = vunpack.c.h.b16 %v5299
        %v5333 = vunpack.c.l.b16 %v5300
        %v5334 = vunpack.c.h.b16 %v5300
        %v5335 = vunpack.c.l.b16 %v5301
        %v5336 = vunpack.c.h.b16 %v5301
        %v5337 = vunpack.c.l.b16 %v5302
        %v5338 = vunpack.c.h.b16 %v5302
        %v5339 = vunpack.c.l.b16 %v5303
        %v5340 = vunpack.c.h.b16 %v5303
        %v5341 = vunpack.c.l.b16 %v5304
        %v5342 = vunpack.c.h.b16 %v5304
        %v5343 = vpack.c.b16 %v5329, %v5327
        %v5344 = vpack.c.b16 %v5330, %v5328
        %v5345 = vpack.c.b16 %v5333, %v5331
        %v5346 = vpack.c.b16 %v5334, %v5332
        %v5347 = vpack.c.b16 %v5337, %v5335
        %v5348 = vpack.c.b16 %v5338, %v5336
        %v5349 = vpack.c.b16 %v5341, %v5339
        %v5350 = vpack.c.b16 %v5342, %v5340
        %v5360 = vsel %vm692, %v5286, 0
        %v5363 = vsel %vm692, %v5287, 0
        %v5366 = vsel %vm692, %v5288, 0
        %v5369 = vsel %vm692, %v5289, 0
        %v5372 = vsel %vm692, %v5290, 0
        %v5375 = vsel %vm692, %v5291, 0
        %v5378 = vsel %vm692, %v5292, 0
        %v5381 = vsel %vm692, %v5293, 0
        %5383 = vmatprep.subr.bf16.mxu0 0
        %5384 = vmatpush1.bf16.msra.mxu0 0
        %5385 = vmatprep.subr.bf16.mxu0 0
        %5386 = vmatpush1.bf16.msra.mxu0 0
        %5387 = vmatprep.subr.bf16.mxu0 0
        %5388 = vmatpush1.bf16.msra.mxu0 0
        %5389 = vmatprep.subr.bf16.mxu0 0
        %5390 = vmatpush1.bf16.msra.mxu0 0
        %5391 = vmatprep.subr.bf16.mxu0 %v5350
        %5392 = vmatpush1.bf16.msra.mxu0 %v5349
        %5393 = vmatprep.subr.bf16.mxu0 %v5348
        %5394 = vmatpush1.bf16.msra.mxu0 %v5347
        %5395 = vmatprep.subr.bf16.mxu0 %v5346
        %5396 = vmatpush1.bf16.msra.mxu0 %v5345
        %5397 = vmatprep.subr.bf16.mxu0 %v5344
        %5398 = vmatpush1.bf16.msra.mxu0 %v5343
        %5399 = vmatprep.subr.bf16.mxu0 0
        %5400 = vmatpush2.bf16.msra.mxu0 0
        %5401 = vmatprep.subr.bf16.mxu0 0
        %5402 = vmatpush2.bf16.msra.mxu0 0
        %5403 = vmatprep.subr.bf16.mxu0 0
        %5404 = vmatpush2.bf16.msra.mxu0 0
        %5405 = vmatprep.subr.bf16.mxu0 0
        %5406 = vmatpush2.bf16.msra.mxu0 0
        %5407 = vmatprep.subr.bf16.mxu0 0
        %5408 = vmatpush2.bf16.msra.mxu0 0
        %5409 = vmatprep.subr.bf16.mxu0 0
        %5410 = vmatpush2.bf16.msra.mxu0 0
        %5411 = vmatprep.subr.bf16.mxu0 0
        %5412 = vmatpush2.bf16.msra.mxu0 0
        %5413 = vmatprep.subr.bf16.mxu0 0
        %5414 = vmatpush2.bf16.msra.mxu0 0
        %5415 = vmatprep.mubr.bf16.mxu0 0
        %5416 = vmatmul.mubr.bf16.gmra.mxu0 %v5360
        %v5417 = vpop.f32.mrf.mxu0
        %v5418 = vadd.f32 %v5312, %v5417
        %v5419 = vpop.f32.mrf.mxu0
        %v5420 = vadd.f32 %v5316, %v5419
        %v5421 = vpop.f32.mrf.mxu0
        %v5422 = vadd.f32 %v5312, %v5421
        %v5423 = vpop.f32.mrf.mxu0
        %v5424 = vadd.f32 %v5316, %v5423
        %5425 = vmatprep.mubr.bf16.mxu0 0
        %5426 = vmatmul.mubr.bf16.gmra.mxu0 %v5363
        %v5427 = vpop.f32.mrf.mxu0
        %v5428 = vadd.f32 %v5312, %v5427
        %v5429 = vpop.f32.mrf.mxu0
        %v5430 = vadd.f32 %v5316, %v5429
        %v5431 = vpop.f32.mrf.mxu0
        %v5432 = vadd.f32 %v5312, %v5431
        %v5433 = vpop.f32.mrf.mxu0
        %v5434 = vadd.f32 %v5316, %v5433
        %5435 = vmatprep.mubr.bf16.mxu0 0
        %5436 = vmatmul.mubr.bf16.gmra.mxu0 %v5366
        %v5437 = vpop.f32.mrf.mxu0
        %v5438 = vadd.f32 %v5312, %v5437
        %v5439 = vpop.f32.mrf.mxu0
        %v5440 = vadd.f32 %v5316, %v5439
        %v5441 = vpop.f32.mrf.mxu0
        %v5442 = vadd.f32 %v5312, %v5441
        %v5443 = vpop.f32.mrf.mxu0
        %v5444 = vadd.f32 %v5316, %v5443
        %5445 = vmatprep.mubr.bf16.mxu0 0
        %5446 = vmatmul.mubr.bf16.gmra.mxu0 %v5369
        %v5447 = vpop.f32.mrf.mxu0
        %v5448 = vadd.f32 %v5312, %v5447
        %v5449 = vpop.f32.mrf.mxu0
        %v5450 = vadd.f32 %v5316, %v5449
        %v5451 = vpop.f32.mrf.mxu0
        %v5452 = vadd.f32 %v5312, %v5451
        %v5453 = vpop.f32.mrf.mxu0
        %v5454 = vadd.f32 %v5316, %v5453
        %5455 = vmatprep.mubr.bf16.mxu0 0
        %5456 = vmatmul.mubr.bf16.gmra.mxu0 %v5372
        %v5457 = vpop.f32.mrf.mxu0
        %v5458 = vadd.f32 %v5312, %v5457
        %v5459 = vpop.f32.mrf.mxu0
        %v5460 = vadd.f32 %v5316, %v5459
        %v5461 = vpop.f32.mrf.mxu0
        %v5462 = vadd.f32 %v5312, %v5461
        %v5463 = vpop.f32.mrf.mxu0
        %v5464 = vadd.f32 %v5316, %v5463
        %5465 = vmatprep.mubr.bf16.mxu0 0
        %5466 = vmatmul.mubr.bf16.gmra.mxu0 %v5375
        %v5467 = vpop.f32.mrf.mxu0
        %v5468 = vadd.f32 %v5312, %v5467
        %v5469 = vpop.f32.mrf.mxu0
        %v5470 = vadd.f32 %v5316, %v5469
        %v5471 = vpop.f32.mrf.mxu0
        %v5472 = vadd.f32 %v5312, %v5471
        %v5473 = vpop.f32.mrf.mxu0
        %v5474 = vadd.f32 %v5316, %v5473
        %5475 = vmatprep.mubr.bf16.mxu0 0
        %5476 = vmatmul.mubr.bf16.gmra.mxu0 %v5378
        %v5477 = vpop.f32.mrf.mxu0
        %v5478 = vadd.f32 %v5312, %v5477
        %v5479 = vpop.f32.mrf.mxu0
        %v5480 = vadd.f32 %v5316, %v5479
        %v5481 = vpop.f32.mrf.mxu0
        %v5482 = vadd.f32 %v5312, %v5481
        %v5483 = vpop.f32.mrf.mxu0
        %v5484 = vadd.f32 %v5316, %v5483
        %5485 = vmatprep.mubr.bf16.mxu0 0
        %5486 = vmatmul.mubr.bf16.gmra.mxu0 %v5381
        %v5487 = vpop.f32.mrf.mxu0
        %v5488 = vadd.f32 %v5312, %v5487
        %v5489 = vpop.f32.mrf.mxu0
        %v5490 = vadd.f32 %v5316, %v5489
        %v5491 = vpop.f32.mrf.mxu0
        %v5492 = vadd.f32 %v5312, %v5491
        %v5493 = vpop.f32.mrf.mxu0
        %v5494 = vadd.f32 %v5316, %v5493
        %5495 = vdwg.mxu0
        %v5496 = vmax.f32 %v5418, 0.0
        %v5497 = vmax.f32 %v5420, 0.0
        %v5498 = vmax.f32 %v5422, 0.0
        %v5499 = vmax.f32 %v5424, 0.0
        %v5500 = vmax.f32 %v5428, 0.0
        %v5501 = vmax.f32 %v5430, 0.0
        %v5502 = vmax.f32 %v5432, 0.0
        %v5503 = vmax.f32 %v5434, 0.0
        %v5504 = vmax.f32 %v5438, 0.0
        %v5505 = vmax.f32 %v5440, 0.0
        %v5506 = vmax.f32 %v5442, 0.0
        %v5507 = vmax.f32 %v5444, 0.0
        %v5508 = vmax.f32 %v5448, 0.0
        %v5509 = vmax.f32 %v5450, 0.0
        %v5510 = vmax.f32 %v5452, 0.0
        %v5511 = vmax.f32 %v5454, 0.0
        %v5512 = vmax.f32 %v5458, 0.0
        %v5513 = vmax.f32 %v5460, 0.0
        %v5514 = vmax.f32 %v5462, 0.0
        %v5515 = vmax.f32 %v5464, 0.0
        %v5516 = vmax.f32 %v5468, 0.0
        %v5517 = vmax.f32 %v5470, 0.0
        %v5518 = vmax.f32 %v5472, 0.0
        %v5519 = vmax.f32 %v5474, 0.0
        %v5520 = vmax.f32 %v5478, 0.0
        %v5521 = vmax.f32 %v5480, 0.0
        %v5522 = vmax.f32 %v5482, 0.0
        %v5523 = vmax.f32 %v5484, 0.0
        %v5524 = vmax.f32 %v5488, 0.0
        %v5525 = vmax.f32 %v5490, 0.0
        %v5526 = vmax.f32 %v5492, 0.0
        %v5527 = vmax.f32 %v5494, 0.0
        %v5528 = vpack.c.bf16 %v5498, %v5496
        %v5529 = vpack.c.bf16 %v5499, %v5497
        %v5530 = vpack.c.bf16 %v5502, %v5500
        %v5531 = vpack.c.bf16 %v5503, %v5501
        %v5532 = vpack.c.bf16 %v5506, %v5504
        %v5533 = vpack.c.bf16 %v5507, %v5505
        %v5534 = vpack.c.bf16 %v5510, %v5508
        %v5535 = vpack.c.bf16 %v5511, %v5509
        %v5536 = vpack.c.bf16 %v5514, %v5512
        %v5537 = vpack.c.bf16 %v5515, %v5513
        %v5538 = vpack.c.bf16 %v5518, %v5516
        %v5539 = vpack.c.bf16 %v5519, %v5517
        %v5540 = vpack.c.bf16 %v5522, %v5520
        %v5541 = vpack.c.bf16 %v5523, %v5521
        %v5542 = vpack.c.bf16 %v5526, %v5524
        %v5543 = vpack.c.bf16 %v5527, %v5525
        %s5544 = smul.u32 %s39, 32
        %s5545 = smul.addr %s5544, 4
        %s5546 = scalar_lea.vmem %s10, %s5545
        %v5547 = vld [vmem:[%s5546] sm:$0xf]
        %v5548 = vld [vmem:[%s5546 + $0x4] sm:$0xf]
        %v5549 = vld [vmem:[%s5546 + $0x8] sm:$0xf]
        %v5550 = vld [vmem:[%s5546 + $0xc] sm:$0xf]
        %v5551 = vld [vmem:[%s5546 + $0x10] sm:$0xf]
        %v5552 = vld [vmem:[%s5546 + $0x14] sm:$0xf]
        %v5553 = vld [vmem:[%s5546 + $0x18] sm:$0xf]
        %v5554 = vld [vmem:[%s5546 + $0x1c] sm:$0xf]
        %v5555 = vld [vmem:[%s5546 + $0x20] sm:$0xf]
        %v5556 = vld [vmem:[%s5546 + $0x24] sm:$0xf]
        %v5557 = vld [vmem:[%s5546 + $0x28] sm:$0xf]
        %v5558 = vld [vmem:[%s5546 + $0x2c] sm:$0xf]
        %v5559 = vld [vmem:[%s5546 + $0x30] sm:$0xf]
        %v5560 = vld [vmem:[%s5546 + $0x34] sm:$0xf]
        %v5561 = vld [vmem:[%s5546 + $0x38] sm:$0xf]
        %v5562 = vld [vmem:[%s5546 + $0x3c] sm:$0xf]
        %v5563 = vld [vmem:[%s5546 + $0x40] sm:$0xf]
        %v5564 = vld [vmem:[%s5546 + $0x44] sm:$0xf]
        %v5565 = vld [vmem:[%s5546 + $0x48] sm:$0xf]
        %v5566 = vld [vmem:[%s5546 + $0x4c] sm:$0xf]
        %v5567 = vld [vmem:[%s5546 + $0x50] sm:$0xf]
        %v5568 = vld [vmem:[%s5546 + $0x54] sm:$0xf]
        %v5569 = vld [vmem:[%s5546 + $0x58] sm:$0xf]
        %v5570 = vld [vmem:[%s5546 + $0x5c] sm:$0xf]
        %v5571 = vld [vmem:[%s5546 + $0x60] sm:$0xf]
        %v5572 = vld [vmem:[%s5546 + $0x64] sm:$0xf]
        %v5573 = vld [vmem:[%s5546 + $0x68] sm:$0xf]
        %v5574 = vld [vmem:[%s5546 + $0x6c] sm:$0xf]
        %v5575 = vld [vmem:[%s5546 + $0x70] sm:$0xf]
        %v5576 = vld [vmem:[%s5546 + $0x74] sm:$0xf]
        %v5577 = vld [vmem:[%s5546 + $0x78] sm:$0xf]
        %v5578 = vld [vmem:[%s5546 + $0x7c] sm:$0xf]
        %v5611 = vunpack.c.l.b16 %v5547
        %v5612 = vunpack.c.l.b16 %v5548
        %v5613 = vunpack.c.l.b16 %v5549
        %v5614 = vunpack.c.l.b16 %v5550
        %v5615 = vunpack.c.l.b16 %v5551
        %v5616 = vunpack.c.l.b16 %v5552
        %v5617 = vunpack.c.l.b16 %v5553
        %v5618 = vunpack.c.l.b16 %v5554
        %v5619 = vunpack.c.l.b16 %v5555
        %v5620 = vunpack.c.l.b16 %v5556
        %v5621 = vunpack.c.l.b16 %v5557
        %v5622 = vunpack.c.l.b16 %v5558
        %v5623 = vunpack.c.l.b16 %v5559
        %v5624 = vunpack.c.l.b16 %v5560
        %v5625 = vunpack.c.l.b16 %v5561
        %v5626 = vunpack.c.l.b16 %v5562
        %v5627 = vunpack.c.l.b16 %v5563
        %v5628 = vunpack.c.l.b16 %v5564
        %v5629 = vunpack.c.l.b16 %v5565
        %v5630 = vunpack.c.l.b16 %v5566
        %v5631 = vunpack.c.l.b16 %v5567
        %v5632 = vunpack.c.l.b16 %v5568
        %v5633 = vunpack.c.l.b16 %v5569
        %v5634 = vunpack.c.l.b16 %v5570
        %v5635 = vunpack.c.l.b16 %v5571
        %v5636 = vunpack.c.l.b16 %v5572
        %v5637 = vunpack.c.l.b16 %v5573
        %v5638 = vunpack.c.l.b16 %v5574
        %v5639 = vunpack.c.l.b16 %v5575
        %v5640 = vunpack.c.l.b16 %v5576
        %v5641 = vunpack.c.l.b16 %v5577
        %v5642 = vunpack.c.l.b16 %v5578
        %v5643 = vpack.c.b16 %v5612, %v5611
        %v5644 = vpack.c.b16 %v5614, %v5613
        %v5645 = vpack.c.b16 %v5616, %v5615
        %v5646 = vpack.c.b16 %v5618, %v5617
        %v5647 = vpack.c.b16 %v5620, %v5619
        %v5648 = vpack.c.b16 %v5622, %v5621
        %v5649 = vpack.c.b16 %v5624, %v5623
        %v5650 = vpack.c.b16 %v5626, %v5625
        %v5651 = vpack.c.b16 %v5628, %v5627
        %v5652 = vpack.c.b16 %v5630, %v5629
        %v5653 = vpack.c.b16 %v5632, %v5631
        %v5654 = vpack.c.b16 %v5634, %v5633
        %v5655 = vpack.c.b16 %v5636, %v5635
        %v5656 = vpack.c.b16 %v5638, %v5637
        %v5657 = vpack.c.b16 %v5640, %v5639
        %v5658 = vpack.c.b16 %v5642, %v5641
        %5675 = vmatprep.subr.bf16.mxu0 0
        %5676 = vmatpush1.bf16.msra.mxu0 %v5650
        %5677 = vmatprep.subr.bf16.mxu0 0
        %5678 = vmatpush1.bf16.msra.mxu0 %v5649
        %5679 = vmatprep.subr.bf16.mxu0 0
        %5680 = vmatpush1.bf16.msra.mxu0 %v5648
        %5681 = vmatprep.subr.bf16.mxu0 0
        %5682 = vmatpush1.bf16.msra.mxu0 %v5647
        %5683 = vmatprep.subr.bf16.mxu0 0
        %5684 = vmatpush1.bf16.msra.mxu0 %v5646
        %5685 = vmatprep.subr.bf16.mxu0 0
        %5686 = vmatpush1.bf16.msra.mxu0 %v5645
        %5687 = vmatprep.subr.bf16.mxu0 0
        %5688 = vmatpush1.bf16.msra.mxu0 %v5644
        %5689 = vmatprep.subr.bf16.mxu0 0
        %5690 = vmatpush1.bf16.msra.mxu0 %v5643
        %5691 = vmatprep.subr.bf16.mxu0 0
        %5692 = vmatpush2.bf16.msra.mxu0 %v5658
        %5693 = vmatprep.subr.bf16.mxu0 0
        %5694 = vmatpush2.bf16.msra.mxu0 %v5657
        %5695 = vmatprep.subr.bf16.mxu0 0
        %5696 = vmatpush2.bf16.msra.mxu0 %v5656
        %5697 = vmatprep.subr.bf16.mxu0 0
        %5698 = vmatpush2.bf16.msra.mxu0 %v5655
        %5699 = vmatprep.subr.bf16.mxu0 0
        %5700 = vmatpush2.bf16.msra.mxu0 %v5654
        %5701 = vmatprep.subr.bf16.mxu0 0
        %5702 = vmatpush2.bf16.msra.mxu0 %v5653
        %5703 = vmatprep.subr.bf16.mxu0 0
        %5704 = vmatpush2.bf16.msra.mxu0 %v5652
        %5705 = vmatprep.subr.bf16.mxu0 0
        %5706 = vmatpush2.bf16.msra.mxu0 %v5651
        %5707 = vmatprep.mubr.bf16.mxu0 %v5529
        %5708 = vmatmul.mubr.bf16.gmra.mxu0 %v5528
        %v5709 = vpop.f32.mrf.mxu0
        %v5710 = vadd.f32 0.0, %v5709
        %v5711 = vpop.f32.mrf.mxu0
        %v5712 = vpop.f32.mrf.mxu0
        %v5713 = vadd.f32 0.0, %v5712
        %v5714 = vpop.f32.mrf.mxu0
        %5715 = vmatprep.mubr.bf16.mxu0 %v5531
        %5716 = vmatmul.mubr.bf16.gmra.mxu0 %v5530
        %v5717 = vpop.f32.mrf.mxu0
        %v5718 = vadd.f32 0.0, %v5717
        %v5719 = vpop.f32.mrf.mxu0
        %v5720 = vpop.f32.mrf.mxu0
        %v5721 = vadd.f32 0.0, %v5720
        %v5722 = vpop.f32.mrf.mxu0
        %5723 = vmatprep.mubr.bf16.mxu0 %v5533
        %5724 = vmatmul.mubr.bf16.gmra.mxu0 %v5532
        %v5725 = vpop.f32.mrf.mxu0
        %v5726 = vadd.f32 0.0, %v5725
        %v5727 = vpop.f32.mrf.mxu0
        %v5728 = vpop.f32.mrf.mxu0
        %v5729 = vadd.f32 0.0, %v5728
        %v5730 = vpop.f32.mrf.mxu0
        %5731 = vmatprep.mubr.bf16.mxu0 %v5535
        %5732 = vmatmul.mubr.bf16.gmra.mxu0 %v5534
        %v5733 = vpop.f32.mrf.mxu0
        %v5734 = vadd.f32 0.0, %v5733
        %v5735 = vpop.f32.mrf.mxu0
        %v5736 = vpop.f32.mrf.mxu0
        %v5737 = vadd.f32 0.0, %v5736
        %v5738 = vpop.f32.mrf.mxu0
        %5739 = vmatprep.mubr.bf16.mxu0 %v5537
        %5740 = vmatmul.mubr.bf16.gmra.mxu0 %v5536
        %v5741 = vpop.f32.mrf.mxu0
        %v5742 = vadd.f32 0.0, %v5741
        %v5743 = vpop.f32.mrf.mxu0
        %v5744 = vpop.f32.mrf.mxu0
        %v5745 = vadd.f32 0.0, %v5744
        %v5746 = vpop.f32.mrf.mxu0
        %5747 = vmatprep.mubr.bf16.mxu0 %v5539
        %5748 = vmatmul.mubr.bf16.gmra.mxu0 %v5538
        %v5749 = vpop.f32.mrf.mxu0
        %v5750 = vadd.f32 0.0, %v5749
        %v5751 = vpop.f32.mrf.mxu0
        %v5752 = vpop.f32.mrf.mxu0
        %v5753 = vadd.f32 0.0, %v5752
        %v5754 = vpop.f32.mrf.mxu0
        %5755 = vmatprep.mubr.bf16.mxu0 %v5541
        %5756 = vmatmul.mubr.bf16.gmra.mxu0 %v5540
        %v5757 = vpop.f32.mrf.mxu0
        %v5758 = vadd.f32 0.0, %v5757
        %v5759 = vpop.f32.mrf.mxu0
        %v5760 = vpop.f32.mrf.mxu0
        %v5761 = vadd.f32 0.0, %v5760
        %v5762 = vpop.f32.mrf.mxu0
        %5763 = vmatprep.mubr.bf16.mxu0 %v5543
        %5764 = vmatmul.mubr.bf16.gmra.mxu0 %v5542
        %v5765 = vpop.f32.mrf.mxu0
        %v5766 = vadd.f32 0.0, %v5765
        %v5767 = vpop.f32.mrf.mxu0
        %v5768 = vpop.f32.mrf.mxu0
        %v5769 = vadd.f32 0.0, %v5768
        %v5770 = vpop.f32.mrf.mxu0
        %5771 = vdwg.mxu0
        %v5772 = vadd.f32 %v5014, %v5710
        %v5773 = vadd.f32 %v5015, %v5713
        %v5774 = vadd.f32 %v5016, %v5718
        %v5775 = vadd.f32 %v5017, %v5721
        %v5776 = vadd.f32 %v5018, %v5726
        %v5777 = vadd.f32 %v5019, %v5729
        %v5778 = vadd.f32 %v5020, %v5734
        %v5779 = vadd.f32 %v5021, %v5737
        %v5780 = vadd.f32 %v5022, %v5742
        %v5781 = vadd.f32 %v5023, %v5745
        %v5782 = vadd.f32 %v5024, %v5750
        %v5783 = vadd.f32 %v5025, %v5753
        %v5784 = vadd.f32 %v5026, %v5758
        %v5785 = vadd.f32 %v5027, %v5761
        %v5786 = vadd.f32 %v5028, %v5766
        %v5787 = vadd.f32 %v5029, %v5769
        %s5788 = scalar_lea.vmem %s11, %s39
        %v5789 = vld [vmem:[%s5788] sm:$0x1]
        %v5791 = vlaneseq
        %v5792 = vshrl.u32 %v5791, 7
        %v5793 = vsub.s32 0, %v5792
        %v5794 = vrot.slane %v5789, %v5793
        %v5796 = vadd.f32 %v5772, %v5794
        %v5797 = vadd.f32 %v5773, %v5794
        %v5798 = vadd.f32 %v5774, %v5794
        %v5799 = vadd.f32 %v5775, %v5794
        %v5800 = vadd.f32 %v5776, %v5794
        %v5801 = vadd.f32 %v5777, %v5794
        %v5802 = vadd.f32 %v5778, %v5794
        %v5803 = vadd.f32 %v5779, %v5794
        %v5804 = vadd.f32 %v5780, %v5794
        %v5805 = vadd.f32 %v5781, %v5794
        %v5806 = vadd.f32 %v5782, %v5794
        %v5807 = vadd.f32 %v5783, %v5794
        %v5808 = vadd.f32 %v5784, %v5794
        %v5809 = vadd.f32 %v5785, %v5794
        %v5810 = vadd.f32 %v5786, %v5794
        %v5811 = vadd.f32 %v5787, %v5794
        %5812 = vst.msk [vmem:[#allocation2] sm:$0xff] %vm692, %v5796
        %5813 = vst.msk [vmem:[#allocation2 + $0x8] sm:$0xff] %vm692, %v5797
        %5814 = vst.msk [vmem:[#allocation2 + $0x10] sm:$0xff] %vm692, %v5798
        %5815 = vst.msk [vmem:[#allocation2 + $0x18] sm:$0xff] %vm692, %v5799
        %5816 = vst.msk [vmem:[#allocation2 + $0x20] sm:$0xff] %vm692, %v5800
        %5817 = vst.msk [vmem:[#allocation2 + $0x28] sm:$0xff] %vm692, %v5801
        %5818 = vst.msk [vmem:[#allocation2 + $0x30] sm:$0xff] %vm692, %v5802
        %5819 = vst.msk [vmem:[#allocation2 + $0x38] sm:$0xff] %vm692, %v5803
        %5820 = vst.msk [vmem:[#allocation2 + $0x40] sm:$0xff] %vm692, %v5804
        %5821 = vst.msk [vmem:[#allocation2 + $0x48] sm:$0xff] %vm692, %v5805
        %5822 = vst.msk [vmem:[#allocation2 + $0x50] sm:$0xff] %vm692, %v5806
        %5823 = vst.msk [vmem:[#allocation2 + $0x58] sm:$0xff] %vm692, %v5807
        %5824 = vst.msk [vmem:[#allocation2 + $0x60] sm:$0xff] %vm692, %v5808
        %5825 = vst.msk [vmem:[#allocation2 + $0x68] sm:$0xff] %vm692, %v5809
        %5826 = vst.msk [vmem:[#allocation2 + $0x70] sm:$0xff] %vm692, %v5810
        %5827 = vst.msk [vmem:[#allocation2 + $0x78] sm:$0xff] %vm692, %v5811
        %p5828 = scmp.eq.s32.totalorder %s39, 7
        // Predicated region
        $region117: #{tpu_custom_call.1} parent=83 // pred_check
          %p5829 = pneg %p5828
        $region118: #{tpu_custom_call.1} parent=83 // pred_check_branch
          %5831 = sbr.rel (%p5829) target = $region120
        $region119: #{tpu_custom_call.1} parent=83 // pred_region
          %v5832 = vld [vmem:[#allocation2] sm:$0xff]
          %v5833 = vld [vmem:[#allocation2 + $0x8] sm:$0xff]
          %v5834 = vld [vmem:[#allocation2 + $0x10] sm:$0xff]
          %v5835 = vld [vmem:[#allocation2 + $0x18] sm:$0xff]
          %v5836 = vld [vmem:[#allocation2 + $0x20] sm:$0xff]
          %v5837 = vld [vmem:[#allocation2 + $0x28] sm:$0xff]
          %v5838 = vld [vmem:[#allocation2 + $0x30] sm:$0xff]
          %v5839 = vld [vmem:[#allocation2 + $0x38] sm:$0xff]
          %v5840 = vld [vmem:[#allocation2 + $0x40] sm:$0xff]
          %v5841 = vld [vmem:[#allocation2 + $0x48] sm:$0xff]
          %v5842 = vld [vmem:[#allocation2 + $0x50] sm:$0xff]
          %v5843 = vld [vmem:[#allocation2 + $0x58] sm:$0xff]
          %v5844 = vld [vmem:[#allocation2 + $0x60] sm:$0xff]
          %v5845 = vld [vmem:[#allocation2 + $0x68] sm:$0xff]
          %v5846 = vld [vmem:[#allocation2 + $0x70] sm:$0xff]
          %v5847 = vld [vmem:[#allocation2 + $0x78] sm:$0xff]
          %v5848 = vld [vmem:[%s12] sm:$0x1]
          %v5849 = vld [vmem:[%s13] sm:$0x1]
          %v5850 = vsel %vm692, %v5832, 0.0
          %5851 = vadd.xlane.f32.xlu0 %v5850
          %v5852 = vpop.xlane.xlu0 %5851
          %v5853 = vsel %vm692, %v5833, 0.0
          %5854 = vadd.xlane.f32.xlu0 %v5853
          %v5855 = vpop.xlane.xlu0 %5854
          %v5856 = vsel %vm692, %v5834, 0.0
          %5857 = vadd.xlane.f32.xlu0 %v5856
          %v5858 = vpop.xlane.xlu0 %5857
          %v5859 = vsel %vm692, %v5835, 0.0
          %5860 = vadd.xlane.f32.xlu0 %v5859
          %v5861 = vpop.xlane.xlu0 %5860
          %v5862 = vsel %vm692, %v5836, 0.0
          %5863 = vadd.xlane.f32.xlu0 %v5862
          %v5864 = vpop.xlane.xlu0 %5863
          %v5865 = vsel %vm692, %v5837, 0.0
          %5866 = vadd.xlane.f32.xlu0 %v5865
          %v5867 = vpop.xlane.xlu0 %5866
          %v5868 = vsel %vm692, %v5838, 0.0
          %5869 = vadd.xlane.f32.xlu0 %v5868
          %v5870 = vpop.xlane.xlu0 %5869
          %v5871 = vsel %vm692, %v5839, 0.0
          %5872 = vadd.xlane.f32.xlu0 %v5871
          %v5873 = vpop.xlane.xlu0 %5872
          %v5874 = vsel %vm692, %v5840, 0.0
          %5875 = vadd.xlane.f32.xlu0 %v5874
          %v5876 = vpop.xlane.xlu0 %5875
          %v5877 = vsel %vm692, %v5841, 0.0
          %5878 = vadd.xlane.f32.xlu0 %v5877
          %v5879 = vpop.xlane.xlu0 %5878
          %v5880 = vsel %vm692, %v5842, 0.0
          %5881 = vadd.xlane.f32.xlu0 %v5880
          %v5882 = vpop.xlane.xlu0 %5881
          %v5883 = vsel %vm692, %v5843, 0.0
          %5884 = vadd.xlane.f32.xlu0 %v5883
          %v5885 = vpop.xlane.xlu0 %5884
          %v5886 = vsel %vm692, %v5844, 0.0
          %5887 = vadd.xlane.f32.xlu0 %v5886
          %v5888 = vpop.xlane.xlu0 %5887
          %v5889 = vsel %vm692, %v5845, 0.0
          %5890 = vadd.xlane.f32.xlu0 %v5889
          %v5891 = vpop.xlane.xlu0 %5890
          %v5892 = vsel %vm692, %v5846, 0.0
          %5893 = vadd.xlane.f32.xlu0 %v5892
          %v5894 = vpop.xlane.xlu0 %5893
          %v5895 = vsel %vm692, %v5847, 0.0
          %5896 = vadd.xlane.f32.xlu0 %v5895
          %v5897 = vpop.xlane.xlu0 %5896
          %v5898 = vmul.f32 %v5852, %v741
          %v5899 = vmul.f32 %v5855, %v741
          %v5900 = vmul.f32 %v5858, %v741
          %v5901 = vmul.f32 %v5861, %v741
          %v5902 = vmul.f32 %v5864, %v741
          %v5903 = vmul.f32 %v5867, %v741
          %v5904 = vmul.f32 %v5870, %v741
          %v5905 = vmul.f32 %v5873, %v741
          %v5906 = vmul.f32 %v5876, %v741
          %v5907 = vmul.f32 %v5879, %v741
          %v5908 = vmul.f32 %v5882, %v741
          %v5909 = vmul.f32 %v5885, %v741
          %v5910 = vmul.f32 %v5888, %v741
          %v5911 = vmul.f32 %v5891, %v741
          %v5912 = vmul.f32 %v5894, %v741
          %v5913 = vmul.f32 %v5897, %v741
          %v5914 = vsub.f32 %v5832, %v5898
          %v5915 = vsub.f32 %v5833, %v5899
          %v5916 = vsub.f32 %v5834, %v5900
          %v5917 = vsub.f32 %v5835, %v5901
          %v5918 = vsub.f32 %v5836, %v5902
          %v5919 = vsub.f32 %v5837, %v5903
          %v5920 = vsub.f32 %v5838, %v5904
          %v5921 = vsub.f32 %v5839, %v5905
          %v5922 = vsub.f32 %v5840, %v5906
          %v5923 = vsub.f32 %v5841, %v5907
          %v5924 = vsub.f32 %v5842, %v5908
          %v5925 = vsub.f32 %v5843, %v5909
          %v5926 = vsub.f32 %v5844, %v5910
          %v5927 = vsub.f32 %v5845, %v5911
          %v5928 = vsub.f32 %v5846, %v5912
          %v5929 = vsub.f32 %v5847, %v5913
          %v5930 = vmul.f32 %v5914, %v5914
          %v5931 = vmul.f32 %v5915, %v5915
          %v5932 = vmul.f32 %v5916, %v5916
          %v5933 = vmul.f32 %v5917, %v5917
          %v5934 = vmul.f32 %v5918, %v5918
          %v5935 = vmul.f32 %v5919, %v5919
          %v5936 = vmul.f32 %v5920, %v5920
          %v5937 = vmul.f32 %v5921, %v5921
          %v5938 = vmul.f32 %v5922, %v5922
          %v5939 = vmul.f32 %v5923, %v5923
          %v5940 = vmul.f32 %v5924, %v5924
          %v5941 = vmul.f32 %v5925, %v5925
          %v5942 = vmul.f32 %v5926, %v5926
          %v5943 = vmul.f32 %v5927, %v5927
          %v5944 = vmul.f32 %v5928, %v5928
          %v5945 = vmul.f32 %v5929, %v5929
          %v5946 = vsel %vm692, %v5930, 0.0
          %5947 = vadd.xlane.f32.xlu0 %v5946
          %v5948 = vpop.xlane.xlu0 %5947
          %v5949 = vsel %vm692, %v5931, 0.0
          %5950 = vadd.xlane.f32.xlu0 %v5949
          %v5951 = vpop.xlane.xlu0 %5950
          %v5952 = vsel %vm692, %v5932, 0.0
          %5953 = vadd.xlane.f32.xlu0 %v5952
          %v5954 = vpop.xlane.xlu0 %5953
          %v5955 = vsel %vm692, %v5933, 0.0
          %5956 = vadd.xlane.f32.xlu0 %v5955
          %v5957 = vpop.xlane.xlu0 %5956
          %v5958 = vsel %vm692, %v5934, 0.0
          %5959 = vadd.xlane.f32.xlu0 %v5958
          %v5960 = vpop.xlane.xlu0 %5959
          %v5961 = vsel %vm692, %v5935, 0.0
          %5962 = vadd.xlane.f32.xlu0 %v5961
          %v5963 = vpop.xlane.xlu0 %5962
          %v5964 = vsel %vm692, %v5936, 0.0
          %5965 = vadd.xlane.f32.xlu0 %v5964
          %v5966 = vpop.xlane.xlu0 %5965
          %v5967 = vsel %vm692, %v5937, 0.0
          %5968 = vadd.xlane.f32.xlu0 %v5967
          %v5969 = vpop.xlane.xlu0 %5968
          %v5970 = vsel %vm692, %v5938, 0.0
          %5971 = vadd.xlane.f32.xlu0 %v5970
          %v5972 = vpop.xlane.xlu0 %5971
          %v5973 = vsel %vm692, %v5939, 0.0
          %5974 = vadd.xlane.f32.xlu0 %v5973
          %v5975 = vpop.xlane.xlu0 %5974
          %v5976 = vsel %vm692, %v5940, 0.0
          %5977 = vadd.xlane.f32.xlu0 %v5976
          %v5978 = vpop.xlane.xlu0 %5977
          %v5979 = vsel %vm692, %v5941, 0.0
          %5980 = vadd.xlane.f32.xlu0 %v5979
          %v5981 = vpop.xlane.xlu0 %5980
          %v5982 = vsel %vm692, %v5942, 0.0
          %5983 = vadd.xlane.f32.xlu0 %v5982
          %v5984 = vpop.xlane.xlu0 %5983
          %v5985 = vsel %vm692, %v5943, 0.0
          %5986 = vadd.xlane.f32.xlu0 %v5985
          %v5987 = vpop.xlane.xlu0 %5986
          %v5988 = vsel %vm692, %v5944, 0.0
          %5989 = vadd.xlane.f32.xlu0 %v5988
          %v5990 = vpop.xlane.xlu0 %5989
          %v5991 = vsel %vm692, %v5945, 0.0
          %5992 = vadd.xlane.f32.xlu0 %v5991
          %v5993 = vpop.xlane.xlu0 %5992
          %v5994 = vmul.f32 %v5948, %v741
          %v5995 = vmul.f32 %v5951, %v741
          %v5996 = vmul.f32 %v5954, %v741
          %v5997 = vmul.f32 %v5957, %v741
          %v5998 = vmul.f32 %v5960, %v741
          %v5999 = vmul.f32 %v5963, %v741
          %v6000 = vmul.f32 %v5966, %v741
          %v6001 = vmul.f32 %v5969, %v741
          %v6002 = vmul.f32 %v5972, %v741
          %v6003 = vmul.f32 %v5975, %v741
          %v6004 = vmul.f32 %v5978, %v741
          %v6005 = vmul.f32 %v5981, %v741
          %v6006 = vmul.f32 %v5984, %v741
          %v6007 = vmul.f32 %v5987, %v741
          %v6008 = vmul.f32 %v5990, %v741
          %v6009 = vmul.f32 %v5993, %v741
          %v6010 = vadd.f32 %v5994, 1e-05
          %v6011 = vadd.f32 %v5995, 1e-05
          %v6012 = vadd.f32 %v5996, 1e-05
          %v6013 = vadd.f32 %v5997, 1e-05
          %v6014 = vadd.f32 %v5998, 1e-05
          %v6015 = vadd.f32 %v5999, 1e-05
          %v6016 = vadd.f32 %v6000, 1e-05
          %v6017 = vadd.f32 %v6001, 1e-05
          %v6018 = vadd.f32 %v6002, 1e-05
          %v6019 = vadd.f32 %v6003, 1e-05
          %v6020 = vadd.f32 %v6004, 1e-05
          %v6021 = vadd.f32 %v6005, 1e-05
          %v6022 = vadd.f32 %v6006, 1e-05
          %v6023 = vadd.f32 %v6007, 1e-05
          %v6024 = vadd.f32 %v6008, 1e-05
          %v6025 = vadd.f32 %v6009, 1e-05
          %v6026 = vrsqrt.pop %v6010
          %v6027 = vrsqrt.pop %v6011
          %v6028 = vrsqrt.pop %v6012
          %v6029 = vrsqrt.pop %v6013
          %v6030 = vrsqrt.pop %v6014
          %v6031 = vrsqrt.pop %v6015
          %v6032 = vrsqrt.pop %v6016
          %v6033 = vrsqrt.pop %v6017
          %v6034 = vrsqrt.pop %v6018
          %v6035 = vrsqrt.pop %v6019
          %v6036 = vrsqrt.pop %v6020
          %v6037 = vrsqrt.pop %v6021
          %v6038 = vrsqrt.pop %v6022
          %v6039 = vrsqrt.pop %v6023
          %v6040 = vrsqrt.pop %v6024
          %v6041 = vrsqrt.pop %v6025
          %v6042 = vmul.f32 %v5914, %v6026
          %v6043 = vmul.f32 %v5915, %v6027
          %v6044 = vmul.f32 %v5916, %v6028
          %v6045 = vmul.f32 %v5917, %v6029
          %v6046 = vmul.f32 %v5918, %v6030
          %v6047 = vmul.f32 %v5919, %v6031
          %v6048 = vmul.f32 %v5920, %v6032
          %v6049 = vmul.f32 %v5921, %v6033
          %v6050 = vmul.f32 %v5922, %v6034
          %v6051 = vmul.f32 %v5923, %v6035
          %v6052 = vmul.f32 %v5924, %v6036
          %v6053 = vmul.f32 %v5925, %v6037
          %v6054 = vmul.f32 %v5926, %v6038
          %v6055 = vmul.f32 %v5927, %v6039
          %v6056 = vmul.f32 %v5928, %v6040
          %v6057 = vmul.f32 %v5929, %v6041
          %v6059 = vlaneseq
          %v6060 = vshrl.u32 %v6059, 7
          %v6061 = vsub.s32 0, %v6060
          %v6062 = vrot.slane %v5848, %v6061
          %v6064 = vmul.f32 %v6042, %v6062
          %v6065 = vmul.f32 %v6043, %v6062
          %v6066 = vmul.f32 %v6044, %v6062
          %v6067 = vmul.f32 %v6045, %v6062
          %v6068 = vmul.f32 %v6046, %v6062
          %v6069 = vmul.f32 %v6047, %v6062
          %v6070 = vmul.f32 %v6048, %v6062
          %v6071 = vmul.f32 %v6049, %v6062
          %v6072 = vmul.f32 %v6050, %v6062
          %v6073 = vmul.f32 %v6051, %v6062
          %v6074 = vmul.f32 %v6052, %v6062
          %v6075 = vmul.f32 %v6053, %v6062
          %v6076 = vmul.f32 %v6054, %v6062
          %v6077 = vmul.f32 %v6055, %v6062
          %v6078 = vmul.f32 %v6056, %v6062
          %v6079 = vmul.f32 %v6057, %v6062
          %v6081 = vlaneseq
          %v6082 = vshrl.u32 %v6081, 7
          %v6083 = vsub.s32 0, %v6082
          %v6084 = vrot.slane %v5849, %v6083
          %v6086 = vadd.f32 %v6064, %v6084
          %v6087 = vadd.f32 %v6065, %v6084
          %v6088 = vadd.f32 %v6066, %v6084
          %v6089 = vadd.f32 %v6067, %v6084
          %v6090 = vadd.f32 %v6068, %v6084
          %v6091 = vadd.f32 %v6069, %v6084
          %v6092 = vadd.f32 %v6070, %v6084
          %v6093 = vadd.f32 %v6071, %v6084
          %v6094 = vadd.f32 %v6072, %v6084
          %v6095 = vadd.f32 %v6073, %v6084
          %v6096 = vadd.f32 %v6074, %v6084
          %v6097 = vadd.f32 %v6075, %v6084
          %v6098 = vadd.f32 %v6076, %v6084
          %v6099 = vadd.f32 %v6077, %v6084
          %v6100 = vadd.f32 %v6078, %v6084
          %v6101 = vadd.f32 %v6079, %v6084
          %v6102 = vpack.c.bf16 %v6087, %v6086
          %v6103 = vpack.c.bf16 %v6089, %v6088
          %v6104 = vpack.c.bf16 %v6091, %v6090
          %v6105 = vpack.c.bf16 %v6093, %v6092
          %v6106 = vpack.c.bf16 %v6095, %v6094
          %v6107 = vpack.c.bf16 %v6097, %v6096
          %v6108 = vpack.c.bf16 %v6099, %v6098
          %v6109 = vpack.c.bf16 %v6101, %v6100
          %v6110 = vld [vmem:[#allocation14] sm:$0xf]
          %v6111 = vld [vmem:[#allocation14 + $0x4] sm:$0xf]
          %v6112 = vld [vmem:[#allocation14 + $0x8] sm:$0xf]
          %v6113 = vld [vmem:[#allocation14 + $0xc] sm:$0xf]
          %v6114 = vld [vmem:[#allocation14 + $0x10] sm:$0xf]
          %v6115 = vld [vmem:[#allocation14 + $0x14] sm:$0xf]
          %v6116 = vld [vmem:[#allocation14 + $0x18] sm:$0xf]
          %v6117 = vld [vmem:[#allocation14 + $0x1c] sm:$0xf]
          %v6118 = vld [vmem:[%s15] sm:$0x1]
          %v6120 = vlaneseq
          %v6121 = vshrl.u32 %v6120, 7
          %v6122 = vsub.s32 0, %v6121
          %v6123 = vrot.slane %v6118, %v6122
          %v6133 = vunpack.c.l.b16 %v6110
          %v6134 = vunpack.c.l.b16 %v6111
          %v6135 = vunpack.c.l.b16 %v6112
          %v6136 = vunpack.c.l.b16 %v6113
          %v6137 = vunpack.c.l.b16 %v6114
          %v6138 = vunpack.c.l.b16 %v6115
          %v6139 = vunpack.c.l.b16 %v6116
          %v6140 = vunpack.c.l.b16 %v6117
          %v6141 = vpack.c.b16 %v6134, %v6133
          %v6142 = vpack.c.b16 %v6136, %v6135
          %v6143 = vpack.c.b16 %v6138, %v6137
          %v6144 = vpack.c.b16 %v6140, %v6139
          %v6150 = vsel %vm692, %v6102, 0
          %v6153 = vsel %vm692, %v6103, 0
          %v6156 = vsel %vm692, %v6104, 0
          %v6159 = vsel %vm692, %v6105, 0
          %v6162 = vsel %vm692, %v6106, 0
          %v6165 = vsel %vm692, %v6107, 0
          %v6168 = vsel %vm692, %v6108, 0
          %v6171 = vsel %vm692, %v6109, 0
          %6173 = vmatprep.subr.bf16.mxu0 0
          %6174 = vmatpush1.bf16.msra.mxu0 0
          %6175 = vmatprep.subr.bf16.mxu0 0
          %6176 = vmatpush1.bf16.msra.mxu0 0
          %6177 = vmatprep.subr.bf16.mxu0 0
          %6178 = vmatpush1.bf16.msra.mxu0 0
          %6179 = vmatprep.subr.bf16.mxu0 0
          %6180 = vmatpush1.bf16.msra.mxu0 0
          %6181 = vmatprep.subr.bf16.mxu0 0
          %6182 = vmatpush1.bf16.msra.mxu0 %v6144
          %6183 = vmatprep.subr.bf16.mxu0 0
          %6184 = vmatpush1.bf16.msra.mxu0 %v6143
          %6185 = vmatprep.subr.bf16.mxu0 0
          %6186 = vmatpush1.bf16.msra.mxu0 %v6142
          %6187 = vmatprep.subr.bf16.mxu0 0
          %6188 = vmatpush1.bf16.msra.mxu0 %v6141
          %6189 = vmatprep.subr.bf16.mxu0 0
          %6190 = vmatpush2.bf16.msra.mxu0 0
          %6191 = vmatprep.subr.bf16.mxu0 0
          %6192 = vmatpush2.bf16.msra.mxu0 0
          %6193 = vmatprep.subr.bf16.mxu0 0
          %6194 = vmatpush2.bf16.msra.mxu0 0
          %6195 = vmatprep.subr.bf16.mxu0 0
          %6196 = vmatpush2.bf16.msra.mxu0 0
          %6197 = vmatprep.subr.bf16.mxu0 0
          %6198 = vmatpush2.bf16.msra.mxu0 0
          %6199 = vmatprep.subr.bf16.mxu0 0
          %6200 = vmatpush2.bf16.msra.mxu0 0
          %6201 = vmatprep.subr.bf16.mxu0 0
          %6202 = vmatpush2.bf16.msra.mxu0 0
          %6203 = vmatprep.subr.bf16.mxu0 0
          %6204 = vmatpush2.bf16.msra.mxu0 0
          %6205 = vmatprep.mubr.bf16.mxu0 0
          %6206 = vmatmul.mubr.bf16.gmra.mxu0 %v6150
          %v6207 = vpop.f32.mrf.mxu0
          %v6208 = vadd.f32 %v6123, %v6207
          %v6209 = vpop.f32.mrf.mxu0
          %v6210 = vpop.f32.mrf.mxu0
          %v6211 = vadd.f32 %v6123, %v6210
          %v6212 = vpop.f32.mrf.mxu0
          %6213 = vmatprep.mubr.bf16.mxu0 0
          %6214 = vmatmul.mubr.bf16.gmra.mxu0 %v6153
          %v6215 = vpop.f32.mrf.mxu0
          %v6216 = vadd.f32 %v6123, %v6215
          %v6217 = vpop.f32.mrf.mxu0
          %v6218 = vpop.f32.mrf.mxu0
          %v6219 = vadd.f32 %v6123, %v6218
          %v6220 = vpop.f32.mrf.mxu0
          %6221 = vmatprep.mubr.bf16.mxu0 0
          %6222 = vmatmul.mubr.bf16.gmra.mxu0 %v6156
          %v6223 = vpop.f32.mrf.mxu0
          %v6224 = vadd.f32 %v6123, %v6223
          %v6225 = vpop.f32.mrf.mxu0
          %v6226 = vpop.f32.mrf.mxu0
          %v6227 = vadd.f32 %v6123, %v6226
          %v6228 = vpop.f32.mrf.mxu0
          %6229 = vmatprep.mubr.bf16.mxu0 0
          %6230 = vmatmul.mubr.bf16.gmra.mxu0 %v6159
          %v6231 = vpop.f32.mrf.mxu0
          %v6232 = vadd.f32 %v6123, %v6231
          %v6233 = vpop.f32.mrf.mxu0
          %v6234 = vpop.f32.mrf.mxu0
          %v6235 = vadd.f32 %v6123, %v6234
          %v6236 = vpop.f32.mrf.mxu0
          %6237 = vmatprep.mubr.bf16.mxu0 0
          %6238 = vmatmul.mubr.bf16.gmra.mxu0 %v6162
          %v6239 = vpop.f32.mrf.mxu0
          %v6240 = vadd.f32 %v6123, %v6239
          %v6241 = vpop.f32.mrf.mxu0
          %v6242 = vpop.f32.mrf.mxu0
          %v6243 = vadd.f32 %v6123, %v6242
          %v6244 = vpop.f32.mrf.mxu0
          %6245 = vmatprep.mubr.bf16.mxu0 0
          %6246 = vmatmul.mubr.bf16.gmra.mxu0 %v6165
          %v6247 = vpop.f32.mrf.mxu0
          %v6248 = vadd.f32 %v6123, %v6247
          %v6249 = vpop.f32.mrf.mxu0
          %v6250 = vpop.f32.mrf.mxu0
          %v6251 = vadd.f32 %v6123, %v6250
          %v6252 = vpop.f32.mrf.mxu0
          %6253 = vmatprep.mubr.bf16.mxu0 0
          %6254 = vmatmul.mubr.bf16.gmra.mxu0 %v6168
          %v6255 = vpop.f32.mrf.mxu0
          %v6256 = vadd.f32 %v6123, %v6255
          %v6257 = vpop.f32.mrf.mxu0
          %v6258 = vpop.f32.mrf.mxu0
          %v6259 = vadd.f32 %v6123, %v6258
          %v6260 = vpop.f32.mrf.mxu0
          %6261 = vmatprep.mubr.bf16.mxu0 0
          %6262 = vmatmul.mubr.bf16.gmra.mxu0 %v6171
          %v6263 = vpop.f32.mrf.mxu0
          %v6264 = vadd.f32 %v6123, %v6263
          %v6265 = vpop.f32.mrf.mxu0
          %v6266 = vpop.f32.mrf.mxu0
          %v6267 = vadd.f32 %v6123, %v6266
          %v6268 = vpop.f32.mrf.mxu0
          %6269 = vdwg.mxu0
          %6270 = vst [vmem:[%s628] sm:$0xff] %v6208
          %6271 = vst [vmem:[%s628 + $0x8] sm:$0xff] %v6211
          %6272 = vst [vmem:[%s628 + $0x10] sm:$0xff] %v6216
          %6273 = vst [vmem:[%s628 + $0x18] sm:$0xff] %v6219
          %6274 = vst [vmem:[%s628 + $0x20] sm:$0xff] %v6224
          %6275 = vst [vmem:[%s628 + $0x28] sm:$0xff] %v6227
          %6276 = vst [vmem:[%s628 + $0x30] sm:$0xff] %v6232
          %6277 = vst [vmem:[%s628 + $0x38] sm:$0xff] %v6235
          %6278 = vst [vmem:[%s628 + $0x40] sm:$0xff] %v6240
          %6279 = vst [vmem:[%s628 + $0x48] sm:$0xff] %v6243
          %6280 = vst [vmem:[%s628 + $0x50] sm:$0xff] %v6248
          %6281 = vst [vmem:[%s628 + $0x58] sm:$0xff] %v6251
          %6282 = vst [vmem:[%s628 + $0x60] sm:$0xff] %v6256
          %6283 = vst [vmem:[%s628 + $0x68] sm:$0xff] %v6259
          %6284 = vst [vmem:[%s628 + $0x70] sm:$0xff] %v6264
          %6285 = vst [vmem:[%s628 + $0x78] sm:$0xff] %v6267
        $region120: #{tpu_custom_call.1} parent=83 // pred_fallthru
          _
        %s6286 = sand.u32 %s395, 1
        %s6287 = scalar_lea.sflag [#allocation5], %s6286
        %s6288 = sand.u32 %s395, 1
        %s6289 = smul.addr %s6288, 128
        %s6290 = scalar_lea.vmem [#allocation15], %s6289
        // Predicated region
        $region121: #{tpu_custom_call.1} parent=83 // pred_check
          %p6291 = pneg %p405
        $region122: #{tpu_custom_call.1} parent=83 // pred_check_branch
          %6293 = sbr.rel (%p6291) target = $region124
        $region123: #{tpu_custom_call.1} parent=83 // pred_region
          %s6295 = ssub.s32 2048, 2048
          %6296 = vsyncadd %s6287, %s6295
          %s6297 = smul.addr %s38, 16
          %s6298 = smul.addr %s6297, 128
          %s6299 = scalar_lea.hbm %s16, %s6298
          %s6300 = sshll.u32 %s6290, 4
          %s6301 = int_to_ptr.vmem [resolvable:$true] %s6300
          %6306 = dma.vmem_to_hbm [thread:$0]  %s6301, 2048, %s6299, %s6287, 128, 128, 8
        $region124: #{tpu_custom_call.1} parent=83 // pred_fallthru
          _
      $region84: #{tpu_custom_call.1} parent=5 // pred_fallthru
        _
      %p6307 = scmp.le.s32.totalorder 2, %s29
      // Predicated region
      $region125: #{tpu_custom_call.1} parent=5 // pred_check
        %p6308 = pneg %p6307
      $region126: #{tpu_custom_call.1} parent=5 // pred_check_branch
        %6310 = sbr.rel (%p6308) target = $region128
      $region127: #{tpu_custom_call.1} parent=5 // pred_region
        %s6311 = ssub.s32 %s29, 2
        // Predicated region
        $region129: #{tpu_custom_call.1} parent=127 // pred_check
          %p6312 = pneg %p411
        $region130: #{tpu_custom_call.1} parent=127 // pred_check_branch
          %6314 = sbr.rel (%p6312) target = $region132
        $region131: #{tpu_custom_call.1} parent=127 // pred_region
          %s6315 = sand.u32 %s396, 1
          %s6316 = scalar_lea.sflag [#allocation5], %s6315
          %s6317 = sand.u32 %s396, 1
          %s6318 = smul.addr %s6317, 128
          %s6319 = scalar_lea.vmem [#allocation15], %s6318
          %6320 = dma.done %s6316, 2048
        $region132: #{tpu_custom_call.1} parent=127 // pred_fallthru
          _
      $region128: #{tpu_custom_call.1} parent=5 // pred_fallthru
        _
    $region6: #{tpu_custom_call.1} parent=1 // loop_footer
      %s33 = sadd.s32 1, %s29
    $region7: #{tpu_custom_call.1} parent=1 // loop_footer_branch
      %28 = sbr.rel target = $region3
    $region8: #{tpu_custom_call.1} parent=1 // loop_exit
      _
    %6321 = vsyncpa [#allocation4], 1
    %s6322 = scalar_lea.sflag [#allocation4], 1
    %6323 = vsyncpa %s6322, 1
    %6324 = vsyncpa [#allocation7], 1
    %6325 = vsyncpa [#allocation10], 1
    %6326 = vsyncpa [#allocation13], 1
    %6327 = vsyncpa [#allocation5], 1
    %s6328 = scalar_lea.sflag [#allocation5], 1
    %6329 = vsyncpa %s6328, 1

</llo_original>
